<compile_context>
chip_gen: v7x
topology: tpu7x:2x2x1
jax: 0.10.0
libtpu: 0.0.40
codegen_flags: <defaults>
</compile_context>

<pallas_src>
import functools

import jax
import jax.numpy as jnp
import numpy as np
from jax.experimental import pallas as pl
from jax.experimental.pallas import tpu as pltpu


# ----------------------------------------------------------------------------
# Fused kernel: 2 bidirectional LSTM layers + final linear, all in VMEM.
# Gate-column layout everywhere (8H):  [i_f,i_b | f_f,f_b | o_f,o_b | g_f,g_b]
# ----------------------------------------------------------------------------
def _bilstm_fused_kernel(
    xcat_ref,    # (T*BP, 2*Din)  row block t = [x(t) | x(T-1-t)], rows (t, b)
    wih0_ref,    # (2*Din, 8H)    rows [0:Din]->fwd cols, [Din:2Din]->bwd cols
    whh0_ref,    # (2H, 8H)       block-diag: rows[0:H]=h_f->fwd cols, rows[H:2H]=h_b->bwd cols
    b0_ref,      # (1, 8H)        combined bias (b_ih + b_hh), both directions
    wih1_ref,    # (4H, 8H)       rows [0:2H]=y0(t)->fwd cols, [2H:4H]=y0(T-1-t)->bwd cols
    whh1_ref,    # (2H, 8H)
    b1_ref,      # (1, 8H)
    wfc_ref,     # (2H, Dout)     final linear weight (transposed)
    bfc_ref,     # (1, Dout)
    out_ref,     # (T*BP, Dout)
    xp_ref,      # (T*BP, 8H)  VMEM scratch: hoisted gate projection (reused per layer)
    y0_ref,      # (T*BP, 4H)  VMEM scratch: layer-0 output, cols[0:2H]=y0(t), cols[2H:4H]=y0(T-1-t)
    y1_ref,      # (T*BP, 2H)  VMEM scratch: layer-1 output (plain time order)
    *, BP: int, T: int, H: int,
):
    f32 = jnp.float32

    def recurrence(whh_ref, write_step):
        # Combined carried state for both directions (no per-step lane concat).
        hcat = jnp.zeros((BP, 2 * H), f32)   # [h_fwd | h_bwd]
        ccat = jnp.zeros((BP, 2 * H), f32)
        for t in range(T):                    # static unroll (T=8)
            # one fused matmul per step; weights re-read from VMEM each iteration
            g = xp_ref[t * BP:(t + 1) * BP, :] + jnp.dot(
                hcat, whh_ref[...], preferred_element_type=f32)        # (BP, 8H)
            # sigmoid (i, f, o for both dirs) via single tanh; tanh for cell gate
            sg = 0.5 * jnp.tanh(0.5 * g[:, 0:6 * H]) + 0.5             # (BP, 6H)
            gg = jnp.tanh(g[:, 6 * H:8 * H])                            # (BP, 2H)
            i_g = sg[:, 0:2 * H]
            f_g = sg[:, 2 * H:4 * H]
            o_g = sg[:, 4 * H:6 * H]
            ccat = f_g * ccat + i_g * gg
            hcat = o_g * jnp.tanh(ccat)
            write_step(t, hcat)

    # ---------------- layer 0 ----------------
    # Hoisted projection (bwd half already time-reversed by xcat construction).
    xp_ref[...] = jnp.dot(xcat_ref[...], wih0_ref[...],
                          preferred_element_type=f32) + b0_ref[...]

    def write0(t, hcat):
        tb = T - 1 - t
        h_f = hcat[:, 0:H]          # fwd output for time t
        h_b = hcat[:, H:2 * H]      # bwd output for time T-1-t
        # plain time order (feeds fwd direction of layer 1)
        y0_ref[t * BP:(t + 1) * BP, 0:H] = h_f
        y0_ref[tb * BP:(tb + 1) * BP, H:2 * H] = h_b
        # time-reversed copy (feeds bwd direction of layer 1, no shuffle later)
        y0_ref[tb * BP:(tb + 1) * BP, 2 * H:3 * H] = h_f
        y0_ref[t * BP:(t + 1) * BP, 3 * H:4 * H] = h_b

    recurrence(whh0_ref, write0)

    # ---------------- layer 1 ----------------
    xp_ref[...] = jnp.dot(y0_ref[...], wih1_ref[...],
                          preferred_element_type=f32) + b1_ref[...]

    def write1(t, hcat):
        tb = T - 1 - t
        y1_ref[t * BP:(t + 1) * BP, 0:H] = hcat[:, 0:H]
        y1_ref[tb * BP:(tb + 1) * BP, H:2 * H] = hcat[:, H:2 * H]

    recurrence(whh1_ref, write1)

    # ---------------- final fully-connected layer ----------------
    out_ref[...] = (jnp.dot(y1_ref[...], wfc_ref[...],
                            preferred_element_type=f32)
                    + bfc_ref[...]).astype(out_ref.dtype)


# ----------------------------------------------------------------------------
# Wrapper: batch-first (B, T, Din) -> (B, T, Din), one pallas_call.
# ----------------------------------------------------------------------------
def bilstm_model(x, packed):
    B, T, d_in = x.shape
    H = packed["l0"]["whh"].shape[0] // 2
    d_out = packed["w_fc"].shape[1]
    BP = 8                                   # pad batch to the 8-sublane granule
    assert B <= BP, "this demo kernel assumes batch <= 8 (one sublane tile)"

    x32 = x.astype(jnp.float32)
    x_pad = jnp.pad(x32, ((0, BP - B), (0, 0), (0, 0)))      # (BP, T, Din), zero rows are dummies
    xt = jnp.transpose(x_pad, (1, 0, 2))                      # (T, BP, Din)
    # row block t = [x(t) | x(T-1-t)]  -> bwd direction sees a reversed stream
    xcat = jnp.concatenate([xt, xt[::-1]], axis=-1).reshape(T * BP, 2 * d_in)

    kernel = functools.partial(_bilstm_fused_kernel, BP=BP, T=T, H=H)
    vmem = pl.BlockSpec(memory_space=pltpu.MemorySpace.VMEM)
    out_flat = pl.pallas_call(
        kernel,
        out_shape=jax.ShapeDtypeStruct((T * BP, d_out), jnp.float32),
        in_specs=[vmem] * 9,
        out_specs=vmem,
        scratch_shapes=[pltpu.VMEM((T * BP, 8 * H), jnp.float32),   # xp
                        pltpu.VMEM((T * BP, 4 * H), jnp.float32),   # y0 (both orderings)
                        pltpu.VMEM((T * BP, 2 * H), jnp.float32)],  # y1
    )(xcat,
      packed["l0"]["wih"], packed["l0"]["whh"], packed["l0"]["b"],
      packed["l1"]["wih"], packed["l1"]["whh"], packed["l1"]["b"],
      packed["w_fc"], packed["b_fc"])

    out = out_flat.reshape(T, BP, d_out)[:, :B, :]            # drop padded batch rows
    return jnp.transpose(out, (1, 0, 2))                      # (B, T, Dout)


# ----------------------------------------------------------------------------
# Parameter init: PyTorch-style U(-1/sqrt(H), 1/sqrt(H)).  Returns both the
# raw torch-layout weights (for the pure-JAX reference) and the pre-packed
# layouts the fused kernel expects.
# ----------------------------------------------------------------------------
def _reorder_ifog(w, H):
    # torch gate row order [i, f, g, o] -> kernel order [i, f, o, g]
    return jnp.concatenate([w[0:H], w[H:2 * H], w[3 * H:4 * H], w[2 * H:3 * H]], axis=0)


def _interleave_dirs(wf, wb, H):
    # wf, wb: (rows, 4H), cols ordered [i, f, o, g]
    # -> (rows, 8H), cols [i_f,i_b | f_f,f_b | o_f,o_b | g_f,g_b]
    parts = []
    for gt in range(4):
        parts.append(wf[:, gt * H:(gt + 1) * H])
        parts.append(wb[:, gt * H:(gt + 1) * H])
    return jnp.concatenate(parts, axis=1)


def _pack_layer(raw_f, raw_b, H):
    wih_f, whh_f, bih_f, bhh_f = raw_f
    wih_b, whh_b, bih_b, bhh_b = raw_b
    wih_f_t = _reorder_ifog(wih_f, H).T      # (din, 4H)
    wih_b_t = _reorder_ifog(wih_b, H).T
    whh_f_t = _reorder_ifog(whh_f, H).T      # (H, 4H)
    whh_b_t = _reorder_ifog(whh_b, H).T
    b_f = _reorder_ifog((bih_f + bhh_f)[:, None], H)[:, 0]    # (4H,)
    b_b = _reorder_ifog((bih_b + bhh_b)[:, None], H)[:, 0]

    # extended input->gate weight: rows [0:din] feed fwd cols, rows [din:2din] feed bwd cols
    wih_ext = _interleave_dirs(
        jnp.concatenate([wih_f_t, jnp.zeros_like(wih_b_t)], axis=0),
        jnp.concatenate([jnp.zeros_like(wih_f_t), wih_b_t], axis=0), H)   # (2*din, 8H)
    # block-diag recurrent weight: rows [0:H]=h_f -> fwd cols, rows [H:2H]=h_b -> bwd cols
    whh_blk = _interleave_dirs(
        jnp.concatenate([whh_f_t, jnp.zeros_like(whh_b_t)], axis=0),
        jnp.concatenate([jnp.zeros_like(whh_f_t), whh_b_t], axis=0), H)   # (2H, 8H)
    b = _interleave_dirs(b_f[None, :], b_b[None, :], H)                    # (1, 8H)
    return dict(wih=wih_ext, whh=whh_blk, b=b)


def init_params(key, input_size=3, hidden_size=64, num_layers=2):
    assert num_layers == 2, "fused kernel is specialized for num_layers=2"
    H = hidden_size
    k = 1.0 / float(H) ** 0.5

    def uni(key, shape):
        return jax.random.uniform(key, shape, minval=-k, maxval=k, dtype=jnp.float32)

    def lstm_dir(key, din):
        key, k1, k2, k3, k4 = jax.random.split(key, 5)
        return key, (uni(k1, (4 * H, din)), uni(k2, (4 * H, H)),
                     uni(k3, (4 * H,)), uni(k4, (4 * H,)))

    key, l0f = lstm_dir(key, input_size)
    key, l0b = lstm_dir(key, input_size)
    key, l1f = lstm_dir(key, 2 * H)
    key, l1b = lstm_dir(key, 2 * H)

    kf = 1.0 / float(2 * H) ** 0.5
    key, k1, k2 = jax.random.split(key, 3)
    w_fc = jax.random.uniform(k1, (input_size, 2 * H), minval=-kf, maxval=kf, dtype=jnp.float32)
    b_fc = jax.random.uniform(k2, (input_size,), minval=-kf, maxval=kf, dtype=jnp.float32)

    packed = dict(l0=_pack_layer(l0f, l0b, H),
                  l1=_pack_layer(l1f, l1b, H),
                  w_fc=w_fc.T,                      # (2H, Dout)
                  b_fc=b_fc.reshape(1, -1))         # (1, Dout)
    raw = dict(layers=[(l0f, l0b), (l1f, l1b)], w_fc=w_fc, b_fc=b_fc)
    return packed, raw


# ----------------------------------------------------------------------------
# Pure-JAX reference (torch layouts / gate order), used only for validation.
# ----------------------------------------------------------------------------
def _lstm_dir_ref(x_seq, wih, whh, bih, bhh):
    H = whh.shape[1]
    Bsz = x_seq.shape[1]

    def step(carry, x_t):
        h, c = carry
        gates = x_t @ wih.T + bih + h @ whh.T + bhh
        i = jax.nn.sigmoid(gates[:, 0:H])
        f = jax.nn.sigmoid(gates[:, H:2 * H])
        g = jnp.tanh(gates[:, 2 * H:3 * H])
        o = jax.nn.sigmoid(gates[:, 3 * H:4 * H])
        c = f * c + i * g
        h = o * jnp.tanh(c)
        return (h, c), h

    init = (jnp.zeros((Bsz, H), jnp.float32), jnp.zeros((Bsz, H), jnp.float32))
    _, ys = jax.lax.scan(step, init, x_seq)
    return ys


def bilstm_reference(x, raw):
    xt = jnp.transpose(x.astype(jnp.float32), (1, 0, 2))   # (T, B, Din)
    h = xt
    for (fwd, bwd) in raw["layers"]:
        yf = _lstm_dir_ref(h, *fwd)
        yb = _lstm_dir_ref(h[::-1], *bwd)[::-1]
        h = jnp.concatenate([yf, yb], axis=-1)
    out = h @ raw["w_fc"].T + raw["b_fc"]
    return jnp.transpose(out, (1, 0, 2))                    # (B, T, Dout)


if __name__ == "__main__":
    key = jax.random.PRNGKey(0)
    kx, kp = jax.random.split(key)

    B, T, D_IN, HIDDEN, LAYERS = 2, 8, 3, 64, 2   # module defaults: input=3, hidden=64, 2 layers
    x = jax.random.normal(kx, (B, T, D_IN), dtype=jnp.float32)
    packed, raw = init_params(kp, input_size=D_IN, hidden_size=HIDDEN, num_layers=LAYERS)

    out = jax.jit(bilstm_model)(x, packed)
    out = jax.block_until_ready(out)
    assert out.shape == (B, T, D_IN), out.shape

    with jax.default_matmul_precision("highest"):
        ref = bilstm_reference(x, raw)
    np.testing.assert_allclose(np.asarray(out), np.asarray(ref), rtol=5e-3, atol=5e-3)

    print("KERNEL_OK")
</pallas_src>

<mosaic_0001>
module attributes {stable_mosaic.version = 11 : i64} {
  func.func @_bilstm_fused_kernel(%arg0: memref<64x6xf32, #tpu.memory_space<vmem>>, %arg1: memref<6x512xf32, #tpu.memory_space<vmem>>, %arg2: memref<128x512xf32, #tpu.memory_space<vmem>>, %arg3: memref<1x512xf32, #tpu.memory_space<vmem>>, %arg4: memref<256x512xf32, #tpu.memory_space<vmem>>, %arg5: memref<128x512xf32, #tpu.memory_space<vmem>>, %arg6: memref<1x512xf32, #tpu.memory_space<vmem>>, %arg7: memref<128x3xf32, #tpu.memory_space<vmem>>, %arg8: memref<1x3xf32, #tpu.memory_space<vmem>>, %arg9: memref<64x3xf32, #tpu.memory_space<vmem>>, %arg10: memref<64x512xf32, #tpu.memory_space<vmem>>, %arg11: memref<64x256xf32, #tpu.memory_space<vmem>>, %arg12: memref<64x128xf32, #tpu.memory_space<vmem>>) attributes {dimension_semantics = [], scalar_prefetch = 0 : i64, scratch_operands = 3 : i64, tpu.core_type = #tpu.core_type<tc>} {
    %c0 = arith.constant 0 : index
    %c0_0 = arith.constant 0 : index
    %0 = vector.load %arg0[%c0, %c0_0] : memref<64x6xf32, #tpu.memory_space<vmem>>, vector<64x6xf32>
    %c0_1 = arith.constant 0 : index
    %c0_2 = arith.constant 0 : index
    %1 = vector.load %arg1[%c0_1, %c0_2] : memref<6x512xf32, #tpu.memory_space<vmem>>, vector<6x512xf32>
    %cst = arith.constant dense<0.000000e+00> : vector<64x512xf32>
    %2 = tpu.matmul %0, %1, %cst {dimension_numbers = #tpu.dot_dimension_numbers<[1], [0], [0], [1], [0, 0, 1, 1], [], []>} : vector<64x6xf32>, vector<6x512xf32>, vector<64x512xf32> -> vector<64x512xf32>
    %c0_3 = arith.constant 0 : index
    %c0_4 = arith.constant 0 : index
    %3 = vector.load %arg3[%c0_3, %c0_4] : memref<1x512xf32, #tpu.memory_space<vmem>>, vector<1x512xf32>
    %4 = vector.broadcast %3 : vector<1x512xf32> to vector<64x512xf32>
    %5 = arith.addf %2, %4 : vector<64x512xf32>
    %c0_5 = arith.constant 0 : index
    %c0_6 = arith.constant 0 : index
    %6 = vector.load %arg10[%c0_5, %c0_6] : memref<64x512xf32, #tpu.memory_space<vmem>>, vector<64x512xf32>
    tpu.vector_store %arg10[%c0_5, %c0_6], %5 {strides = array<i32>} : memref<64x512xf32, #tpu.memory_space<vmem>>, vector<64x512xf32>,
    %cst_7 = arith.constant 0.000000e+00 : f32
    %7 = vector.broadcast %cst_7 : f32 to vector<8x128xf32>
    %cst_8 = arith.constant 0.000000e+00 : f32
    %8 = vector.broadcast %cst_8 : f32 to vector<8x128xf32>
    %c0_9 = arith.constant 0 : index
    %c0_10 = arith.constant 0 : index
    %9 = vector.load %arg10[%c0_9, %c0_10] : memref<64x512xf32, #tpu.memory_space<vmem>>, vector<8x512xf32>
    %c0_11 = arith.constant 0 : index
    %c0_12 = arith.constant 0 : index
    %10 = vector.load %arg2[%c0_11, %c0_12] : memref<128x512xf32, #tpu.memory_space<vmem>>, vector<128x512xf32>
    %cst_13 = arith.constant dense<0.000000e+00> : vector<8x512xf32>
    %11 = tpu.matmul %7, %10, %cst_13 {dimension_numbers = #tpu.dot_dimension_numbers<[1], [0], [0], [1], [0, 0, 1, 1], [], []>} : vector<8x128xf32>, vector<128x512xf32>, vector<8x512xf32> -> vector<8x512xf32>
    %12 = arith.addf %9, %11 : vector<8x512xf32>
    %13 = vector.extract_strided_slice %12 {offsets = [0, 0], sizes = [8, 384], strides = [1, 1]} : vector<8x512xf32> to vector<8x384xf32>
    %cst_14 = arith.constant 5.000000e-01 : f32
    %14 = vector.broadcast %cst_14 : f32 to vector<8x384xf32>
    %15 = arith.mulf %14, %13 : vector<8x384xf32>
    %16 = math.tanh %15 : vector<8x384xf32>
    %cst_15 = arith.constant 5.000000e-01 : f32
    %17 = vector.broadcast %cst_15 : f32 to vector<8x384xf32>
    %18 = arith.mulf %17, %16 : vector<8x384xf32>
    %cst_16 = arith.constant 5.000000e-01 : f32
    %19 = vector.broadcast %cst_16 : f32 to vector<8x384xf32>
    %20 = arith.addf %18, %19 : vector<8x384xf32>
    %21 = vector.extract_strided_slice %12 {offsets = [0, 384], sizes = [8, 128], strides = [1, 1]} : vector<8x512xf32> to vector<8x128xf32>
    %22 = math.tanh %21 : vector<8x128xf32>
    %23 = vector.extract_strided_slice %20 {offsets = [0, 0], sizes = [8, 128], strides = [1, 1]} : vector<8x384xf32> to vector<8x128xf32>
    %24 = vector.extract_strided_slice %20 {offsets = [0, 128], sizes = [8, 128], strides = [1, 1]} : vector<8x384xf32> to vector<8x128xf32>
    %25 = vector.extract_strided_slice %20 {offsets = [0, 256], sizes = [8, 128], strides = [1, 1]} : vector<8x384xf32> to vector<8x128xf32>
    %26 = arith.mulf %24, %8 : vector<8x128xf32>
    %27 = arith.mulf %23, %22 : vector<8x128xf32>
    %28 = arith.addf %26, %27 : vector<8x128xf32>
    %29 = math.tanh %28 : vector<8x128xf32>
    %30 = arith.mulf %25, %29 : vector<8x128xf32>
    %31 = vector.extract_strided_slice %30 {offsets = [0, 0], sizes = [8, 64], strides = [1, 1]} : vector<8x128xf32> to vector<8x64xf32>
    %32 = vector.extract_strided_slice %30 {offsets = [0, 64], sizes = [8, 64], strides = [1, 1]} : vector<8x128xf32> to vector<8x64xf32>
    %c0_17 = arith.constant 0 : index
    %c0_18 = arith.constant 0 : index
    %33 = vector.load %arg11[%c0_17, %c0_18] : memref<64x256xf32, #tpu.memory_space<vmem>>, vector<8x64xf32>
    tpu.vector_store %arg11[%c0_17, %c0_18], %31 {strides = array<i32>} : memref<64x256xf32, #tpu.memory_space<vmem>>, vector<8x64xf32>,
    %c56 = arith.constant 56 : index
    %c64 = arith.constant 64 : index
    %34 = vector.load %arg11[%c56, %c64] : memref<64x256xf32, #tpu.memory_space<vmem>>, vector<8x64xf32>
    tpu.vector_store %arg11[%c56, %c64], %32 {strides = array<i32>} : memref<64x256xf32, #tpu.memory_space<vmem>>, vector<8x64xf32>,
    %c56_19 = arith.constant 56 : index
    %c128 = arith.constant 128 : index
    %35 = vector.load %arg11[%c56_19, %c128] : memref<64x256xf32, #tpu.memory_space<vmem>>, vector<8x64xf32>
    tpu.vector_store %arg11[%c56_19, %c128], %31 {strides = array<i32>} : memref<64x256xf32, #tpu.memory_space<vmem>>, vector<8x64xf32>,
    %c0_20 = arith.constant 0 : index
    %c192 = arith.constant 192 : index
    %36 = vector.load %arg11[%c0_20, %c192] : memref<64x256xf32, #tpu.memory_space<vmem>>, vector<8x64xf32>
    tpu.vector_store %arg11[%c0_20, %c192], %32 {strides = array<i32>} : memref<64x256xf32, #tpu.memory_space<vmem>>, vector<8x64xf32>,
    %c8 = arith.constant 8 : index
    %c0_21 = arith.constant 0 : index
    %37 = vector.load %arg10[%c8, %c0_21] : memref<64x512xf32, #tpu.memory_space<vmem>>, vector<8x512xf32>
    %c0_22 = arith.constant 0 : index
    %c0_23 = arith.constant 0 : index
    %38 = vector.load %arg2[%c0_22, %c0_23] : memref<128x512xf32, #tpu.memory_space<vmem>>, vector<128x512xf32>
    %cst_24 = arith.constant dense<0.000000e+00> : vector<8x512xf32>
    %39 = tpu.matmul %30, %38, %cst_24 {dimension_numbers = #tpu.dot_dimension_numbers<[1], [0], [0], [1], [0, 0, 1, 1], [], []>} : vector<8x128xf32>, vector<128x512xf32>, vector<8x512xf32> -> vector<8x512xf32>
    %40 = arith.addf %37, %39 : vector<8x512xf32>
    %41 = vector.extract_strided_slice %40 {offsets = [0, 0], sizes = [8, 384], strides = [1, 1]} : vector<8x512xf32> to vector<8x384xf32>
    %cst_25 = arith.constant 5.000000e-01 : f32
    %42 = vector.broadcast %cst_25 : f32 to vector<8x384xf32>
    %43 = arith.mulf %42, %41 : vector<8x384xf32>
    %44 = math.tanh %43 : vector<8x384xf32>
    %cst_26 = arith.constant 5.000000e-01 : f32
    %45 = vector.broadcast %cst_26 : f32 to vector<8x384xf32>
    %46 = arith.mulf %45, %44 : vector<8x384xf32>
    %cst_27 = arith.constant 5.000000e-01 : f32
    %47 = vector.broadcast %cst_27 : f32 to vector<8x384xf32>
    %48 = arith.addf %46, %47 : vector<8x384xf32>
    %49 = vector.extract_strided_slice %40 {offsets = [0, 384], sizes = [8, 128], strides = [1, 1]} : vector<8x512xf32> to vector<8x128xf32>
    %50 = math.tanh %49 : vector<8x128xf32>
    %51 = vector.extract_strided_slice %48 {offsets = [0, 0], sizes = [8, 128], strides = [1, 1]} : vector<8x384xf32> to vector<8x128xf32>
    %52 = vector.extract_strided_slice %48 {offsets = [0, 128], sizes = [8, 128], strides = [1, 1]} : vector<8x384xf32> to vector<8x128xf32>
    %53 = vector.extract_strided_slice %48 {offsets = [0, 256], sizes = [8, 128], strides = [1, 1]} : vector<8x384xf32> to vector<8x128xf32>
    %54 = arith.mulf %52, %28 : vector<8x128xf32>
    %55 = arith.mulf %51, %50 : vector<8x128xf32>
    %56 = arith.addf %54, %55 : vector<8x128xf32>
    %57 = math.tanh %56 : vector<8x128xf32>
    %58 = arith.mulf %53, %57 : vector<8x128xf32>
    %59 = vector.extract_strided_slice %58 {offsets = [0, 0], sizes = [8, 64], strides = [1, 1]} : vector<8x128xf32> to vector<8x64xf32>
    %60 = vector.extract_strided_slice %58 {offsets = [0, 64], sizes = [8, 64], strides = [1, 1]} : vector<8x128xf32> to vector<8x64xf32>
    %c8_28 = arith.constant 8 : index
    %c0_29 = arith.constant 0 : index
    %61 = vector.load %arg11[%c8_28, %c0_29] : memref<64x256xf32, #tpu.memory_space<vmem>>, vector<8x64xf32>
    tpu.vector_store %arg11[%c8_28, %c0_29], %59 {strides = array<i32>} : memref<64x256xf32, #tpu.memory_space<vmem>>, vector<8x64xf32>,
    %c48 = arith.constant 48 : index
    %c64_30 = arith.constant 64 : index
    %62 = vector.load %arg11[%c48, %c64_30] : memref<64x256xf32, #tpu.memory_space<vmem>>, vector<8x64xf32>
    tpu.vector_store %arg11[%c48, %c64_30], %60 {strides = array<i32>} : memref<64x256xf32, #tpu.memory_space<vmem>>, vector<8x64xf32>,
    %c48_31 = arith.constant 48 : index
    %c128_32 = arith.constant 128 : index
    %63 = vector.load %arg11[%c48_31, %c128_32] : memref<64x256xf32, #tpu.memory_space<vmem>>, vector<8x64xf32>
    tpu.vector_store %arg11[%c48_31, %c128_32], %59 {strides = array<i32>} : memref<64x256xf32, #tpu.memory_space<vmem>>, vector<8x64xf32>,
    %c8_33 = arith.constant 8 : index
    %c192_34 = arith.constant 192 : index
    %64 = vector.load %arg11[%c8_33, %c192_34] : memref<64x256xf32, #tpu.memory_space<vmem>>, vector<8x64xf32>
    tpu.vector_store %arg11[%c8_33, %c192_34], %60 {strides = array<i32>} : memref<64x256xf32, #tpu.memory_space<vmem>>, vector<8x64xf32>,
    %c16 = arith.constant 16 : index
    %c0_35 = arith.constant 0 : index
    %65 = vector.load %arg10[%c16, %c0_35] : memref<64x512xf32, #tpu.memory_space<vmem>>, vector<8x512xf32>
    %c0_36 = arith.constant 0 : index
    %c0_37 = arith.constant 0 : index
    %66 = vector.load %arg2[%c0_36, %c0_37] : memref<128x512xf32, #tpu.memory_space<vmem>>, vector<128x512xf32>
    %cst_38 = arith.constant dense<0.000000e+00> : vector<8x512xf32>
    %67 = tpu.matmul %58, %66, %cst_38 {dimension_numbers = #tpu.dot_dimension_numbers<[1], [0], [0], [1], [0, 0, 1, 1], [], []>} : vector<8x128xf32>, vector<128x512xf32>, vector<8x512xf32> -> vector<8x512xf32>
    %68 = arith.addf %65, %67 : vector<8x512xf32>
    %69 = vector.extract_strided_slice %68 {offsets = [0, 0], sizes = [8, 384], strides = [1, 1]} : vector<8x512xf32> to vector<8x384xf32>
    %cst_39 = arith.constant 5.000000e-01 : f32
    %70 = vector.broadcast %cst_39 : f32 to vector<8x384xf32>
    %71 = arith.mulf %70, %69 : vector<8x384xf32>
    %72 = math.tanh %71 : vector<8x384xf32>
    %cst_40 = arith.constant 5.000000e-01 : f32
    %73 = vector.broadcast %cst_40 : f32 to vector<8x384xf32>
    %74 = arith.mulf %73, %72 : vector<8x384xf32>
    %cst_41 = arith.constant 5.000000e-01 : f32
    %75 = vector.broadcast %cst_41 : f32 to vector<8x384xf32>
    %76 = arith.addf %74, %75 : vector<8x384xf32>
    %77 = vector.extract_strided_slice %68 {offsets = [0, 384], sizes = [8, 128], strides = [1, 1]} : vector<8x512xf32> to vector<8x128xf32>
    %78 = math.tanh %77 : vector<8x128xf32>
    %79 = vector.extract_strided_slice %76 {offsets = [0, 0], sizes = [8, 128], strides = [1, 1]} : vector<8x384xf32> to vector<8x128xf32>
    %80 = vector.extract_strided_slice %76 {offsets = [0, 128], sizes = [8, 128], strides = [1, 1]} : vector<8x384xf32> to vector<8x128xf32>
    %81 = vector.extract_strided_slice %76 {offsets = [0, 256], sizes = [8, 128], strides = [1, 1]} : vector<8x384xf32> to vector<8x128xf32>
    %82 = arith.mulf %80, %56 : vector<8x128xf32>
    %83 = arith.mulf %79, %78 : vector<8x128xf32>
    %84 = arith.addf %82, %83 : vector<8x128xf32>
    %85 = math.tanh %84 : vector<8x128xf32>
    %86 = arith.mulf %81, %85 : vector<8x128xf32>
    %87 = vector.extract_strided_slice %86 {offsets = [0, 0], sizes = [8, 64], strides = [1, 1]} : vector<8x128xf32> to vector<8x64xf32>
    %88 = vector.extract_strided_slice %86 {offsets = [0, 64], sizes = [8, 64], strides = [1, 1]} : vector<8x128xf32> to vector<8x64xf32>
    %c16_42 = arith.constant 16 : index
    %c0_43 = arith.constant 0 : index
    %89 = vector.load %arg11[%c16_42, %c0_43] : memref<64x256xf32, #tpu.memory_space<vmem>>, vector<8x64xf32>
    tpu.vector_store %arg11[%c16_42, %c0_43], %87 {strides = array<i32>} : memref<64x256xf32, #tpu.memory_space<vmem>>, vector<8x64xf32>,
    %c40 = arith.constant 40 : index
    %c64_44 = arith.constant 64 : index
    %90 = vector.load %arg11[%c40, %c64_44] : memref<64x256xf32, #tpu.memory_space<vmem>>, vector<8x64xf32>
    tpu.vector_store %arg11[%c40, %c64_44], %88 {strides = array<i32>} : memref<64x256xf32, #tpu.memory_space<vmem>>, vector<8x64xf32>,
    %c40_45 = arith.constant 40 : index
    %c128_46 = arith.constant 128 : index
    %91 = vector.load %arg11[%c40_45, %c128_46] : memref<64x256xf32, #tpu.memory_space<vmem>>, vector<8x64xf32>
    tpu.vector_store %arg11[%c40_45, %c128_46], %87 {strides = array<i32>} : memref<64x256xf32, #tpu.memory_space<vmem>>, vector<8x64xf32>,
    %c16_47 = arith.constant 16 : index
    %c192_48 = arith.constant 192 : index
    %92 = vector.load %arg11[%c16_47, %c192_48] : memref<64x256xf32, #tpu.memory_space<vmem>>, vector<8x64xf32>
    tpu.vector_store %arg11[%c16_47, %c192_48], %88 {strides = array<i32>} : memref<64x256xf32, #tpu.memory_space<vmem>>, vector<8x64xf32>,
    %c24 = arith.constant 24 : index
    %c0_49 = arith.constant 0 : index
    %93 = vector.load %arg10[%c24, %c0_49] : memref<64x512xf32, #tpu.memory_space<vmem>>, vector<8x512xf32>
    %c0_50 = arith.constant 0 : index
    %c0_51 = arith.constant 0 : index
    %94 = vector.load %arg2[%c0_50, %c0_51] : memref<128x512xf32, #tpu.memory_space<vmem>>, vector<128x512xf32>
    %cst_52 = arith.constant dense<0.000000e+00> : vector<8x512xf32>
    %95 = tpu.matmul %86, %94, %cst_52 {dimension_numbers = #tpu.dot_dimension_numbers<[1], [0], [0], [1], [0, 0, 1, 1], [], []>} : vector<8x128xf32>, vector<128x512xf32>, vector<8x512xf32> -> vector<8x512xf32>
    %96 = arith.addf %93, %95 : vector<8x512xf32>
    %97 = vector.extract_strided_slice %96 {offsets = [0, 0], sizes = [8, 384], strides = [1, 1]} : vector<8x512xf32> to vector<8x384xf32>
    %cst_53 = arith.constant 5.000000e-01 : f32
    %98 = vector.broadcast %cst_53 : f32 to vector<8x384xf32>
    %99 = arith.mulf %98, %97 : vector<8x384xf32>
    %100 = math.tanh %99 : vector<8x384xf32>
    %cst_54 = arith.constant 5.000000e-01 : f32
    %101 = vector.broadcast %cst_54 : f32 to vector<8x384xf32>
    %102 = arith.mulf %101, %100 : vector<8x384xf32>
    %cst_55 = arith.constant 5.000000e-01 : f32
    %103 = vector.broadcast %cst_55 : f32 to vector<8x384xf32>
    %104 = arith.addf %102, %103 : vector<8x384xf32>
    %105 = vector.extract_strided_slice %96 {offsets = [0, 384], sizes = [8, 128], strides = [1, 1]} : vector<8x512xf32> to vector<8x128xf32>
    %106 = math.tanh %105 : vector<8x128xf32>
    %107 = vector.extract_strided_slice %104 {offsets = [0, 0], sizes = [8, 128], strides = [1, 1]} : vector<8x384xf32> to vector<8x128xf32>
    %108 = vector.extract_strided_slice %104 {offsets = [0, 128], sizes = [8, 128], strides = [1, 1]} : vector<8x384xf32> to vector<8x128xf32>
    %109 = vector.extract_strided_slice %104 {offsets = [0, 256], sizes = [8, 128], strides = [1, 1]} : vector<8x384xf32> to vector<8x128xf32>
    %110 = arith.mulf %108, %84 : vector<8x128xf32>
    %111 = arith.mulf %107, %106 : vector<8x128xf32>
    %112 = arith.addf %110, %111 : vector<8x128xf32>
    %113 = math.tanh %112 : vector<8x128xf32>
    %114 = arith.mulf %109, %113 : vector<8x128xf32>
    %115 = vector.extract_strided_slice %114 {offsets = [0, 0], sizes = [8, 64], strides = [1, 1]} : vector<8x128xf32> to vector<8x64xf32>
    %116 = vector.extract_strided_slice %114 {offsets = [0, 64], sizes = [8, 64], strides = [1, 1]} : vector<8x128xf32> to vector<8x64xf32>
    %c24_56 = arith.constant 24 : index
    %c0_57 = arith.constant 0 : index
    %117 = vector.load %arg11[%c24_56, %c0_57] : memref<64x256xf32, #tpu.memory_space<vmem>>, vector<8x64xf32>
    tpu.vector_store %arg11[%c24_56, %c0_57], %115 {strides = array<i32>} : memref<64x256xf32, #tpu.memory_space<vmem>>, vector<8x64xf32>,
    %c32 = arith.constant 32 : index
    %c64_58 = arith.constant 64 : index
    %118 = vector.load %arg11[%c32, %c64_58] : memref<64x256xf32, #tpu.memory_space<vmem>>, vector<8x64xf32>
    tpu.vector_store %arg11[%c32, %c64_58], %116 {strides = array<i32>} : memref<64x256xf32, #tpu.memory_space<vmem>>, vector<8x64xf32>,
    %c32_59 = arith.constant 32 : index
    %c128_60 = arith.constant 128 : index
    %119 = vector.load %arg11[%c32_59, %c128_60] : memref<64x256xf32, #tpu.memory_space<vmem>>, vector<8x64xf32>
    tpu.vector_store %arg11[%c32_59, %c128_60], %115 {strides = array<i32>} : memref<64x256xf32, #tpu.memory_space<vmem>>, vector<8x64xf32>,
    %c24_61 = arith.constant 24 : index
    %c192_62 = arith.constant 192 : index
    %120 = vector.load %arg11[%c24_61, %c192_62] : memref<64x256xf32, #tpu.memory_space<vmem>>, vector<8x64xf32>
    tpu.vector_store %arg11[%c24_61, %c192_62], %116 {strides = array<i32>} : memref<64x256xf32, #tpu.memory_space<vmem>>, vector<8x64xf32>,
    %c32_63 = arith.constant 32 : index
    %c0_64 = arith.constant 0 : index
    %121 = vector.load %arg10[%c32_63, %c0_64] : memref<64x512xf32, #tpu.memory_space<vmem>>, vector<8x512xf32>
    %c0_65 = arith.constant 0 : index
    %c0_66 = arith.constant 0 : index
    %122 = vector.load %arg2[%c0_65, %c0_66] : memref<128x512xf32, #tpu.memory_space<vmem>>, vector<128x512xf32>
    %cst_67 = arith.constant dense<0.000000e+00> : vector<8x512xf32>
    %123 = tpu.matmul %114, %122, %cst_67 {dimension_numbers = #tpu.dot_dimension_numbers<[1], [0], [0], [1], [0, 0, 1, 1], [], []>} : vector<8x128xf32>, vector<128x512xf32>, vector<8x512xf32> -> vector<8x512xf32>
    %124 = arith.addf %121, %123 : vector<8x512xf32>
    %125 = vector.extract_strided_slice %124 {offsets = [0, 0], sizes = [8, 384], strides = [1, 1]} : vector<8x512xf32> to vector<8x384xf32>
    %cst_68 = arith.constant 5.000000e-01 : f32
    %126 = vector.broadcast %cst_68 : f32 to vector<8x384xf32>
    %127 = arith.mulf %126, %125 : vector<8x384xf32>
    %128 = math.tanh %127 : vector<8x384xf32>
    %cst_69 = arith.constant 5.000000e-01 : f32
    %129 = vector.broadcast %cst_69 : f32 to vector<8x384xf32>
    %130 = arith.mulf %129, %128 : vector<8x384xf32>
    %cst_70 = arith.constant 5.000000e-01 : f32
    %131 = vector.broadcast %cst_70 : f32 to vector<8x384xf32>
    %132 = arith.addf %130, %131 : vector<8x384xf32>
    %133 = vector.extract_strided_slice %124 {offsets = [0, 384], sizes = [8, 128], strides = [1, 1]} : vector<8x512xf32> to vector<8x128xf32>
    %134 = math.tanh %133 : vector<8x128xf32>
    %135 = vector.extract_strided_slice %132 {offsets = [0, 0], sizes = [8, 128], strides = [1, 1]} : vector<8x384xf32> to vector<8x128xf32>
    %136 = vector.extract_strided_slice %132 {offsets = [0, 128], sizes = [8, 128], strides = [1, 1]} : vector<8x384xf32> to vector<8x128xf32>
    %137 = vector.extract_strided_slice %132 {offsets = [0, 256], sizes = [8, 128], strides = [1, 1]} : vector<8x384xf32> to vector<8x128xf32>
    %138 = arith.mulf %136, %112 : vector<8x128xf32>
    %139 = arith.mulf %135, %134 : vector<8x128xf32>
    %140 = arith.addf %138, %139 : vector<8x128xf32>
    %141 = math.tanh %140 : vector<8x128xf32>
    %142 = arith.mulf %137, %141 : vector<8x128xf32>
    %143 = vector.extract_strided_slice %142 {offsets = [0, 0], sizes = [8, 64], strides = [1, 1]} : vector<8x128xf32> to vector<8x64xf32>
    %144 = vector.extract_strided_slice %142 {offsets = [0, 64], sizes = [8, 64], strides = [1, 1]} : vector<8x128xf32> to vector<8x64xf32>
    %c32_71 = arith.constant 32 : index
    %c0_72 = arith.constant 0 : index
    %145 = vector.load %arg11[%c32_71, %c0_72] : memref<64x256xf32, #tpu.memory_space<vmem>>, vector<8x64xf32>
    tpu.vector_store %arg11[%c32_71, %c0_72], %143 {strides = array<i32>} : memref<64x256xf32, #tpu.memory_space<vmem>>, vector<8x64xf32>,
    %c24_73 = arith.constant 24 : index
    %c64_74 = arith.constant 64 : index
    %146 = vector.load %arg11[%c24_73, %c64_74] : memref<64x256xf32, #tpu.memory_space<vmem>>, vector<8x64xf32>
    tpu.vector_store %arg11[%c24_73, %c64_74], %144 {strides = array<i32>} : memref<64x256xf32, #tpu.memory_space<vmem>>, vector<8x64xf32>,
    %c24_75 = arith.constant 24 : index
    %c128_76 = arith.constant 128 : index
    %147 = vector.load %arg11[%c24_75, %c128_76] : memref<64x256xf32, #tpu.memory_space<vmem>>, vector<8x64xf32>
    tpu.vector_store %arg11[%c24_75, %c128_76], %143 {strides = array<i32>} : memref<64x256xf32, #tpu.memory_space<vmem>>, vector<8x64xf32>,
    %c32_77 = arith.constant 32 : index
    %c192_78 = arith.constant 192 : index
    %148 = vector.load %arg11[%c32_77, %c192_78] : memref<64x256xf32, #tpu.memory_space<vmem>>, vector<8x64xf32>
    tpu.vector_store %arg11[%c32_77, %c192_78], %144 {strides = array<i32>} : memref<64x256xf32, #tpu.memory_space<vmem>>, vector<8x64xf32>,
    %c40_79 = arith.constant 40 : index
    %c0_80 = arith.constant 0 : index
    %149 = vector.load %arg10[%c40_79, %c0_80] : memref<64x512xf32, #tpu.memory_space<vmem>>, vector<8x512xf32>
    %c0_81 = arith.constant 0 : index
    %c0_82 = arith.constant 0 : index
    %150 = vector.load %arg2[%c0_81, %c0_82] : memref<128x512xf32, #tpu.memory_space<vmem>>, vector<128x512xf32>
    %cst_83 = arith.constant dense<0.000000e+00> : vector<8x512xf32>
    %151 = tpu.matmul %142, %150, %cst_83 {dimension_numbers = #tpu.dot_dimension_numbers<[1], [0], [0], [1], [0, 0, 1, 1], [], []>} : vector<8x128xf32>, vector<128x512xf32>, vector<8x512xf32> -> vector<8x512xf32>
    %152 = arith.addf %149, %151 : vector<8x512xf32>
    %153 = vector.extract_strided_slice %152 {offsets = [0, 0], sizes = [8, 384], strides = [1, 1]} : vector<8x512xf32> to vector<8x384xf32>
    %cst_84 = arith.constant 5.000000e-01 : f32
    %154 = vector.broadcast %cst_84 : f32 to vector<8x384xf32>
    %155 = arith.mulf %154, %153 : vector<8x384xf32>
    %156 = math.tanh %155 : vector<8x384xf32>
    %cst_85 = arith.constant 5.000000e-01 : f32
    %157 = vector.broadcast %cst_85 : f32 to vector<8x384xf32>
    %158 = arith.mulf %157, %156 : vector<8x384xf32>
    %cst_86 = arith.constant 5.000000e-01 : f32
    %159 = vector.broadcast %cst_86 : f32 to vector<8x384xf32>
    %160 = arith.addf %158, %159 : vector<8x384xf32>
    %161 = vector.extract_strided_slice %152 {offsets = [0, 384], sizes = [8, 128], strides = [1, 1]} : vector<8x512xf32> to vector<8x128xf32>
    %162 = math.tanh %161 : vector<8x128xf32>
    %163 = vector.extract_strided_slice %160 {offsets = [0, 0], sizes = [8, 128], strides = [1, 1]} : vector<8x384xf32> to vector<8x128xf32>
    %164 = vector.extract_strided_slice %160 {offsets = [0, 128], sizes = [8, 128], strides = [1, 1]} : vector<8x384xf32> to vector<8x128xf32>
    %165 = vector.extract_strided_slice %160 {offsets = [0, 256], sizes = [8, 128], strides = [1, 1]} : vector<8x384xf32> to vector<8x128xf32>
    %166 = arith.mulf %164, %140 : vector<8x128xf32>
    %167 = arith.mulf %163, %162 : vector<8x128xf32>
    %168 = arith.addf %166, %167 : vector<8x128xf32>
    %169 = math.tanh %168 : vector<8x128xf32>
    %170 = arith.mulf %165, %169 : vector<8x128xf32>
    %171 = vector.extract_strided_slice %170 {offsets = [0, 0], sizes = [8, 64], strides = [1, 1]} : vector<8x128xf32> to vector<8x64xf32>
    %172 = vector.extract_strided_slice %170 {offsets = [0, 64], sizes = [8, 64], strides = [1, 1]} : vector<8x128xf32> to vector<8x64xf32>
    %c40_87 = arith.constant 40 : index
    %c0_88 = arith.constant 0 : index
    %173 = vector.load %arg11[%c40_87, %c0_88] : memref<64x256xf32, #tpu.memory_space<vmem>>, vector<8x64xf32>
    tpu.vector_store %arg11[%c40_87, %c0_88], %171 {strides = array<i32>} : memref<64x256xf32, #tpu.memory_space<vmem>>, vector<8x64xf32>,
    %c16_89 = arith.constant 16 : index
    %c64_90 = arith.constant 64 : index
    %174 = vector.load %arg11[%c16_89, %c64_90] : memref<64x256xf32, #tpu.memory_space<vmem>>, vector<8x64xf32>
    tpu.vector_store %arg11[%c16_89, %c64_90], %172 {strides = array<i32>} : memref<64x256xf32, #tpu.memory_space<vmem>>, vector<8x64xf32>,
    %c16_91 = arith.constant 16 : index
    %c128_92 = arith.constant 128 : index
    %175 = vector.load %arg11[%c16_91, %c128_92] : memref<64x256xf32, #tpu.memory_space<vmem>>, vector<8x64xf32>
    tpu.vector_store %arg11[%c16_91, %c128_92], %171 {strides = array<i32>} : memref<64x256xf32, #tpu.memory_space<vmem>>, vector<8x64xf32>,
    %c40_93 = arith.constant 40 : index
    %c192_94 = arith.constant 192 : index
    %176 = vector.load %arg11[%c40_93, %c192_94] : memref<64x256xf32, #tpu.memory_space<vmem>>, vector<8x64xf32>
    tpu.vector_store %arg11[%c40_93, %c192_94], %172 {strides = array<i32>} : memref<64x256xf32, #tpu.memory_space<vmem>>, vector<8x64xf32>,
    %c48_95 = arith.constant 48 : index
    %c0_96 = arith.constant 0 : index
    %177 = vector.load %arg10[%c48_95, %c0_96] : memref<64x512xf32, #tpu.memory_space<vmem>>, vector<8x512xf32>
    %c0_97 = arith.constant 0 : index
    %c0_98 = arith.constant 0 : index
    %178 = vector.load %arg2[%c0_97, %c0_98] : memref<128x512xf32, #tpu.memory_space<vmem>>, vector<128x512xf32>
    %cst_99 = arith.constant dense<0.000000e+00> : vector<8x512xf32>
    %179 = tpu.matmul %170, %178, %cst_99 {dimension_numbers = #tpu.dot_dimension_numbers<[1], [0], [0], [1], [0, 0, 1, 1], [], []>} : vector<8x128xf32>, vector<128x512xf32>, vector<8x512xf32> -> vector<8x512xf32>
    %180 = arith.addf %177, %179 : vector<8x512xf32>
    %181 = vector.extract_strided_slice %180 {offsets = [0, 0], sizes = [8, 384], strides = [1, 1]} : vector<8x512xf32> to vector<8x384xf32>
    %cst_100 = arith.constant 5.000000e-01 : f32
    %182 = vector.broadcast %cst_100 : f32 to vector<8x384xf32>
    %183 = arith.mulf %182, %181 : vector<8x384xf32>
    %184 = math.tanh %183 : vector<8x384xf32>
    %cst_101 = arith.constant 5.000000e-01 : f32
    %185 = vector.broadcast %cst_101 : f32 to vector<8x384xf32>
    %186 = arith.mulf %185, %184 : vector<8x384xf32>
    %cst_102 = arith.constant 5.000000e-01 : f32
    %187 = vector.broadcast %cst_102 : f32 to vector<8x384xf32>
    %188 = arith.addf %186, %187 : vector<8x384xf32>
    %189 = vector.extract_strided_slice %180 {offsets = [0, 384], sizes = [8, 128], strides = [1, 1]} : vector<8x512xf32> to vector<8x128xf32>
    %190 = math.tanh %189 : vector<8x128xf32>
    %191 = vector.extract_strided_slice %188 {offsets = [0, 0], sizes = [8, 128], strides = [1, 1]} : vector<8x384xf32> to vector<8x128xf32>
    %192 = vector.extract_strided_slice %188 {offsets = [0, 128], sizes = [8, 128], strides = [1, 1]} : vector<8x384xf32> to vector<8x128xf32>
    %193 = vector.extract_strided_slice %188 {offsets = [0, 256], sizes = [8, 128], strides = [1, 1]} : vector<8x384xf32> to vector<8x128xf32>
    %194 = arith.mulf %192, %168 : vector<8x128xf32>
    %195 = arith.mulf %191, %190 : vector<8x128xf32>
    %196 = arith.addf %194, %195 : vector<8x128xf32>
    %197 = math.tanh %196 : vector<8x128xf32>
    %198 = arith.mulf %193, %197 : vector<8x128xf32>
    %199 = vector.extract_strided_slice %198 {offsets = [0, 0], sizes = [8, 64], strides = [1, 1]} : vector<8x128xf32> to vector<8x64xf32>
    %200 = vector.extract_strided_slice %198 {offsets = [0, 64], sizes = [8, 64], strides = [1, 1]} : vector<8x128xf32> to vector<8x64xf32>
    %c48_103 = arith.constant 48 : index
    %c0_104 = arith.constant 0 : index
    %201 = vector.load %arg11[%c48_103, %c0_104] : memref<64x256xf32, #tpu.memory_space<vmem>>, vector<8x64xf32>
    tpu.vector_store %arg11[%c48_103, %c0_104], %199 {strides = array<i32>} : memref<64x256xf32, #tpu.memory_space<vmem>>, vector<8x64xf32>,
    %c8_105 = arith.constant 8 : index
    %c64_106 = arith.constant 64 : index
    %202 = vector.load %arg11[%c8_105, %c64_106] : memref<64x256xf32, #tpu.memory_space<vmem>>, vector<8x64xf32>
    tpu.vector_store %arg11[%c8_105, %c64_106], %200 {strides = array<i32>} : memref<64x256xf32, #tpu.memory_space<vmem>>, vector<8x64xf32>,
    %c8_107 = arith.constant 8 : index
    %c128_108 = arith.constant 128 : index
    %203 = vector.load %arg11[%c8_107, %c128_108] : memref<64x256xf32, #tpu.memory_space<vmem>>, vector<8x64xf32>
    tpu.vector_store %arg11[%c8_107, %c128_108], %199 {strides = array<i32>} : memref<64x256xf32, #tpu.memory_space<vmem>>, vector<8x64xf32>,
    %c48_109 = arith.constant 48 : index
    %c192_110 = arith.constant 192 : index
    %204 = vector.load %arg11[%c48_109, %c192_110] : memref<64x256xf32, #tpu.memory_space<vmem>>, vector<8x64xf32>
    tpu.vector_store %arg11[%c48_109, %c192_110], %200 {strides = array<i32>} : memref<64x256xf32, #tpu.memory_space<vmem>>, vector<8x64xf32>,
    %c56_111 = arith.constant 56 : index
    %c0_112 = arith.constant 0 : index
    %205 = vector.load %arg10[%c56_111, %c0_112] : memref<64x512xf32, #tpu.memory_space<vmem>>, vector<8x512xf32>
    %c0_113 = arith.constant 0 : index
    %c0_114 = arith.constant 0 : index
    %206 = vector.load %arg2[%c0_113, %c0_114] : memref<128x512xf32, #tpu.memory_space<vmem>>, vector<128x512xf32>
    %cst_115 = arith.constant dense<0.000000e+00> : vector<8x512xf32>
    %207 = tpu.matmul %198, %206, %cst_115 {dimension_numbers = #tpu.dot_dimension_numbers<[1], [0], [0], [1], [0, 0, 1, 1], [], []>} : vector<8x128xf32>, vector<128x512xf32>, vector<8x512xf32> -> vector<8x512xf32>
    %208 = arith.addf %205, %207 : vector<8x512xf32>
    %209 = vector.extract_strided_slice %208 {offsets = [0, 0], sizes = [8, 384], strides = [1, 1]} : vector<8x512xf32> to vector<8x384xf32>
    %cst_116 = arith.constant 5.000000e-01 : f32
    %210 = vector.broadcast %cst_116 : f32 to vector<8x384xf32>
    %211 = arith.mulf %210, %209 : vector<8x384xf32>
    %212 = math.tanh %211 : vector<8x384xf32>
    %cst_117 = arith.constant 5.000000e-01 : f32
    %213 = vector.broadcast %cst_117 : f32 to vector<8x384xf32>
    %214 = arith.mulf %213, %212 : vector<8x384xf32>
    %cst_118 = arith.constant 5.000000e-01 : f32
    %215 = vector.broadcast %cst_118 : f32 to vector<8x384xf32>
    %216 = arith.addf %214, %215 : vector<8x384xf32>
    %217 = vector.extract_strided_slice %208 {offsets = [0, 384], sizes = [8, 128], strides = [1, 1]} : vector<8x512xf32> to vector<8x128xf32>
    %218 = math.tanh %217 : vector<8x128xf32>
    %219 = vector.extract_strided_slice %216 {offsets = [0, 0], sizes = [8, 128], strides = [1, 1]} : vector<8x384xf32> to vector<8x128xf32>
    %220 = vector.extract_strided_slice %216 {offsets = [0, 128], sizes = [8, 128], strides = [1, 1]} : vector<8x384xf32> to vector<8x128xf32>
    %221 = vector.extract_strided_slice %216 {offsets = [0, 256], sizes = [8, 128], strides = [1, 1]} : vector<8x384xf32> to vector<8x128xf32>
    %222 = arith.mulf %220, %196 : vector<8x128xf32>
    %223 = arith.mulf %219, %218 : vector<8x128xf32>
    %224 = arith.addf %222, %223 : vector<8x128xf32>
    %225 = math.tanh %224 : vector<8x128xf32>
    %226 = arith.mulf %221, %225 : vector<8x128xf32>
    %227 = vector.extract_strided_slice %226 {offsets = [0, 0], sizes = [8, 64], strides = [1, 1]} : vector<8x128xf32> to vector<8x64xf32>
    %228 = vector.extract_strided_slice %226 {offsets = [0, 64], sizes = [8, 64], strides = [1, 1]} : vector<8x128xf32> to vector<8x64xf32>
    %c56_119 = arith.constant 56 : index
    %c0_120 = arith.constant 0 : index
    %229 = vector.load %arg11[%c56_119, %c0_120] : memref<64x256xf32, #tpu.memory_space<vmem>>, vector<8x64xf32>
    tpu.vector_store %arg11[%c56_119, %c0_120], %227 {strides = array<i32>} : memref<64x256xf32, #tpu.memory_space<vmem>>, vector<8x64xf32>,
    %c0_121 = arith.constant 0 : index
    %c64_122 = arith.constant 64 : index
    %230 = vector.load %arg11[%c0_121, %c64_122] : memref<64x256xf32, #tpu.memory_space<vmem>>, vector<8x64xf32>
    tpu.vector_store %arg11[%c0_121, %c64_122], %228 {strides = array<i32>} : memref<64x256xf32, #tpu.memory_space<vmem>>, vector<8x64xf32>,
    %c0_123 = arith.constant 0 : index
    %c128_124 = arith.constant 128 : index
    %231 = vector.load %arg11[%c0_123, %c128_124] : memref<64x256xf32, #tpu.memory_space<vmem>>, vector<8x64xf32>
    tpu.vector_store %arg11[%c0_123, %c128_124], %227 {strides = array<i32>} : memref<64x256xf32, #tpu.memory_space<vmem>>, vector<8x64xf32>,
    %c56_125 = arith.constant 56 : index
    %c192_126 = arith.constant 192 : index
    %232 = vector.load %arg11[%c56_125, %c192_126] : memref<64x256xf32, #tpu.memory_space<vmem>>, vector<8x64xf32>
    tpu.vector_store %arg11[%c56_125, %c192_126], %228 {strides = array<i32>} : memref<64x256xf32, #tpu.memory_space<vmem>>, vector<8x64xf32>,
    %c0_127 = arith.constant 0 : index
    %c0_128 = arith.constant 0 : index
    %233 = vector.load %arg11[%c0_127, %c0_128] : memref<64x256xf32, #tpu.memory_space<vmem>>, vector<64x256xf32>
    %c0_129 = arith.constant 0 : index
    %c0_130 = arith.constant 0 : index
    %234 = vector.load %arg4[%c0_129, %c0_130] : memref<256x512xf32, #tpu.memory_space<vmem>>, vector<256x512xf32>
    %cst_131 = arith.constant dense<0.000000e+00> : vector<64x512xf32>
    %235 = tpu.matmul %233, %234, %cst_131 {dimension_numbers = #tpu.dot_dimension_numbers<[1], [0], [0], [1], [0, 0, 1, 1], [], []>} : vector<64x256xf32>, vector<256x512xf32>, vector<64x512xf32> -> vector<64x512xf32>
    %c0_132 = arith.constant 0 : index
    %c0_133 = arith.constant 0 : index
    %236 = vector.load %arg6[%c0_132, %c0_133] : memref<1x512xf32, #tpu.memory_space<vmem>>, vector<1x512xf32>
    %237 = vector.broadcast %236 : vector<1x512xf32> to vector<64x512xf32>
    %238 = arith.addf %235, %237 : vector<64x512xf32>
    %c0_134 = arith.constant 0 : index
    %c0_135 = arith.constant 0 : index
    %239 = vector.load %arg10[%c0_134, %c0_135] : memref<64x512xf32, #tpu.memory_space<vmem>>, vector<64x512xf32>
    tpu.vector_store %arg10[%c0_134, %c0_135], %238 {strides = array<i32>} : memref<64x512xf32, #tpu.memory_space<vmem>>, vector<64x512xf32>,
    %cst_136 = arith.constant 0.000000e+00 : f32
    %240 = vector.broadcast %cst_136 : f32 to vector<8x128xf32>
    %cst_137 = arith.constant 0.000000e+00 : f32
    %241 = vector.broadcast %cst_137 : f32 to vector<8x128xf32>
    %c0_138 = arith.constant 0 : index
    %c0_139 = arith.constant 0 : index
    %242 = vector.load %arg10[%c0_138, %c0_139] : memref<64x512xf32, #tpu.memory_space<vmem>>, vector<8x512xf32>
    %c0_140 = arith.constant 0 : index
    %c0_141 = arith.constant 0 : index
    %243 = vector.load %arg5[%c0_140, %c0_141] : memref<128x512xf32, #tpu.memory_space<vmem>>, vector<128x512xf32>
    %cst_142 = arith.constant dense<0.000000e+00> : vector<8x512xf32>
    %244 = tpu.matmul %240, %243, %cst_142 {dimension_numbers = #tpu.dot_dimension_numbers<[1], [0], [0], [1], [0, 0, 1, 1], [], []>} : vector<8x128xf32>, vector<128x512xf32>, vector<8x512xf32> -> vector<8x512xf32>
    %245 = arith.addf %242, %244 : vector<8x512xf32>
    %246 = vector.extract_strided_slice %245 {offsets = [0, 0], sizes = [8, 384], strides = [1, 1]} : vector<8x512xf32> to vector<8x384xf32>
    %cst_143 = arith.constant 5.000000e-01 : f32
    %247 = vector.broadcast %cst_143 : f32 to vector<8x384xf32>
    %248 = arith.mulf %247, %246 : vector<8x384xf32>
    %249 = math.tanh %248 : vector<8x384xf32>
    %cst_144 = arith.constant 5.000000e-01 : f32
    %250 = vector.broadcast %cst_144 : f32 to vector<8x384xf32>
    %251 = arith.mulf %250, %249 : vector<8x384xf32>
    %cst_145 = arith.constant 5.000000e-01 : f32
    %252 = vector.broadcast %cst_145 : f32 to vector<8x384xf32>
    %253 = arith.addf %251, %252 : vector<8x384xf32>
    %254 = vector.extract_strided_slice %245 {offsets = [0, 384], sizes = [8, 128], strides = [1, 1]} : vector<8x512xf32> to vector<8x128xf32>
    %255 = math.tanh %254 : vector<8x128xf32>
    %256 = vector.extract_strided_slice %253 {offsets = [0, 0], sizes = [8, 128], strides = [1, 1]} : vector<8x384xf32> to vector<8x128xf32>
    %257 = vector.extract_strided_slice %253 {offsets = [0, 128], sizes = [8, 128], strides = [1, 1]} : vector<8x384xf32> to vector<8x128xf32>
    %258 = vector.extract_strided_slice %253 {offsets = [0, 256], sizes = [8, 128], strides = [1, 1]} : vector<8x384xf32> to vector<8x128xf32>
    %259 = arith.mulf %257, %241 : vector<8x128xf32>
    %260 = arith.mulf %256, %255 : vector<8x128xf32>
    %261 = arith.addf %259, %260 : vector<8x128xf32>
    %262 = math.tanh %261 : vector<8x128xf32>
    %263 = arith.mulf %258, %262 : vector<8x128xf32>
    %264 = vector.extract_strided_slice %263 {offsets = [0, 0], sizes = [8, 64], strides = [1, 1]} : vector<8x128xf32> to vector<8x64xf32>
    %c0_146 = arith.constant 0 : index
    %c0_147 = arith.constant 0 : index
    %265 = vector.load %arg12[%c0_146, %c0_147] : memref<64x128xf32, #tpu.memory_space<vmem>>, vector<8x64xf32>
    tpu.vector_store %arg12[%c0_146, %c0_147], %264 {strides = array<i32>} : memref<64x128xf32, #tpu.memory_space<vmem>>, vector<8x64xf32>,
    %266 = vector.extract_strided_slice %263 {offsets = [0, 64], sizes = [8, 64], strides = [1, 1]} : vector<8x128xf32> to vector<8x64xf32>
    %c56_148 = arith.constant 56 : index
    %c64_149 = arith.constant 64 : index
    %267 = vector.load %arg12[%c56_148, %c64_149] : memref<64x128xf32, #tpu.memory_space<vmem>>, vector<8x64xf32>
    tpu.vector_store %arg12[%c56_148, %c64_149], %266 {strides = array<i32>} : memref<64x128xf32, #tpu.memory_space<vmem>>, vector<8x64xf32>,
    %c8_150 = arith.constant 8 : index
    %c0_151 = arith.constant 0 : index
    %268 = vector.load %arg10[%c8_150, %c0_151] : memref<64x512xf32, #tpu.memory_space<vmem>>, vector<8x512xf32>
    %c0_152 = arith.constant 0 : index
    %c0_153 = arith.constant 0 : index
    %269 = vector.load %arg5[%c0_152, %c0_153] : memref<128x512xf32, #tpu.memory_space<vmem>>, vector<128x512xf32>
    %cst_154 = arith.constant dense<0.000000e+00> : vector<8x512xf32>
    %270 = tpu.matmul %263, %269, %cst_154 {dimension_numbers = #tpu.dot_dimension_numbers<[1], [0], [0], [1], [0, 0, 1, 1], [], []>} : vector<8x128xf32>, vector<128x512xf32>, vector<8x512xf32> -> vector<8x512xf32>
    %271 = arith.addf %268, %270 : vector<8x512xf32>
    %272 = vector.extract_strided_slice %271 {offsets = [0, 0], sizes = [8, 384], strides = [1, 1]} : vector<8x512xf32> to vector<8x384xf32>
    %cst_155 = arith.constant 5.000000e-01 : f32
    %273 = vector.broadcast %cst_155 : f32 to vector<8x384xf32>
    %274 = arith.mulf %273, %272 : vector<8x384xf32>
    %275 = math.tanh %274 : vector<8x384xf32>
    %cst_156 = arith.constant 5.000000e-01 : f32
    %276 = vector.broadcast %cst_156 : f32 to vector<8x384xf32>
    %277 = arith.mulf %276, %275 : vector<8x384xf32>
    %cst_157 = arith.constant 5.000000e-01 : f32
    %278 = vector.broadcast %cst_157 : f32 to vector<8x384xf32>
    %279 = arith.addf %277, %278 : vector<8x384xf32>
    %280 = vector.extract_strided_slice %271 {offsets = [0, 384], sizes = [8, 128], strides = [1, 1]} : vector<8x512xf32> to vector<8x128xf32>
    %281 = math.tanh %280 : vector<8x128xf32>
    %282 = vector.extract_strided_slice %279 {offsets = [0, 0], sizes = [8, 128], strides = [1, 1]} : vector<8x384xf32> to vector<8x128xf32>
    %283 = vector.extract_strided_slice %279 {offsets = [0, 128], sizes = [8, 128], strides = [1, 1]} : vector<8x384xf32> to vector<8x128xf32>
    %284 = vector.extract_strided_slice %279 {offsets = [0, 256], sizes = [8, 128], strides = [1, 1]} : vector<8x384xf32> to vector<8x128xf32>
    %285 = arith.mulf %283, %261 : vector<8x128xf32>
    %286 = arith.mulf %282, %281 : vector<8x128xf32>
    %287 = arith.addf %285, %286 : vector<8x128xf32>
    %288 = math.tanh %287 : vector<8x128xf32>
    %289 = arith.mulf %284, %288 : vector<8x128xf32>
    %290 = vector.extract_strided_slice %289 {offsets = [0, 0], sizes = [8, 64], strides = [1, 1]} : vector<8x128xf32> to vector<8x64xf32>
    %c8_158 = arith.constant 8 : index
    %c0_159 = arith.constant 0 : index
    %291 = vector.load %arg12[%c8_158, %c0_159] : memref<64x128xf32, #tpu.memory_space<vmem>>, vector<8x64xf32>
    tpu.vector_store %arg12[%c8_158, %c0_159], %290 {strides = array<i32>} : memref<64x128xf32, #tpu.memory_space<vmem>>, vector<8x64xf32>,
    %292 = vector.extract_strided_slice %289 {offsets = [0, 64], sizes = [8, 64], strides = [1, 1]} : vector<8x128xf32> to vector<8x64xf32>
    %c48_160 = arith.constant 48 : index
    %c64_161 = arith.constant 64 : index
    %293 = vector.load %arg12[%c48_160, %c64_161] : memref<64x128xf32, #tpu.memory_space<vmem>>, vector<8x64xf32>
    tpu.vector_store %arg12[%c48_160, %c64_161], %292 {strides = array<i32>} : memref<64x128xf32, #tpu.memory_space<vmem>>, vector<8x64xf32>,
    %c16_162 = arith.constant 16 : index
    %c0_163 = arith.constant 0 : index
    %294 = vector.load %arg10[%c16_162, %c0_163] : memref<64x512xf32, #tpu.memory_space<vmem>>, vector<8x512xf32>
    %c0_164 = arith.constant 0 : index
    %c0_165 = arith.constant 0 : index
    %295 = vector.load %arg5[%c0_164, %c0_165] : memref<128x512xf32, #tpu.memory_space<vmem>>, vector<128x512xf32>
    %cst_166 = arith.constant dense<0.000000e+00> : vector<8x512xf32>
    %296 = tpu.matmul %289, %295, %cst_166 {dimension_numbers = #tpu.dot_dimension_numbers<[1], [0], [0], [1], [0, 0, 1, 1], [], []>} : vector<8x128xf32>, vector<128x512xf32>, vector<8x512xf32> -> vector<8x512xf32>
    %297 = arith.addf %294, %296 : vector<8x512xf32>
    %298 = vector.extract_strided_slice %297 {offsets = [0, 0], sizes = [8, 384], strides = [1, 1]} : vector<8x512xf32> to vector<8x384xf32>
    %cst_167 = arith.constant 5.000000e-01 : f32
    %299 = vector.broadcast %cst_167 : f32 to vector<8x384xf32>
    %300 = arith.mulf %299, %298 : vector<8x384xf32>
    %301 = math.tanh %300 : vector<8x384xf32>
    %cst_168 = arith.constant 5.000000e-01 : f32
    %302 = vector.broadcast %cst_168 : f32 to vector<8x384xf32>
    %303 = arith.mulf %302, %301 : vector<8x384xf32>
    %cst_169 = arith.constant 5.000000e-01 : f32
    %304 = vector.broadcast %cst_169 : f32 to vector<8x384xf32>
    %305 = arith.addf %303, %304 : vector<8x384xf32>
    %306 = vector.extract_strided_slice %297 {offsets = [0, 384], sizes = [8, 128], strides = [1, 1]} : vector<8x512xf32> to vector<8x128xf32>
    %307 = math.tanh %306 : vector<8x128xf32>
    %308 = vector.extract_strided_slice %305 {offsets = [0, 0], sizes = [8, 128], strides = [1, 1]} : vector<8x384xf32> to vector<8x128xf32>
    %309 = vector.extract_strided_slice %305 {offsets = [0, 128], sizes = [8, 128], strides = [1, 1]} : vector<8x384xf32> to vector<8x128xf32>
    %310 = vector.extract_strided_slice %305 {offsets = [0, 256], sizes = [8, 128], strides = [1, 1]} : vector<8x384xf32> to vector<8x128xf32>
    %311 = arith.mulf %309, %287 : vector<8x128xf32>
    %312 = arith.mulf %308, %307 : vector<8x128xf32>
    %313 = arith.addf %311, %312 : vector<8x128xf32>
    %314 = math.tanh %313 : vector<8x128xf32>
    %315 = arith.mulf %310, %314 : vector<8x128xf32>
    %316 = vector.extract_strided_slice %315 {offsets = [0, 0], sizes = [8, 64], strides = [1, 1]} : vector<8x128xf32> to vector<8x64xf32>
    %c16_170 = arith.constant 16 : index
    %c0_171 = arith.constant 0 : index
    %317 = vector.load %arg12[%c16_170, %c0_171] : memref<64x128xf32, #tpu.memory_space<vmem>>, vector<8x64xf32>
    tpu.vector_store %arg12[%c16_170, %c0_171], %316 {strides = array<i32>} : memref<64x128xf32, #tpu.memory_space<vmem>>, vector<8x64xf32>,
    %318 = vector.extract_strided_slice %315 {offsets = [0, 64], sizes = [8, 64], strides = [1, 1]} : vector<8x128xf32> to vector<8x64xf32>
    %c40_172 = arith.constant 40 : index
    %c64_173 = arith.constant 64 : index
    %319 = vector.load %arg12[%c40_172, %c64_173] : memref<64x128xf32, #tpu.memory_space<vmem>>, vector<8x64xf32>
    tpu.vector_store %arg12[%c40_172, %c64_173], %318 {strides = array<i32>} : memref<64x128xf32, #tpu.memory_space<vmem>>, vector<8x64xf32>,
    %c24_174 = arith.constant 24 : index
    %c0_175 = arith.constant 0 : index
    %320 = vector.load %arg10[%c24_174, %c0_175] : memref<64x512xf32, #tpu.memory_space<vmem>>, vector<8x512xf32>
    %c0_176 = arith.constant 0 : index
    %c0_177 = arith.constant 0 : index
    %321 = vector.load %arg5[%c0_176, %c0_177] : memref<128x512xf32, #tpu.memory_space<vmem>>, vector<128x512xf32>
    %cst_178 = arith.constant dense<0.000000e+00> : vector<8x512xf32>
    %322 = tpu.matmul %315, %321, %cst_178 {dimension_numbers = #tpu.dot_dimension_numbers<[1], [0], [0], [1], [0, 0, 1, 1], [], []>} : vector<8x128xf32>, vector<128x512xf32>, vector<8x512xf32> -> vector<8x512xf32>
    %323 = arith.addf %320, %322 : vector<8x512xf32>
    %324 = vector.extract_strided_slice %323 {offsets = [0, 0], sizes = [8, 384], strides = [1, 1]} : vector<8x512xf32> to vector<8x384xf32>
    %cst_179 = arith.constant 5.000000e-01 : f32
    %325 = vector.broadcast %cst_179 : f32 to vector<8x384xf32>
    %326 = arith.mulf %325, %324 : vector<8x384xf32>
    %327 = math.tanh %326 : vector<8x384xf32>
    %cst_180 = arith.constant 5.000000e-01 : f32
    %328 = vector.broadcast %cst_180 : f32 to vector<8x384xf32>
    %329 = arith.mulf %328, %327 : vector<8x384xf32>
    %cst_181 = arith.constant 5.000000e-01 : f32
    %330 = vector.broadcast %cst_181 : f32 to vector<8x384xf32>
    %331 = arith.addf %329, %330 : vector<8x384xf32>
    %332 = vector.extract_strided_slice %323 {offsets = [0, 384], sizes = [8, 128], strides = [1, 1]} : vector<8x512xf32> to vector<8x128xf32>
    %333 = math.tanh %332 : vector<8x128xf32>
    %334 = vector.extract_strided_slice %331 {offsets = [0, 0], sizes = [8, 128], strides = [1, 1]} : vector<8x384xf32> to vector<8x128xf32>
    %335 = vector.extract_strided_slice %331 {offsets = [0, 128], sizes = [8, 128], strides = [1, 1]} : vector<8x384xf32> to vector<8x128xf32>
    %336 = vector.extract_strided_slice %331 {offsets = [0, 256], sizes = [8, 128], strides = [1, 1]} : vector<8x384xf32> to vector<8x128xf32>
    %337 = arith.mulf %335, %313 : vector<8x128xf32>
    %338 = arith.mulf %334, %333 : vector<8x128xf32>
    %339 = arith.addf %337, %338 : vector<8x128xf32>
    %340 = math.tanh %339 : vector<8x128xf32>
    %341 = arith.mulf %336, %340 : vector<8x128xf32>
    %342 = vector.extract_strided_slice %341 {offsets = [0, 0], sizes = [8, 64], strides = [1, 1]} : vector<8x128xf32> to vector<8x64xf32>
    %c24_182 = arith.constant 24 : index
    %c0_183 = arith.constant 0 : index
    %343 = vector.load %arg12[%c24_182, %c0_183] : memref<64x128xf32, #tpu.memory_space<vmem>>, vector<8x64xf32>
    tpu.vector_store %arg12[%c24_182, %c0_183], %342 {strides = array<i32>} : memref<64x128xf32, #tpu.memory_space<vmem>>, vector<8x64xf32>,
    %344 = vector.extract_strided_slice %341 {offsets = [0, 64], sizes = [8, 64], strides = [1, 1]} : vector<8x128xf32> to vector<8x64xf32>
    %c32_184 = arith.constant 32 : index
    %c64_185 = arith.constant 64 : index
    %345 = vector.load %arg12[%c32_184, %c64_185] : memref<64x128xf32, #tpu.memory_space<vmem>>, vector<8x64xf32>
    tpu.vector_store %arg12[%c32_184, %c64_185], %344 {strides = array<i32>} : memref<64x128xf32, #tpu.memory_space<vmem>>, vector<8x64xf32>,
    %c32_186 = arith.constant 32 : index
    %c0_187 = arith.constant 0 : index
    %346 = vector.load %arg10[%c32_186, %c0_187] : memref<64x512xf32, #tpu.memory_space<vmem>>, vector<8x512xf32>
    %c0_188 = arith.constant 0 : index
    %c0_189 = arith.constant 0 : index
    %347 = vector.load %arg5[%c0_188, %c0_189] : memref<128x512xf32, #tpu.memory_space<vmem>>, vector<128x512xf32>
    %cst_190 = arith.constant dense<0.000000e+00> : vector<8x512xf32>
    %348 = tpu.matmul %341, %347, %cst_190 {dimension_numbers = #tpu.dot_dimension_numbers<[1], [0], [0], [1], [0, 0, 1, 1], [], []>} : vector<8x128xf32>, vector<128x512xf32>, vector<8x512xf32> -> vector<8x512xf32>
    %349 = arith.addf %346, %348 : vector<8x512xf32>
    %350 = vector.extract_strided_slice %349 {offsets = [0, 0], sizes = [8, 384], strides = [1, 1]} : vector<8x512xf32> to vector<8x384xf32>
    %cst_191 = arith.constant 5.000000e-01 : f32
    %351 = vector.broadcast %cst_191 : f32 to vector<8x384xf32>
    %352 = arith.mulf %351, %350 : vector<8x384xf32>
    %353 = math.tanh %352 : vector<8x384xf32>
    %cst_192 = arith.constant 5.000000e-01 : f32
    %354 = vector.broadcast %cst_192 : f32 to vector<8x384xf32>
    %355 = arith.mulf %354, %353 : vector<8x384xf32>
    %cst_193 = arith.constant 5.000000e-01 : f32
    %356 = vector.broadcast %cst_193 : f32 to vector<8x384xf32>
    %357 = arith.addf %355, %356 : vector<8x384xf32>
    %358 = vector.extract_strided_slice %349 {offsets = [0, 384], sizes = [8, 128], strides = [1, 1]} : vector<8x512xf32> to vector<8x128xf32>
    %359 = math.tanh %358 : vector<8x128xf32>
    %360 = vector.extract_strided_slice %357 {offsets = [0, 0], sizes = [8, 128], strides = [1, 1]} : vector<8x384xf32> to vector<8x128xf32>
    %361 = vector.extract_strided_slice %357 {offsets = [0, 128], sizes = [8, 128], strides = [1, 1]} : vector<8x384xf32> to vector<8x128xf32>
    %362 = vector.extract_strided_slice %357 {offsets = [0, 256], sizes = [8, 128], strides = [1, 1]} : vector<8x384xf32> to vector<8x128xf32>
    %363 = arith.mulf %361, %339 : vector<8x128xf32>
    %364 = arith.mulf %360, %359 : vector<8x128xf32>
    %365 = arith.addf %363, %364 : vector<8x128xf32>
    %366 = math.tanh %365 : vector<8x128xf32>
    %367 = arith.mulf %362, %366 : vector<8x128xf32>
    %368 = vector.extract_strided_slice %367 {offsets = [0, 0], sizes = [8, 64], strides = [1, 1]} : vector<8x128xf32> to vector<8x64xf32>
    %c32_194 = arith.constant 32 : index
    %c0_195 = arith.constant 0 : index
    %369 = vector.load %arg12[%c32_194, %c0_195] : memref<64x128xf32, #tpu.memory_space<vmem>>, vector<8x64xf32>
    tpu.vector_store %arg12[%c32_194, %c0_195], %368 {strides = array<i32>} : memref<64x128xf32, #tpu.memory_space<vmem>>, vector<8x64xf32>,
    %370 = vector.extract_strided_slice %367 {offsets = [0, 64], sizes = [8, 64], strides = [1, 1]} : vector<8x128xf32> to vector<8x64xf32>
    %c24_196 = arith.constant 24 : index
    %c64_197 = arith.constant 64 : index
    %371 = vector.load %arg12[%c24_196, %c64_197] : memref<64x128xf32, #tpu.memory_space<vmem>>, vector<8x64xf32>
    tpu.vector_store %arg12[%c24_196, %c64_197], %370 {strides = array<i32>} : memref<64x128xf32, #tpu.memory_space<vmem>>, vector<8x64xf32>,
    %c40_198 = arith.constant 40 : index
    %c0_199 = arith.constant 0 : index
    %372 = vector.load %arg10[%c40_198, %c0_199] : memref<64x512xf32, #tpu.memory_space<vmem>>, vector<8x512xf32>
    %c0_200 = arith.constant 0 : index
    %c0_201 = arith.constant 0 : index
    %373 = vector.load %arg5[%c0_200, %c0_201] : memref<128x512xf32, #tpu.memory_space<vmem>>, vector<128x512xf32>
    %cst_202 = arith.constant dense<0.000000e+00> : vector<8x512xf32>
    %374 = tpu.matmul %367, %373, %cst_202 {dimension_numbers = #tpu.dot_dimension_numbers<[1], [0], [0], [1], [0, 0, 1, 1], [], []>} : vector<8x128xf32>, vector<128x512xf32>, vector<8x512xf32> -> vector<8x512xf32>
    %375 = arith.addf %372, %374 : vector<8x512xf32>
    %376 = vector.extract_strided_slice %375 {offsets = [0, 0], sizes = [8, 384], strides = [1, 1]} : vector<8x512xf32> to vector<8x384xf32>
    %cst_203 = arith.constant 5.000000e-01 : f32
    %377 = vector.broadcast %cst_203 : f32 to vector<8x384xf32>
    %378 = arith.mulf %377, %376 : vector<8x384xf32>
    %379 = math.tanh %378 : vector<8x384xf32>
    %cst_204 = arith.constant 5.000000e-01 : f32
    %380 = vector.broadcast %cst_204 : f32 to vector<8x384xf32>
    %381 = arith.mulf %380, %379 : vector<8x384xf32>
    %cst_205 = arith.constant 5.000000e-01 : f32
    %382 = vector.broadcast %cst_205 : f32 to vector<8x384xf32>
    %383 = arith.addf %381, %382 : vector<8x384xf32>
    %384 = vector.extract_strided_slice %375 {offsets = [0, 384], sizes = [8, 128], strides = [1, 1]} : vector<8x512xf32> to vector<8x128xf32>
    %385 = math.tanh %384 : vector<8x128xf32>
    %386 = vector.extract_strided_slice %383 {offsets = [0, 0], sizes = [8, 128], strides = [1, 1]} : vector<8x384xf32> to vector<8x128xf32>
    %387 = vector.extract_strided_slice %383 {offsets = [0, 128], sizes = [8, 128], strides = [1, 1]} : vector<8x384xf32> to vector<8x128xf32>
    %388 = vector.extract_strided_slice %383 {offsets = [0, 256], sizes = [8, 128], strides = [1, 1]} : vector<8x384xf32> to vector<8x128xf32>
    %389 = arith.mulf %387, %365 : vector<8x128xf32>
    %390 = arith.mulf %386, %385 : vector<8x128xf32>
    %391 = arith.addf %389, %390 : vector<8x128xf32>
    %392 = math.tanh %391 : vector<8x128xf32>
    %393 = arith.mulf %388, %392 : vector<8x128xf32>
    %394 = vector.extract_strided_slice %393 {offsets = [0, 0], sizes = [8, 64], strides = [1, 1]} : vector<8x128xf32> to vector<8x64xf32>
    %c40_206 = arith.constant 40 : index
    %c0_207 = arith.constant 0 : index
    %395 = vector.load %arg12[%c40_206, %c0_207] : memref<64x128xf32, #tpu.memory_space<vmem>>, vector<8x64xf32>
    tpu.vector_store %arg12[%c40_206, %c0_207], %394 {strides = array<i32>} : memref<64x128xf32, #tpu.memory_space<vmem>>, vector<8x64xf32>,
    %396 = vector.extract_strided_slice %393 {offsets = [0, 64], sizes = [8, 64], strides = [1, 1]} : vector<8x128xf32> to vector<8x64xf32>
    %c16_208 = arith.constant 16 : index
    %c64_209 = arith.constant 64 : index
    %397 = vector.load %arg12[%c16_208, %c64_209] : memref<64x128xf32, #tpu.memory_space<vmem>>, vector<8x64xf32>
    tpu.vector_store %arg12[%c16_208, %c64_209], %396 {strides = array<i32>} : memref<64x128xf32, #tpu.memory_space<vmem>>, vector<8x64xf32>,
    %c48_210 = arith.constant 48 : index
    %c0_211 = arith.constant 0 : index
    %398 = vector.load %arg10[%c48_210, %c0_211] : memref<64x512xf32, #tpu.memory_space<vmem>>, vector<8x512xf32>
    %c0_212 = arith.constant 0 : index
    %c0_213 = arith.constant 0 : index
    %399 = vector.load %arg5[%c0_212, %c0_213] : memref<128x512xf32, #tpu.memory_space<vmem>>, vector<128x512xf32>
    %cst_214 = arith.constant dense<0.000000e+00> : vector<8x512xf32>
    %400 = tpu.matmul %393, %399, %cst_214 {dimension_numbers = #tpu.dot_dimension_numbers<[1], [0], [0], [1], [0, 0, 1, 1], [], []>} : vector<8x128xf32>, vector<128x512xf32>, vector<8x512xf32> -> vector<8x512xf32>
    %401 = arith.addf %398, %400 : vector<8x512xf32>
    %402 = vector.extract_strided_slice %401 {offsets = [0, 0], sizes = [8, 384], strides = [1, 1]} : vector<8x512xf32> to vector<8x384xf32>
    %cst_215 = arith.constant 5.000000e-01 : f32
    %403 = vector.broadcast %cst_215 : f32 to vector<8x384xf32>
    %404 = arith.mulf %403, %402 : vector<8x384xf32>
    %405 = math.tanh %404 : vector<8x384xf32>
    %cst_216 = arith.constant 5.000000e-01 : f32
    %406 = vector.broadcast %cst_216 : f32 to vector<8x384xf32>
    %407 = arith.mulf %406, %405 : vector<8x384xf32>
    %cst_217 = arith.constant 5.000000e-01 : f32
    %408 = vector.broadcast %cst_217 : f32 to vector<8x384xf32>
    %409 = arith.addf %407, %408 : vector<8x384xf32>
    %410 = vector.extract_strided_slice %401 {offsets = [0, 384], sizes = [8, 128], strides = [1, 1]} : vector<8x512xf32> to vector<8x128xf32>
    %411 = math.tanh %410 : vector<8x128xf32>
    %412 = vector.extract_strided_slice %409 {offsets = [0, 0], sizes = [8, 128], strides = [1, 1]} : vector<8x384xf32> to vector<8x128xf32>
    %413 = vector.extract_strided_slice %409 {offsets = [0, 128], sizes = [8, 128], strides = [1, 1]} : vector<8x384xf32> to vector<8x128xf32>
    %414 = vector.extract_strided_slice %409 {offsets = [0, 256], sizes = [8, 128], strides = [1, 1]} : vector<8x384xf32> to vector<8x128xf32>
    %415 = arith.mulf %413, %391 : vector<8x128xf32>
    %416 = arith.mulf %412, %411 : vector<8x128xf32>
    %417 = arith.addf %415, %416 : vector<8x128xf32>
    %418 = math.tanh %417 : vector<8x128xf32>
    %419 = arith.mulf %414, %418 : vector<8x128xf32>
    %420 = vector.extract_strided_slice %419 {offsets = [0, 0], sizes = [8, 64], strides = [1, 1]} : vector<8x128xf32> to vector<8x64xf32>
    %c48_218 = arith.constant 48 : index
    %c0_219 = arith.constant 0 : index
    %421 = vector.load %arg12[%c48_218, %c0_219] : memref<64x128xf32, #tpu.memory_space<vmem>>, vector<8x64xf32>
    tpu.vector_store %arg12[%c48_218, %c0_219], %420 {strides = array<i32>} : memref<64x128xf32, #tpu.memory_space<vmem>>, vector<8x64xf32>,
    %422 = vector.extract_strided_slice %419 {offsets = [0, 64], sizes = [8, 64], strides = [1, 1]} : vector<8x128xf32> to vector<8x64xf32>
    %c8_220 = arith.constant 8 : index
    %c64_221 = arith.constant 64 : index
    %423 = vector.load %arg12[%c8_220, %c64_221] : memref<64x128xf32, #tpu.memory_space<vmem>>, vector<8x64xf32>
    tpu.vector_store %arg12[%c8_220, %c64_221], %422 {strides = array<i32>} : memref<64x128xf32, #tpu.memory_space<vmem>>, vector<8x64xf32>,
    %c56_222 = arith.constant 56 : index
    %c0_223 = arith.constant 0 : index
    %424 = vector.load %arg10[%c56_222, %c0_223] : memref<64x512xf32, #tpu.memory_space<vmem>>, vector<8x512xf32>
    %c0_224 = arith.constant 0 : index
    %c0_225 = arith.constant 0 : index
    %425 = vector.load %arg5[%c0_224, %c0_225] : memref<128x512xf32, #tpu.memory_space<vmem>>, vector<128x512xf32>
    %cst_226 = arith.constant dense<0.000000e+00> : vector<8x512xf32>
    %426 = tpu.matmul %419, %425, %cst_226 {dimension_numbers = #tpu.dot_dimension_numbers<[1], [0], [0], [1], [0, 0, 1, 1], [], []>} : vector<8x128xf32>, vector<128x512xf32>, vector<8x512xf32> -> vector<8x512xf32>
    %427 = arith.addf %424, %426 : vector<8x512xf32>
    %428 = vector.extract_strided_slice %427 {offsets = [0, 0], sizes = [8, 384], strides = [1, 1]} : vector<8x512xf32> to vector<8x384xf32>
    %cst_227 = arith.constant 5.000000e-01 : f32
    %429 = vector.broadcast %cst_227 : f32 to vector<8x384xf32>
    %430 = arith.mulf %429, %428 : vector<8x384xf32>
    %431 = math.tanh %430 : vector<8x384xf32>
    %cst_228 = arith.constant 5.000000e-01 : f32
    %432 = vector.broadcast %cst_228 : f32 to vector<8x384xf32>
    %433 = arith.mulf %432, %431 : vector<8x384xf32>
    %cst_229 = arith.constant 5.000000e-01 : f32
    %434 = vector.broadcast %cst_229 : f32 to vector<8x384xf32>
    %435 = arith.addf %433, %434 : vector<8x384xf32>
    %436 = vector.extract_strided_slice %427 {offsets = [0, 384], sizes = [8, 128], strides = [1, 1]} : vector<8x512xf32> to vector<8x128xf32>
    %437 = math.tanh %436 : vector<8x128xf32>
    %438 = vector.extract_strided_slice %435 {offsets = [0, 0], sizes = [8, 128], strides = [1, 1]} : vector<8x384xf32> to vector<8x128xf32>
    %439 = vector.extract_strided_slice %435 {offsets = [0, 128], sizes = [8, 128], strides = [1, 1]} : vector<8x384xf32> to vector<8x128xf32>
    %440 = vector.extract_strided_slice %435 {offsets = [0, 256], sizes = [8, 128], strides = [1, 1]} : vector<8x384xf32> to vector<8x128xf32>
    %441 = arith.mulf %439, %417 : vector<8x128xf32>
    %442 = arith.mulf %438, %437 : vector<8x128xf32>
    %443 = arith.addf %441, %442 : vector<8x128xf32>
    %444 = math.tanh %443 : vector<8x128xf32>
    %445 = arith.mulf %440, %444 : vector<8x128xf32>
    %446 = vector.extract_strided_slice %445 {offsets = [0, 0], sizes = [8, 64], strides = [1, 1]} : vector<8x128xf32> to vector<8x64xf32>
    %c56_230 = arith.constant 56 : index
    %c0_231 = arith.constant 0 : index
    %447 = vector.load %arg12[%c56_230, %c0_231] : memref<64x128xf32, #tpu.memory_space<vmem>>, vector<8x64xf32>
    tpu.vector_store %arg12[%c56_230, %c0_231], %446 {strides = array<i32>} : memref<64x128xf32, #tpu.memory_space<vmem>>, vector<8x64xf32>,
    %448 = vector.extract_strided_slice %445 {offsets = [0, 64], sizes = [8, 64], strides = [1, 1]} : vector<8x128xf32> to vector<8x64xf32>
    %c0_232 = arith.constant 0 : index
    %c64_233 = arith.constant 64 : index
    %449 = vector.load %arg12[%c0_232, %c64_233] : memref<64x128xf32, #tpu.memory_space<vmem>>, vector<8x64xf32>
    tpu.vector_store %arg12[%c0_232, %c64_233], %448 {strides = array<i32>} : memref<64x128xf32, #tpu.memory_space<vmem>>, vector<8x64xf32>,
    %c0_234 = arith.constant 0 : index
    %c0_235 = arith.constant 0 : index
    %450 = vector.load %arg12[%c0_234, %c0_235] : memref<64x128xf32, #tpu.memory_space<vmem>>, vector<64x128xf32>
    %c0_236 = arith.constant 0 : index
    %c0_237 = arith.constant 0 : index
    %451 = vector.load %arg7[%c0_236, %c0_237] : memref<128x3xf32, #tpu.memory_space<vmem>>, vector<128x3xf32>
    %cst_238 = arith.constant dense<0.000000e+00> : vector<64x3xf32>
    %452 = tpu.matmul %450, %451, %cst_238 {dimension_numbers = #tpu.dot_dimension_numbers<[1], [0], [0], [1], [0, 0, 1, 1], [], []>} : vector<64x128xf32>, vector<128x3xf32>, vector<64x3xf32> -> vector<64x3xf32>
    %c0_239 = arith.constant 0 : index
    %c0_240 = arith.constant 0 : index
    %453 = vector.load %arg8[%c0_239, %c0_240] : memref<1x3xf32, #tpu.memory_space<vmem>>, vector<1x3xf32>
    %454 = vector.broadcast %453 : vector<1x3xf32> to vector<64x3xf32>
    %455 = arith.addf %452, %454 : vector<64x3xf32>
    %c0_241 = arith.constant 0 : index
    %c0_242 = arith.constant 0 : index
    %456 = vector.load %arg9[%c0_241, %c0_242] : memref<64x3xf32, #tpu.memory_space<vmem>>, vector<64x3xf32>
    tpu.vector_store %arg9[%c0_241, %c0_242], %455 {strides = array<i32>} : memref<64x3xf32, #tpu.memory_space<vmem>>, vector<64x3xf32>,
    return
  }
}

</mosaic_0001>

<llo_original>
// kernel: bilstm_model.1
$region0: #{bilstm_model.1}
  #allocation0 [shape = 'u32[]', space=smem, size = 0x4, offset = 0x4, fixed_abs, tag = 'smem constant byte address 0x4 - core index']
  #allocation1 [shape = 'u32[144,128]{1,0:T(1,128)}', space=vmem, size = 0x12000, scoped, tag = 'internal scratch']
  #allocation2 [shape = 'f32[64,512]{1,0:T(8,128)}', space=vmem, size = 0x20000, scoped, tag = 'scratch operand']
  #allocation3 [shape = 'f32[64,256]{1,0:T(8,128)}', space=vmem, size = 0x10000, scoped, tag = 'scratch operand']
  #allocation4 [shape = 'f32[64,128]{1,0:T(8,128)}', space=vmem, size = 0x8000, scoped, tag = 'scratch operand']
  %s0 = inlined_call_operand.vmem [shape: f32[64,6], index: 0, kind: input, shape index: {}]
  %s1 = inlined_call_operand.vmem [shape: f32[6,512], index: 1, kind: input, shape index: {}]
  %s2 = inlined_call_operand.hbm [shape: f32[128,512], index: 2, kind: input, shape index: {}]
  %s3 = inlined_call_operand.vmem [shape: f32[1,512], index: 3, kind: input, shape index: {}]
  %s4 = inlined_call_operand.hbm [shape: f32[256,512], index: 4, kind: input, shape index: {}]
  %s5 = inlined_call_operand.hbm [shape: f32[128,512], index: 5, kind: input, shape index: {}]
  %s6 = inlined_call_operand.vmem [shape: f32[1,512], index: 6, kind: input, shape index: {}]
  %s7 = inlined_call_operand.vmem [shape: f32[128,3], index: 7, kind: input, shape index: {}]
  %s8 = inlined_call_operand.vmem [shape: f32[1,3], index: 8, kind: input, shape index: {}]
  %s9 = inlined_call_operand.vmem [shape: f32[64,3], index: 9, kind: output, shape index: {}]
  %s10 = sld [smem:[#allocation0]]
  $region58: #{bilstm_model.1} parent=0
    _
  %s12 = ssub.s32 1, %s10
  %s13 = scalar_select 0, %s12, %s10
  $region1: #{bilstm_model.1} parent=0
    #allocation5 [shape = 'u8[262144]{0}', space=vmem, size = 0x40000, scoped, tag = 'input window, operand 2, single buffered']
    #allocation6 [shape = 's32[1]{0}', space=sflag, size = 0x4, scoped, tag = 'scoped memory for bilstm_model.1']
    #allocation7 [shape = 'u8[524288]{0}', space=vmem, size = 0x80000, scoped, tag = 'input window, operand 4, single buffered']
    #allocation8 [shape = 's32[1]{0}', space=sflag, size = 0x4, scoped, tag = 'scoped memory for bilstm_model.1']
    #allocation9 [shape = 'u8[262144]{0}', space=vmem, size = 0x40000, scoped, tag = 'input window, operand 5, single buffered']
    %14 = vsyncpa [#allocation6], 0
    %15 = vsyncpa [#allocation8], 0
    // Predicated region
    $region2: #{bilstm_model.1} parent=1 // pred_check
      _
    $region3: #{bilstm_model.1} parent=1 // pred_check_branch
      %17 = sbr.rel (0) target = $region5
    $region4: #{bilstm_model.1} parent=1 // pred_region
      _
    $region5: #{bilstm_model.1} parent=1 // pred_fallthru
      _
    // Predicated region
    $region6: #{bilstm_model.1} parent=1 // pred_check
      _
    $region7: #{bilstm_model.1} parent=1 // pred_check_branch
      %19 = sbr.rel (0) target = $region9
    $region8: #{bilstm_model.1} parent=1 // pred_region
      _
    $region9: #{bilstm_model.1} parent=1 // pred_fallthru
      _
    // Predicated region
    $region10: #{bilstm_model.1} parent=1 // pred_check
      _
    $region11: #{bilstm_model.1} parent=1 // pred_check_branch
      %21 = sbr.rel (0) target = $region13
    $region12: #{bilstm_model.1} parent=1 // pred_region
      %s23 = ssub.s32 8192, 8192
      %24 = vsyncadd [#allocation6], %s23
      %s25 = sshll.u32 [#allocation5], 4
      %s26 = int_to_ptr.vmem [resolvable:$true] %s25
      %31 = dma.hbm_to_vmem [thread:$0]  %s2, 8192, %s26, [#allocation6], 512, 512, 32
    $region13: #{bilstm_model.1} parent=1 // pred_fallthru
      _
    // Predicated region
    $region14: #{bilstm_model.1} parent=1 // pred_check
      _
    $region15: #{bilstm_model.1} parent=1 // pred_check_branch
      %33 = sbr.rel (0) target = $region17
    $region16: #{bilstm_model.1} parent=1 // pred_region
      _
    $region17: #{bilstm_model.1} parent=1 // pred_fallthru
      _
    // Predicated region
    $region18: #{bilstm_model.1} parent=1 // pred_check
      _
    $region19: #{bilstm_model.1} parent=1 // pred_check_branch
      %35 = sbr.rel (0) target = $region21
    $region20: #{bilstm_model.1} parent=1 // pred_region
      %s37 = ssub.s32 16384, 16384
      %38 = vsyncadd [#allocation8], %s37
      %s39 = sshll.u32 [#allocation7], 4
      %s40 = int_to_ptr.vmem [resolvable:$true] %s39
      %45 = dma.hbm_to_vmem [thread:$0]  %s4, 16384, %s40, [#allocation8], 512, 512, 32
    $region21: #{bilstm_model.1} parent=1 // pred_fallthru
      _
    // Predicated region
    $region22: #{bilstm_model.1} parent=1 // pred_check
      _
    $region23: #{bilstm_model.1} parent=1 // pred_check_branch
      %47 = sbr.rel (0) target = $region25
    $region24: #{bilstm_model.1} parent=1 // pred_region
      %s49 = ssub.s32 8192, 8192
      %50 = vsyncadd [#allocation8], %s49
      %s51 = sshll.u32 [#allocation9], 4
      %s52 = int_to_ptr.vmem [resolvable:$true] %s51
      %57 = dma.hbm_to_vmem [thread:$0]  %s5, 8192, %s52, [#allocation8], 512, 512, 32
    $region25: #{bilstm_model.1} parent=1 // pred_fallthru
      _
    // Predicated region
    $region26: #{bilstm_model.1} parent=1 // pred_check
      _
    $region27: #{bilstm_model.1} parent=1 // pred_check_branch
      %59 = sbr.rel (0) target = $region29
    $region28: #{bilstm_model.1} parent=1 // pred_region
      _
    $region29: #{bilstm_model.1} parent=1 // pred_fallthru
      _
    // Predicated region
    $region30: #{bilstm_model.1} parent=1 // pred_check
      _
    $region31: #{bilstm_model.1} parent=1 // pred_check_branch
      %61 = sbr.rel (0) target = $region33
    $region32: #{bilstm_model.1} parent=1 // pred_region
      _
    $region33: #{bilstm_model.1} parent=1 // pred_fallthru
      _
    // Predicated region
    $region34: #{bilstm_model.1} parent=1 // pred_check
      _
    $region35: #{bilstm_model.1} parent=1 // pred_check_branch
      %63 = sbr.rel (0) target = $region37
    $region36: #{bilstm_model.1} parent=1 // pred_region
      _
    $region37: #{bilstm_model.1} parent=1 // pred_fallthru
      _
    // Predicated region
    $region38: #{bilstm_model.1} parent=1 // pred_check
      _
    $region39: #{bilstm_model.1} parent=1 // pred_check_branch
      %65 = sbr.rel (0) target = $region41
    $region40: #{bilstm_model.1} parent=1 // pred_region
      %66 = dma.done [#allocation6], 8192
    $region41: #{bilstm_model.1} parent=1 // pred_fallthru
      _
    // Predicated region
    $region42: #{bilstm_model.1} parent=1 // pred_check
      _
    $region43: #{bilstm_model.1} parent=1 // pred_check_branch
      %68 = sbr.rel (0) target = $region45
    $region44: #{bilstm_model.1} parent=1 // pred_region
      %69 = dma.done [#allocation8], 16384
    $region45: #{bilstm_model.1} parent=1 // pred_fallthru
      _
    // Predicated region
    $region46: #{bilstm_model.1} parent=1 // pred_check
      _
    $region47: #{bilstm_model.1} parent=1 // pred_check_branch
      %71 = sbr.rel (0) target = $region49
    $region48: #{bilstm_model.1} parent=1 // pred_region
      %72 = dma.done [#allocation8], 8192
    $region49: #{bilstm_model.1} parent=1 // pred_fallthru
      _
    %v73 = vld [vmem:[%s0] sm:$0xff]
    %v74 = vld [vmem:[%s0 + $0x8] sm:$0xff]
    %v75 = vld [vmem:[%s0 + $0x10] sm:$0xff]
    %v76 = vld [vmem:[%s0 + $0x18] sm:$0xff]
    %v77 = vld [vmem:[%s0 + $0x20] sm:$0xff]
    %v78 = vld [vmem:[%s0 + $0x28] sm:$0xff]
    %v79 = vld [vmem:[%s0 + $0x30] sm:$0xff]
    %v80 = vld [vmem:[%s0 + $0x38] sm:$0xff]
    %v81 = vld [vmem:[%s1] sm:$0x3f]
    %v82 = vld [vmem:[%s1 + $0x8] sm:$0x3f]
    %v83 = vld [vmem:[%s1 + $0x10] sm:$0x3f]
    %v84 = vld [vmem:[%s1 + $0x18] sm:$0x3f]
    %v85 = vld [vmem:[%s3] sm:$0xf]
    %v87 = vlaneseq
    %v88 = vshrl.u32 %v87, 7
    %v89 = vsub.s32 0, %v88
    %v90 = vrot.slane %v85, %v89
    %v91 = vlaneseq
    %v92 = vshrl.u32 %v91, 7
    %v93 = vsub.s32 1, %v92
    %v94 = vrot.slane %v85, %v93
    %v95 = vlaneseq
    %v96 = vshrl.u32 %v95, 7
    %v97 = vsub.s32 2, %v96
    %v98 = vrot.slane %v85, %v97
    %v99 = vlaneseq
    %v100 = vshrl.u32 %v99, 7
    %v101 = vsub.s32 3, %v100
    %v102 = vrot.slane %v85, %v101
    %vm107 = vcmask 48128
    %v109 = vsel %vm107, %v73, 0
    %v112 = vsel %vm107, %v74, 0
    %v115 = vsel %vm107, %v75, 0
    %v118 = vsel %vm107, %v76, 0
    %v121 = vsel %vm107, %v77, 0
    %v124 = vsel %vm107, %v78, 0
    %v127 = vsel %vm107, %v79, 0
    %v130 = vsel %vm107, %v80, 0
    %vm132 = vcmask 1045504
    %v134 = vsel %vm132, %v81, 0
    %v137 = vsel %vm132, %v82, 0
    %v140 = vsel %vm132, %v83, 0
    %v143 = vsel %vm132, %v84, 0
    %145 = vmatprep.subr.mxu0 %v137
    %146 = vmatpush1.msra.mxu0 %v134
    %147 = vmatprep.subr.mxu0 0.0
    %148 = vmatpush1.msra.mxu0 0.0
    %149 = vmatprep.subr.mxu0 0.0
    %150 = vmatpush1.msra.mxu0 0.0
    %151 = vmatprep.subr.mxu0 0.0
    %152 = vmatpush1.msra.mxu0 0.0
    %153 = vmatprep.subr.mxu0 0.0
    %154 = vmatpush1.msra.mxu0 0.0
    %155 = vmatprep.subr.mxu0 0.0
    %156 = vmatpush1.msra.mxu0 0.0
    %157 = vmatprep.subr.mxu0 0.0
    %158 = vmatpush1.msra.mxu0 0.0
    %159 = vmatprep.subr.mxu0 0.0
    %160 = vmatpush1.msra.mxu0 0.0
    %161 = vmatprep.subr.mxu0 0.0
    %162 = vmatpush1.msra.mxu0 0.0
    %163 = vmatprep.subr.mxu0 0.0
    %164 = vmatpush1.msra.mxu0 0.0
    %165 = vmatprep.subr.mxu0 0.0
    %166 = vmatpush1.msra.mxu0 0.0
    %167 = vmatprep.subr.mxu0 0.0
    %168 = vmatpush1.msra.mxu0 0.0
    %169 = vmatprep.subr.mxu0 0.0
    %170 = vmatpush1.msra.mxu0 0.0
    %171 = vmatprep.subr.mxu0 0.0
    %172 = vmatpush1.msra.mxu0 0.0
    %173 = vmatprep.subr.mxu0 0.0
    %174 = vmatpush1.msra.mxu0 0.0
    %175 = vmatprep.subr.mxu0 0.0
    %176 = vmatpush1.msra.mxu0 0.0
    %177 = vmatprep.subr.mxu0 0.0
    %178 = vmatpush1.msra.mxu0 0.0
    %179 = vmatprep.subr.mxu0 0.0
    %180 = vmatpush1.msra.mxu0 0.0
    %181 = vmatprep.subr.mxu0 0.0
    %182 = vmatpush1.msra.mxu0 0.0
    %183 = vmatprep.subr.mxu0 0.0
    %184 = vmatpush1.msra.mxu0 0.0
    %185 = vmatprep.subr.mxu0 0.0
    %186 = vmatpush1.msra.mxu0 0.0
    %187 = vmatprep.subr.mxu0 0.0
    %188 = vmatpush1.msra.mxu0 0.0
    %189 = vmatprep.subr.mxu0 0.0
    %190 = vmatpush1.msra.mxu0 0.0
    %191 = vmatprep.subr.mxu0 0.0
    %192 = vmatpush1.msra.mxu0 0.0
    %193 = vmatprep.subr.mxu0 0.0
    %194 = vmatpush1.msra.mxu0 0.0
    %195 = vmatprep.subr.mxu0 0.0
    %196 = vmatpush1.msra.mxu0 0.0
    %197 = vmatprep.subr.mxu0 0.0
    %198 = vmatpush1.msra.mxu0 0.0
    %199 = vmatprep.subr.mxu0 0.0
    %200 = vmatpush1.msra.mxu0 0.0
    %201 = vmatprep.subr.mxu0 0.0
    %202 = vmatpush1.msra.mxu0 0.0
    %203 = vmatprep.subr.mxu0 0.0
    %204 = vmatpush1.msra.mxu0 0.0
    %205 = vmatprep.subr.mxu0 0.0
    %206 = vmatpush1.msra.mxu0 0.0
    %207 = vmatprep.subr.mxu0 0.0
    %208 = vmatpush1.msra.mxu0 0.0
    %209 = vmatprep.mubr.f32.mxu0 0.0
    %210 = vmatmul.mubr.f32.gmra.mrb[0].mxu0 %v109
    %v211 = vpop.f32.mrb[0].mxu0
    %v212 = vadd.f32 %v90, %v211
    %v213 = vpop.f32.mrb[0].mxu0
    %v214 = vadd.f32 %v94, %v213
    %215 = vmatprep.mubr.f32.mxu0 0.0
    %216 = vmatmul.mubr.f32.gmra.mrb[0].mxu0 %v112
    %v217 = vpop.f32.mrb[0].mxu0
    %v218 = vadd.f32 %v90, %v217
    %v219 = vpop.f32.mrb[0].mxu0
    %v220 = vadd.f32 %v94, %v219
    %221 = vmatprep.mubr.f32.mxu0 0.0
    %222 = vmatmul.mubr.f32.gmra.mrb[0].mxu0 %v115
    %v223 = vpop.f32.mrb[0].mxu0
    %v224 = vadd.f32 %v90, %v223
    %v225 = vpop.f32.mrb[0].mxu0
    %v226 = vadd.f32 %v94, %v225
    %227 = vmatprep.mubr.f32.mxu0 0.0
    %228 = vmatmul.mubr.f32.gmra.mrb[0].mxu0 %v118
    %v229 = vpop.f32.mrb[0].mxu0
    %v230 = vadd.f32 %v90, %v229
    %v231 = vpop.f32.mrb[0].mxu0
    %v232 = vadd.f32 %v94, %v231
    %233 = vmatprep.mubr.f32.mxu0 0.0
    %234 = vmatmul.mubr.f32.gmra.mrb[0].mxu0 %v121
    %v235 = vpop.f32.mrb[0].mxu0
    %v236 = vadd.f32 %v90, %v235
    %v237 = vpop.f32.mrb[0].mxu0
    %v238 = vadd.f32 %v94, %v237
    %239 = vmatprep.mubr.f32.mxu0 0.0
    %240 = vmatmul.mubr.f32.gmra.mrb[0].mxu0 %v124
    %v241 = vpop.f32.mrb[0].mxu0
    %v242 = vadd.f32 %v90, %v241
    %v243 = vpop.f32.mrb[0].mxu0
    %v244 = vadd.f32 %v94, %v243
    %245 = vmatprep.mubr.f32.mxu0 0.0
    %246 = vmatmul.mubr.f32.gmra.mrb[0].mxu0 %v127
    %v247 = vpop.f32.mrb[0].mxu0
    %v248 = vadd.f32 %v90, %v247
    %v249 = vpop.f32.mrb[0].mxu0
    %v250 = vadd.f32 %v94, %v249
    %251 = vmatprep.mubr.f32.mxu0 0.0
    %252 = vmatmul.mubr.f32.gmra.mrb[0].mxu0 %v130
    %v253 = vpop.f32.mrb[0].mxu0
    %v254 = vadd.f32 %v90, %v253
    %v255 = vpop.f32.mrb[0].mxu0
    %v256 = vadd.f32 %v94, %v255
    %257 = vdwg.mxu0
    %258 = vmatprep.subr.mxu0 %v143
    %259 = vmatpush1.msra.mxu0 %v140
    %260 = vmatprep.subr.mxu0 0.0
    %261 = vmatpush1.msra.mxu0 0.0
    %262 = vmatprep.subr.mxu0 0.0
    %263 = vmatpush1.msra.mxu0 0.0
    %264 = vmatprep.subr.mxu0 0.0
    %265 = vmatpush1.msra.mxu0 0.0
    %266 = vmatprep.subr.mxu0 0.0
    %267 = vmatpush1.msra.mxu0 0.0
    %268 = vmatprep.subr.mxu0 0.0
    %269 = vmatpush1.msra.mxu0 0.0
    %270 = vmatprep.subr.mxu0 0.0
    %271 = vmatpush1.msra.mxu0 0.0
    %272 = vmatprep.subr.mxu0 0.0
    %273 = vmatpush1.msra.mxu0 0.0
    %274 = vmatprep.subr.mxu0 0.0
    %275 = vmatpush1.msra.mxu0 0.0
    %276 = vmatprep.subr.mxu0 0.0
    %277 = vmatpush1.msra.mxu0 0.0
    %278 = vmatprep.subr.mxu0 0.0
    %279 = vmatpush1.msra.mxu0 0.0
    %280 = vmatprep.subr.mxu0 0.0
    %281 = vmatpush1.msra.mxu0 0.0
    %282 = vmatprep.subr.mxu0 0.0
    %283 = vmatpush1.msra.mxu0 0.0
    %284 = vmatprep.subr.mxu0 0.0
    %285 = vmatpush1.msra.mxu0 0.0
    %286 = vmatprep.subr.mxu0 0.0
    %287 = vmatpush1.msra.mxu0 0.0
    %288 = vmatprep.subr.mxu0 0.0
    %289 = vmatpush1.msra.mxu0 0.0
    %290 = vmatprep.subr.mxu0 0.0
    %291 = vmatpush1.msra.mxu0 0.0
    %292 = vmatprep.subr.mxu0 0.0
    %293 = vmatpush1.msra.mxu0 0.0
    %294 = vmatprep.subr.mxu0 0.0
    %295 = vmatpush1.msra.mxu0 0.0
    %296 = vmatprep.subr.mxu0 0.0
    %297 = vmatpush1.msra.mxu0 0.0
    %298 = vmatprep.subr.mxu0 0.0
    %299 = vmatpush1.msra.mxu0 0.0
    %300 = vmatprep.subr.mxu0 0.0
    %301 = vmatpush1.msra.mxu0 0.0
    %302 = vmatprep.subr.mxu0 0.0
    %303 = vmatpush1.msra.mxu0 0.0
    %304 = vmatprep.subr.mxu0 0.0
    %305 = vmatpush1.msra.mxu0 0.0
    %306 = vmatprep.subr.mxu0 0.0
    %307 = vmatpush1.msra.mxu0 0.0
    %308 = vmatprep.subr.mxu0 0.0
    %309 = vmatpush1.msra.mxu0 0.0
    %310 = vmatprep.subr.mxu0 0.0
    %311 = vmatpush1.msra.mxu0 0.0
    %312 = vmatprep.subr.mxu0 0.0
    %313 = vmatpush1.msra.mxu0 0.0
    %314 = vmatprep.subr.mxu0 0.0
    %315 = vmatpush1.msra.mxu0 0.0
    %316 = vmatprep.subr.mxu0 0.0
    %317 = vmatpush1.msra.mxu0 0.0
    %318 = vmatprep.subr.mxu0 0.0
    %319 = vmatpush1.msra.mxu0 0.0
    %320 = vmatprep.subr.mxu0 0.0
    %321 = vmatpush1.msra.mxu0 0.0
    %322 = vmatprep.mubr.f32.mxu0 0.0
    %323 = vmatmul.mubr.f32.gmra.mrb[0].mxu0 %v109
    %v324 = vpop.f32.mrb[0].mxu0
    %v325 = vadd.f32 %v98, %v324
    %v326 = vpop.f32.mrb[0].mxu0
    %v327 = vadd.f32 %v102, %v326
    %328 = vmatprep.mubr.f32.mxu0 0.0
    %329 = vmatmul.mubr.f32.gmra.mrb[0].mxu0 %v112
    %v330 = vpop.f32.mrb[0].mxu0
    %v331 = vadd.f32 %v98, %v330
    %v332 = vpop.f32.mrb[0].mxu0
    %v333 = vadd.f32 %v102, %v332
    %334 = vmatprep.mubr.f32.mxu0 0.0
    %335 = vmatmul.mubr.f32.gmra.mrb[0].mxu0 %v115
    %v336 = vpop.f32.mrb[0].mxu0
    %v337 = vadd.f32 %v98, %v336
    %v338 = vpop.f32.mrb[0].mxu0
    %v339 = vadd.f32 %v102, %v338
    %340 = vmatprep.mubr.f32.mxu0 0.0
    %341 = vmatmul.mubr.f32.gmra.mrb[0].mxu0 %v118
    %v342 = vpop.f32.mrb[0].mxu0
    %v343 = vadd.f32 %v98, %v342
    %v344 = vpop.f32.mrb[0].mxu0
    %v345 = vadd.f32 %v102, %v344
    %346 = vmatprep.mubr.f32.mxu0 0.0
    %347 = vmatmul.mubr.f32.gmra.mrb[0].mxu0 %v121
    %v348 = vpop.f32.mrb[0].mxu0
    %v349 = vadd.f32 %v98, %v348
    %v350 = vpop.f32.mrb[0].mxu0
    %v351 = vadd.f32 %v102, %v350
    %352 = vmatprep.mubr.f32.mxu0 0.0
    %353 = vmatmul.mubr.f32.gmra.mrb[0].mxu0 %v124
    %v354 = vpop.f32.mrb[0].mxu0
    %v355 = vadd.f32 %v98, %v354
    %v356 = vpop.f32.mrb[0].mxu0
    %v357 = vadd.f32 %v102, %v356
    %358 = vmatprep.mubr.f32.mxu0 0.0
    %359 = vmatmul.mubr.f32.gmra.mrb[0].mxu0 %v127
    %v360 = vpop.f32.mrb[0].mxu0
    %v361 = vadd.f32 %v98, %v360
    %v362 = vpop.f32.mrb[0].mxu0
    %v363 = vadd.f32 %v102, %v362
    %364 = vmatprep.mubr.f32.mxu0 0.0
    %365 = vmatmul.mubr.f32.gmra.mrb[0].mxu0 %v130
    %v366 = vpop.f32.mrb[0].mxu0
    %v367 = vadd.f32 %v98, %v366
    %v368 = vpop.f32.mrb[0].mxu0
    %v369 = vadd.f32 %v102, %v368
    %370 = vdwg.mxu0
    %371 = vst [vmem:[#allocation2] sm:$0xff] %v212
    %372 = vst [vmem:[#allocation2 + $0x8] sm:$0xff] %v214
    %373 = vst [vmem:[#allocation2 + $0x10] sm:$0xff] %v325
    %374 = vst [vmem:[#allocation2 + $0x18] sm:$0xff] %v327
    %375 = vst [vmem:[#allocation2 + $0x20] sm:$0xff] %v218
    %376 = vst [vmem:[#allocation2 + $0x28] sm:$0xff] %v220
    %377 = vst [vmem:[#allocation2 + $0x30] sm:$0xff] %v331
    %378 = vst [vmem:[#allocation2 + $0x38] sm:$0xff] %v333
    %379 = vst [vmem:[#allocation2 + $0x40] sm:$0xff] %v224
    %380 = vst [vmem:[#allocation2 + $0x48] sm:$0xff] %v226
    %381 = vst [vmem:[#allocation2 + $0x50] sm:$0xff] %v337
    %382 = vst [vmem:[#allocation2 + $0x58] sm:$0xff] %v339
    %383 = vst [vmem:[#allocation2 + $0x60] sm:$0xff] %v230
    %384 = vst [vmem:[#allocation2 + $0x68] sm:$0xff] %v232
    %385 = vst [vmem:[#allocation2 + $0x70] sm:$0xff] %v343
    %386 = vst [vmem:[#allocation2 + $0x78] sm:$0xff] %v345
    %387 = vst [vmem:[#allocation2 + $0x80] sm:$0xff] %v236
    %388 = vst [vmem:[#allocation2 + $0x88] sm:$0xff] %v238
    %389 = vst [vmem:[#allocation2 + $0x90] sm:$0xff] %v349
    %390 = vst [vmem:[#allocation2 + $0x98] sm:$0xff] %v351
    %391 = vst [vmem:[#allocation2 + $0xa0] sm:$0xff] %v242
    %392 = vst [vmem:[#allocation2 + $0xa8] sm:$0xff] %v244
    %393 = vst [vmem:[#allocation2 + $0xb0] sm:$0xff] %v355
    %394 = vst [vmem:[#allocation2 + $0xb8] sm:$0xff] %v357
    %395 = vst [vmem:[#allocation2 + $0xc0] sm:$0xff] %v248
    %396 = vst [vmem:[#allocation2 + $0xc8] sm:$0xff] %v250
    %397 = vst [vmem:[#allocation2 + $0xd0] sm:$0xff] %v361
    %398 = vst [vmem:[#allocation2 + $0xd8] sm:$0xff] %v363
    %399 = vst [vmem:[#allocation2 + $0xe0] sm:$0xff] %v254
    %400 = vst [vmem:[#allocation2 + $0xe8] sm:$0xff] %v256
    %401 = vst [vmem:[#allocation2 + $0xf0] sm:$0xff] %v367
    %402 = vst [vmem:[#allocation2 + $0xf8] sm:$0xff] %v369
    %v403 = vld [vmem:[#allocation2] sm:$0xff]
    %v404 = vld [vmem:[#allocation2 + $0x8] sm:$0xff]
    %v405 = vld [vmem:[#allocation2 + $0x10] sm:$0xff]
    %v406 = vld [vmem:[#allocation2 + $0x18] sm:$0xff]
    %v407 = vld [vmem:[#allocation5] sm:$0xff]
    %v408 = vld [vmem:[#allocation5 + $0x8] sm:$0xff]
    %v409 = vld [vmem:[#allocation5 + $0x10] sm:$0xff]
    %v410 = vld [vmem:[#allocation5 + $0x18] sm:$0xff]
    %v411 = vld [vmem:[#allocation5 + $0x20] sm:$0xff]
    %v412 = vld [vmem:[#allocation5 + $0x28] sm:$0xff]
    %v413 = vld [vmem:[#allocation5 + $0x30] sm:$0xff]
    %v414 = vld [vmem:[#allocation5 + $0x38] sm:$0xff]
    %v415 = vld [vmem:[#allocation5 + $0x40] sm:$0xff]
    %v416 = vld [vmem:[#allocation5 + $0x48] sm:$0xff]
    %v417 = vld [vmem:[#allocation5 + $0x50] sm:$0xff]
    %v418 = vld [vmem:[#allocation5 + $0x58] sm:$0xff]
    %v419 = vld [vmem:[#allocation5 + $0x60] sm:$0xff]
    %v420 = vld [vmem:[#allocation5 + $0x68] sm:$0xff]
    %v421 = vld [vmem:[#allocation5 + $0x70] sm:$0xff]
    %v422 = vld [vmem:[#allocation5 + $0x78] sm:$0xff]
    %v423 = vld [vmem:[#allocation5 + $0x80] sm:$0xff]
    %v424 = vld [vmem:[#allocation5 + $0x88] sm:$0xff]
    %v425 = vld [vmem:[#allocation5 + $0x90] sm:$0xff]
    %v426 = vld [vmem:[#allocation5 + $0x98] sm:$0xff]
    %v427 = vld [vmem:[#allocation5 + $0xa0] sm:$0xff]
    %v428 = vld [vmem:[#allocation5 + $0xa8] sm:$0xff]
    %v429 = vld [vmem:[#allocation5 + $0xb0] sm:$0xff]
    %v430 = vld [vmem:[#allocation5 + $0xb8] sm:$0xff]
    %v431 = vld [vmem:[#allocation5 + $0xc0] sm:$0xff]
    %v432 = vld [vmem:[#allocation5 + $0xc8] sm:$0xff]
    %v433 = vld [vmem:[#allocation5 + $0xd0] sm:$0xff]
    %v434 = vld [vmem:[#allocation5 + $0xd8] sm:$0xff]
    %v435 = vld [vmem:[#allocation5 + $0xe0] sm:$0xff]
    %v436 = vld [vmem:[#allocation5 + $0xe8] sm:$0xff]
    %v437 = vld [vmem:[#allocation5 + $0xf0] sm:$0xff]
    %v438 = vld [vmem:[#allocation5 + $0xf8] sm:$0xff]
    %v439 = vld [vmem:[#allocation5 + $0x100] sm:$0xff]
    %v440 = vld [vmem:[#allocation5 + $0x108] sm:$0xff]
    %v441 = vld [vmem:[#allocation5 + $0x110] sm:$0xff]
    %v442 = vld [vmem:[#allocation5 + $0x118] sm:$0xff]
    %v443 = vld [vmem:[#allocation5 + $0x120] sm:$0xff]
    %v444 = vld [vmem:[#allocation5 + $0x128] sm:$0xff]
    %v445 = vld [vmem:[#allocation5 + $0x130] sm:$0xff]
    %v446 = vld [vmem:[#allocation5 + $0x138] sm:$0xff]
    %v447 = vld [vmem:[#allocation5 + $0x140] sm:$0xff]
    %v448 = vld [vmem:[#allocation5 + $0x148] sm:$0xff]
    %v449 = vld [vmem:[#allocation5 + $0x150] sm:$0xff]
    %v450 = vld [vmem:[#allocation5 + $0x158] sm:$0xff]
    %v451 = vld [vmem:[#allocation5 + $0x160] sm:$0xff]
    %v452 = vld [vmem:[#allocation5 + $0x168] sm:$0xff]
    %v453 = vld [vmem:[#allocation5 + $0x170] sm:$0xff]
    %v454 = vld [vmem:[#allocation5 + $0x178] sm:$0xff]
    %v455 = vld [vmem:[#allocation5 + $0x180] sm:$0xff]
    %v456 = vld [vmem:[#allocation5 + $0x188] sm:$0xff]
    %v457 = vld [vmem:[#allocation5 + $0x190] sm:$0xff]
    %v458 = vld [vmem:[#allocation5 + $0x198] sm:$0xff]
    %v459 = vld [vmem:[#allocation5 + $0x1a0] sm:$0xff]
    %v460 = vld [vmem:[#allocation5 + $0x1a8] sm:$0xff]
    %v461 = vld [vmem:[#allocation5 + $0x1b0] sm:$0xff]
    %v462 = vld [vmem:[#allocation5 + $0x1b8] sm:$0xff]
    %v463 = vld [vmem:[#allocation5 + $0x1c0] sm:$0xff]
    %v464 = vld [vmem:[#allocation5 + $0x1c8] sm:$0xff]
    %v465 = vld [vmem:[#allocation5 + $0x1d0] sm:$0xff]
    %v466 = vld [vmem:[#allocation5 + $0x1d8] sm:$0xff]
    %v467 = vld [vmem:[#allocation5 + $0x1e0] sm:$0xff]
    %v468 = vld [vmem:[#allocation5 + $0x1e8] sm:$0xff]
    %v469 = vld [vmem:[#allocation5 + $0x1f0] sm:$0xff]
    %v470 = vld [vmem:[#allocation5 + $0x1f8] sm:$0xff]
    %471 = vmatprep.subr.mxu0 %v408
    %472 = vmatpush1.msra.mxu0 %v407
    %473 = vmatprep.subr.mxu0 %v412
    %474 = vmatpush1.msra.mxu0 %v411
    %475 = vmatprep.subr.mxu0 %v416
    %476 = vmatpush1.msra.mxu0 %v415
    %477 = vmatprep.subr.mxu0 %v420
    %478 = vmatpush1.msra.mxu0 %v419
    %479 = vmatprep.subr.mxu0 %v424
    %480 = vmatpush1.msra.mxu0 %v423
    %481 = vmatprep.subr.mxu0 %v428
    %482 = vmatpush1.msra.mxu0 %v427
    %483 = vmatprep.subr.mxu0 %v432
    %484 = vmatpush1.msra.mxu0 %v431
    %485 = vmatprep.subr.mxu0 %v436
    %486 = vmatpush1.msra.mxu0 %v435
    %487 = vmatprep.subr.mxu0 %v440
    %488 = vmatpush1.msra.mxu0 %v439
    %489 = vmatprep.subr.mxu0 %v444
    %490 = vmatpush1.msra.mxu0 %v443
    %491 = vmatprep.subr.mxu0 %v448
    %492 = vmatpush1.msra.mxu0 %v447
    %493 = vmatprep.subr.mxu0 %v452
    %494 = vmatpush1.msra.mxu0 %v451
    %495 = vmatprep.subr.mxu0 %v456
    %496 = vmatpush1.msra.mxu0 %v455
    %497 = vmatprep.subr.mxu0 %v460
    %498 = vmatpush1.msra.mxu0 %v459
    %499 = vmatprep.subr.mxu0 %v464
    %500 = vmatpush1.msra.mxu0 %v463
    %501 = vmatprep.subr.mxu0 %v468
    %502 = vmatpush1.msra.mxu0 %v467
    %503 = vmatprep.subr.mxu0 0.0
    %504 = vmatpush1.msra.mxu0 0.0
    %505 = vmatprep.subr.mxu0 0.0
    %506 = vmatpush1.msra.mxu0 0.0
    %507 = vmatprep.subr.mxu0 0.0
    %508 = vmatpush1.msra.mxu0 0.0
    %509 = vmatprep.subr.mxu0 0.0
    %510 = vmatpush1.msra.mxu0 0.0
    %511 = vmatprep.subr.mxu0 0.0
    %512 = vmatpush1.msra.mxu0 0.0
    %513 = vmatprep.subr.mxu0 0.0
    %514 = vmatpush1.msra.mxu0 0.0
    %515 = vmatprep.subr.mxu0 0.0
    %516 = vmatpush1.msra.mxu0 0.0
    %517 = vmatprep.subr.mxu0 0.0
    %518 = vmatpush1.msra.mxu0 0.0
    %519 = vmatprep.subr.mxu0 0.0
    %520 = vmatpush1.msra.mxu0 0.0
    %521 = vmatprep.subr.mxu0 0.0
    %522 = vmatpush1.msra.mxu0 0.0
    %523 = vmatprep.subr.mxu0 0.0
    %524 = vmatpush1.msra.mxu0 0.0
    %525 = vmatprep.subr.mxu0 0.0
    %526 = vmatpush1.msra.mxu0 0.0
    %527 = vmatprep.subr.mxu0 0.0
    %528 = vmatpush1.msra.mxu0 0.0
    %529 = vmatprep.subr.mxu0 0.0
    %530 = vmatpush1.msra.mxu0 0.0
    %531 = vmatprep.subr.mxu0 0.0
    %532 = vmatpush1.msra.mxu0 0.0
    %533 = vmatprep.subr.mxu0 0.0
    %534 = vmatpush1.msra.mxu0 0.0
    %535 = vmatprep.mubr.f32.mxu0 0.0
    %536 = vmatmul.mubr.f32.gmra.mrb[0].mxu0 0.0
    %v537 = vpop.f32.mrb[0].mxu0
    %v538 = vadd.f32 0.0, %v537
    %v539 = vpop.f32.mrb[0].mxu0
    %v540 = vadd.f32 0.0, %v539
    %541 = vdwg.mxu0
    %542 = vmatprep.subr.mxu0 %v410
    %543 = vmatpush1.msra.mxu0 %v409
    %544 = vmatprep.subr.mxu0 %v414
    %545 = vmatpush1.msra.mxu0 %v413
    %546 = vmatprep.subr.mxu0 %v418
    %547 = vmatpush1.msra.mxu0 %v417
    %548 = vmatprep.subr.mxu0 %v422
    %549 = vmatpush1.msra.mxu0 %v421
    %550 = vmatprep.subr.mxu0 %v426
    %551 = vmatpush1.msra.mxu0 %v425
    %552 = vmatprep.subr.mxu0 %v430
    %553 = vmatpush1.msra.mxu0 %v429
    %554 = vmatprep.subr.mxu0 %v434
    %555 = vmatpush1.msra.mxu0 %v433
    %556 = vmatprep.subr.mxu0 %v438
    %557 = vmatpush1.msra.mxu0 %v437
    %558 = vmatprep.subr.mxu0 %v442
    %559 = vmatpush1.msra.mxu0 %v441
    %560 = vmatprep.subr.mxu0 %v446
    %561 = vmatpush1.msra.mxu0 %v445
    %562 = vmatprep.subr.mxu0 %v450
    %563 = vmatpush1.msra.mxu0 %v449
    %564 = vmatprep.subr.mxu0 %v454
    %565 = vmatpush1.msra.mxu0 %v453
    %566 = vmatprep.subr.mxu0 %v458
    %567 = vmatpush1.msra.mxu0 %v457
    %568 = vmatprep.subr.mxu0 %v462
    %569 = vmatpush1.msra.mxu0 %v461
    %570 = vmatprep.subr.mxu0 %v466
    %571 = vmatpush1.msra.mxu0 %v465
    %572 = vmatprep.subr.mxu0 %v470
    %573 = vmatpush1.msra.mxu0 %v469
    %574 = vmatprep.subr.mxu0 0.0
    %575 = vmatpush1.msra.mxu0 0.0
    %576 = vmatprep.subr.mxu0 0.0
    %577 = vmatpush1.msra.mxu0 0.0
    %578 = vmatprep.subr.mxu0 0.0
    %579 = vmatpush1.msra.mxu0 0.0
    %580 = vmatprep.subr.mxu0 0.0
    %581 = vmatpush1.msra.mxu0 0.0
    %582 = vmatprep.subr.mxu0 0.0
    %583 = vmatpush1.msra.mxu0 0.0
    %584 = vmatprep.subr.mxu0 0.0
    %585 = vmatpush1.msra.mxu0 0.0
    %586 = vmatprep.subr.mxu0 0.0
    %587 = vmatpush1.msra.mxu0 0.0
    %588 = vmatprep.subr.mxu0 0.0
    %589 = vmatpush1.msra.mxu0 0.0
    %590 = vmatprep.subr.mxu0 0.0
    %591 = vmatpush1.msra.mxu0 0.0
    %592 = vmatprep.subr.mxu0 0.0
    %593 = vmatpush1.msra.mxu0 0.0
    %594 = vmatprep.subr.mxu0 0.0
    %595 = vmatpush1.msra.mxu0 0.0
    %596 = vmatprep.subr.mxu0 0.0
    %597 = vmatpush1.msra.mxu0 0.0
    %598 = vmatprep.subr.mxu0 0.0
    %599 = vmatpush1.msra.mxu0 0.0
    %600 = vmatprep.subr.mxu0 0.0
    %601 = vmatpush1.msra.mxu0 0.0
    %602 = vmatprep.subr.mxu0 0.0
    %603 = vmatpush1.msra.mxu0 0.0
    %604 = vmatprep.subr.mxu0 0.0
    %605 = vmatpush1.msra.mxu0 0.0
    %606 = vmatprep.mubr.f32.mxu0 0.0
    %607 = vmatmul.mubr.f32.gmra.mrb[0].mxu0 0.0
    %v608 = vpop.f32.mrb[0].mxu0
    %v609 = vadd.f32 0.0, %v608
    %v610 = vpop.f32.mrb[0].mxu0
    %v611 = vadd.f32 0.0, %v610
    %612 = vdwg.mxu0
    %v613 = vadd.f32 %v403, %v538
    %v614 = vadd.f32 %v404, %v540
    %v615 = vadd.f32 %v405, %v609
    %v616 = vadd.f32 %v406, %v611
    %v617 = vmul.f32 %v613, 0.5
    %v618 = vmul.f32 %v614, 0.5
    %v619 = vmul.f32 %v615, 0.5
    %v620 = vtanh.pop %v617
    %v621 = vtanh.pop %v618
    %v622 = vtanh.pop %v619
    %v623 = vmul.f32 %v620, 0.5
    %v624 = vmul.f32 %v621, 0.5
    %v625 = vmul.f32 %v622, 0.5
    %v626 = vadd.f32 %v623, 0.5
    %v627 = vadd.f32 %v624, 0.5
    %v628 = vadd.f32 %v625, 0.5
    %v629 = vtanh.pop %v616
    %v630 = vmul.f32 %v627, 0.0
    %v631 = vmul.f32 %v626, %v629
    %v632 = vadd.f32 %v630, %v631
    %v633 = vtanh.pop %v632
    %v634 = vmul.f32 %v628, %v633
    %vm635 = vcmask 523264
    %636 = vst.msk [vmem:[#allocation3] sm:$0xff] %vm635, %v634
    %vm637 = vcmask 1048064
    %638 = vst.msk [vmem:[#allocation3 + $0x70] sm:$0xff] %vm637, %v634
    %639 = vst.msk [vmem:[#allocation3 + $0x78] sm:$0xff] %vm635, %v634
    %640 = vst.msk [vmem:[#allocation3 + $0x8] sm:$0xff] %vm637, %v634
    %v641 = vld [vmem:[#allocation2 + $0x20] sm:$0xff]
    %v642 = vld [vmem:[#allocation2 + $0x28] sm:$0xff]
    %v643 = vld [vmem:[#allocation2 + $0x30] sm:$0xff]
    %v644 = vld [vmem:[#allocation2 + $0x38] sm:$0xff]
    %v645 = vld [vmem:[#allocation5] sm:$0xff]
    %v646 = vld [vmem:[#allocation5 + $0x8] sm:$0xff]
    %v647 = vld [vmem:[#allocation5 + $0x10] sm:$0xff]
    %v648 = vld [vmem:[#allocation5 + $0x18] sm:$0xff]
    %v649 = vld [vmem:[#allocation5 + $0x20] sm:$0xff]
    %v650 = vld [vmem:[#allocation5 + $0x28] sm:$0xff]
    %v651 = vld [vmem:[#allocation5 + $0x30] sm:$0xff]
    %v652 = vld [vmem:[#allocation5 + $0x38] sm:$0xff]
    %v653 = vld [vmem:[#allocation5 + $0x40] sm:$0xff]
    %v654 = vld [vmem:[#allocation5 + $0x48] sm:$0xff]
    %v655 = vld [vmem:[#allocation5 + $0x50] sm:$0xff]
    %v656 = vld [vmem:[#allocation5 + $0x58] sm:$0xff]
    %v657 = vld [vmem:[#allocation5 + $0x60] sm:$0xff]
    %v658 = vld [vmem:[#allocation5 + $0x68] sm:$0xff]
    %v659 = vld [vmem:[#allocation5 + $0x70] sm:$0xff]
    %v660 = vld [vmem:[#allocation5 + $0x78] sm:$0xff]
    %v661 = vld [vmem:[#allocation5 + $0x80] sm:$0xff]
    %v662 = vld [vmem:[#allocation5 + $0x88] sm:$0xff]
    %v663 = vld [vmem:[#allocation5 + $0x90] sm:$0xff]
    %v664 = vld [vmem:[#allocation5 + $0x98] sm:$0xff]
    %v665 = vld [vmem:[#allocation5 + $0xa0] sm:$0xff]
    %v666 = vld [vmem:[#allocation5 + $0xa8] sm:$0xff]
    %v667 = vld [vmem:[#allocation5 + $0xb0] sm:$0xff]
    %v668 = vld [vmem:[#allocation5 + $0xb8] sm:$0xff]
    %v669 = vld [vmem:[#allocation5 + $0xc0] sm:$0xff]
    %v670 = vld [vmem:[#allocation5 + $0xc8] sm:$0xff]
    %v671 = vld [vmem:[#allocation5 + $0xd0] sm:$0xff]
    %v672 = vld [vmem:[#allocation5 + $0xd8] sm:$0xff]
    %v673 = vld [vmem:[#allocation5 + $0xe0] sm:$0xff]
    %v674 = vld [vmem:[#allocation5 + $0xe8] sm:$0xff]
    %v675 = vld [vmem:[#allocation5 + $0xf0] sm:$0xff]
    %v676 = vld [vmem:[#allocation5 + $0xf8] sm:$0xff]
    %v677 = vld [vmem:[#allocation5 + $0x100] sm:$0xff]
    %v678 = vld [vmem:[#allocation5 + $0x108] sm:$0xff]
    %v679 = vld [vmem:[#allocation5 + $0x110] sm:$0xff]
    %v680 = vld [vmem:[#allocation5 + $0x118] sm:$0xff]
    %v681 = vld [vmem:[#allocation5 + $0x120] sm:$0xff]
    %v682 = vld [vmem:[#allocation5 + $0x128] sm:$0xff]
    %v683 = vld [vmem:[#allocation5 + $0x130] sm:$0xff]
    %v684 = vld [vmem:[#allocation5 + $0x138] sm:$0xff]
    %v685 = vld [vmem:[#allocation5 + $0x140] sm:$0xff]
    %v686 = vld [vmem:[#allocation5 + $0x148] sm:$0xff]
    %v687 = vld [vmem:[#allocation5 + $0x150] sm:$0xff]
    %v688 = vld [vmem:[#allocation5 + $0x158] sm:$0xff]
    %v689 = vld [vmem:[#allocation5 + $0x160] sm:$0xff]
    %v690 = vld [vmem:[#allocation5 + $0x168] sm:$0xff]
    %v691 = vld [vmem:[#allocation5 + $0x170] sm:$0xff]
    %v692 = vld [vmem:[#allocation5 + $0x178] sm:$0xff]
    %v693 = vld [vmem:[#allocation5 + $0x180] sm:$0xff]
    %v694 = vld [vmem:[#allocation5 + $0x188] sm:$0xff]
    %v695 = vld [vmem:[#allocation5 + $0x190] sm:$0xff]
    %v696 = vld [vmem:[#allocation5 + $0x198] sm:$0xff]
    %v697 = vld [vmem:[#allocation5 + $0x1a0] sm:$0xff]
    %v698 = vld [vmem:[#allocation5 + $0x1a8] sm:$0xff]
    %v699 = vld [vmem:[#allocation5 + $0x1b0] sm:$0xff]
    %v700 = vld [vmem:[#allocation5 + $0x1b8] sm:$0xff]
    %v701 = vld [vmem:[#allocation5 + $0x1c0] sm:$0xff]
    %v702 = vld [vmem:[#allocation5 + $0x1c8] sm:$0xff]
    %v703 = vld [vmem:[#allocation5 + $0x1d0] sm:$0xff]
    %v704 = vld [vmem:[#allocation5 + $0x1d8] sm:$0xff]
    %v705 = vld [vmem:[#allocation5 + $0x1e0] sm:$0xff]
    %v706 = vld [vmem:[#allocation5 + $0x1e8] sm:$0xff]
    %v707 = vld [vmem:[#allocation5 + $0x1f0] sm:$0xff]
    %v708 = vld [vmem:[#allocation5 + $0x1f8] sm:$0xff]
    %709 = vmatprep.subr.mxu0 %v646
    %710 = vmatpush1.msra.mxu0 %v645
    %711 = vmatprep.subr.mxu0 %v650
    %712 = vmatpush1.msra.mxu0 %v649
    %713 = vmatprep.subr.mxu0 %v654
    %714 = vmatpush1.msra.mxu0 %v653
    %715 = vmatprep.subr.mxu0 %v658
    %716 = vmatpush1.msra.mxu0 %v657
    %717 = vmatprep.subr.mxu0 %v662
    %718 = vmatpush1.msra.mxu0 %v661
    %719 = vmatprep.subr.mxu0 %v666
    %720 = vmatpush1.msra.mxu0 %v665
    %721 = vmatprep.subr.mxu0 %v670
    %722 = vmatpush1.msra.mxu0 %v669
    %723 = vmatprep.subr.mxu0 %v674
    %724 = vmatpush1.msra.mxu0 %v673
    %725 = vmatprep.subr.mxu0 %v678
    %726 = vmatpush1.msra.mxu0 %v677
    %727 = vmatprep.subr.mxu0 %v682
    %728 = vmatpush1.msra.mxu0 %v681
    %729 = vmatprep.subr.mxu0 %v686
    %730 = vmatpush1.msra.mxu0 %v685
    %731 = vmatprep.subr.mxu0 %v690
    %732 = vmatpush1.msra.mxu0 %v689
    %733 = vmatprep.subr.mxu0 %v694
    %734 = vmatpush1.msra.mxu0 %v693
    %735 = vmatprep.subr.mxu0 %v698
    %736 = vmatpush1.msra.mxu0 %v697
    %737 = vmatprep.subr.mxu0 %v702
    %738 = vmatpush1.msra.mxu0 %v701
    %739 = vmatprep.subr.mxu0 %v706
    %740 = vmatpush1.msra.mxu0 %v705
    %741 = vmatprep.subr.mxu0 0.0
    %742 = vmatpush1.msra.mxu0 0.0
    %743 = vmatprep.subr.mxu0 0.0
    %744 = vmatpush1.msra.mxu0 0.0
    %745 = vmatprep.subr.mxu0 0.0
    %746 = vmatpush1.msra.mxu0 0.0
    %747 = vmatprep.subr.mxu0 0.0
    %748 = vmatpush1.msra.mxu0 0.0
    %749 = vmatprep.subr.mxu0 0.0
    %750 = vmatpush1.msra.mxu0 0.0
    %751 = vmatprep.subr.mxu0 0.0
    %752 = vmatpush1.msra.mxu0 0.0
    %753 = vmatprep.subr.mxu0 0.0
    %754 = vmatpush1.msra.mxu0 0.0
    %755 = vmatprep.subr.mxu0 0.0
    %756 = vmatpush1.msra.mxu0 0.0
    %757 = vmatprep.subr.mxu0 0.0
    %758 = vmatpush1.msra.mxu0 0.0
    %759 = vmatprep.subr.mxu0 0.0
    %760 = vmatpush1.msra.mxu0 0.0
    %761 = vmatprep.subr.mxu0 0.0
    %762 = vmatpush1.msra.mxu0 0.0
    %763 = vmatprep.subr.mxu0 0.0
    %764 = vmatpush1.msra.mxu0 0.0
    %765 = vmatprep.subr.mxu0 0.0
    %766 = vmatpush1.msra.mxu0 0.0
    %767 = vmatprep.subr.mxu0 0.0
    %768 = vmatpush1.msra.mxu0 0.0
    %769 = vmatprep.subr.mxu0 0.0
    %770 = vmatpush1.msra.mxu0 0.0
    %771 = vmatprep.subr.mxu0 0.0
    %772 = vmatpush1.msra.mxu0 0.0
    %773 = vmatprep.mubr.f32.mxu0 0.0
    %774 = vmatmul.mubr.f32.gmra.mrb[0].mxu0 %v634
    %v775 = vpop.f32.mrb[0].mxu0
    %v776 = vadd.f32 0.0, %v775
    %v777 = vpop.f32.mrb[0].mxu0
    %v778 = vadd.f32 0.0, %v777
    %779 = vdwg.mxu0
    %780 = vmatprep.subr.mxu0 %v648
    %781 = vmatpush1.msra.mxu0 %v647
    %782 = vmatprep.subr.mxu0 %v652
    %783 = vmatpush1.msra.mxu0 %v651
    %784 = vmatprep.subr.mxu0 %v656
    %785 = vmatpush1.msra.mxu0 %v655
    %786 = vmatprep.subr.mxu0 %v660
    %787 = vmatpush1.msra.mxu0 %v659
    %788 = vmatprep.subr.mxu0 %v664
    %789 = vmatpush1.msra.mxu0 %v663
    %790 = vmatprep.subr.mxu0 %v668
    %791 = vmatpush1.msra.mxu0 %v667
    %792 = vmatprep.subr.mxu0 %v672
    %793 = vmatpush1.msra.mxu0 %v671
    %794 = vmatprep.subr.mxu0 %v676
    %795 = vmatpush1.msra.mxu0 %v675
    %796 = vmatprep.subr.mxu0 %v680
    %797 = vmatpush1.msra.mxu0 %v679
    %798 = vmatprep.subr.mxu0 %v684
    %799 = vmatpush1.msra.mxu0 %v683
    %800 = vmatprep.subr.mxu0 %v688
    %801 = vmatpush1.msra.mxu0 %v687
    %802 = vmatprep.subr.mxu0 %v692
    %803 = vmatpush1.msra.mxu0 %v691
    %804 = vmatprep.subr.mxu0 %v696
    %805 = vmatpush1.msra.mxu0 %v695
    %806 = vmatprep.subr.mxu0 %v700
    %807 = vmatpush1.msra.mxu0 %v699
    %808 = vmatprep.subr.mxu0 %v704
    %809 = vmatpush1.msra.mxu0 %v703
    %810 = vmatprep.subr.mxu0 %v708
    %811 = vmatpush1.msra.mxu0 %v707
    %812 = vmatprep.subr.mxu0 0.0
    %813 = vmatpush1.msra.mxu0 0.0
    %814 = vmatprep.subr.mxu0 0.0
    %815 = vmatpush1.msra.mxu0 0.0
    %816 = vmatprep.subr.mxu0 0.0
    %817 = vmatpush1.msra.mxu0 0.0
    %818 = vmatprep.subr.mxu0 0.0
    %819 = vmatpush1.msra.mxu0 0.0
    %820 = vmatprep.subr.mxu0 0.0
    %821 = vmatpush1.msra.mxu0 0.0
    %822 = vmatprep.subr.mxu0 0.0
    %823 = vmatpush1.msra.mxu0 0.0
    %824 = vmatprep.subr.mxu0 0.0
    %825 = vmatpush1.msra.mxu0 0.0
    %826 = vmatprep.subr.mxu0 0.0
    %827 = vmatpush1.msra.mxu0 0.0
    %828 = vmatprep.subr.mxu0 0.0
    %829 = vmatpush1.msra.mxu0 0.0
    %830 = vmatprep.subr.mxu0 0.0
    %831 = vmatpush1.msra.mxu0 0.0
    %832 = vmatprep.subr.mxu0 0.0
    %833 = vmatpush1.msra.mxu0 0.0
    %834 = vmatprep.subr.mxu0 0.0
    %835 = vmatpush1.msra.mxu0 0.0
    %836 = vmatprep.subr.mxu0 0.0
    %837 = vmatpush1.msra.mxu0 0.0
    %838 = vmatprep.subr.mxu0 0.0
    %839 = vmatpush1.msra.mxu0 0.0
    %840 = vmatprep.subr.mxu0 0.0
    %841 = vmatpush1.msra.mxu0 0.0
    %842 = vmatprep.subr.mxu0 0.0
    %843 = vmatpush1.msra.mxu0 0.0
    %844 = vmatprep.mubr.f32.mxu0 0.0
    %845 = vmatmul.mubr.f32.gmra.mrb[0].mxu0 %v634
    %v846 = vpop.f32.mrb[0].mxu0
    %v847 = vadd.f32 0.0, %v846
    %v848 = vpop.f32.mrb[0].mxu0
    %v849 = vadd.f32 0.0, %v848
    %850 = vdwg.mxu0
    %v851 = vadd.f32 %v641, %v776
    %v852 = vadd.f32 %v642, %v778
    %v853 = vadd.f32 %v643, %v847
    %v854 = vadd.f32 %v644, %v849
    %v855 = vmul.f32 %v851, 0.5
    %v856 = vmul.f32 %v852, 0.5
    %v857 = vmul.f32 %v853, 0.5
    %v858 = vtanh.pop %v855
    %v859 = vtanh.pop %v856
    %v860 = vtanh.pop %v857
    %v861 = vmul.f32 %v858, 0.5
    %v862 = vmul.f32 %v859, 0.5
    %v863 = vmul.f32 %v860, 0.5
    %v864 = vadd.f32 %v861, 0.5
    %v865 = vadd.f32 %v862, 0.5
    %v866 = vadd.f32 %v863, 0.5
    %v867 = vtanh.pop %v854
    %v868 = vmul.f32 %v865, %v632
    %v869 = vmul.f32 %v864, %v867
    %v870 = vadd.f32 %v868, %v869
    %v871 = vtanh.pop %v870
    %v872 = vmul.f32 %v866, %v871
    %873 = vst.msk [vmem:[#allocation3 + $0x10] sm:$0xff] %vm635, %v872
    %874 = vst.msk [vmem:[#allocation3 + $0x60] sm:$0xff] %vm637, %v872
    %875 = vst.msk [vmem:[#allocation3 + $0x68] sm:$0xff] %vm635, %v872
    %876 = vst.msk [vmem:[#allocation3 + $0x18] sm:$0xff] %vm637, %v872
    %v877 = vld [vmem:[#allocation2 + $0x40] sm:$0xff]
    %v878 = vld [vmem:[#allocation2 + $0x48] sm:$0xff]
    %v879 = vld [vmem:[#allocation2 + $0x50] sm:$0xff]
    %v880 = vld [vmem:[#allocation2 + $0x58] sm:$0xff]
    %v881 = vld [vmem:[#allocation5] sm:$0xff]
    %v882 = vld [vmem:[#allocation5 + $0x8] sm:$0xff]
    %v883 = vld [vmem:[#allocation5 + $0x10] sm:$0xff]
    %v884 = vld [vmem:[#allocation5 + $0x18] sm:$0xff]
    %v885 = vld [vmem:[#allocation5 + $0x20] sm:$0xff]
    %v886 = vld [vmem:[#allocation5 + $0x28] sm:$0xff]
    %v887 = vld [vmem:[#allocation5 + $0x30] sm:$0xff]
    %v888 = vld [vmem:[#allocation5 + $0x38] sm:$0xff]
    %v889 = vld [vmem:[#allocation5 + $0x40] sm:$0xff]
    %v890 = vld [vmem:[#allocation5 + $0x48] sm:$0xff]
    %v891 = vld [vmem:[#allocation5 + $0x50] sm:$0xff]
    %v892 = vld [vmem:[#allocation5 + $0x58] sm:$0xff]
    %v893 = vld [vmem:[#allocation5 + $0x60] sm:$0xff]
    %v894 = vld [vmem:[#allocation5 + $0x68] sm:$0xff]
    %v895 = vld [vmem:[#allocation5 + $0x70] sm:$0xff]
    %v896 = vld [vmem:[#allocation5 + $0x78] sm:$0xff]
    %v897 = vld [vmem:[#allocation5 + $0x80] sm:$0xff]
    %v898 = vld [vmem:[#allocation5 + $0x88] sm:$0xff]
    %v899 = vld [vmem:[#allocation5 + $0x90] sm:$0xff]
    %v900 = vld [vmem:[#allocation5 + $0x98] sm:$0xff]
    %v901 = vld [vmem:[#allocation5 + $0xa0] sm:$0xff]
    %v902 = vld [vmem:[#allocation5 + $0xa8] sm:$0xff]
    %v903 = vld [vmem:[#allocation5 + $0xb0] sm:$0xff]
    %v904 = vld [vmem:[#allocation5 + $0xb8] sm:$0xff]
    %v905 = vld [vmem:[#allocation5 + $0xc0] sm:$0xff]
    %v906 = vld [vmem:[#allocation5 + $0xc8] sm:$0xff]
    %v907 = vld [vmem:[#allocation5 + $0xd0] sm:$0xff]
    %v908 = vld [vmem:[#allocation5 + $0xd8] sm:$0xff]
    %v909 = vld [vmem:[#allocation5 + $0xe0] sm:$0xff]
    %v910 = vld [vmem:[#allocation5 + $0xe8] sm:$0xff]
    %v911 = vld [vmem:[#allocation5 + $0xf0] sm:$0xff]
    %v912 = vld [vmem:[#allocation5 + $0xf8] sm:$0xff]
    %v913 = vld [vmem:[#allocation5 + $0x100] sm:$0xff]
    %v914 = vld [vmem:[#allocation5 + $0x108] sm:$0xff]
    %v915 = vld [vmem:[#allocation5 + $0x110] sm:$0xff]
    %v916 = vld [vmem:[#allocation5 + $0x118] sm:$0xff]
    %v917 = vld [vmem:[#allocation5 + $0x120] sm:$0xff]
    %v918 = vld [vmem:[#allocation5 + $0x128] sm:$0xff]
    %v919 = vld [vmem:[#allocation5 + $0x130] sm:$0xff]
    %v920 = vld [vmem:[#allocation5 + $0x138] sm:$0xff]
    %v921 = vld [vmem:[#allocation5 + $0x140] sm:$0xff]
    %v922 = vld [vmem:[#allocation5 + $0x148] sm:$0xff]
    %v923 = vld [vmem:[#allocation5 + $0x150] sm:$0xff]
    %v924 = vld [vmem:[#allocation5 + $0x158] sm:$0xff]
    %v925 = vld [vmem:[#allocation5 + $0x160] sm:$0xff]
    %v926 = vld [vmem:[#allocation5 + $0x168] sm:$0xff]
    %v927 = vld [vmem:[#allocation5 + $0x170] sm:$0xff]
    %v928 = vld [vmem:[#allocation5 + $0x178] sm:$0xff]
    %v929 = vld [vmem:[#allocation5 + $0x180] sm:$0xff]
    %v930 = vld [vmem:[#allocation5 + $0x188] sm:$0xff]
    %v931 = vld [vmem:[#allocation5 + $0x190] sm:$0xff]
    %v932 = vld [vmem:[#allocation5 + $0x198] sm:$0xff]
    %v933 = vld [vmem:[#allocation5 + $0x1a0] sm:$0xff]
    %v934 = vld [vmem:[#allocation5 + $0x1a8] sm:$0xff]
    %v935 = vld [vmem:[#allocation5 + $0x1b0] sm:$0xff]
    %v936 = vld [vmem:[#allocation5 + $0x1b8] sm:$0xff]
    %v937 = vld [vmem:[#allocation5 + $0x1c0] sm:$0xff]
    %v938 = vld [vmem:[#allocation5 + $0x1c8] sm:$0xff]
    %v939 = vld [vmem:[#allocation5 + $0x1d0] sm:$0xff]
    %v940 = vld [vmem:[#allocation5 + $0x1d8] sm:$0xff]
    %v941 = vld [vmem:[#allocation5 + $0x1e0] sm:$0xff]
    %v942 = vld [vmem:[#allocation5 + $0x1e8] sm:$0xff]
    %v943 = vld [vmem:[#allocation5 + $0x1f0] sm:$0xff]
    %v944 = vld [vmem:[#allocation5 + $0x1f8] sm:$0xff]
    %945 = vmatprep.subr.mxu0 %v882
    %946 = vmatpush1.msra.mxu0 %v881
    %947 = vmatprep.subr.mxu0 %v886
    %948 = vmatpush1.msra.mxu0 %v885
    %949 = vmatprep.subr.mxu0 %v890
    %950 = vmatpush1.msra.mxu0 %v889
    %951 = vmatprep.subr.mxu0 %v894
    %952 = vmatpush1.msra.mxu0 %v893
    %953 = vmatprep.subr.mxu0 %v898
    %954 = vmatpush1.msra.mxu0 %v897
    %955 = vmatprep.subr.mxu0 %v902
    %956 = vmatpush1.msra.mxu0 %v901
    %957 = vmatprep.subr.mxu0 %v906
    %958 = vmatpush1.msra.mxu0 %v905
    %959 = vmatprep.subr.mxu0 %v910
    %960 = vmatpush1.msra.mxu0 %v909
    %961 = vmatprep.subr.mxu0 %v914
    %962 = vmatpush1.msra.mxu0 %v913
    %963 = vmatprep.subr.mxu0 %v918
    %964 = vmatpush1.msra.mxu0 %v917
    %965 = vmatprep.subr.mxu0 %v922
    %966 = vmatpush1.msra.mxu0 %v921
    %967 = vmatprep.subr.mxu0 %v926
    %968 = vmatpush1.msra.mxu0 %v925
    %969 = vmatprep.subr.mxu0 %v930
    %970 = vmatpush1.msra.mxu0 %v929
    %971 = vmatprep.subr.mxu0 %v934
    %972 = vmatpush1.msra.mxu0 %v933
    %973 = vmatprep.subr.mxu0 %v938
    %974 = vmatpush1.msra.mxu0 %v937
    %975 = vmatprep.subr.mxu0 %v942
    %976 = vmatpush1.msra.mxu0 %v941
    %977 = vmatprep.subr.mxu0 0.0
    %978 = vmatpush1.msra.mxu0 0.0
    %979 = vmatprep.subr.mxu0 0.0
    %980 = vmatpush1.msra.mxu0 0.0
    %981 = vmatprep.subr.mxu0 0.0
    %982 = vmatpush1.msra.mxu0 0.0
    %983 = vmatprep.subr.mxu0 0.0
    %984 = vmatpush1.msra.mxu0 0.0
    %985 = vmatprep.subr.mxu0 0.0
    %986 = vmatpush1.msra.mxu0 0.0
    %987 = vmatprep.subr.mxu0 0.0
    %988 = vmatpush1.msra.mxu0 0.0
    %989 = vmatprep.subr.mxu0 0.0
    %990 = vmatpush1.msra.mxu0 0.0
    %991 = vmatprep.subr.mxu0 0.0
    %992 = vmatpush1.msra.mxu0 0.0
    %993 = vmatprep.subr.mxu0 0.0
    %994 = vmatpush1.msra.mxu0 0.0
    %995 = vmatprep.subr.mxu0 0.0
    %996 = vmatpush1.msra.mxu0 0.0
    %997 = vmatprep.subr.mxu0 0.0
    %998 = vmatpush1.msra.mxu0 0.0
    %999 = vmatprep.subr.mxu0 0.0
    %1000 = vmatpush1.msra.mxu0 0.0
    %1001 = vmatprep.subr.mxu0 0.0
    %1002 = vmatpush1.msra.mxu0 0.0
    %1003 = vmatprep.subr.mxu0 0.0
    %1004 = vmatpush1.msra.mxu0 0.0
    %1005 = vmatprep.subr.mxu0 0.0
    %1006 = vmatpush1.msra.mxu0 0.0
    %1007 = vmatprep.subr.mxu0 0.0
    %1008 = vmatpush1.msra.mxu0 0.0
    %1009 = vmatprep.mubr.f32.mxu0 0.0
    %1010 = vmatmul.mubr.f32.gmra.mrb[0].mxu0 %v872
    %v1011 = vpop.f32.mrb[0].mxu0
    %v1012 = vadd.f32 0.0, %v1011
    %v1013 = vpop.f32.mrb[0].mxu0
    %v1014 = vadd.f32 0.0, %v1013
    %1015 = vdwg.mxu0
    %1016 = vmatprep.subr.mxu0 %v884
    %1017 = vmatpush1.msra.mxu0 %v883
    %1018 = vmatprep.subr.mxu0 %v888
    %1019 = vmatpush1.msra.mxu0 %v887
    %1020 = vmatprep.subr.mxu0 %v892
    %1021 = vmatpush1.msra.mxu0 %v891
    %1022 = vmatprep.subr.mxu0 %v896
    %1023 = vmatpush1.msra.mxu0 %v895
    %1024 = vmatprep.subr.mxu0 %v900
    %1025 = vmatpush1.msra.mxu0 %v899
    %1026 = vmatprep.subr.mxu0 %v904
    %1027 = vmatpush1.msra.mxu0 %v903
    %1028 = vmatprep.subr.mxu0 %v908
    %1029 = vmatpush1.msra.mxu0 %v907
    %1030 = vmatprep.subr.mxu0 %v912
    %1031 = vmatpush1.msra.mxu0 %v911
    %1032 = vmatprep.subr.mxu0 %v916
    %1033 = vmatpush1.msra.mxu0 %v915
    %1034 = vmatprep.subr.mxu0 %v920
    %1035 = vmatpush1.msra.mxu0 %v919
    %1036 = vmatprep.subr.mxu0 %v924
    %1037 = vmatpush1.msra.mxu0 %v923
    %1038 = vmatprep.subr.mxu0 %v928
    %1039 = vmatpush1.msra.mxu0 %v927
    %1040 = vmatprep.subr.mxu0 %v932
    %1041 = vmatpush1.msra.mxu0 %v931
    %1042 = vmatprep.subr.mxu0 %v936
    %1043 = vmatpush1.msra.mxu0 %v935
    %1044 = vmatprep.subr.mxu0 %v940
    %1045 = vmatpush1.msra.mxu0 %v939
    %1046 = vmatprep.subr.mxu0 %v944
    %1047 = vmatpush1.msra.mxu0 %v943
    %1048 = vmatprep.subr.mxu0 0.0
    %1049 = vmatpush1.msra.mxu0 0.0
    %1050 = vmatprep.subr.mxu0 0.0
    %1051 = vmatpush1.msra.mxu0 0.0
    %1052 = vmatprep.subr.mxu0 0.0
    %1053 = vmatpush1.msra.mxu0 0.0
    %1054 = vmatprep.subr.mxu0 0.0
    %1055 = vmatpush1.msra.mxu0 0.0
    %1056 = vmatprep.subr.mxu0 0.0
    %1057 = vmatpush1.msra.mxu0 0.0
    %1058 = vmatprep.subr.mxu0 0.0
    %1059 = vmatpush1.msra.mxu0 0.0
    %1060 = vmatprep.subr.mxu0 0.0
    %1061 = vmatpush1.msra.mxu0 0.0
    %1062 = vmatprep.subr.mxu0 0.0
    %1063 = vmatpush1.msra.mxu0 0.0
    %1064 = vmatprep.subr.mxu0 0.0
    %1065 = vmatpush1.msra.mxu0 0.0
    %1066 = vmatprep.subr.mxu0 0.0
    %1067 = vmatpush1.msra.mxu0 0.0
    %1068 = vmatprep.subr.mxu0 0.0
    %1069 = vmatpush1.msra.mxu0 0.0
    %1070 = vmatprep.subr.mxu0 0.0
    %1071 = vmatpush1.msra.mxu0 0.0
    %1072 = vmatprep.subr.mxu0 0.0
    %1073 = vmatpush1.msra.mxu0 0.0
    %1074 = vmatprep.subr.mxu0 0.0
    %1075 = vmatpush1.msra.mxu0 0.0
    %1076 = vmatprep.subr.mxu0 0.0
    %1077 = vmatpush1.msra.mxu0 0.0
    %1078 = vmatprep.subr.mxu0 0.0
    %1079 = vmatpush1.msra.mxu0 0.0
    %1080 = vmatprep.mubr.f32.mxu0 0.0
    %1081 = vmatmul.mubr.f32.gmra.mrb[0].mxu0 %v872
    %v1082 = vpop.f32.mrb[0].mxu0
    %v1083 = vadd.f32 0.0, %v1082
    %v1084 = vpop.f32.mrb[0].mxu0
    %v1085 = vadd.f32 0.0, %v1084
    %1086 = vdwg.mxu0
    %v1087 = vadd.f32 %v877, %v1012
    %v1088 = vadd.f32 %v878, %v1014
    %v1089 = vadd.f32 %v879, %v1083
    %v1090 = vadd.f32 %v880, %v1085
    %v1091 = vmul.f32 %v1087, 0.5
    %v1092 = vmul.f32 %v1088, 0.5
    %v1093 = vmul.f32 %v1089, 0.5
    %v1094 = vtanh.pop %v1091
    %v1095 = vtanh.pop %v1092
    %v1096 = vtanh.pop %v1093
    %v1097 = vmul.f32 %v1094, 0.5
    %v1098 = vmul.f32 %v1095, 0.5
    %v1099 = vmul.f32 %v1096, 0.5
    %v1100 = vadd.f32 %v1097, 0.5
    %v1101 = vadd.f32 %v1098, 0.5
    %v1102 = vadd.f32 %v1099, 0.5
    %v1103 = vtanh.pop %v1090
    %v1104 = vmul.f32 %v1101, %v870
    %v1105 = vmul.f32 %v1100, %v1103
    %v1106 = vadd.f32 %v1104, %v1105
    %v1107 = vtanh.pop %v1106
    %v1108 = vmul.f32 %v1102, %v1107
    %1109 = vst.msk [vmem:[#allocation3 + $0x20] sm:$0xff] %vm635, %v1108
    %1110 = vst.msk [vmem:[#allocation3 + $0x50] sm:$0xff] %vm637, %v1108
    %1111 = vst.msk [vmem:[#allocation3 + $0x58] sm:$0xff] %vm635, %v1108
    %1112 = vst.msk [vmem:[#allocation3 + $0x28] sm:$0xff] %vm637, %v1108
    %v1113 = vld [vmem:[#allocation2 + $0x60] sm:$0xff]
    %v1114 = vld [vmem:[#allocation2 + $0x68] sm:$0xff]
    %v1115 = vld [vmem:[#allocation2 + $0x70] sm:$0xff]
    %v1116 = vld [vmem:[#allocation2 + $0x78] sm:$0xff]
    %v1117 = vld [vmem:[#allocation5] sm:$0xff]
    %v1118 = vld [vmem:[#allocation5 + $0x8] sm:$0xff]
    %v1119 = vld [vmem:[#allocation5 + $0x10] sm:$0xff]
    %v1120 = vld [vmem:[#allocation5 + $0x18] sm:$0xff]
    %v1121 = vld [vmem:[#allocation5 + $0x20] sm:$0xff]
    %v1122 = vld [vmem:[#allocation5 + $0x28] sm:$0xff]
    %v1123 = vld [vmem:[#allocation5 + $0x30] sm:$0xff]
    %v1124 = vld [vmem:[#allocation5 + $0x38] sm:$0xff]
    %v1125 = vld [vmem:[#allocation5 + $0x40] sm:$0xff]
    %v1126 = vld [vmem:[#allocation5 + $0x48] sm:$0xff]
    %v1127 = vld [vmem:[#allocation5 + $0x50] sm:$0xff]
    %v1128 = vld [vmem:[#allocation5 + $0x58] sm:$0xff]
    %v1129 = vld [vmem:[#allocation5 + $0x60] sm:$0xff]
    %v1130 = vld [vmem:[#allocation5 + $0x68] sm:$0xff]
    %v1131 = vld [vmem:[#allocation5 + $0x70] sm:$0xff]
    %v1132 = vld [vmem:[#allocation5 + $0x78] sm:$0xff]
    %v1133 = vld [vmem:[#allocation5 + $0x80] sm:$0xff]
    %v1134 = vld [vmem:[#allocation5 + $0x88] sm:$0xff]
    %v1135 = vld [vmem:[#allocation5 + $0x90] sm:$0xff]
    %v1136 = vld [vmem:[#allocation5 + $0x98] sm:$0xff]
    %v1137 = vld [vmem:[#allocation5 + $0xa0] sm:$0xff]
    %v1138 = vld [vmem:[#allocation5 + $0xa8] sm:$0xff]
    %v1139 = vld [vmem:[#allocation5 + $0xb0] sm:$0xff]
    %v1140 = vld [vmem:[#allocation5 + $0xb8] sm:$0xff]
    %v1141 = vld [vmem:[#allocation5 + $0xc0] sm:$0xff]
    %v1142 = vld [vmem:[#allocation5 + $0xc8] sm:$0xff]
    %v1143 = vld [vmem:[#allocation5 + $0xd0] sm:$0xff]
    %v1144 = vld [vmem:[#allocation5 + $0xd8] sm:$0xff]
    %v1145 = vld [vmem:[#allocation5 + $0xe0] sm:$0xff]
    %v1146 = vld [vmem:[#allocation5 + $0xe8] sm:$0xff]
    %v1147 = vld [vmem:[#allocation5 + $0xf0] sm:$0xff]
    %v1148 = vld [vmem:[#allocation5 + $0xf8] sm:$0xff]
    %v1149 = vld [vmem:[#allocation5 + $0x100] sm:$0xff]
    %v1150 = vld [vmem:[#allocation5 + $0x108] sm:$0xff]
    %v1151 = vld [vmem:[#allocation5 + $0x110] sm:$0xff]
    %v1152 = vld [vmem:[#allocation5 + $0x118] sm:$0xff]
    %v1153 = vld [vmem:[#allocation5 + $0x120] sm:$0xff]
    %v1154 = vld [vmem:[#allocation5 + $0x128] sm:$0xff]
    %v1155 = vld [vmem:[#allocation5 + $0x130] sm:$0xff]
    %v1156 = vld [vmem:[#allocation5 + $0x138] sm:$0xff]
    %v1157 = vld [vmem:[#allocation5 + $0x140] sm:$0xff]
    %v1158 = vld [vmem:[#allocation5 + $0x148] sm:$0xff]
    %v1159 = vld [vmem:[#allocation5 + $0x150] sm:$0xff]
    %v1160 = vld [vmem:[#allocation5 + $0x158] sm:$0xff]
    %v1161 = vld [vmem:[#allocation5 + $0x160] sm:$0xff]
    %v1162 = vld [vmem:[#allocation5 + $0x168] sm:$0xff]
    %v1163 = vld [vmem:[#allocation5 + $0x170] sm:$0xff]
    %v1164 = vld [vmem:[#allocation5 + $0x178] sm:$0xff]
    %v1165 = vld [vmem:[#allocation5 + $0x180] sm:$0xff]
    %v1166 = vld [vmem:[#allocation5 + $0x188] sm:$0xff]
    %v1167 = vld [vmem:[#allocation5 + $0x190] sm:$0xff]
    %v1168 = vld [vmem:[#allocation5 + $0x198] sm:$0xff]
    %v1169 = vld [vmem:[#allocation5 + $0x1a0] sm:$0xff]
    %v1170 = vld [vmem:[#allocation5 + $0x1a8] sm:$0xff]
    %v1171 = vld [vmem:[#allocation5 + $0x1b0] sm:$0xff]
    %v1172 = vld [vmem:[#allocation5 + $0x1b8] sm:$0xff]
    %v1173 = vld [vmem:[#allocation5 + $0x1c0] sm:$0xff]
    %v1174 = vld [vmem:[#allocation5 + $0x1c8] sm:$0xff]
    %v1175 = vld [vmem:[#allocation5 + $0x1d0] sm:$0xff]
    %v1176 = vld [vmem:[#allocation5 + $0x1d8] sm:$0xff]
    %v1177 = vld [vmem:[#allocation5 + $0x1e0] sm:$0xff]
    %v1178 = vld [vmem:[#allocation5 + $0x1e8] sm:$0xff]
    %v1179 = vld [vmem:[#allocation5 + $0x1f0] sm:$0xff]
    %v1180 = vld [vmem:[#allocation5 + $0x1f8] sm:$0xff]
    %1181 = vmatprep.subr.mxu0 %v1118
    %1182 = vmatpush1.msra.mxu0 %v1117
    %1183 = vmatprep.subr.mxu0 %v1122
    %1184 = vmatpush1.msra.mxu0 %v1121
    %1185 = vmatprep.subr.mxu0 %v1126
    %1186 = vmatpush1.msra.mxu0 %v1125
    %1187 = vmatprep.subr.mxu0 %v1130
    %1188 = vmatpush1.msra.mxu0 %v1129
    %1189 = vmatprep.subr.mxu0 %v1134
    %1190 = vmatpush1.msra.mxu0 %v1133
    %1191 = vmatprep.subr.mxu0 %v1138
    %1192 = vmatpush1.msra.mxu0 %v1137
    %1193 = vmatprep.subr.mxu0 %v1142
    %1194 = vmatpush1.msra.mxu0 %v1141
    %1195 = vmatprep.subr.mxu0 %v1146
    %1196 = vmatpush1.msra.mxu0 %v1145
    %1197 = vmatprep.subr.mxu0 %v1150
    %1198 = vmatpush1.msra.mxu0 %v1149
    %1199 = vmatprep.subr.mxu0 %v1154
    %1200 = vmatpush1.msra.mxu0 %v1153
    %1201 = vmatprep.subr.mxu0 %v1158
    %1202 = vmatpush1.msra.mxu0 %v1157
    %1203 = vmatprep.subr.mxu0 %v1162
    %1204 = vmatpush1.msra.mxu0 %v1161
    %1205 = vmatprep.subr.mxu0 %v1166
    %1206 = vmatpush1.msra.mxu0 %v1165
    %1207 = vmatprep.subr.mxu0 %v1170
    %1208 = vmatpush1.msra.mxu0 %v1169
    %1209 = vmatprep.subr.mxu0 %v1174
    %1210 = vmatpush1.msra.mxu0 %v1173
    %1211 = vmatprep.subr.mxu0 %v1178
    %1212 = vmatpush1.msra.mxu0 %v1177
    %1213 = vmatprep.subr.mxu0 0.0
    %1214 = vmatpush1.msra.mxu0 0.0
    %1215 = vmatprep.subr.mxu0 0.0
    %1216 = vmatpush1.msra.mxu0 0.0
    %1217 = vmatprep.subr.mxu0 0.0
    %1218 = vmatpush1.msra.mxu0 0.0
    %1219 = vmatprep.subr.mxu0 0.0
    %1220 = vmatpush1.msra.mxu0 0.0
    %1221 = vmatprep.subr.mxu0 0.0
    %1222 = vmatpush1.msra.mxu0 0.0
    %1223 = vmatprep.subr.mxu0 0.0
    %1224 = vmatpush1.msra.mxu0 0.0
    %1225 = vmatprep.subr.mxu0 0.0
    %1226 = vmatpush1.msra.mxu0 0.0
    %1227 = vmatprep.subr.mxu0 0.0
    %1228 = vmatpush1.msra.mxu0 0.0
    %1229 = vmatprep.subr.mxu0 0.0
    %1230 = vmatpush1.msra.mxu0 0.0
    %1231 = vmatprep.subr.mxu0 0.0
    %1232 = vmatpush1.msra.mxu0 0.0
    %1233 = vmatprep.subr.mxu0 0.0
    %1234 = vmatpush1.msra.mxu0 0.0
    %1235 = vmatprep.subr.mxu0 0.0
    %1236 = vmatpush1.msra.mxu0 0.0
    %1237 = vmatprep.subr.mxu0 0.0
    %1238 = vmatpush1.msra.mxu0 0.0
    %1239 = vmatprep.subr.mxu0 0.0
    %1240 = vmatpush1.msra.mxu0 0.0
    %1241 = vmatprep.subr.mxu0 0.0
    %1242 = vmatpush1.msra.mxu0 0.0
    %1243 = vmatprep.subr.mxu0 0.0
    %1244 = vmatpush1.msra.mxu0 0.0
    %1245 = vmatprep.mubr.f32.mxu0 0.0
    %1246 = vmatmul.mubr.f32.gmra.mrb[0].mxu0 %v1108
    %v1247 = vpop.f32.mrb[0].mxu0
    %v1248 = vadd.f32 0.0, %v1247
    %v1249 = vpop.f32.mrb[0].mxu0
    %v1250 = vadd.f32 0.0, %v1249
    %1251 = vdwg.mxu0
    %1252 = vmatprep.subr.mxu0 %v1120
    %1253 = vmatpush1.msra.mxu0 %v1119
    %1254 = vmatprep.subr.mxu0 %v1124
    %1255 = vmatpush1.msra.mxu0 %v1123
    %1256 = vmatprep.subr.mxu0 %v1128
    %1257 = vmatpush1.msra.mxu0 %v1127
    %1258 = vmatprep.subr.mxu0 %v1132
    %1259 = vmatpush1.msra.mxu0 %v1131
    %1260 = vmatprep.subr.mxu0 %v1136
    %1261 = vmatpush1.msra.mxu0 %v1135
    %1262 = vmatprep.subr.mxu0 %v1140
    %1263 = vmatpush1.msra.mxu0 %v1139
    %1264 = vmatprep.subr.mxu0 %v1144
    %1265 = vmatpush1.msra.mxu0 %v1143
    %1266 = vmatprep.subr.mxu0 %v1148
    %1267 = vmatpush1.msra.mxu0 %v1147
    %1268 = vmatprep.subr.mxu0 %v1152
    %1269 = vmatpush1.msra.mxu0 %v1151
    %1270 = vmatprep.subr.mxu0 %v1156
    %1271 = vmatpush1.msra.mxu0 %v1155
    %1272 = vmatprep.subr.mxu0 %v1160
    %1273 = vmatpush1.msra.mxu0 %v1159
    %1274 = vmatprep.subr.mxu0 %v1164
    %1275 = vmatpush1.msra.mxu0 %v1163
    %1276 = vmatprep.subr.mxu0 %v1168
    %1277 = vmatpush1.msra.mxu0 %v1167
    %1278 = vmatprep.subr.mxu0 %v1172
    %1279 = vmatpush1.msra.mxu0 %v1171
    %1280 = vmatprep.subr.mxu0 %v1176
    %1281 = vmatpush1.msra.mxu0 %v1175
    %1282 = vmatprep.subr.mxu0 %v1180
    %1283 = vmatpush1.msra.mxu0 %v1179
    %1284 = vmatprep.subr.mxu0 0.0
    %1285 = vmatpush1.msra.mxu0 0.0
    %1286 = vmatprep.subr.mxu0 0.0
    %1287 = vmatpush1.msra.mxu0 0.0
    %1288 = vmatprep.subr.mxu0 0.0
    %1289 = vmatpush1.msra.mxu0 0.0
    %1290 = vmatprep.subr.mxu0 0.0
    %1291 = vmatpush1.msra.mxu0 0.0
    %1292 = vmatprep.subr.mxu0 0.0
    %1293 = vmatpush1.msra.mxu0 0.0
    %1294 = vmatprep.subr.mxu0 0.0
    %1295 = vmatpush1.msra.mxu0 0.0
    %1296 = vmatprep.subr.mxu0 0.0
    %1297 = vmatpush1.msra.mxu0 0.0
    %1298 = vmatprep.subr.mxu0 0.0
    %1299 = vmatpush1.msra.mxu0 0.0
    %1300 = vmatprep.subr.mxu0 0.0
    %1301 = vmatpush1.msra.mxu0 0.0
    %1302 = vmatprep.subr.mxu0 0.0
    %1303 = vmatpush1.msra.mxu0 0.0
    %1304 = vmatprep.subr.mxu0 0.0
    %1305 = vmatpush1.msra.mxu0 0.0
    %1306 = vmatprep.subr.mxu0 0.0
    %1307 = vmatpush1.msra.mxu0 0.0
    %1308 = vmatprep.subr.mxu0 0.0
    %1309 = vmatpush1.msra.mxu0 0.0
    %1310 = vmatprep.subr.mxu0 0.0
    %1311 = vmatpush1.msra.mxu0 0.0
    %1312 = vmatprep.subr.mxu0 0.0
    %1313 = vmatpush1.msra.mxu0 0.0
    %1314 = vmatprep.subr.mxu0 0.0
    %1315 = vmatpush1.msra.mxu0 0.0
    %1316 = vmatprep.mubr.f32.mxu0 0.0
    %1317 = vmatmul.mubr.f32.gmra.mrb[0].mxu0 %v1108
    %v1318 = vpop.f32.mrb[0].mxu0
    %v1319 = vadd.f32 0.0, %v1318
    %v1320 = vpop.f32.mrb[0].mxu0
    %v1321 = vadd.f32 0.0, %v1320
    %1322 = vdwg.mxu0
    %v1323 = vadd.f32 %v1113, %v1248
    %v1324 = vadd.f32 %v1114, %v1250
    %v1325 = vadd.f32 %v1115, %v1319
    %v1326 = vadd.f32 %v1116, %v1321
    %v1327 = vmul.f32 %v1323, 0.5
    %v1328 = vmul.f32 %v1324, 0.5
    %v1329 = vmul.f32 %v1325, 0.5
    %v1330 = vtanh.pop %v1327
    %v1331 = vtanh.pop %v1328
    %v1332 = vtanh.pop %v1329
    %v1333 = vmul.f32 %v1330, 0.5
    %v1334 = vmul.f32 %v1331, 0.5
    %v1335 = vmul.f32 %v1332, 0.5
    %v1336 = vadd.f32 %v1333, 0.5
    %v1337 = vadd.f32 %v1334, 0.5
    %v1338 = vadd.f32 %v1335, 0.5
    %v1339 = vtanh.pop %v1326
    %v1340 = vmul.f32 %v1337, %v1106
    %v1341 = vmul.f32 %v1336, %v1339
    %v1342 = vadd.f32 %v1340, %v1341
    %v1343 = vtanh.pop %v1342
    %v1344 = vmul.f32 %v1338, %v1343
    %1345 = vst.msk [vmem:[#allocation3 + $0x30] sm:$0xff] %vm635, %v1344
    %1346 = vst.msk [vmem:[#allocation3 + $0x40] sm:$0xff] %vm637, %v1344
    %1347 = vst.msk [vmem:[#allocation3 + $0x48] sm:$0xff] %vm635, %v1344
    %1348 = vst.msk [vmem:[#allocation3 + $0x38] sm:$0xff] %vm637, %v1344
    %v1349 = vld [vmem:[#allocation2 + $0x80] sm:$0xff]
    %v1350 = vld [vmem:[#allocation2 + $0x88] sm:$0xff]
    %v1351 = vld [vmem:[#allocation2 + $0x90] sm:$0xff]
    %v1352 = vld [vmem:[#allocation2 + $0x98] sm:$0xff]
    %v1353 = vld [vmem:[#allocation5] sm:$0xff]
    %v1354 = vld [vmem:[#allocation5 + $0x8] sm:$0xff]
    %v1355 = vld [vmem:[#allocation5 + $0x10] sm:$0xff]
    %v1356 = vld [vmem:[#allocation5 + $0x18] sm:$0xff]
    %v1357 = vld [vmem:[#allocation5 + $0x20] sm:$0xff]
    %v1358 = vld [vmem:[#allocation5 + $0x28] sm:$0xff]
    %v1359 = vld [vmem:[#allocation5 + $0x30] sm:$0xff]
    %v1360 = vld [vmem:[#allocation5 + $0x38] sm:$0xff]
    %v1361 = vld [vmem:[#allocation5 + $0x40] sm:$0xff]
    %v1362 = vld [vmem:[#allocation5 + $0x48] sm:$0xff]
    %v1363 = vld [vmem:[#allocation5 + $0x50] sm:$0xff]
    %v1364 = vld [vmem:[#allocation5 + $0x58] sm:$0xff]
    %v1365 = vld [vmem:[#allocation5 + $0x60] sm:$0xff]
    %v1366 = vld [vmem:[#allocation5 + $0x68] sm:$0xff]
    %v1367 = vld [vmem:[#allocation5 + $0x70] sm:$0xff]
    %v1368 = vld [vmem:[#allocation5 + $0x78] sm:$0xff]
    %v1369 = vld [vmem:[#allocation5 + $0x80] sm:$0xff]
    %v1370 = vld [vmem:[#allocation5 + $0x88] sm:$0xff]
    %v1371 = vld [vmem:[#allocation5 + $0x90] sm:$0xff]
    %v1372 = vld [vmem:[#allocation5 + $0x98] sm:$0xff]
    %v1373 = vld [vmem:[#allocation5 + $0xa0] sm:$0xff]
    %v1374 = vld [vmem:[#allocation5 + $0xa8] sm:$0xff]
    %v1375 = vld [vmem:[#allocation5 + $0xb0] sm:$0xff]
    %v1376 = vld [vmem:[#allocation5 + $0xb8] sm:$0xff]
    %v1377 = vld [vmem:[#allocation5 + $0xc0] sm:$0xff]
    %v1378 = vld [vmem:[#allocation5 + $0xc8] sm:$0xff]
    %v1379 = vld [vmem:[#allocation5 + $0xd0] sm:$0xff]
    %v1380 = vld [vmem:[#allocation5 + $0xd8] sm:$0xff]
    %v1381 = vld [vmem:[#allocation5 + $0xe0] sm:$0xff]
    %v1382 = vld [vmem:[#allocation5 + $0xe8] sm:$0xff]
    %v1383 = vld [vmem:[#allocation5 + $0xf0] sm:$0xff]
    %v1384 = vld [vmem:[#allocation5 + $0xf8] sm:$0xff]
    %v1385 = vld [vmem:[#allocation5 + $0x100] sm:$0xff]
    %v1386 = vld [vmem:[#allocation5 + $0x108] sm:$0xff]
    %v1387 = vld [vmem:[#allocation5 + $0x110] sm:$0xff]
    %v1388 = vld [vmem:[#allocation5 + $0x118] sm:$0xff]
    %v1389 = vld [vmem:[#allocation5 + $0x120] sm:$0xff]
    %v1390 = vld [vmem:[#allocation5 + $0x128] sm:$0xff]
    %v1391 = vld [vmem:[#allocation5 + $0x130] sm:$0xff]
    %v1392 = vld [vmem:[#allocation5 + $0x138] sm:$0xff]
    %v1393 = vld [vmem:[#allocation5 + $0x140] sm:$0xff]
    %v1394 = vld [vmem:[#allocation5 + $0x148] sm:$0xff]
    %v1395 = vld [vmem:[#allocation5 + $0x150] sm:$0xff]
    %v1396 = vld [vmem:[#allocation5 + $0x158] sm:$0xff]
    %v1397 = vld [vmem:[#allocation5 + $0x160] sm:$0xff]
    %v1398 = vld [vmem:[#allocation5 + $0x168] sm:$0xff]
    %v1399 = vld [vmem:[#allocation5 + $0x170] sm:$0xff]
    %v1400 = vld [vmem:[#allocation5 + $0x178] sm:$0xff]
    %v1401 = vld [vmem:[#allocation5 + $0x180] sm:$0xff]
    %v1402 = vld [vmem:[#allocation5 + $0x188] sm:$0xff]
    %v1403 = vld [vmem:[#allocation5 + $0x190] sm:$0xff]
    %v1404 = vld [vmem:[#allocation5 + $0x198] sm:$0xff]
    %v1405 = vld [vmem:[#allocation5 + $0x1a0] sm:$0xff]
    %v1406 = vld [vmem:[#allocation5 + $0x1a8] sm:$0xff]
    %v1407 = vld [vmem:[#allocation5 + $0x1b0] sm:$0xff]
    %v1408 = vld [vmem:[#allocation5 + $0x1b8] sm:$0xff]
    %v1409 = vld [vmem:[#allocation5 + $0x1c0] sm:$0xff]
    %v1410 = vld [vmem:[#allocation5 + $0x1c8] sm:$0xff]
    %v1411 = vld [vmem:[#allocation5 + $0x1d0] sm:$0xff]
    %v1412 = vld [vmem:[#allocation5 + $0x1d8] sm:$0xff]
    %v1413 = vld [vmem:[#allocation5 + $0x1e0] sm:$0xff]
    %v1414 = vld [vmem:[#allocation5 + $0x1e8] sm:$0xff]
    %v1415 = vld [vmem:[#allocation5 + $0x1f0] sm:$0xff]
    %v1416 = vld [vmem:[#allocation5 + $0x1f8] sm:$0xff]
    %1417 = vmatprep.subr.mxu0 %v1354
    %1418 = vmatpush1.msra.mxu0 %v1353
    %1419 = vmatprep.subr.mxu0 %v1358
    %1420 = vmatpush1.msra.mxu0 %v1357
    %1421 = vmatprep.subr.mxu0 %v1362
    %1422 = vmatpush1.msra.mxu0 %v1361
    %1423 = vmatprep.subr.mxu0 %v1366
    %1424 = vmatpush1.msra.mxu0 %v1365
    %1425 = vmatprep.subr.mxu0 %v1370
    %1426 = vmatpush1.msra.mxu0 %v1369
    %1427 = vmatprep.subr.mxu0 %v1374
    %1428 = vmatpush1.msra.mxu0 %v1373
    %1429 = vmatprep.subr.mxu0 %v1378
    %1430 = vmatpush1.msra.mxu0 %v1377
    %1431 = vmatprep.subr.mxu0 %v1382
    %1432 = vmatpush1.msra.mxu0 %v1381
    %1433 = vmatprep.subr.mxu0 %v1386
    %1434 = vmatpush1.msra.mxu0 %v1385
    %1435 = vmatprep.subr.mxu0 %v1390
    %1436 = vmatpush1.msra.mxu0 %v1389
    %1437 = vmatprep.subr.mxu0 %v1394
    %1438 = vmatpush1.msra.mxu0 %v1393
    %1439 = vmatprep.subr.mxu0 %v1398
    %1440 = vmatpush1.msra.mxu0 %v1397
    %1441 = vmatprep.subr.mxu0 %v1402
    %1442 = vmatpush1.msra.mxu0 %v1401
    %1443 = vmatprep.subr.mxu0 %v1406
    %1444 = vmatpush1.msra.mxu0 %v1405
    %1445 = vmatprep.subr.mxu0 %v1410
    %1446 = vmatpush1.msra.mxu0 %v1409
    %1447 = vmatprep.subr.mxu0 %v1414
    %1448 = vmatpush1.msra.mxu0 %v1413
    %1449 = vmatprep.subr.mxu0 0.0
    %1450 = vmatpush1.msra.mxu0 0.0
    %1451 = vmatprep.subr.mxu0 0.0
    %1452 = vmatpush1.msra.mxu0 0.0
    %1453 = vmatprep.subr.mxu0 0.0
    %1454 = vmatpush1.msra.mxu0 0.0
    %1455 = vmatprep.subr.mxu0 0.0
    %1456 = vmatpush1.msra.mxu0 0.0
    %1457 = vmatprep.subr.mxu0 0.0
    %1458 = vmatpush1.msra.mxu0 0.0
    %1459 = vmatprep.subr.mxu0 0.0
    %1460 = vmatpush1.msra.mxu0 0.0
    %1461 = vmatprep.subr.mxu0 0.0
    %1462 = vmatpush1.msra.mxu0 0.0
    %1463 = vmatprep.subr.mxu0 0.0
    %1464 = vmatpush1.msra.mxu0 0.0
    %1465 = vmatprep.subr.mxu0 0.0
    %1466 = vmatpush1.msra.mxu0 0.0
    %1467 = vmatprep.subr.mxu0 0.0
    %1468 = vmatpush1.msra.mxu0 0.0
    %1469 = vmatprep.subr.mxu0 0.0
    %1470 = vmatpush1.msra.mxu0 0.0
    %1471 = vmatprep.subr.mxu0 0.0
    %1472 = vmatpush1.msra.mxu0 0.0
    %1473 = vmatprep.subr.mxu0 0.0
    %1474 = vmatpush1.msra.mxu0 0.0
    %1475 = vmatprep.subr.mxu0 0.0
    %1476 = vmatpush1.msra.mxu0 0.0
    %1477 = vmatprep.subr.mxu0 0.0
    %1478 = vmatpush1.msra.mxu0 0.0
    %1479 = vmatprep.subr.mxu0 0.0
    %1480 = vmatpush1.msra.mxu0 0.0
    %1481 = vmatprep.mubr.f32.mxu0 0.0
    %1482 = vmatmul.mubr.f32.gmra.mrb[0].mxu0 %v1344
    %v1483 = vpop.f32.mrb[0].mxu0
    %v1484 = vadd.f32 0.0, %v1483
    %v1485 = vpop.f32.mrb[0].mxu0
    %v1486 = vadd.f32 0.0, %v1485
    %1487 = vdwg.mxu0
    %1488 = vmatprep.subr.mxu0 %v1356
    %1489 = vmatpush1.msra.mxu0 %v1355
    %1490 = vmatprep.subr.mxu0 %v1360
    %1491 = vmatpush1.msra.mxu0 %v1359
    %1492 = vmatprep.subr.mxu0 %v1364
    %1493 = vmatpush1.msra.mxu0 %v1363
    %1494 = vmatprep.subr.mxu0 %v1368
    %1495 = vmatpush1.msra.mxu0 %v1367
    %1496 = vmatprep.subr.mxu0 %v1372
    %1497 = vmatpush1.msra.mxu0 %v1371
    %1498 = vmatprep.subr.mxu0 %v1376
    %1499 = vmatpush1.msra.mxu0 %v1375
    %1500 = vmatprep.subr.mxu0 %v1380
    %1501 = vmatpush1.msra.mxu0 %v1379
    %1502 = vmatprep.subr.mxu0 %v1384
    %1503 = vmatpush1.msra.mxu0 %v1383
    %1504 = vmatprep.subr.mxu0 %v1388
    %1505 = vmatpush1.msra.mxu0 %v1387
    %1506 = vmatprep.subr.mxu0 %v1392
    %1507 = vmatpush1.msra.mxu0 %v1391
    %1508 = vmatprep.subr.mxu0 %v1396
    %1509 = vmatpush1.msra.mxu0 %v1395
    %1510 = vmatprep.subr.mxu0 %v1400
    %1511 = vmatpush1.msra.mxu0 %v1399
    %1512 = vmatprep.subr.mxu0 %v1404
    %1513 = vmatpush1.msra.mxu0 %v1403
    %1514 = vmatprep.subr.mxu0 %v1408
    %1515 = vmatpush1.msra.mxu0 %v1407
    %1516 = vmatprep.subr.mxu0 %v1412
    %1517 = vmatpush1.msra.mxu0 %v1411
    %1518 = vmatprep.subr.mxu0 %v1416
    %1519 = vmatpush1.msra.mxu0 %v1415
    %1520 = vmatprep.subr.mxu0 0.0
    %1521 = vmatpush1.msra.mxu0 0.0
    %1522 = vmatprep.subr.mxu0 0.0
    %1523 = vmatpush1.msra.mxu0 0.0
    %1524 = vmatprep.subr.mxu0 0.0
    %1525 = vmatpush1.msra.mxu0 0.0
    %1526 = vmatprep.subr.mxu0 0.0
    %1527 = vmatpush1.msra.mxu0 0.0
    %1528 = vmatprep.subr.mxu0 0.0
    %1529 = vmatpush1.msra.mxu0 0.0
    %1530 = vmatprep.subr.mxu0 0.0
    %1531 = vmatpush1.msra.mxu0 0.0
    %1532 = vmatprep.subr.mxu0 0.0
    %1533 = vmatpush1.msra.mxu0 0.0
    %1534 = vmatprep.subr.mxu0 0.0
    %1535 = vmatpush1.msra.mxu0 0.0
    %1536 = vmatprep.subr.mxu0 0.0
    %1537 = vmatpush1.msra.mxu0 0.0
    %1538 = vmatprep.subr.mxu0 0.0
    %1539 = vmatpush1.msra.mxu0 0.0
    %1540 = vmatprep.subr.mxu0 0.0
    %1541 = vmatpush1.msra.mxu0 0.0
    %1542 = vmatprep.subr.mxu0 0.0
    %1543 = vmatpush1.msra.mxu0 0.0
    %1544 = vmatprep.subr.mxu0 0.0
    %1545 = vmatpush1.msra.mxu0 0.0
    %1546 = vmatprep.subr.mxu0 0.0
    %1547 = vmatpush1.msra.mxu0 0.0
    %1548 = vmatprep.subr.mxu0 0.0
    %1549 = vmatpush1.msra.mxu0 0.0
    %1550 = vmatprep.subr.mxu0 0.0
    %1551 = vmatpush1.msra.mxu0 0.0
    %1552 = vmatprep.mubr.f32.mxu0 0.0
    %1553 = vmatmul.mubr.f32.gmra.mrb[0].mxu0 %v1344
    %v1554 = vpop.f32.mrb[0].mxu0
    %v1555 = vadd.f32 0.0, %v1554
    %v1556 = vpop.f32.mrb[0].mxu0
    %v1557 = vadd.f32 0.0, %v1556
    %1558 = vdwg.mxu0
    %v1559 = vadd.f32 %v1349, %v1484
    %v1560 = vadd.f32 %v1350, %v1486
    %v1561 = vadd.f32 %v1351, %v1555
    %v1562 = vadd.f32 %v1352, %v1557
    %v1563 = vmul.f32 %v1559, 0.5
    %v1564 = vmul.f32 %v1560, 0.5
    %v1565 = vmul.f32 %v1561, 0.5
    %v1566 = vtanh.pop %v1563
    %v1567 = vtanh.pop %v1564
    %v1568 = vtanh.pop %v1565
    %v1569 = vmul.f32 %v1566, 0.5
    %v1570 = vmul.f32 %v1567, 0.5
    %v1571 = vmul.f32 %v1568, 0.5
    %v1572 = vadd.f32 %v1569, 0.5
    %v1573 = vadd.f32 %v1570, 0.5
    %v1574 = vadd.f32 %v1571, 0.5
    %v1575 = vtanh.pop %v1562
    %v1576 = vmul.f32 %v1573, %v1342
    %v1577 = vmul.f32 %v1572, %v1575
    %v1578 = vadd.f32 %v1576, %v1577
    %v1579 = vtanh.pop %v1578
    %v1580 = vmul.f32 %v1574, %v1579
    %1581 = vst.msk [vmem:[#allocation3 + $0x40] sm:$0xff] %vm635, %v1580
    %1582 = vst.msk [vmem:[#allocation3 + $0x30] sm:$0xff] %vm637, %v1580
    %1583 = vst.msk [vmem:[#allocation3 + $0x38] sm:$0xff] %vm635, %v1580
    %1584 = vst.msk [vmem:[#allocation3 + $0x48] sm:$0xff] %vm637, %v1580
    %v1585 = vld [vmem:[#allocation2 + $0xa0] sm:$0xff]
    %v1586 = vld [vmem:[#allocation2 + $0xa8] sm:$0xff]
    %v1587 = vld [vmem:[#allocation2 + $0xb0] sm:$0xff]
    %v1588 = vld [vmem:[#allocation2 + $0xb8] sm:$0xff]
    %v1589 = vld [vmem:[#allocation5] sm:$0xff]
    %v1590 = vld [vmem:[#allocation5 + $0x8] sm:$0xff]
    %v1591 = vld [vmem:[#allocation5 + $0x10] sm:$0xff]
    %v1592 = vld [vmem:[#allocation5 + $0x18] sm:$0xff]
    %v1593 = vld [vmem:[#allocation5 + $0x20] sm:$0xff]
    %v1594 = vld [vmem:[#allocation5 + $0x28] sm:$0xff]
    %v1595 = vld [vmem:[#allocation5 + $0x30] sm:$0xff]
    %v1596 = vld [vmem:[#allocation5 + $0x38] sm:$0xff]
    %v1597 = vld [vmem:[#allocation5 + $0x40] sm:$0xff]
    %v1598 = vld [vmem:[#allocation5 + $0x48] sm:$0xff]
    %v1599 = vld [vmem:[#allocation5 + $0x50] sm:$0xff]
    %v1600 = vld [vmem:[#allocation5 + $0x58] sm:$0xff]
    %v1601 = vld [vmem:[#allocation5 + $0x60] sm:$0xff]
    %v1602 = vld [vmem:[#allocation5 + $0x68] sm:$0xff]
    %v1603 = vld [vmem:[#allocation5 + $0x70] sm:$0xff]
    %v1604 = vld [vmem:[#allocation5 + $0x78] sm:$0xff]
    %v1605 = vld [vmem:[#allocation5 + $0x80] sm:$0xff]
    %v1606 = vld [vmem:[#allocation5 + $0x88] sm:$0xff]
    %v1607 = vld [vmem:[#allocation5 + $0x90] sm:$0xff]
    %v1608 = vld [vmem:[#allocation5 + $0x98] sm:$0xff]
    %v1609 = vld [vmem:[#allocation5 + $0xa0] sm:$0xff]
    %v1610 = vld [vmem:[#allocation5 + $0xa8] sm:$0xff]
    %v1611 = vld [vmem:[#allocation5 + $0xb0] sm:$0xff]
    %v1612 = vld [vmem:[#allocation5 + $0xb8] sm:$0xff]
    %v1613 = vld [vmem:[#allocation5 + $0xc0] sm:$0xff]
    %v1614 = vld [vmem:[#allocation5 + $0xc8] sm:$0xff]
    %v1615 = vld [vmem:[#allocation5 + $0xd0] sm:$0xff]
    %v1616 = vld [vmem:[#allocation5 + $0xd8] sm:$0xff]
    %v1617 = vld [vmem:[#allocation5 + $0xe0] sm:$0xff]
    %v1618 = vld [vmem:[#allocation5 + $0xe8] sm:$0xff]
    %v1619 = vld [vmem:[#allocation5 + $0xf0] sm:$0xff]
    %v1620 = vld [vmem:[#allocation5 + $0xf8] sm:$0xff]
    %v1621 = vld [vmem:[#allocation5 + $0x100] sm:$0xff]
    %v1622 = vld [vmem:[#allocation5 + $0x108] sm:$0xff]
    %v1623 = vld [vmem:[#allocation5 + $0x110] sm:$0xff]
    %v1624 = vld [vmem:[#allocation5 + $0x118] sm:$0xff]
    %v1625 = vld [vmem:[#allocation5 + $0x120] sm:$0xff]
    %v1626 = vld [vmem:[#allocation5 + $0x128] sm:$0xff]
    %v1627 = vld [vmem:[#allocation5 + $0x130] sm:$0xff]
    %v1628 = vld [vmem:[#allocation5 + $0x138] sm:$0xff]
    %v1629 = vld [vmem:[#allocation5 + $0x140] sm:$0xff]
    %v1630 = vld [vmem:[#allocation5 + $0x148] sm:$0xff]
    %v1631 = vld [vmem:[#allocation5 + $0x150] sm:$0xff]
    %v1632 = vld [vmem:[#allocation5 + $0x158] sm:$0xff]
    %v1633 = vld [vmem:[#allocation5 + $0x160] sm:$0xff]
    %v1634 = vld [vmem:[#allocation5 + $0x168] sm:$0xff]
    %v1635 = vld [vmem:[#allocation5 + $0x170] sm:$0xff]
    %v1636 = vld [vmem:[#allocation5 + $0x178] sm:$0xff]
    %v1637 = vld [vmem:[#allocation5 + $0x180] sm:$0xff]
    %v1638 = vld [vmem:[#allocation5 + $0x188] sm:$0xff]
    %v1639 = vld [vmem:[#allocation5 + $0x190] sm:$0xff]
    %v1640 = vld [vmem:[#allocation5 + $0x198] sm:$0xff]
    %v1641 = vld [vmem:[#allocation5 + $0x1a0] sm:$0xff]
    %v1642 = vld [vmem:[#allocation5 + $0x1a8] sm:$0xff]
    %v1643 = vld [vmem:[#allocation5 + $0x1b0] sm:$0xff]
    %v1644 = vld [vmem:[#allocation5 + $0x1b8] sm:$0xff]
    %v1645 = vld [vmem:[#allocation5 + $0x1c0] sm:$0xff]
    %v1646 = vld [vmem:[#allocation5 + $0x1c8] sm:$0xff]
    %v1647 = vld [vmem:[#allocation5 + $0x1d0] sm:$0xff]
    %v1648 = vld [vmem:[#allocation5 + $0x1d8] sm:$0xff]
    %v1649 = vld [vmem:[#allocation5 + $0x1e0] sm:$0xff]
    %v1650 = vld [vmem:[#allocation5 + $0x1e8] sm:$0xff]
    %v1651 = vld [vmem:[#allocation5 + $0x1f0] sm:$0xff]
    %v1652 = vld [vmem:[#allocation5 + $0x1f8] sm:$0xff]
    %1653 = vmatprep.subr.mxu0 %v1590
    %1654 = vmatpush1.msra.mxu0 %v1589
    %1655 = vmatprep.subr.mxu0 %v1594
    %1656 = vmatpush1.msra.mxu0 %v1593
    %1657 = vmatprep.subr.mxu0 %v1598
    %1658 = vmatpush1.msra.mxu0 %v1597
    %1659 = vmatprep.subr.mxu0 %v1602
    %1660 = vmatpush1.msra.mxu0 %v1601
    %1661 = vmatprep.subr.mxu0 %v1606
    %1662 = vmatpush1.msra.mxu0 %v1605
    %1663 = vmatprep.subr.mxu0 %v1610
    %1664 = vmatpush1.msra.mxu0 %v1609
    %1665 = vmatprep.subr.mxu0 %v1614
    %1666 = vmatpush1.msra.mxu0 %v1613
    %1667 = vmatprep.subr.mxu0 %v1618
    %1668 = vmatpush1.msra.mxu0 %v1617
    %1669 = vmatprep.subr.mxu0 %v1622
    %1670 = vmatpush1.msra.mxu0 %v1621
    %1671 = vmatprep.subr.mxu0 %v1626
    %1672 = vmatpush1.msra.mxu0 %v1625
    %1673 = vmatprep.subr.mxu0 %v1630
    %1674 = vmatpush1.msra.mxu0 %v1629
    %1675 = vmatprep.subr.mxu0 %v1634
    %1676 = vmatpush1.msra.mxu0 %v1633
    %1677 = vmatprep.subr.mxu0 %v1638
    %1678 = vmatpush1.msra.mxu0 %v1637
    %1679 = vmatprep.subr.mxu0 %v1642
    %1680 = vmatpush1.msra.mxu0 %v1641
    %1681 = vmatprep.subr.mxu0 %v1646
    %1682 = vmatpush1.msra.mxu0 %v1645
    %1683 = vmatprep.subr.mxu0 %v1650
    %1684 = vmatpush1.msra.mxu0 %v1649
    %1685 = vmatprep.subr.mxu0 0.0
    %1686 = vmatpush1.msra.mxu0 0.0
    %1687 = vmatprep.subr.mxu0 0.0
    %1688 = vmatpush1.msra.mxu0 0.0
    %1689 = vmatprep.subr.mxu0 0.0
    %1690 = vmatpush1.msra.mxu0 0.0
    %1691 = vmatprep.subr.mxu0 0.0
    %1692 = vmatpush1.msra.mxu0 0.0
    %1693 = vmatprep.subr.mxu0 0.0
    %1694 = vmatpush1.msra.mxu0 0.0
    %1695 = vmatprep.subr.mxu0 0.0
    %1696 = vmatpush1.msra.mxu0 0.0
    %1697 = vmatprep.subr.mxu0 0.0
    %1698 = vmatpush1.msra.mxu0 0.0
    %1699 = vmatprep.subr.mxu0 0.0
    %1700 = vmatpush1.msra.mxu0 0.0
    %1701 = vmatprep.subr.mxu0 0.0
    %1702 = vmatpush1.msra.mxu0 0.0
    %1703 = vmatprep.subr.mxu0 0.0
    %1704 = vmatpush1.msra.mxu0 0.0
    %1705 = vmatprep.subr.mxu0 0.0
    %1706 = vmatpush1.msra.mxu0 0.0
    %1707 = vmatprep.subr.mxu0 0.0
    %1708 = vmatpush1.msra.mxu0 0.0
    %1709 = vmatprep.subr.mxu0 0.0
    %1710 = vmatpush1.msra.mxu0 0.0
    %1711 = vmatprep.subr.mxu0 0.0
    %1712 = vmatpush1.msra.mxu0 0.0
    %1713 = vmatprep.subr.mxu0 0.0
    %1714 = vmatpush1.msra.mxu0 0.0
    %1715 = vmatprep.subr.mxu0 0.0
    %1716 = vmatpush1.msra.mxu0 0.0
    %1717 = vmatprep.mubr.f32.mxu0 0.0
    %1718 = vmatmul.mubr.f32.gmra.mrb[0].mxu0 %v1580
    %v1719 = vpop.f32.mrb[0].mxu0
    %v1720 = vadd.f32 0.0, %v1719
    %v1721 = vpop.f32.mrb[0].mxu0
    %v1722 = vadd.f32 0.0, %v1721
    %1723 = vdwg.mxu0
    %1724 = vmatprep.subr.mxu0 %v1592
    %1725 = vmatpush1.msra.mxu0 %v1591
    %1726 = vmatprep.subr.mxu0 %v1596
    %1727 = vmatpush1.msra.mxu0 %v1595
    %1728 = vmatprep.subr.mxu0 %v1600
    %1729 = vmatpush1.msra.mxu0 %v1599
    %1730 = vmatprep.subr.mxu0 %v1604
    %1731 = vmatpush1.msra.mxu0 %v1603
    %1732 = vmatprep.subr.mxu0 %v1608
    %1733 = vmatpush1.msra.mxu0 %v1607
    %1734 = vmatprep.subr.mxu0 %v1612
    %1735 = vmatpush1.msra.mxu0 %v1611
    %1736 = vmatprep.subr.mxu0 %v1616
    %1737 = vmatpush1.msra.mxu0 %v1615
    %1738 = vmatprep.subr.mxu0 %v1620
    %1739 = vmatpush1.msra.mxu0 %v1619
    %1740 = vmatprep.subr.mxu0 %v1624
    %1741 = vmatpush1.msra.mxu0 %v1623
    %1742 = vmatprep.subr.mxu0 %v1628
    %1743 = vmatpush1.msra.mxu0 %v1627
    %1744 = vmatprep.subr.mxu0 %v1632
    %1745 = vmatpush1.msra.mxu0 %v1631
    %1746 = vmatprep.subr.mxu0 %v1636
    %1747 = vmatpush1.msra.mxu0 %v1635
    %1748 = vmatprep.subr.mxu0 %v1640
    %1749 = vmatpush1.msra.mxu0 %v1639
    %1750 = vmatprep.subr.mxu0 %v1644
    %1751 = vmatpush1.msra.mxu0 %v1643
    %1752 = vmatprep.subr.mxu0 %v1648
    %1753 = vmatpush1.msra.mxu0 %v1647
    %1754 = vmatprep.subr.mxu0 %v1652
    %1755 = vmatpush1.msra.mxu0 %v1651
    %1756 = vmatprep.subr.mxu0 0.0
    %1757 = vmatpush1.msra.mxu0 0.0
    %1758 = vmatprep.subr.mxu0 0.0
    %1759 = vmatpush1.msra.mxu0 0.0
    %1760 = vmatprep.subr.mxu0 0.0
    %1761 = vmatpush1.msra.mxu0 0.0
    %1762 = vmatprep.subr.mxu0 0.0
    %1763 = vmatpush1.msra.mxu0 0.0
    %1764 = vmatprep.subr.mxu0 0.0
    %1765 = vmatpush1.msra.mxu0 0.0
    %1766 = vmatprep.subr.mxu0 0.0
    %1767 = vmatpush1.msra.mxu0 0.0
    %1768 = vmatprep.subr.mxu0 0.0
    %1769 = vmatpush1.msra.mxu0 0.0
    %1770 = vmatprep.subr.mxu0 0.0
    %1771 = vmatpush1.msra.mxu0 0.0
    %1772 = vmatprep.subr.mxu0 0.0
    %1773 = vmatpush1.msra.mxu0 0.0
    %1774 = vmatprep.subr.mxu0 0.0
    %1775 = vmatpush1.msra.mxu0 0.0
    %1776 = vmatprep.subr.mxu0 0.0
    %1777 = vmatpush1.msra.mxu0 0.0
    %1778 = vmatprep.subr.mxu0 0.0
    %1779 = vmatpush1.msra.mxu0 0.0
    %1780 = vmatprep.subr.mxu0 0.0
    %1781 = vmatpush1.msra.mxu0 0.0
    %1782 = vmatprep.subr.mxu0 0.0
    %1783 = vmatpush1.msra.mxu0 0.0
    %1784 = vmatprep.subr.mxu0 0.0
    %1785 = vmatpush1.msra.mxu0 0.0
    %1786 = vmatprep.subr.mxu0 0.0
    %1787 = vmatpush1.msra.mxu0 0.0
    %1788 = vmatprep.mubr.f32.mxu0 0.0
    %1789 = vmatmul.mubr.f32.gmra.mrb[0].mxu0 %v1580
    %v1790 = vpop.f32.mrb[0].mxu0
    %v1791 = vadd.f32 0.0, %v1790
    %v1792 = vpop.f32.mrb[0].mxu0
    %v1793 = vadd.f32 0.0, %v1792
    %1794 = vdwg.mxu0
    %v1795 = vadd.f32 %v1585, %v1720
    %v1796 = vadd.f32 %v1586, %v1722
    %v1797 = vadd.f32 %v1587, %v1791
    %v1798 = vadd.f32 %v1588, %v1793
    %v1799 = vmul.f32 %v1795, 0.5
    %v1800 = vmul.f32 %v1796, 0.5
    %v1801 = vmul.f32 %v1797, 0.5
    %v1802 = vtanh.pop %v1799
    %v1803 = vtanh.pop %v1800
    %v1804 = vtanh.pop %v1801
    %v1805 = vmul.f32 %v1802, 0.5
    %v1806 = vmul.f32 %v1803, 0.5
    %v1807 = vmul.f32 %v1804, 0.5
    %v1808 = vadd.f32 %v1805, 0.5
    %v1809 = vadd.f32 %v1806, 0.5
    %v1810 = vadd.f32 %v1807, 0.5
    %v1811 = vtanh.pop %v1798
    %v1812 = vmul.f32 %v1809, %v1578
    %v1813 = vmul.f32 %v1808, %v1811
    %v1814 = vadd.f32 %v1812, %v1813
    %v1815 = vtanh.pop %v1814
    %v1816 = vmul.f32 %v1810, %v1815
    %1817 = vst.msk [vmem:[#allocation3 + $0x50] sm:$0xff] %vm635, %v1816
    %1818 = vst.msk [vmem:[#allocation3 + $0x20] sm:$0xff] %vm637, %v1816
    %1819 = vst.msk [vmem:[#allocation3 + $0x28] sm:$0xff] %vm635, %v1816
    %1820 = vst.msk [vmem:[#allocation3 + $0x58] sm:$0xff] %vm637, %v1816
    %v1821 = vld [vmem:[#allocation2 + $0xc0] sm:$0xff]
    %v1822 = vld [vmem:[#allocation2 + $0xc8] sm:$0xff]
    %v1823 = vld [vmem:[#allocation2 + $0xd0] sm:$0xff]
    %v1824 = vld [vmem:[#allocation2 + $0xd8] sm:$0xff]
    %v1825 = vld [vmem:[#allocation5] sm:$0xff]
    %v1826 = vld [vmem:[#allocation5 + $0x8] sm:$0xff]
    %v1827 = vld [vmem:[#allocation5 + $0x10] sm:$0xff]
    %v1828 = vld [vmem:[#allocation5 + $0x18] sm:$0xff]
    %v1829 = vld [vmem:[#allocation5 + $0x20] sm:$0xff]
    %v1830 = vld [vmem:[#allocation5 + $0x28] sm:$0xff]
    %v1831 = vld [vmem:[#allocation5 + $0x30] sm:$0xff]
    %v1832 = vld [vmem:[#allocation5 + $0x38] sm:$0xff]
    %v1833 = vld [vmem:[#allocation5 + $0x40] sm:$0xff]
    %v1834 = vld [vmem:[#allocation5 + $0x48] sm:$0xff]
    %v1835 = vld [vmem:[#allocation5 + $0x50] sm:$0xff]
    %v1836 = vld [vmem:[#allocation5 + $0x58] sm:$0xff]
    %v1837 = vld [vmem:[#allocation5 + $0x60] sm:$0xff]
    %v1838 = vld [vmem:[#allocation5 + $0x68] sm:$0xff]
    %v1839 = vld [vmem:[#allocation5 + $0x70] sm:$0xff]
    %v1840 = vld [vmem:[#allocation5 + $0x78] sm:$0xff]
    %v1841 = vld [vmem:[#allocation5 + $0x80] sm:$0xff]
    %v1842 = vld [vmem:[#allocation5 + $0x88] sm:$0xff]
    %v1843 = vld [vmem:[#allocation5 + $0x90] sm:$0xff]
    %v1844 = vld [vmem:[#allocation5 + $0x98] sm:$0xff]
    %v1845 = vld [vmem:[#allocation5 + $0xa0] sm:$0xff]
    %v1846 = vld [vmem:[#allocation5 + $0xa8] sm:$0xff]
    %v1847 = vld [vmem:[#allocation5 + $0xb0] sm:$0xff]
    %v1848 = vld [vmem:[#allocation5 + $0xb8] sm:$0xff]
    %v1849 = vld [vmem:[#allocation5 + $0xc0] sm:$0xff]
    %v1850 = vld [vmem:[#allocation5 + $0xc8] sm:$0xff]
    %v1851 = vld [vmem:[#allocation5 + $0xd0] sm:$0xff]
    %v1852 = vld [vmem:[#allocation5 + $0xd8] sm:$0xff]
    %v1853 = vld [vmem:[#allocation5 + $0xe0] sm:$0xff]
    %v1854 = vld [vmem:[#allocation5 + $0xe8] sm:$0xff]
    %v1855 = vld [vmem:[#allocation5 + $0xf0] sm:$0xff]
    %v1856 = vld [vmem:[#allocation5 + $0xf8] sm:$0xff]
    %v1857 = vld [vmem:[#allocation5 + $0x100] sm:$0xff]
    %v1858 = vld [vmem:[#allocation5 + $0x108] sm:$0xff]
    %v1859 = vld [vmem:[#allocation5 + $0x110] sm:$0xff]
    %v1860 = vld [vmem:[#allocation5 + $0x118] sm:$0xff]
    %v1861 = vld [vmem:[#allocation5 + $0x120] sm:$0xff]
    %v1862 = vld [vmem:[#allocation5 + $0x128] sm:$0xff]
    %v1863 = vld [vmem:[#allocation5 + $0x130] sm:$0xff]
    %v1864 = vld [vmem:[#allocation5 + $0x138] sm:$0xff]
    %v1865 = vld [vmem:[#allocation5 + $0x140] sm:$0xff]
    %v1866 = vld [vmem:[#allocation5 + $0x148] sm:$0xff]
    %v1867 = vld [vmem:[#allocation5 + $0x150] sm:$0xff]
    %v1868 = vld [vmem:[#allocation5 + $0x158] sm:$0xff]
    %v1869 = vld [vmem:[#allocation5 + $0x160] sm:$0xff]
    %v1870 = vld [vmem:[#allocation5 + $0x168] sm:$0xff]
    %v1871 = vld [vmem:[#allocation5 + $0x170] sm:$0xff]
    %v1872 = vld [vmem:[#allocation5 + $0x178] sm:$0xff]
    %v1873 = vld [vmem:[#allocation5 + $0x180] sm:$0xff]
    %v1874 = vld [vmem:[#allocation5 + $0x188] sm:$0xff]
    %v1875 = vld [vmem:[#allocation5 + $0x190] sm:$0xff]
    %v1876 = vld [vmem:[#allocation5 + $0x198] sm:$0xff]
    %v1877 = vld [vmem:[#allocation5 + $0x1a0] sm:$0xff]
    %v1878 = vld [vmem:[#allocation5 + $0x1a8] sm:$0xff]
    %v1879 = vld [vmem:[#allocation5 + $0x1b0] sm:$0xff]
    %v1880 = vld [vmem:[#allocation5 + $0x1b8] sm:$0xff]
    %v1881 = vld [vmem:[#allocation5 + $0x1c0] sm:$0xff]
    %v1882 = vld [vmem:[#allocation5 + $0x1c8] sm:$0xff]
    %v1883 = vld [vmem:[#allocation5 + $0x1d0] sm:$0xff]
    %v1884 = vld [vmem:[#allocation5 + $0x1d8] sm:$0xff]
    %v1885 = vld [vmem:[#allocation5 + $0x1e0] sm:$0xff]
    %v1886 = vld [vmem:[#allocation5 + $0x1e8] sm:$0xff]
    %v1887 = vld [vmem:[#allocation5 + $0x1f0] sm:$0xff]
    %v1888 = vld [vmem:[#allocation5 + $0x1f8] sm:$0xff]
    %1889 = vmatprep.subr.mxu0 %v1826
    %1890 = vmatpush1.msra.mxu0 %v1825
    %1891 = vmatprep.subr.mxu0 %v1830
    %1892 = vmatpush1.msra.mxu0 %v1829
    %1893 = vmatprep.subr.mxu0 %v1834
    %1894 = vmatpush1.msra.mxu0 %v1833
    %1895 = vmatprep.subr.mxu0 %v1838
    %1896 = vmatpush1.msra.mxu0 %v1837
    %1897 = vmatprep.subr.mxu0 %v1842
    %1898 = vmatpush1.msra.mxu0 %v1841
    %1899 = vmatprep.subr.mxu0 %v1846
    %1900 = vmatpush1.msra.mxu0 %v1845
    %1901 = vmatprep.subr.mxu0 %v1850
    %1902 = vmatpush1.msra.mxu0 %v1849
    %1903 = vmatprep.subr.mxu0 %v1854
    %1904 = vmatpush1.msra.mxu0 %v1853
    %1905 = vmatprep.subr.mxu0 %v1858
    %1906 = vmatpush1.msra.mxu0 %v1857
    %1907 = vmatprep.subr.mxu0 %v1862
    %1908 = vmatpush1.msra.mxu0 %v1861
    %1909 = vmatprep.subr.mxu0 %v1866
    %1910 = vmatpush1.msra.mxu0 %v1865
    %1911 = vmatprep.subr.mxu0 %v1870
    %1912 = vmatpush1.msra.mxu0 %v1869
    %1913 = vmatprep.subr.mxu0 %v1874
    %1914 = vmatpush1.msra.mxu0 %v1873
    %1915 = vmatprep.subr.mxu0 %v1878
    %1916 = vmatpush1.msra.mxu0 %v1877
    %1917 = vmatprep.subr.mxu0 %v1882
    %1918 = vmatpush1.msra.mxu0 %v1881
    %1919 = vmatprep.subr.mxu0 %v1886
    %1920 = vmatpush1.msra.mxu0 %v1885
    %1921 = vmatprep.subr.mxu0 0.0
    %1922 = vmatpush1.msra.mxu0 0.0
    %1923 = vmatprep.subr.mxu0 0.0
    %1924 = vmatpush1.msra.mxu0 0.0
    %1925 = vmatprep.subr.mxu0 0.0
    %1926 = vmatpush1.msra.mxu0 0.0
    %1927 = vmatprep.subr.mxu0 0.0
    %1928 = vmatpush1.msra.mxu0 0.0
    %1929 = vmatprep.subr.mxu0 0.0
    %1930 = vmatpush1.msra.mxu0 0.0
    %1931 = vmatprep.subr.mxu0 0.0
    %1932 = vmatpush1.msra.mxu0 0.0
    %1933 = vmatprep.subr.mxu0 0.0
    %1934 = vmatpush1.msra.mxu0 0.0
    %1935 = vmatprep.subr.mxu0 0.0
    %1936 = vmatpush1.msra.mxu0 0.0
    %1937 = vmatprep.subr.mxu0 0.0
    %1938 = vmatpush1.msra.mxu0 0.0
    %1939 = vmatprep.subr.mxu0 0.0
    %1940 = vmatpush1.msra.mxu0 0.0
    %1941 = vmatprep.subr.mxu0 0.0
    %1942 = vmatpush1.msra.mxu0 0.0
    %1943 = vmatprep.subr.mxu0 0.0
    %1944 = vmatpush1.msra.mxu0 0.0
    %1945 = vmatprep.subr.mxu0 0.0
    %1946 = vmatpush1.msra.mxu0 0.0
    %1947 = vmatprep.subr.mxu0 0.0
    %1948 = vmatpush1.msra.mxu0 0.0
    %1949 = vmatprep.subr.mxu0 0.0
    %1950 = vmatpush1.msra.mxu0 0.0
    %1951 = vmatprep.subr.mxu0 0.0
    %1952 = vmatpush1.msra.mxu0 0.0
    %1953 = vmatprep.mubr.f32.mxu0 0.0
    %1954 = vmatmul.mubr.f32.gmra.mrb[0].mxu0 %v1816
    %v1955 = vpop.f32.mrb[0].mxu0
    %v1956 = vadd.f32 0.0, %v1955
    %v1957 = vpop.f32.mrb[0].mxu0
    %v1958 = vadd.f32 0.0, %v1957
    %1959 = vdwg.mxu0
    %1960 = vmatprep.subr.mxu0 %v1828
    %1961 = vmatpush1.msra.mxu0 %v1827
    %1962 = vmatprep.subr.mxu0 %v1832
    %1963 = vmatpush1.msra.mxu0 %v1831
    %1964 = vmatprep.subr.mxu0 %v1836
    %1965 = vmatpush1.msra.mxu0 %v1835
    %1966 = vmatprep.subr.mxu0 %v1840
    %1967 = vmatpush1.msra.mxu0 %v1839
    %1968 = vmatprep.subr.mxu0 %v1844
    %1969 = vmatpush1.msra.mxu0 %v1843
    %1970 = vmatprep.subr.mxu0 %v1848
    %1971 = vmatpush1.msra.mxu0 %v1847
    %1972 = vmatprep.subr.mxu0 %v1852
    %1973 = vmatpush1.msra.mxu0 %v1851
    %1974 = vmatprep.subr.mxu0 %v1856
    %1975 = vmatpush1.msra.mxu0 %v1855
    %1976 = vmatprep.subr.mxu0 %v1860
    %1977 = vmatpush1.msra.mxu0 %v1859
    %1978 = vmatprep.subr.mxu0 %v1864
    %1979 = vmatpush1.msra.mxu0 %v1863
    %1980 = vmatprep.subr.mxu0 %v1868
    %1981 = vmatpush1.msra.mxu0 %v1867
    %1982 = vmatprep.subr.mxu0 %v1872
    %1983 = vmatpush1.msra.mxu0 %v1871
    %1984 = vmatprep.subr.mxu0 %v1876
    %1985 = vmatpush1.msra.mxu0 %v1875
    %1986 = vmatprep.subr.mxu0 %v1880
    %1987 = vmatpush1.msra.mxu0 %v1879
    %1988 = vmatprep.subr.mxu0 %v1884
    %1989 = vmatpush1.msra.mxu0 %v1883
    %1990 = vmatprep.subr.mxu0 %v1888
    %1991 = vmatpush1.msra.mxu0 %v1887
    %1992 = vmatprep.subr.mxu0 0.0
    %1993 = vmatpush1.msra.mxu0 0.0
    %1994 = vmatprep.subr.mxu0 0.0
    %1995 = vmatpush1.msra.mxu0 0.0
    %1996 = vmatprep.subr.mxu0 0.0
    %1997 = vmatpush1.msra.mxu0 0.0
    %1998 = vmatprep.subr.mxu0 0.0
    %1999 = vmatpush1.msra.mxu0 0.0
    %2000 = vmatprep.subr.mxu0 0.0
    %2001 = vmatpush1.msra.mxu0 0.0
    %2002 = vmatprep.subr.mxu0 0.0
    %2003 = vmatpush1.msra.mxu0 0.0
    %2004 = vmatprep.subr.mxu0 0.0
    %2005 = vmatpush1.msra.mxu0 0.0
    %2006 = vmatprep.subr.mxu0 0.0
    %2007 = vmatpush1.msra.mxu0 0.0
    %2008 = vmatprep.subr.mxu0 0.0
    %2009 = vmatpush1.msra.mxu0 0.0
    %2010 = vmatprep.subr.mxu0 0.0
    %2011 = vmatpush1.msra.mxu0 0.0
    %2012 = vmatprep.subr.mxu0 0.0
    %2013 = vmatpush1.msra.mxu0 0.0
    %2014 = vmatprep.subr.mxu0 0.0
    %2015 = vmatpush1.msra.mxu0 0.0
    %2016 = vmatprep.subr.mxu0 0.0
    %2017 = vmatpush1.msra.mxu0 0.0
    %2018 = vmatprep.subr.mxu0 0.0
    %2019 = vmatpush1.msra.mxu0 0.0
    %2020 = vmatprep.subr.mxu0 0.0
    %2021 = vmatpush1.msra.mxu0 0.0
    %2022 = vmatprep.subr.mxu0 0.0
    %2023 = vmatpush1.msra.mxu0 0.0
    %2024 = vmatprep.mubr.f32.mxu0 0.0
    %2025 = vmatmul.mubr.f32.gmra.mrb[0].mxu0 %v1816
    %v2026 = vpop.f32.mrb[0].mxu0
    %v2027 = vadd.f32 0.0, %v2026
    %v2028 = vpop.f32.mrb[0].mxu0
    %v2029 = vadd.f32 0.0, %v2028
    %2030 = vdwg.mxu0
    %v2031 = vadd.f32 %v1821, %v1956
    %v2032 = vadd.f32 %v1822, %v1958
    %v2033 = vadd.f32 %v1823, %v2027
    %v2034 = vadd.f32 %v1824, %v2029
    %v2035 = vmul.f32 %v2031, 0.5
    %v2036 = vmul.f32 %v2032, 0.5
    %v2037 = vmul.f32 %v2033, 0.5
    %v2038 = vtanh.pop %v2035
    %v2039 = vtanh.pop %v2036
    %v2040 = vtanh.pop %v2037
    %v2041 = vmul.f32 %v2038, 0.5
    %v2042 = vmul.f32 %v2039, 0.5
    %v2043 = vmul.f32 %v2040, 0.5
    %v2044 = vadd.f32 %v2041, 0.5
    %v2045 = vadd.f32 %v2042, 0.5
    %v2046 = vadd.f32 %v2043, 0.5
    %v2047 = vtanh.pop %v2034
    %v2048 = vmul.f32 %v2045, %v1814
    %v2049 = vmul.f32 %v2044, %v2047
    %v2050 = vadd.f32 %v2048, %v2049
    %v2051 = vtanh.pop %v2050
    %v2052 = vmul.f32 %v2046, %v2051
    %2053 = vst.msk [vmem:[#allocation3 + $0x60] sm:$0xff] %vm635, %v2052
    %2054 = vst.msk [vmem:[#allocation3 + $0x10] sm:$0xff] %vm637, %v2052
    %2055 = vst.msk [vmem:[#allocation3 + $0x18] sm:$0xff] %vm635, %v2052
    %2056 = vst.msk [vmem:[#allocation3 + $0x68] sm:$0xff] %vm637, %v2052
    %v2057 = vld [vmem:[#allocation2 + $0xe0] sm:$0xff]
    %v2058 = vld [vmem:[#allocation2 + $0xe8] sm:$0xff]
    %v2059 = vld [vmem:[#allocation2 + $0xf0] sm:$0xff]
    %v2060 = vld [vmem:[#allocation2 + $0xf8] sm:$0xff]
    %v2061 = vld [vmem:[#allocation5] sm:$0xff]
    %v2062 = vld [vmem:[#allocation5 + $0x8] sm:$0xff]
    %v2063 = vld [vmem:[#allocation5 + $0x10] sm:$0xff]
    %v2064 = vld [vmem:[#allocation5 + $0x18] sm:$0xff]
    %v2065 = vld [vmem:[#allocation5 + $0x20] sm:$0xff]
    %v2066 = vld [vmem:[#allocation5 + $0x28] sm:$0xff]
    %v2067 = vld [vmem:[#allocation5 + $0x30] sm:$0xff]
    %v2068 = vld [vmem:[#allocation5 + $0x38] sm:$0xff]
    %v2069 = vld [vmem:[#allocation5 + $0x40] sm:$0xff]
    %v2070 = vld [vmem:[#allocation5 + $0x48] sm:$0xff]
    %v2071 = vld [vmem:[#allocation5 + $0x50] sm:$0xff]
    %v2072 = vld [vmem:[#allocation5 + $0x58] sm:$0xff]
    %v2073 = vld [vmem:[#allocation5 + $0x60] sm:$0xff]
    %v2074 = vld [vmem:[#allocation5 + $0x68] sm:$0xff]
    %v2075 = vld [vmem:[#allocation5 + $0x70] sm:$0xff]
    %v2076 = vld [vmem:[#allocation5 + $0x78] sm:$0xff]
    %v2077 = vld [vmem:[#allocation5 + $0x80] sm:$0xff]
    %v2078 = vld [vmem:[#allocation5 + $0x88] sm:$0xff]
    %v2079 = vld [vmem:[#allocation5 + $0x90] sm:$0xff]
    %v2080 = vld [vmem:[#allocation5 + $0x98] sm:$0xff]
    %v2081 = vld [vmem:[#allocation5 + $0xa0] sm:$0xff]
    %v2082 = vld [vmem:[#allocation5 + $0xa8] sm:$0xff]
    %v2083 = vld [vmem:[#allocation5 + $0xb0] sm:$0xff]
    %v2084 = vld [vmem:[#allocation5 + $0xb8] sm:$0xff]
    %v2085 = vld [vmem:[#allocation5 + $0xc0] sm:$0xff]
    %v2086 = vld [vmem:[#allocation5 + $0xc8] sm:$0xff]
    %v2087 = vld [vmem:[#allocation5 + $0xd0] sm:$0xff]
    %v2088 = vld [vmem:[#allocation5 + $0xd8] sm:$0xff]
    %v2089 = vld [vmem:[#allocation5 + $0xe0] sm:$0xff]
    %v2090 = vld [vmem:[#allocation5 + $0xe8] sm:$0xff]
    %v2091 = vld [vmem:[#allocation5 + $0xf0] sm:$0xff]
    %v2092 = vld [vmem:[#allocation5 + $0xf8] sm:$0xff]
    %v2093 = vld [vmem:[#allocation5 + $0x100] sm:$0xff]
    %v2094 = vld [vmem:[#allocation5 + $0x108] sm:$0xff]
    %v2095 = vld [vmem:[#allocation5 + $0x110] sm:$0xff]
    %v2096 = vld [vmem:[#allocation5 + $0x118] sm:$0xff]
    %v2097 = vld [vmem:[#allocation5 + $0x120] sm:$0xff]
    %v2098 = vld [vmem:[#allocation5 + $0x128] sm:$0xff]
    %v2099 = vld [vmem:[#allocation5 + $0x130] sm:$0xff]
    %v2100 = vld [vmem:[#allocation5 + $0x138] sm:$0xff]
    %v2101 = vld [vmem:[#allocation5 + $0x140] sm:$0xff]
    %v2102 = vld [vmem:[#allocation5 + $0x148] sm:$0xff]
    %v2103 = vld [vmem:[#allocation5 + $0x150] sm:$0xff]
    %v2104 = vld [vmem:[#allocation5 + $0x158] sm:$0xff]
    %v2105 = vld [vmem:[#allocation5 + $0x160] sm:$0xff]
    %v2106 = vld [vmem:[#allocation5 + $0x168] sm:$0xff]
    %v2107 = vld [vmem:[#allocation5 + $0x170] sm:$0xff]
    %v2108 = vld [vmem:[#allocation5 + $0x178] sm:$0xff]
    %v2109 = vld [vmem:[#allocation5 + $0x180] sm:$0xff]
    %v2110 = vld [vmem:[#allocation5 + $0x188] sm:$0xff]
    %v2111 = vld [vmem:[#allocation5 + $0x190] sm:$0xff]
    %v2112 = vld [vmem:[#allocation5 + $0x198] sm:$0xff]
    %v2113 = vld [vmem:[#allocation5 + $0x1a0] sm:$0xff]
    %v2114 = vld [vmem:[#allocation5 + $0x1a8] sm:$0xff]
    %v2115 = vld [vmem:[#allocation5 + $0x1b0] sm:$0xff]
    %v2116 = vld [vmem:[#allocation5 + $0x1b8] sm:$0xff]
    %v2117 = vld [vmem:[#allocation5 + $0x1c0] sm:$0xff]
    %v2118 = vld [vmem:[#allocation5 + $0x1c8] sm:$0xff]
    %v2119 = vld [vmem:[#allocation5 + $0x1d0] sm:$0xff]
    %v2120 = vld [vmem:[#allocation5 + $0x1d8] sm:$0xff]
    %v2121 = vld [vmem:[#allocation5 + $0x1e0] sm:$0xff]
    %v2122 = vld [vmem:[#allocation5 + $0x1e8] sm:$0xff]
    %v2123 = vld [vmem:[#allocation5 + $0x1f0] sm:$0xff]
    %v2124 = vld [vmem:[#allocation5 + $0x1f8] sm:$0xff]
    %2125 = vmatprep.subr.mxu0 %v2062
    %2126 = vmatpush1.msra.mxu0 %v2061
    %2127 = vmatprep.subr.mxu0 %v2066
    %2128 = vmatpush1.msra.mxu0 %v2065
    %2129 = vmatprep.subr.mxu0 %v2070
    %2130 = vmatpush1.msra.mxu0 %v2069
    %2131 = vmatprep.subr.mxu0 %v2074
    %2132 = vmatpush1.msra.mxu0 %v2073
    %2133 = vmatprep.subr.mxu0 %v2078
    %2134 = vmatpush1.msra.mxu0 %v2077
    %2135 = vmatprep.subr.mxu0 %v2082
    %2136 = vmatpush1.msra.mxu0 %v2081
    %2137 = vmatprep.subr.mxu0 %v2086
    %2138 = vmatpush1.msra.mxu0 %v2085
    %2139 = vmatprep.subr.mxu0 %v2090
    %2140 = vmatpush1.msra.mxu0 %v2089
    %2141 = vmatprep.subr.mxu0 %v2094
    %2142 = vmatpush1.msra.mxu0 %v2093
    %2143 = vmatprep.subr.mxu0 %v2098
    %2144 = vmatpush1.msra.mxu0 %v2097
    %2145 = vmatprep.subr.mxu0 %v2102
    %2146 = vmatpush1.msra.mxu0 %v2101
    %2147 = vmatprep.subr.mxu0 %v2106
    %2148 = vmatpush1.msra.mxu0 %v2105
    %2149 = vmatprep.subr.mxu0 %v2110
    %2150 = vmatpush1.msra.mxu0 %v2109
    %2151 = vmatprep.subr.mxu0 %v2114
    %2152 = vmatpush1.msra.mxu0 %v2113
    %2153 = vmatprep.subr.mxu0 %v2118
    %2154 = vmatpush1.msra.mxu0 %v2117
    %2155 = vmatprep.subr.mxu0 %v2122
    %2156 = vmatpush1.msra.mxu0 %v2121
    %2157 = vmatprep.subr.mxu0 0.0
    %2158 = vmatpush1.msra.mxu0 0.0
    %2159 = vmatprep.subr.mxu0 0.0
    %2160 = vmatpush1.msra.mxu0 0.0
    %2161 = vmatprep.subr.mxu0 0.0
    %2162 = vmatpush1.msra.mxu0 0.0
    %2163 = vmatprep.subr.mxu0 0.0
    %2164 = vmatpush1.msra.mxu0 0.0
    %2165 = vmatprep.subr.mxu0 0.0
    %2166 = vmatpush1.msra.mxu0 0.0
    %2167 = vmatprep.subr.mxu0 0.0
    %2168 = vmatpush1.msra.mxu0 0.0
    %2169 = vmatprep.subr.mxu0 0.0
    %2170 = vmatpush1.msra.mxu0 0.0
    %2171 = vmatprep.subr.mxu0 0.0
    %2172 = vmatpush1.msra.mxu0 0.0
    %2173 = vmatprep.subr.mxu0 0.0
    %2174 = vmatpush1.msra.mxu0 0.0
    %2175 = vmatprep.subr.mxu0 0.0
    %2176 = vmatpush1.msra.mxu0 0.0
    %2177 = vmatprep.subr.mxu0 0.0
    %2178 = vmatpush1.msra.mxu0 0.0
    %2179 = vmatprep.subr.mxu0 0.0
    %2180 = vmatpush1.msra.mxu0 0.0
    %2181 = vmatprep.subr.mxu0 0.0
    %2182 = vmatpush1.msra.mxu0 0.0
    %2183 = vmatprep.subr.mxu0 0.0
    %2184 = vmatpush1.msra.mxu0 0.0
    %2185 = vmatprep.subr.mxu0 0.0
    %2186 = vmatpush1.msra.mxu0 0.0
    %2187 = vmatprep.subr.mxu0 0.0
    %2188 = vmatpush1.msra.mxu0 0.0
    %2189 = vmatprep.mubr.f32.mxu0 0.0
    %2190 = vmatmul.mubr.f32.gmra.mrb[0].mxu0 %v2052
    %v2191 = vpop.f32.mrb[0].mxu0
    %v2192 = vadd.f32 0.0, %v2191
    %v2193 = vpop.f32.mrb[0].mxu0
    %v2194 = vadd.f32 0.0, %v2193
    %2195 = vdwg.mxu0
    %2196 = vmatprep.subr.mxu0 %v2064
    %2197 = vmatpush1.msra.mxu0 %v2063
    %2198 = vmatprep.subr.mxu0 %v2068
    %2199 = vmatpush1.msra.mxu0 %v2067
    %2200 = vmatprep.subr.mxu0 %v2072
    %2201 = vmatpush1.msra.mxu0 %v2071
    %2202 = vmatprep.subr.mxu0 %v2076
    %2203 = vmatpush1.msra.mxu0 %v2075
    %2204 = vmatprep.subr.mxu0 %v2080
    %2205 = vmatpush1.msra.mxu0 %v2079
    %2206 = vmatprep.subr.mxu0 %v2084
    %2207 = vmatpush1.msra.mxu0 %v2083
    %2208 = vmatprep.subr.mxu0 %v2088
    %2209 = vmatpush1.msra.mxu0 %v2087
    %2210 = vmatprep.subr.mxu0 %v2092
    %2211 = vmatpush1.msra.mxu0 %v2091
    %2212 = vmatprep.subr.mxu0 %v2096
    %2213 = vmatpush1.msra.mxu0 %v2095
    %2214 = vmatprep.subr.mxu0 %v2100
    %2215 = vmatpush1.msra.mxu0 %v2099
    %2216 = vmatprep.subr.mxu0 %v2104
    %2217 = vmatpush1.msra.mxu0 %v2103
    %2218 = vmatprep.subr.mxu0 %v2108
    %2219 = vmatpush1.msra.mxu0 %v2107
    %2220 = vmatprep.subr.mxu0 %v2112
    %2221 = vmatpush1.msra.mxu0 %v2111
    %2222 = vmatprep.subr.mxu0 %v2116
    %2223 = vmatpush1.msra.mxu0 %v2115
    %2224 = vmatprep.subr.mxu0 %v2120
    %2225 = vmatpush1.msra.mxu0 %v2119
    %2226 = vmatprep.subr.mxu0 %v2124
    %2227 = vmatpush1.msra.mxu0 %v2123
    %2228 = vmatprep.subr.mxu0 0.0
    %2229 = vmatpush1.msra.mxu0 0.0
    %2230 = vmatprep.subr.mxu0 0.0
    %2231 = vmatpush1.msra.mxu0 0.0
    %2232 = vmatprep.subr.mxu0 0.0
    %2233 = vmatpush1.msra.mxu0 0.0
    %2234 = vmatprep.subr.mxu0 0.0
    %2235 = vmatpush1.msra.mxu0 0.0
    %2236 = vmatprep.subr.mxu0 0.0
    %2237 = vmatpush1.msra.mxu0 0.0
    %2238 = vmatprep.subr.mxu0 0.0
    %2239 = vmatpush1.msra.mxu0 0.0
    %2240 = vmatprep.subr.mxu0 0.0
    %2241 = vmatpush1.msra.mxu0 0.0
    %2242 = vmatprep.subr.mxu0 0.0
    %2243 = vmatpush1.msra.mxu0 0.0
    %2244 = vmatprep.subr.mxu0 0.0
    %2245 = vmatpush1.msra.mxu0 0.0
    %2246 = vmatprep.subr.mxu0 0.0
    %2247 = vmatpush1.msra.mxu0 0.0
    %2248 = vmatprep.subr.mxu0 0.0
    %2249 = vmatpush1.msra.mxu0 0.0
    %2250 = vmatprep.subr.mxu0 0.0
    %2251 = vmatpush1.msra.mxu0 0.0
    %2252 = vmatprep.subr.mxu0 0.0
    %2253 = vmatpush1.msra.mxu0 0.0
    %2254 = vmatprep.subr.mxu0 0.0
    %2255 = vmatpush1.msra.mxu0 0.0
    %2256 = vmatprep.subr.mxu0 0.0
    %2257 = vmatpush1.msra.mxu0 0.0
    %2258 = vmatprep.subr.mxu0 0.0
    %2259 = vmatpush1.msra.mxu0 0.0
    %2260 = vmatprep.mubr.f32.mxu0 0.0
    %2261 = vmatmul.mubr.f32.gmra.mrb[0].mxu0 %v2052
    %v2262 = vpop.f32.mrb[0].mxu0
    %v2263 = vadd.f32 0.0, %v2262
    %v2264 = vpop.f32.mrb[0].mxu0
    %v2265 = vadd.f32 0.0, %v2264
    %2266 = vdwg.mxu0
    %v2267 = vadd.f32 %v2057, %v2192
    %v2268 = vadd.f32 %v2058, %v2194
    %v2269 = vadd.f32 %v2059, %v2263
    %v2270 = vadd.f32 %v2060, %v2265
    %v2271 = vmul.f32 %v2267, 0.5
    %v2272 = vmul.f32 %v2268, 0.5
    %v2273 = vmul.f32 %v2269, 0.5
    %v2274 = vtanh.pop %v2271
    %v2275 = vtanh.pop %v2272
    %v2276 = vtanh.pop %v2273
    %v2277 = vmul.f32 %v2274, 0.5
    %v2278 = vmul.f32 %v2275, 0.5
    %v2279 = vmul.f32 %v2276, 0.5
    %v2280 = vadd.f32 %v2277, 0.5
    %v2281 = vadd.f32 %v2278, 0.5
    %v2282 = vadd.f32 %v2279, 0.5
    %v2283 = vtanh.pop %v2270
    %v2284 = vmul.f32 %v2281, %v2050
    %v2285 = vmul.f32 %v2280, %v2283
    %v2286 = vadd.f32 %v2284, %v2285
    %v2287 = vtanh.pop %v2286
    %v2288 = vmul.f32 %v2282, %v2287
    %2289 = vst.msk [vmem:[#allocation3 + $0x70] sm:$0xff] %vm635, %v2288
    %2290 = vst.msk [vmem:[#allocation3] sm:$0xff] %vm637, %v2288
    %2291 = vst.msk [vmem:[#allocation3 + $0x8] sm:$0xff] %vm635, %v2288
    %2292 = vst.msk [vmem:[#allocation3 + $0x78] sm:$0xff] %vm637, %v2288
    %v2293 = vld [vmem:[#allocation3] sm:$0xff]
    %v2294 = vld [vmem:[#allocation3 + $0x8] sm:$0xff]
    %v2295 = vld [vmem:[#allocation3 + $0x10] sm:$0xff]
    %v2296 = vld [vmem:[#allocation3 + $0x18] sm:$0xff]
    %v2297 = vld [vmem:[#allocation3 + $0x20] sm:$0xff]
    %v2298 = vld [vmem:[#allocation3 + $0x28] sm:$0xff]
    %v2299 = vld [vmem:[#allocation3 + $0x30] sm:$0xff]
    %v2300 = vld [vmem:[#allocation3 + $0x38] sm:$0xff]
    %v2301 = vld [vmem:[#allocation3 + $0x40] sm:$0xff]
    %v2302 = vld [vmem:[#allocation3 + $0x48] sm:$0xff]
    %v2303 = vld [vmem:[#allocation3 + $0x50] sm:$0xff]
    %v2304 = vld [vmem:[#allocation3 + $0x58] sm:$0xff]
    %v2305 = vld [vmem:[#allocation3 + $0x60] sm:$0xff]
    %v2306 = vld [vmem:[#allocation3 + $0x68] sm:$0xff]
    %v2307 = vld [vmem:[#allocation3 + $0x70] sm:$0xff]
    %v2308 = vld [vmem:[#allocation3 + $0x78] sm:$0xff]
    %v2309 = vld [vmem:[#allocation7] sm:$0xff]
    %v2310 = vld [vmem:[#allocation7 + $0x8] sm:$0xff]
    %v2311 = vld [vmem:[#allocation7 + $0x10] sm:$0xff]
    %v2312 = vld [vmem:[#allocation7 + $0x18] sm:$0xff]
    %v2313 = vld [vmem:[#allocation7 + $0x20] sm:$0xff]
    %v2314 = vld [vmem:[#allocation7 + $0x28] sm:$0xff]
    %v2315 = vld [vmem:[#allocation7 + $0x30] sm:$0xff]
    %v2316 = vld [vmem:[#allocation7 + $0x38] sm:$0xff]
    %v2317 = vld [vmem:[#allocation7 + $0x40] sm:$0xff]
    %v2318 = vld [vmem:[#allocation7 + $0x48] sm:$0xff]
    %v2319 = vld [vmem:[#allocation7 + $0x50] sm:$0xff]
    %v2320 = vld [vmem:[#allocation7 + $0x58] sm:$0xff]
    %v2321 = vld [vmem:[#allocation7 + $0x60] sm:$0xff]
    %v2322 = vld [vmem:[#allocation7 + $0x68] sm:$0xff]
    %v2323 = vld [vmem:[#allocation7 + $0x70] sm:$0xff]
    %v2324 = vld [vmem:[#allocation7 + $0x78] sm:$0xff]
    %v2325 = vld [vmem:[#allocation7 + $0x80] sm:$0xff]
    %v2326 = vld [vmem:[#allocation7 + $0x88] sm:$0xff]
    %v2327 = vld [vmem:[#allocation7 + $0x90] sm:$0xff]
    %v2328 = vld [vmem:[#allocation7 + $0x98] sm:$0xff]
    %v2329 = vld [vmem:[#allocation7 + $0xa0] sm:$0xff]
    %v2330 = vld [vmem:[#allocation7 + $0xa8] sm:$0xff]
    %v2331 = vld [vmem:[#allocation7 + $0xb0] sm:$0xff]
    %v2332 = vld [vmem:[#allocation7 + $0xb8] sm:$0xff]
    %v2333 = vld [vmem:[#allocation7 + $0xc0] sm:$0xff]
    %v2334 = vld [vmem:[#allocation7 + $0xc8] sm:$0xff]
    %v2335 = vld [vmem:[#allocation7 + $0xd0] sm:$0xff]
    %v2336 = vld [vmem:[#allocation7 + $0xd8] sm:$0xff]
    %v2337 = vld [vmem:[#allocation7 + $0xe0] sm:$0xff]
    %v2338 = vld [vmem:[#allocation7 + $0xe8] sm:$0xff]
    %v2339 = vld [vmem:[#allocation7 + $0xf0] sm:$0xff]
    %v2340 = vld [vmem:[#allocation7 + $0xf8] sm:$0xff]
    %v2341 = vld [vmem:[#allocation7 + $0x100] sm:$0xff]
    %v2342 = vld [vmem:[#allocation7 + $0x108] sm:$0xff]
    %v2343 = vld [vmem:[#allocation7 + $0x110] sm:$0xff]
    %v2344 = vld [vmem:[#allocation7 + $0x118] sm:$0xff]
    %v2345 = vld [vmem:[#allocation7 + $0x120] sm:$0xff]
    %v2346 = vld [vmem:[#allocation7 + $0x128] sm:$0xff]
    %v2347 = vld [vmem:[#allocation7 + $0x130] sm:$0xff]
    %v2348 = vld [vmem:[#allocation7 + $0x138] sm:$0xff]
    %v2349 = vld [vmem:[#allocation7 + $0x140] sm:$0xff]
    %v2350 = vld [vmem:[#allocation7 + $0x148] sm:$0xff]
    %v2351 = vld [vmem:[#allocation7 + $0x150] sm:$0xff]
    %v2352 = vld [vmem:[#allocation7 + $0x158] sm:$0xff]
    %v2353 = vld [vmem:[#allocation7 + $0x160] sm:$0xff]
    %v2354 = vld [vmem:[#allocation7 + $0x168] sm:$0xff]
    %v2355 = vld [vmem:[#allocation7 + $0x170] sm:$0xff]
    %v2356 = vld [vmem:[#allocation7 + $0x178] sm:$0xff]
    %v2357 = vld [vmem:[#allocation7 + $0x180] sm:$0xff]
    %v2358 = vld [vmem:[#allocation7 + $0x188] sm:$0xff]
    %v2359 = vld [vmem:[#allocation7 + $0x190] sm:$0xff]
    %v2360 = vld [vmem:[#allocation7 + $0x198] sm:$0xff]
    %v2361 = vld [vmem:[#allocation7 + $0x1a0] sm:$0xff]
    %v2362 = vld [vmem:[#allocation7 + $0x1a8] sm:$0xff]
    %v2363 = vld [vmem:[#allocation7 + $0x1b0] sm:$0xff]
    %v2364 = vld [vmem:[#allocation7 + $0x1b8] sm:$0xff]
    %v2365 = vld [vmem:[#allocation7 + $0x1c0] sm:$0xff]
    %v2366 = vld [vmem:[#allocation7 + $0x1c8] sm:$0xff]
    %v2367 = vld [vmem:[#allocation7 + $0x1d0] sm:$0xff]
    %v2368 = vld [vmem:[#allocation7 + $0x1d8] sm:$0xff]
    %v2369 = vld [vmem:[#allocation7 + $0x1e0] sm:$0xff]
    %v2370 = vld [vmem:[#allocation7 + $0x1e8] sm:$0xff]
    %v2371 = vld [vmem:[#allocation7 + $0x1f0] sm:$0xff]
    %v2372 = vld [vmem:[#allocation7 + $0x1f8] sm:$0xff]
    %v2373 = vld [vmem:[#allocation7 + $0x200] sm:$0xff]
    %v2374 = vld [vmem:[#allocation7 + $0x208] sm:$0xff]
    %v2375 = vld [vmem:[#allocation7 + $0x210] sm:$0xff]
    %v2376 = vld [vmem:[#allocation7 + $0x218] sm:$0xff]
    %v2377 = vld [vmem:[#allocation7 + $0x220] sm:$0xff]
    %v2378 = vld [vmem:[#allocation7 + $0x228] sm:$0xff]
    %v2379 = vld [vmem:[#allocation7 + $0x230] sm:$0xff]
    %v2380 = vld [vmem:[#allocation7 + $0x238] sm:$0xff]
    %v2381 = vld [vmem:[#allocation7 + $0x240] sm:$0xff]
    %v2382 = vld [vmem:[#allocation7 + $0x248] sm:$0xff]
    %v2383 = vld [vmem:[#allocation7 + $0x250] sm:$0xff]
    %v2384 = vld [vmem:[#allocation7 + $0x258] sm:$0xff]
    %v2385 = vld [vmem:[#allocation7 + $0x260] sm:$0xff]
    %v2386 = vld [vmem:[#allocation7 + $0x268] sm:$0xff]
    %v2387 = vld [vmem:[#allocation7 + $0x270] sm:$0xff]
    %v2388 = vld [vmem:[#allocation7 + $0x278] sm:$0xff]
    %v2389 = vld [vmem:[#allocation7 + $0x280] sm:$0xff]
    %v2390 = vld [vmem:[#allocation7 + $0x288] sm:$0xff]
    %v2391 = vld [vmem:[#allocation7 + $0x290] sm:$0xff]
    %v2392 = vld [vmem:[#allocation7 + $0x298] sm:$0xff]
    %v2393 = vld [vmem:[#allocation7 + $0x2a0] sm:$0xff]
    %v2394 = vld [vmem:[#allocation7 + $0x2a8] sm:$0xff]
    %v2395 = vld [vmem:[#allocation7 + $0x2b0] sm:$0xff]
    %v2396 = vld [vmem:[#allocation7 + $0x2b8] sm:$0xff]
    %v2397 = vld [vmem:[#allocation7 + $0x2c0] sm:$0xff]
    %v2398 = vld [vmem:[#allocation7 + $0x2c8] sm:$0xff]
    %v2399 = vld [vmem:[#allocation7 + $0x2d0] sm:$0xff]
    %v2400 = vld [vmem:[#allocation7 + $0x2d8] sm:$0xff]
    %v2401 = vld [vmem:[#allocation7 + $0x2e0] sm:$0xff]
    %v2402 = vld [vmem:[#allocation7 + $0x2e8] sm:$0xff]
    %v2403 = vld [vmem:[#allocation7 + $0x2f0] sm:$0xff]
    %v2404 = vld [vmem:[#allocation7 + $0x2f8] sm:$0xff]
    %v2405 = vld [vmem:[#allocation7 + $0x300] sm:$0xff]
    %v2406 = vld [vmem:[#allocation7 + $0x308] sm:$0xff]
    %v2407 = vld [vmem:[#allocation7 + $0x310] sm:$0xff]
    %v2408 = vld [vmem:[#allocation7 + $0x318] sm:$0xff]
    %v2409 = vld [vmem:[#allocation7 + $0x320] sm:$0xff]
    %v2410 = vld [vmem:[#allocation7 + $0x328] sm:$0xff]
    %v2411 = vld [vmem:[#allocation7 + $0x330] sm:$0xff]
    %v2412 = vld [vmem:[#allocation7 + $0x338] sm:$0xff]
    %v2413 = vld [vmem:[#allocation7 + $0x340] sm:$0xff]
    %v2414 = vld [vmem:[#allocation7 + $0x348] sm:$0xff]
    %v2415 = vld [vmem:[#allocation7 + $0x350] sm:$0xff]
    %v2416 = vld [vmem:[#allocation7 + $0x358] sm:$0xff]
    %v2417 = vld [vmem:[#allocation7 + $0x360] sm:$0xff]
    %v2418 = vld [vmem:[#allocation7 + $0x368] sm:$0xff]
    %v2419 = vld [vmem:[#allocation7 + $0x370] sm:$0xff]
    %v2420 = vld [vmem:[#allocation7 + $0x378] sm:$0xff]
    %v2421 = vld [vmem:[#allocation7 + $0x380] sm:$0xff]
    %v2422 = vld [vmem:[#allocation7 + $0x388] sm:$0xff]
    %v2423 = vld [vmem:[#allocation7 + $0x390] sm:$0xff]
    %v2424 = vld [vmem:[#allocation7 + $0x398] sm:$0xff]
    %v2425 = vld [vmem:[#allocation7 + $0x3a0] sm:$0xff]
    %v2426 = vld [vmem:[#allocation7 + $0x3a8] sm:$0xff]
    %v2427 = vld [vmem:[#allocation7 + $0x3b0] sm:$0xff]
    %v2428 = vld [vmem:[#allocation7 + $0x3b8] sm:$0xff]
    %v2429 = vld [vmem:[#allocation7 + $0x3c0] sm:$0xff]
    %v2430 = vld [vmem:[#allocation7 + $0x3c8] sm:$0xff]
    %v2431 = vld [vmem:[#allocation7 + $0x3d0] sm:$0xff]
    %v2432 = vld [vmem:[#allocation7 + $0x3d8] sm:$0xff]
    %v2433 = vld [vmem:[#allocation7 + $0x3e0] sm:$0xff]
    %v2434 = vld [vmem:[#allocation7 + $0x3e8] sm:$0xff]
    %v2435 = vld [vmem:[#allocation7 + $0x3f0] sm:$0xff]
    %v2436 = vld [vmem:[#allocation7 + $0x3f8] sm:$0xff]
    %v2437 = vld [vmem:[%s6] sm:$0xf]
    %v2439 = vlaneseq
    %v2440 = vshrl.u32 %v2439, 7
    %v2441 = vsub.s32 0, %v2440
    %v2442 = vrot.slane %v2437, %v2441
    %v2443 = vlaneseq
    %v2444 = vshrl.u32 %v2443, 7
    %v2445 = vsub.s32 1, %v2444
    %v2446 = vrot.slane %v2437, %v2445
    %v2447 = vlaneseq
    %v2448 = vshrl.u32 %v2447, 7
    %v2449 = vsub.s32 2, %v2448
    %v2450 = vrot.slane %v2437, %v2449
    %v2451 = vlaneseq
    %v2452 = vshrl.u32 %v2451, 7
    %v2453 = vsub.s32 3, %v2452
    %v2454 = vrot.slane %v2437, %v2453
    %2459 = vmatprep.subr.mxu0 %v2310
    %2460 = vmatpush1.msra.mxu0 %v2309
    %2461 = vmatprep.subr.mxu0 %v2314
    %2462 = vmatpush1.msra.mxu0 %v2313
    %2463 = vmatprep.subr.mxu0 %v2318
    %2464 = vmatpush1.msra.mxu0 %v2317
    %2465 = vmatprep.subr.mxu0 %v2322
    %2466 = vmatpush1.msra.mxu0 %v2321
    %2467 = vmatprep.subr.mxu0 %v2326
    %2468 = vmatpush1.msra.mxu0 %v2325
    %2469 = vmatprep.subr.mxu0 %v2330
    %2470 = vmatpush1.msra.mxu0 %v2329
    %2471 = vmatprep.subr.mxu0 %v2334
    %2472 = vmatpush1.msra.mxu0 %v2333
    %2473 = vmatprep.subr.mxu0 %v2338
    %2474 = vmatpush1.msra.mxu0 %v2337
    %2475 = vmatprep.subr.mxu0 %v2342
    %2476 = vmatpush1.msra.mxu0 %v2341
    %2477 = vmatprep.subr.mxu0 %v2346
    %2478 = vmatpush1.msra.mxu0 %v2345
    %2479 = vmatprep.subr.mxu0 %v2350
    %2480 = vmatpush1.msra.mxu0 %v2349
    %2481 = vmatprep.subr.mxu0 %v2354
    %2482 = vmatpush1.msra.mxu0 %v2353
    %2483 = vmatprep.subr.mxu0 %v2358
    %2484 = vmatpush1.msra.mxu0 %v2357
    %2485 = vmatprep.subr.mxu0 %v2362
    %2486 = vmatpush1.msra.mxu0 %v2361
    %2487 = vmatprep.subr.mxu0 %v2366
    %2488 = vmatpush1.msra.mxu0 %v2365
    %2489 = vmatprep.subr.mxu0 %v2370
    %2490 = vmatpush1.msra.mxu0 %v2369
    %2491 = vmatprep.subr.mxu0 %v2374
    %2492 = vmatpush1.msra.mxu0 %v2373
    %2493 = vmatprep.subr.mxu0 %v2378
    %2494 = vmatpush1.msra.mxu0 %v2377
    %2495 = vmatprep.subr.mxu0 %v2382
    %2496 = vmatpush1.msra.mxu0 %v2381
    %2497 = vmatprep.subr.mxu0 %v2386
    %2498 = vmatpush1.msra.mxu0 %v2385
    %2499 = vmatprep.subr.mxu0 %v2390
    %2500 = vmatpush1.msra.mxu0 %v2389
    %2501 = vmatprep.subr.mxu0 %v2394
    %2502 = vmatpush1.msra.mxu0 %v2393
    %2503 = vmatprep.subr.mxu0 %v2398
    %2504 = vmatpush1.msra.mxu0 %v2397
    %2505 = vmatprep.subr.mxu0 %v2402
    %2506 = vmatpush1.msra.mxu0 %v2401
    %2507 = vmatprep.subr.mxu0 %v2406
    %2508 = vmatpush1.msra.mxu0 %v2405
    %2509 = vmatprep.subr.mxu0 %v2410
    %2510 = vmatpush1.msra.mxu0 %v2409
    %2511 = vmatprep.subr.mxu0 %v2414
    %2512 = vmatpush1.msra.mxu0 %v2413
    %2513 = vmatprep.subr.mxu0 %v2418
    %2514 = vmatpush1.msra.mxu0 %v2417
    %2515 = vmatprep.subr.mxu0 %v2422
    %2516 = vmatpush1.msra.mxu0 %v2421
    %2517 = vmatprep.subr.mxu0 %v2426
    %2518 = vmatpush1.msra.mxu0 %v2425
    %2519 = vmatprep.subr.mxu0 %v2430
    %2520 = vmatpush1.msra.mxu0 %v2429
    %2521 = vmatprep.subr.mxu0 %v2434
    %2522 = vmatpush1.msra.mxu0 %v2433
    %2523 = vmatprep.mubr.f32.mxu0 %v2294
    %2524 = vmatmul.mubr.f32.gmra.mrb[0].mxu0 %v2293
    %v2525 = vpop.f32.mrb[0].mxu0
    %v2526 = vadd.f32 %v2442, %v2525
    %v2527 = vpop.f32.mrb[0].mxu0
    %v2528 = vadd.f32 %v2446, %v2527
    %2529 = vmatprep.mubr.f32.mxu0 %v2296
    %2530 = vmatmul.mubr.f32.gmra.mrb[0].mxu0 %v2295
    %v2531 = vpop.f32.mrb[0].mxu0
    %v2532 = vadd.f32 %v2442, %v2531
    %v2533 = vpop.f32.mrb[0].mxu0
    %v2534 = vadd.f32 %v2446, %v2533
    %2535 = vmatprep.mubr.f32.mxu0 %v2298
    %2536 = vmatmul.mubr.f32.gmra.mrb[0].mxu0 %v2297
    %v2537 = vpop.f32.mrb[0].mxu0
    %v2538 = vadd.f32 %v2442, %v2537
    %v2539 = vpop.f32.mrb[0].mxu0
    %v2540 = vadd.f32 %v2446, %v2539
    %2541 = vmatprep.mubr.f32.mxu0 %v2300
    %2542 = vmatmul.mubr.f32.gmra.mrb[0].mxu0 %v2299
    %v2543 = vpop.f32.mrb[0].mxu0
    %v2544 = vadd.f32 %v2442, %v2543
    %v2545 = vpop.f32.mrb[0].mxu0
    %v2546 = vadd.f32 %v2446, %v2545
    %2547 = vmatprep.mubr.f32.mxu0 %v2302
    %2548 = vmatmul.mubr.f32.gmra.mrb[0].mxu0 %v2301
    %v2549 = vpop.f32.mrb[0].mxu0
    %v2550 = vadd.f32 %v2442, %v2549
    %v2551 = vpop.f32.mrb[0].mxu0
    %v2552 = vadd.f32 %v2446, %v2551
    %2553 = vmatprep.mubr.f32.mxu0 %v2304
    %2554 = vmatmul.mubr.f32.gmra.mrb[0].mxu0 %v2303
    %v2555 = vpop.f32.mrb[0].mxu0
    %v2556 = vadd.f32 %v2442, %v2555
    %v2557 = vpop.f32.mrb[0].mxu0
    %v2558 = vadd.f32 %v2446, %v2557
    %2559 = vmatprep.mubr.f32.mxu0 %v2306
    %2560 = vmatmul.mubr.f32.gmra.mrb[0].mxu0 %v2305
    %v2561 = vpop.f32.mrb[0].mxu0
    %v2562 = vadd.f32 %v2442, %v2561
    %v2563 = vpop.f32.mrb[0].mxu0
    %v2564 = vadd.f32 %v2446, %v2563
    %2565 = vmatprep.mubr.f32.mxu0 %v2308
    %2566 = vmatmul.mubr.f32.gmra.mrb[0].mxu0 %v2307
    %v2567 = vpop.f32.mrb[0].mxu0
    %v2568 = vadd.f32 %v2442, %v2567
    %v2569 = vpop.f32.mrb[0].mxu0
    %v2570 = vadd.f32 %v2446, %v2569
    %2571 = vdwg.mxu0
    %2572 = vmatprep.subr.mxu0 %v2312
    %2573 = vmatpush1.msra.mxu0 %v2311
    %2574 = vmatprep.subr.mxu0 %v2316
    %2575 = vmatpush1.msra.mxu0 %v2315
    %2576 = vmatprep.subr.mxu0 %v2320
    %2577 = vmatpush1.msra.mxu0 %v2319
    %2578 = vmatprep.subr.mxu0 %v2324
    %2579 = vmatpush1.msra.mxu0 %v2323
    %2580 = vmatprep.subr.mxu0 %v2328
    %2581 = vmatpush1.msra.mxu0 %v2327
    %2582 = vmatprep.subr.mxu0 %v2332
    %2583 = vmatpush1.msra.mxu0 %v2331
    %2584 = vmatprep.subr.mxu0 %v2336
    %2585 = vmatpush1.msra.mxu0 %v2335
    %2586 = vmatprep.subr.mxu0 %v2340
    %2587 = vmatpush1.msra.mxu0 %v2339
    %2588 = vmatprep.subr.mxu0 %v2344
    %2589 = vmatpush1.msra.mxu0 %v2343
    %2590 = vmatprep.subr.mxu0 %v2348
    %2591 = vmatpush1.msra.mxu0 %v2347
    %2592 = vmatprep.subr.mxu0 %v2352
    %2593 = vmatpush1.msra.mxu0 %v2351
    %2594 = vmatprep.subr.mxu0 %v2356
    %2595 = vmatpush1.msra.mxu0 %v2355
    %2596 = vmatprep.subr.mxu0 %v2360
    %2597 = vmatpush1.msra.mxu0 %v2359
    %2598 = vmatprep.subr.mxu0 %v2364
    %2599 = vmatpush1.msra.mxu0 %v2363
    %2600 = vmatprep.subr.mxu0 %v2368
    %2601 = vmatpush1.msra.mxu0 %v2367
    %2602 = vmatprep.subr.mxu0 %v2372
    %2603 = vmatpush1.msra.mxu0 %v2371
    %2604 = vmatprep.subr.mxu0 %v2376
    %2605 = vmatpush1.msra.mxu0 %v2375
    %2606 = vmatprep.subr.mxu0 %v2380
    %2607 = vmatpush1.msra.mxu0 %v2379
    %2608 = vmatprep.subr.mxu0 %v2384
    %2609 = vmatpush1.msra.mxu0 %v2383
    %2610 = vmatprep.subr.mxu0 %v2388
    %2611 = vmatpush1.msra.mxu0 %v2387
    %2612 = vmatprep.subr.mxu0 %v2392
    %2613 = vmatpush1.msra.mxu0 %v2391
    %2614 = vmatprep.subr.mxu0 %v2396
    %2615 = vmatpush1.msra.mxu0 %v2395
    %2616 = vmatprep.subr.mxu0 %v2400
    %2617 = vmatpush1.msra.mxu0 %v2399
    %2618 = vmatprep.subr.mxu0 %v2404
    %2619 = vmatpush1.msra.mxu0 %v2403
    %2620 = vmatprep.subr.mxu0 %v2408
    %2621 = vmatpush1.msra.mxu0 %v2407
    %2622 = vmatprep.subr.mxu0 %v2412
    %2623 = vmatpush1.msra.mxu0 %v2411
    %2624 = vmatprep.subr.mxu0 %v2416
    %2625 = vmatpush1.msra.mxu0 %v2415
    %2626 = vmatprep.subr.mxu0 %v2420
    %2627 = vmatpush1.msra.mxu0 %v2419
    %2628 = vmatprep.subr.mxu0 %v2424
    %2629 = vmatpush1.msra.mxu0 %v2423
    %2630 = vmatprep.subr.mxu0 %v2428
    %2631 = vmatpush1.msra.mxu0 %v2427
    %2632 = vmatprep.subr.mxu0 %v2432
    %2633 = vmatpush1.msra.mxu0 %v2431
    %2634 = vmatprep.subr.mxu0 %v2436
    %2635 = vmatpush1.msra.mxu0 %v2435
    %2636 = vmatprep.mubr.f32.mxu0 %v2294
    %2637 = vmatmul.mubr.f32.gmra.mrb[0].mxu0 %v2293
    %v2638 = vpop.f32.mrb[0].mxu0
    %v2639 = vadd.f32 %v2450, %v2638
    %v2640 = vpop.f32.mrb[0].mxu0
    %v2641 = vadd.f32 %v2454, %v2640
    %2642 = vmatprep.mubr.f32.mxu0 %v2296
    %2643 = vmatmul.mubr.f32.gmra.mrb[0].mxu0 %v2295
    %v2644 = vpop.f32.mrb[0].mxu0
    %v2645 = vadd.f32 %v2450, %v2644
    %v2646 = vpop.f32.mrb[0].mxu0
    %v2647 = vadd.f32 %v2454, %v2646
    %2648 = vmatprep.mubr.f32.mxu0 %v2298
    %2649 = vmatmul.mubr.f32.gmra.mrb[0].mxu0 %v2297
    %v2650 = vpop.f32.mrb[0].mxu0
    %v2651 = vadd.f32 %v2450, %v2650
    %v2652 = vpop.f32.mrb[0].mxu0
    %v2653 = vadd.f32 %v2454, %v2652
    %2654 = vmatprep.mubr.f32.mxu0 %v2300
    %2655 = vmatmul.mubr.f32.gmra.mrb[0].mxu0 %v2299
    %v2656 = vpop.f32.mrb[0].mxu0
    %v2657 = vadd.f32 %v2450, %v2656
    %v2658 = vpop.f32.mrb[0].mxu0
    %v2659 = vadd.f32 %v2454, %v2658
    %2660 = vmatprep.mubr.f32.mxu0 %v2302
    %2661 = vmatmul.mubr.f32.gmra.mrb[0].mxu0 %v2301
    %v2662 = vpop.f32.mrb[0].mxu0
    %v2663 = vadd.f32 %v2450, %v2662
    %v2664 = vpop.f32.mrb[0].mxu0
    %v2665 = vadd.f32 %v2454, %v2664
    %2666 = vmatprep.mubr.f32.mxu0 %v2304
    %2667 = vmatmul.mubr.f32.gmra.mrb[0].mxu0 %v2303
    %v2668 = vpop.f32.mrb[0].mxu0
    %v2669 = vadd.f32 %v2450, %v2668
    %v2670 = vpop.f32.mrb[0].mxu0
    %v2671 = vadd.f32 %v2454, %v2670
    %2672 = vmatprep.mubr.f32.mxu0 %v2306
    %2673 = vmatmul.mubr.f32.gmra.mrb[0].mxu0 %v2305
    %v2674 = vpop.f32.mrb[0].mxu0
    %v2675 = vadd.f32 %v2450, %v2674
    %v2676 = vpop.f32.mrb[0].mxu0
    %v2677 = vadd.f32 %v2454, %v2676
    %2678 = vmatprep.mubr.f32.mxu0 %v2308
    %2679 = vmatmul.mubr.f32.gmra.mrb[0].mxu0 %v2307
    %v2680 = vpop.f32.mrb[0].mxu0
    %v2681 = vadd.f32 %v2450, %v2680
    %v2682 = vpop.f32.mrb[0].mxu0
    %v2683 = vadd.f32 %v2454, %v2682
    %2684 = vdwg.mxu0
    %2685 = vst [vmem:[#allocation2] sm:$0xff] %v2526
    %2686 = vst [vmem:[#allocation2 + $0x8] sm:$0xff] %v2528
    %2687 = vst [vmem:[#allocation2 + $0x10] sm:$0xff] %v2639
    %2688 = vst [vmem:[#allocation2 + $0x18] sm:$0xff] %v2641
    %2689 = vst [vmem:[#allocation2 + $0x20] sm:$0xff] %v2532
    %2690 = vst [vmem:[#allocation2 + $0x28] sm:$0xff] %v2534
    %2691 = vst [vmem:[#allocation2 + $0x30] sm:$0xff] %v2645
    %2692 = vst [vmem:[#allocation2 + $0x38] sm:$0xff] %v2647
    %2693 = vst [vmem:[#allocation2 + $0x40] sm:$0xff] %v2538
    %2694 = vst [vmem:[#allocation2 + $0x48] sm:$0xff] %v2540
    %2695 = vst [vmem:[#allocation2 + $0x50] sm:$0xff] %v2651
    %2696 = vst [vmem:[#allocation2 + $0x58] sm:$0xff] %v2653
    %2697 = vst [vmem:[#allocation2 + $0x60] sm:$0xff] %v2544
    %2698 = vst [vmem:[#allocation2 + $0x68] sm:$0xff] %v2546
    %2699 = vst [vmem:[#allocation2 + $0x70] sm:$0xff] %v2657
    %2700 = vst [vmem:[#allocation2 + $0x78] sm:$0xff] %v2659
    %2701 = vst [vmem:[#allocation2 + $0x80] sm:$0xff] %v2550
    %2702 = vst [vmem:[#allocation2 + $0x88] sm:$0xff] %v2552
    %2703 = vst [vmem:[#allocation2 + $0x90] sm:$0xff] %v2663
    %2704 = vst [vmem:[#allocation2 + $0x98] sm:$0xff] %v2665
    %2705 = vst [vmem:[#allocation2 + $0xa0] sm:$0xff] %v2556
    %2706 = vst [vmem:[#allocation2 + $0xa8] sm:$0xff] %v2558
    %2707 = vst [vmem:[#allocation2 + $0xb0] sm:$0xff] %v2669
    %2708 = vst [vmem:[#allocation2 + $0xb8] sm:$0xff] %v2671
    %2709 = vst [vmem:[#allocation2 + $0xc0] sm:$0xff] %v2562
    %2710 = vst [vmem:[#allocation2 + $0xc8] sm:$0xff] %v2564
    %2711 = vst [vmem:[#allocation2 + $0xd0] sm:$0xff] %v2675
    %2712 = vst [vmem:[#allocation2 + $0xd8] sm:$0xff] %v2677
    %2713 = vst [vmem:[#allocation2 + $0xe0] sm:$0xff] %v2568
    %2714 = vst [vmem:[#allocation2 + $0xe8] sm:$0xff] %v2570
    %2715 = vst [vmem:[#allocation2 + $0xf0] sm:$0xff] %v2681
    %2716 = vst [vmem:[#allocation2 + $0xf8] sm:$0xff] %v2683
    %v2717 = vld [vmem:[#allocation2] sm:$0xff]
    %v2718 = vld [vmem:[#allocation2 + $0x8] sm:$0xff]
    %v2719 = vld [vmem:[#allocation2 + $0x10] sm:$0xff]
    %v2720 = vld [vmem:[#allocation2 + $0x18] sm:$0xff]
    %v2721 = vld [vmem:[#allocation9] sm:$0xff]
    %v2722 = vld [vmem:[#allocation9 + $0x8] sm:$0xff]
    %v2723 = vld [vmem:[#allocation9 + $0x10] sm:$0xff]
    %v2724 = vld [vmem:[#allocation9 + $0x18] sm:$0xff]
    %v2725 = vld [vmem:[#allocation9 + $0x20] sm:$0xff]
    %v2726 = vld [vmem:[#allocation9 + $0x28] sm:$0xff]
    %v2727 = vld [vmem:[#allocation9 + $0x30] sm:$0xff]
    %v2728 = vld [vmem:[#allocation9 + $0x38] sm:$0xff]
    %v2729 = vld [vmem:[#allocation9 + $0x40] sm:$0xff]
    %v2730 = vld [vmem:[#allocation9 + $0x48] sm:$0xff]
    %v2731 = vld [vmem:[#allocation9 + $0x50] sm:$0xff]
    %v2732 = vld [vmem:[#allocation9 + $0x58] sm:$0xff]
    %v2733 = vld [vmem:[#allocation9 + $0x60] sm:$0xff]
    %v2734 = vld [vmem:[#allocation9 + $0x68] sm:$0xff]
    %v2735 = vld [vmem:[#allocation9 + $0x70] sm:$0xff]
    %v2736 = vld [vmem:[#allocation9 + $0x78] sm:$0xff]
    %v2737 = vld [vmem:[#allocation9 + $0x80] sm:$0xff]
    %v2738 = vld [vmem:[#allocation9 + $0x88] sm:$0xff]
    %v2739 = vld [vmem:[#allocation9 + $0x90] sm:$0xff]
    %v2740 = vld [vmem:[#allocation9 + $0x98] sm:$0xff]
    %v2741 = vld [vmem:[#allocation9 + $0xa0] sm:$0xff]
    %v2742 = vld [vmem:[#allocation9 + $0xa8] sm:$0xff]
    %v2743 = vld [vmem:[#allocation9 + $0xb0] sm:$0xff]
    %v2744 = vld [vmem:[#allocation9 + $0xb8] sm:$0xff]
    %v2745 = vld [vmem:[#allocation9 + $0xc0] sm:$0xff]
    %v2746 = vld [vmem:[#allocation9 + $0xc8] sm:$0xff]
    %v2747 = vld [vmem:[#allocation9 + $0xd0] sm:$0xff]
    %v2748 = vld [vmem:[#allocation9 + $0xd8] sm:$0xff]
    %v2749 = vld [vmem:[#allocation9 + $0xe0] sm:$0xff]
    %v2750 = vld [vmem:[#allocation9 + $0xe8] sm:$0xff]
    %v2751 = vld [vmem:[#allocation9 + $0xf0] sm:$0xff]
    %v2752 = vld [vmem:[#allocation9 + $0xf8] sm:$0xff]
    %v2753 = vld [vmem:[#allocation9 + $0x100] sm:$0xff]
    %v2754 = vld [vmem:[#allocation9 + $0x108] sm:$0xff]
    %v2755 = vld [vmem:[#allocation9 + $0x110] sm:$0xff]
    %v2756 = vld [vmem:[#allocation9 + $0x118] sm:$0xff]
    %v2757 = vld [vmem:[#allocation9 + $0x120] sm:$0xff]
    %v2758 = vld [vmem:[#allocation9 + $0x128] sm:$0xff]
    %v2759 = vld [vmem:[#allocation9 + $0x130] sm:$0xff]
    %v2760 = vld [vmem:[#allocation9 + $0x138] sm:$0xff]
    %v2761 = vld [vmem:[#allocation9 + $0x140] sm:$0xff]
    %v2762 = vld [vmem:[#allocation9 + $0x148] sm:$0xff]
    %v2763 = vld [vmem:[#allocation9 + $0x150] sm:$0xff]
    %v2764 = vld [vmem:[#allocation9 + $0x158] sm:$0xff]
    %v2765 = vld [vmem:[#allocation9 + $0x160] sm:$0xff]
    %v2766 = vld [vmem:[#allocation9 + $0x168] sm:$0xff]
    %v2767 = vld [vmem:[#allocation9 + $0x170] sm:$0xff]
    %v2768 = vld [vmem:[#allocation9 + $0x178] sm:$0xff]
    %v2769 = vld [vmem:[#allocation9 + $0x180] sm:$0xff]
    %v2770 = vld [vmem:[#allocation9 + $0x188] sm:$0xff]
    %v2771 = vld [vmem:[#allocation9 + $0x190] sm:$0xff]
    %v2772 = vld [vmem:[#allocation9 + $0x198] sm:$0xff]
    %v2773 = vld [vmem:[#allocation9 + $0x1a0] sm:$0xff]
    %v2774 = vld [vmem:[#allocation9 + $0x1a8] sm:$0xff]
    %v2775 = vld [vmem:[#allocation9 + $0x1b0] sm:$0xff]
    %v2776 = vld [vmem:[#allocation9 + $0x1b8] sm:$0xff]
    %v2777 = vld [vmem:[#allocation9 + $0x1c0] sm:$0xff]
    %v2778 = vld [vmem:[#allocation9 + $0x1c8] sm:$0xff]
    %v2779 = vld [vmem:[#allocation9 + $0x1d0] sm:$0xff]
    %v2780 = vld [vmem:[#allocation9 + $0x1d8] sm:$0xff]
    %v2781 = vld [vmem:[#allocation9 + $0x1e0] sm:$0xff]
    %v2782 = vld [vmem:[#allocation9 + $0x1e8] sm:$0xff]
    %v2783 = vld [vmem:[#allocation9 + $0x1f0] sm:$0xff]
    %v2784 = vld [vmem:[#allocation9 + $0x1f8] sm:$0xff]
    %2785 = vmatprep.subr.mxu0 %v2722
    %2786 = vmatpush1.msra.mxu0 %v2721
    %2787 = vmatprep.subr.mxu0 %v2726
    %2788 = vmatpush1.msra.mxu0 %v2725
    %2789 = vmatprep.subr.mxu0 %v2730
    %2790 = vmatpush1.msra.mxu0 %v2729
    %2791 = vmatprep.subr.mxu0 %v2734
    %2792 = vmatpush1.msra.mxu0 %v2733
    %2793 = vmatprep.subr.mxu0 %v2738
    %2794 = vmatpush1.msra.mxu0 %v2737
    %2795 = vmatprep.subr.mxu0 %v2742
    %2796 = vmatpush1.msra.mxu0 %v2741
    %2797 = vmatprep.subr.mxu0 %v2746
    %2798 = vmatpush1.msra.mxu0 %v2745
    %2799 = vmatprep.subr.mxu0 %v2750
    %2800 = vmatpush1.msra.mxu0 %v2749
    %2801 = vmatprep.subr.mxu0 %v2754
    %2802 = vmatpush1.msra.mxu0 %v2753
    %2803 = vmatprep.subr.mxu0 %v2758
    %2804 = vmatpush1.msra.mxu0 %v2757
    %2805 = vmatprep.subr.mxu0 %v2762
    %2806 = vmatpush1.msra.mxu0 %v2761
    %2807 = vmatprep.subr.mxu0 %v2766
    %2808 = vmatpush1.msra.mxu0 %v2765
    %2809 = vmatprep.subr.mxu0 %v2770
    %2810 = vmatpush1.msra.mxu0 %v2769
    %2811 = vmatprep.subr.mxu0 %v2774
    %2812 = vmatpush1.msra.mxu0 %v2773
    %2813 = vmatprep.subr.mxu0 %v2778
    %2814 = vmatpush1.msra.mxu0 %v2777
    %2815 = vmatprep.subr.mxu0 %v2782
    %2816 = vmatpush1.msra.mxu0 %v2781
    %2817 = vmatprep.subr.mxu0 0.0
    %2818 = vmatpush1.msra.mxu0 0.0
    %2819 = vmatprep.subr.mxu0 0.0
    %2820 = vmatpush1.msra.mxu0 0.0
    %2821 = vmatprep.subr.mxu0 0.0
    %2822 = vmatpush1.msra.mxu0 0.0
    %2823 = vmatprep.subr.mxu0 0.0
    %2824 = vmatpush1.msra.mxu0 0.0
    %2825 = vmatprep.subr.mxu0 0.0
    %2826 = vmatpush1.msra.mxu0 0.0
    %2827 = vmatprep.subr.mxu0 0.0
    %2828 = vmatpush1.msra.mxu0 0.0
    %2829 = vmatprep.subr.mxu0 0.0
    %2830 = vmatpush1.msra.mxu0 0.0
    %2831 = vmatprep.subr.mxu0 0.0
    %2832 = vmatpush1.msra.mxu0 0.0
    %2833 = vmatprep.subr.mxu0 0.0
    %2834 = vmatpush1.msra.mxu0 0.0
    %2835 = vmatprep.subr.mxu0 0.0
    %2836 = vmatpush1.msra.mxu0 0.0
    %2837 = vmatprep.subr.mxu0 0.0
    %2838 = vmatpush1.msra.mxu0 0.0
    %2839 = vmatprep.subr.mxu0 0.0
    %2840 = vmatpush1.msra.mxu0 0.0
    %2841 = vmatprep.subr.mxu0 0.0
    %2842 = vmatpush1.msra.mxu0 0.0
    %2843 = vmatprep.subr.mxu0 0.0
    %2844 = vmatpush1.msra.mxu0 0.0
    %2845 = vmatprep.subr.mxu0 0.0
    %2846 = vmatpush1.msra.mxu0 0.0
    %2847 = vmatprep.subr.mxu0 0.0
    %2848 = vmatpush1.msra.mxu0 0.0
    %2849 = vmatprep.mubr.f32.mxu0 0.0
    %2850 = vmatmul.mubr.f32.gmra.mrb[0].mxu0 0.0
    %v2851 = vpop.f32.mrb[0].mxu0
    %v2852 = vadd.f32 0.0, %v2851
    %v2853 = vpop.f32.mrb[0].mxu0
    %v2854 = vadd.f32 0.0, %v2853
    %2855 = vdwg.mxu0
    %2856 = vmatprep.subr.mxu0 %v2724
    %2857 = vmatpush1.msra.mxu0 %v2723
    %2858 = vmatprep.subr.mxu0 %v2728
    %2859 = vmatpush1.msra.mxu0 %v2727
    %2860 = vmatprep.subr.mxu0 %v2732
    %2861 = vmatpush1.msra.mxu0 %v2731
    %2862 = vmatprep.subr.mxu0 %v2736
    %2863 = vmatpush1.msra.mxu0 %v2735
    %2864 = vmatprep.subr.mxu0 %v2740
    %2865 = vmatpush1.msra.mxu0 %v2739
    %2866 = vmatprep.subr.mxu0 %v2744
    %2867 = vmatpush1.msra.mxu0 %v2743
    %2868 = vmatprep.subr.mxu0 %v2748
    %2869 = vmatpush1.msra.mxu0 %v2747
    %2870 = vmatprep.subr.mxu0 %v2752
    %2871 = vmatpush1.msra.mxu0 %v2751
    %2872 = vmatprep.subr.mxu0 %v2756
    %2873 = vmatpush1.msra.mxu0 %v2755
    %2874 = vmatprep.subr.mxu0 %v2760
    %2875 = vmatpush1.msra.mxu0 %v2759
    %2876 = vmatprep.subr.mxu0 %v2764
    %2877 = vmatpush1.msra.mxu0 %v2763
    %2878 = vmatprep.subr.mxu0 %v2768
    %2879 = vmatpush1.msra.mxu0 %v2767
    %2880 = vmatprep.subr.mxu0 %v2772
    %2881 = vmatpush1.msra.mxu0 %v2771
    %2882 = vmatprep.subr.mxu0 %v2776
    %2883 = vmatpush1.msra.mxu0 %v2775
    %2884 = vmatprep.subr.mxu0 %v2780
    %2885 = vmatpush1.msra.mxu0 %v2779
    %2886 = vmatprep.subr.mxu0 %v2784
    %2887 = vmatpush1.msra.mxu0 %v2783
    %2888 = vmatprep.subr.mxu0 0.0
    %2889 = vmatpush1.msra.mxu0 0.0
    %2890 = vmatprep.subr.mxu0 0.0
    %2891 = vmatpush1.msra.mxu0 0.0
    %2892 = vmatprep.subr.mxu0 0.0
    %2893 = vmatpush1.msra.mxu0 0.0
    %2894 = vmatprep.subr.mxu0 0.0
    %2895 = vmatpush1.msra.mxu0 0.0
    %2896 = vmatprep.subr.mxu0 0.0
    %2897 = vmatpush1.msra.mxu0 0.0
    %2898 = vmatprep.subr.mxu0 0.0
    %2899 = vmatpush1.msra.mxu0 0.0
    %2900 = vmatprep.subr.mxu0 0.0
    %2901 = vmatpush1.msra.mxu0 0.0
    %2902 = vmatprep.subr.mxu0 0.0
    %2903 = vmatpush1.msra.mxu0 0.0
    %2904 = vmatprep.subr.mxu0 0.0
    %2905 = vmatpush1.msra.mxu0 0.0
    %2906 = vmatprep.subr.mxu0 0.0
    %2907 = vmatpush1.msra.mxu0 0.0
    %2908 = vmatprep.subr.mxu0 0.0
    %2909 = vmatpush1.msra.mxu0 0.0
    %2910 = vmatprep.subr.mxu0 0.0
    %2911 = vmatpush1.msra.mxu0 0.0
    %2912 = vmatprep.subr.mxu0 0.0
    %2913 = vmatpush1.msra.mxu0 0.0
    %2914 = vmatprep.subr.mxu0 0.0
    %2915 = vmatpush1.msra.mxu0 0.0
    %2916 = vmatprep.subr.mxu0 0.0
    %2917 = vmatpush1.msra.mxu0 0.0
    %2918 = vmatprep.subr.mxu0 0.0
    %2919 = vmatpush1.msra.mxu0 0.0
    %2920 = vmatprep.mubr.f32.mxu0 0.0
    %2921 = vmatmul.mubr.f32.gmra.mrb[0].mxu0 0.0
    %v2922 = vpop.f32.mrb[0].mxu0
    %v2923 = vadd.f32 0.0, %v2922
    %v2924 = vpop.f32.mrb[0].mxu0
    %v2925 = vadd.f32 0.0, %v2924
    %2926 = vdwg.mxu0
    %v2927 = vadd.f32 %v2717, %v2852
    %v2928 = vadd.f32 %v2718, %v2854
    %v2929 = vadd.f32 %v2719, %v2923
    %v2930 = vadd.f32 %v2720, %v2925
    %v2931 = vmul.f32 %v2927, 0.5
    %v2932 = vmul.f32 %v2928, 0.5
    %v2933 = vmul.f32 %v2929, 0.5
    %v2934 = vtanh.pop %v2931
    %v2935 = vtanh.pop %v2932
    %v2936 = vtanh.pop %v2933
    %v2937 = vmul.f32 %v2934, 0.5
    %v2938 = vmul.f32 %v2935, 0.5
    %v2939 = vmul.f32 %v2936, 0.5
    %v2940 = vadd.f32 %v2937, 0.5
    %v2941 = vadd.f32 %v2938, 0.5
    %v2942 = vadd.f32 %v2939, 0.5
    %v2943 = vtanh.pop %v2930
    %v2944 = vmul.f32 %v2941, 0.0
    %v2945 = vmul.f32 %v2940, %v2943
    %v2946 = vadd.f32 %v2944, %v2945
    %v2947 = vtanh.pop %v2946
    %v2948 = vmul.f32 %v2942, %v2947
    %2949 = vst.msk [vmem:[#allocation4] sm:$0xff] %vm635, %v2948
    %2950 = vst.msk [vmem:[#allocation4 + $0x38] sm:$0xff] %vm637, %v2948
    %v2951 = vld [vmem:[#allocation2 + $0x20] sm:$0xff]
    %v2952 = vld [vmem:[#allocation2 + $0x28] sm:$0xff]
    %v2953 = vld [vmem:[#allocation2 + $0x30] sm:$0xff]
    %v2954 = vld [vmem:[#allocation2 + $0x38] sm:$0xff]
    %v2955 = vld [vmem:[#allocation9] sm:$0xff]
    %v2956 = vld [vmem:[#allocation9 + $0x8] sm:$0xff]
    %v2957 = vld [vmem:[#allocation9 + $0x10] sm:$0xff]
    %v2958 = vld [vmem:[#allocation9 + $0x18] sm:$0xff]
    %v2959 = vld [vmem:[#allocation9 + $0x20] sm:$0xff]
    %v2960 = vld [vmem:[#allocation9 + $0x28] sm:$0xff]
    %v2961 = vld [vmem:[#allocation9 + $0x30] sm:$0xff]
    %v2962 = vld [vmem:[#allocation9 + $0x38] sm:$0xff]
    %v2963 = vld [vmem:[#allocation9 + $0x40] sm:$0xff]
    %v2964 = vld [vmem:[#allocation9 + $0x48] sm:$0xff]
    %v2965 = vld [vmem:[#allocation9 + $0x50] sm:$0xff]
    %v2966 = vld [vmem:[#allocation9 + $0x58] sm:$0xff]
    %v2967 = vld [vmem:[#allocation9 + $0x60] sm:$0xff]
    %v2968 = vld [vmem:[#allocation9 + $0x68] sm:$0xff]
    %v2969 = vld [vmem:[#allocation9 + $0x70] sm:$0xff]
    %v2970 = vld [vmem:[#allocation9 + $0x78] sm:$0xff]
    %v2971 = vld [vmem:[#allocation9 + $0x80] sm:$0xff]
    %v2972 = vld [vmem:[#allocation9 + $0x88] sm:$0xff]
    %v2973 = vld [vmem:[#allocation9 + $0x90] sm:$0xff]
    %v2974 = vld [vmem:[#allocation9 + $0x98] sm:$0xff]
    %v2975 = vld [vmem:[#allocation9 + $0xa0] sm:$0xff]
    %v2976 = vld [vmem:[#allocation9 + $0xa8] sm:$0xff]
    %v2977 = vld [vmem:[#allocation9 + $0xb0] sm:$0xff]
    %v2978 = vld [vmem:[#allocation9 + $0xb8] sm:$0xff]
    %v2979 = vld [vmem:[#allocation9 + $0xc0] sm:$0xff]
    %v2980 = vld [vmem:[#allocation9 + $0xc8] sm:$0xff]
    %v2981 = vld [vmem:[#allocation9 + $0xd0] sm:$0xff]
    %v2982 = vld [vmem:[#allocation9 + $0xd8] sm:$0xff]
    %v2983 = vld [vmem:[#allocation9 + $0xe0] sm:$0xff]
    %v2984 = vld [vmem:[#allocation9 + $0xe8] sm:$0xff]
    %v2985 = vld [vmem:[#allocation9 + $0xf0] sm:$0xff]
    %v2986 = vld [vmem:[#allocation9 + $0xf8] sm:$0xff]
    %v2987 = vld [vmem:[#allocation9 + $0x100] sm:$0xff]
    %v2988 = vld [vmem:[#allocation9 + $0x108] sm:$0xff]
    %v2989 = vld [vmem:[#allocation9 + $0x110] sm:$0xff]
    %v2990 = vld [vmem:[#allocation9 + $0x118] sm:$0xff]
    %v2991 = vld [vmem:[#allocation9 + $0x120] sm:$0xff]
    %v2992 = vld [vmem:[#allocation9 + $0x128] sm:$0xff]
    %v2993 = vld [vmem:[#allocation9 + $0x130] sm:$0xff]
    %v2994 = vld [vmem:[#allocation9 + $0x138] sm:$0xff]
    %v2995 = vld [vmem:[#allocation9 + $0x140] sm:$0xff]
    %v2996 = vld [vmem:[#allocation9 + $0x148] sm:$0xff]
    %v2997 = vld [vmem:[#allocation9 + $0x150] sm:$0xff]
    %v2998 = vld [vmem:[#allocation9 + $0x158] sm:$0xff]
    %v2999 = vld [vmem:[#allocation9 + $0x160] sm:$0xff]
    %v3000 = vld [vmem:[#allocation9 + $0x168] sm:$0xff]
    %v3001 = vld [vmem:[#allocation9 + $0x170] sm:$0xff]
    %v3002 = vld [vmem:[#allocation9 + $0x178] sm:$0xff]
    %v3003 = vld [vmem:[#allocation9 + $0x180] sm:$0xff]
    %v3004 = vld [vmem:[#allocation9 + $0x188] sm:$0xff]
    %v3005 = vld [vmem:[#allocation9 + $0x190] sm:$0xff]
    %v3006 = vld [vmem:[#allocation9 + $0x198] sm:$0xff]
    %v3007 = vld [vmem:[#allocation9 + $0x1a0] sm:$0xff]
    %v3008 = vld [vmem:[#allocation9 + $0x1a8] sm:$0xff]
    %v3009 = vld [vmem:[#allocation9 + $0x1b0] sm:$0xff]
    %v3010 = vld [vmem:[#allocation9 + $0x1b8] sm:$0xff]
    %v3011 = vld [vmem:[#allocation9 + $0x1c0] sm:$0xff]
    %v3012 = vld [vmem:[#allocation9 + $0x1c8] sm:$0xff]
    %v3013 = vld [vmem:[#allocation9 + $0x1d0] sm:$0xff]
    %v3014 = vld [vmem:[#allocation9 + $0x1d8] sm:$0xff]
    %v3015 = vld [vmem:[#allocation9 + $0x1e0] sm:$0xff]
    %v3016 = vld [vmem:[#allocation9 + $0x1e8] sm:$0xff]
    %v3017 = vld [vmem:[#allocation9 + $0x1f0] sm:$0xff]
    %v3018 = vld [vmem:[#allocation9 + $0x1f8] sm:$0xff]
    %3019 = vmatprep.subr.mxu0 %v2956
    %3020 = vmatpush1.msra.mxu0 %v2955
    %3021 = vmatprep.subr.mxu0 %v2960
    %3022 = vmatpush1.msra.mxu0 %v2959
    %3023 = vmatprep.subr.mxu0 %v2964
    %3024 = vmatpush1.msra.mxu0 %v2963
    %3025 = vmatprep.subr.mxu0 %v2968
    %3026 = vmatpush1.msra.mxu0 %v2967
    %3027 = vmatprep.subr.mxu0 %v2972
    %3028 = vmatpush1.msra.mxu0 %v2971
    %3029 = vmatprep.subr.mxu0 %v2976
    %3030 = vmatpush1.msra.mxu0 %v2975
    %3031 = vmatprep.subr.mxu0 %v2980
    %3032 = vmatpush1.msra.mxu0 %v2979
    %3033 = vmatprep.subr.mxu0 %v2984
    %3034 = vmatpush1.msra.mxu0 %v2983
    %3035 = vmatprep.subr.mxu0 %v2988
    %3036 = vmatpush1.msra.mxu0 %v2987
    %3037 = vmatprep.subr.mxu0 %v2992
    %3038 = vmatpush1.msra.mxu0 %v2991
    %3039 = vmatprep.subr.mxu0 %v2996
    %3040 = vmatpush1.msra.mxu0 %v2995
    %3041 = vmatprep.subr.mxu0 %v3000
    %3042 = vmatpush1.msra.mxu0 %v2999
    %3043 = vmatprep.subr.mxu0 %v3004
    %3044 = vmatpush1.msra.mxu0 %v3003
    %3045 = vmatprep.subr.mxu0 %v3008
    %3046 = vmatpush1.msra.mxu0 %v3007
    %3047 = vmatprep.subr.mxu0 %v3012
    %3048 = vmatpush1.msra.mxu0 %v3011
    %3049 = vmatprep.subr.mxu0 %v3016
    %3050 = vmatpush1.msra.mxu0 %v3015
    %3051 = vmatprep.subr.mxu0 0.0
    %3052 = vmatpush1.msra.mxu0 0.0
    %3053 = vmatprep.subr.mxu0 0.0
    %3054 = vmatpush1.msra.mxu0 0.0
    %3055 = vmatprep.subr.mxu0 0.0
    %3056 = vmatpush1.msra.mxu0 0.0
    %3057 = vmatprep.subr.mxu0 0.0
    %3058 = vmatpush1.msra.mxu0 0.0
    %3059 = vmatprep.subr.mxu0 0.0
    %3060 = vmatpush1.msra.mxu0 0.0
    %3061 = vmatprep.subr.mxu0 0.0
    %3062 = vmatpush1.msra.mxu0 0.0
    %3063 = vmatprep.subr.mxu0 0.0
    %3064 = vmatpush1.msra.mxu0 0.0
    %3065 = vmatprep.subr.mxu0 0.0
    %3066 = vmatpush1.msra.mxu0 0.0
    %3067 = vmatprep.subr.mxu0 0.0
    %3068 = vmatpush1.msra.mxu0 0.0
    %3069 = vmatprep.subr.mxu0 0.0
    %3070 = vmatpush1.msra.mxu0 0.0
    %3071 = vmatprep.subr.mxu0 0.0
    %3072 = vmatpush1.msra.mxu0 0.0
    %3073 = vmatprep.subr.mxu0 0.0
    %3074 = vmatpush1.msra.mxu0 0.0
    %3075 = vmatprep.subr.mxu0 0.0
    %3076 = vmatpush1.msra.mxu0 0.0
    %3077 = vmatprep.subr.mxu0 0.0
    %3078 = vmatpush1.msra.mxu0 0.0
    %3079 = vmatprep.subr.mxu0 0.0
    %3080 = vmatpush1.msra.mxu0 0.0
    %3081 = vmatprep.subr.mxu0 0.0
    %3082 = vmatpush1.msra.mxu0 0.0
    %3083 = vmatprep.mubr.f32.mxu0 0.0
    %3084 = vmatmul.mubr.f32.gmra.mrb[0].mxu0 %v2948
    %v3085 = vpop.f32.mrb[0].mxu0
    %v3086 = vadd.f32 0.0, %v3085
    %v3087 = vpop.f32.mrb[0].mxu0
    %v3088 = vadd.f32 0.0, %v3087
    %3089 = vdwg.mxu0
    %3090 = vmatprep.subr.mxu0 %v2958
    %3091 = vmatpush1.msra.mxu0 %v2957
    %3092 = vmatprep.subr.mxu0 %v2962
    %3093 = vmatpush1.msra.mxu0 %v2961
    %3094 = vmatprep.subr.mxu0 %v2966
    %3095 = vmatpush1.msra.mxu0 %v2965
    %3096 = vmatprep.subr.mxu0 %v2970
    %3097 = vmatpush1.msra.mxu0 %v2969
    %3098 = vmatprep.subr.mxu0 %v2974
    %3099 = vmatpush1.msra.mxu0 %v2973
    %3100 = vmatprep.subr.mxu0 %v2978
    %3101 = vmatpush1.msra.mxu0 %v2977
    %3102 = vmatprep.subr.mxu0 %v2982
    %3103 = vmatpush1.msra.mxu0 %v2981
    %3104 = vmatprep.subr.mxu0 %v2986
    %3105 = vmatpush1.msra.mxu0 %v2985
    %3106 = vmatprep.subr.mxu0 %v2990
    %3107 = vmatpush1.msra.mxu0 %v2989
    %3108 = vmatprep.subr.mxu0 %v2994
    %3109 = vmatpush1.msra.mxu0 %v2993
    %3110 = vmatprep.subr.mxu0 %v2998
    %3111 = vmatpush1.msra.mxu0 %v2997
    %3112 = vmatprep.subr.mxu0 %v3002
    %3113 = vmatpush1.msra.mxu0 %v3001
    %3114 = vmatprep.subr.mxu0 %v3006
    %3115 = vmatpush1.msra.mxu0 %v3005
    %3116 = vmatprep.subr.mxu0 %v3010
    %3117 = vmatpush1.msra.mxu0 %v3009
    %3118 = vmatprep.subr.mxu0 %v3014
    %3119 = vmatpush1.msra.mxu0 %v3013
    %3120 = vmatprep.subr.mxu0 %v3018
    %3121 = vmatpush1.msra.mxu0 %v3017
    %3122 = vmatprep.subr.mxu0 0.0
    %3123 = vmatpush1.msra.mxu0 0.0
    %3124 = vmatprep.subr.mxu0 0.0
    %3125 = vmatpush1.msra.mxu0 0.0
    %3126 = vmatprep.subr.mxu0 0.0
    %3127 = vmatpush1.msra.mxu0 0.0
    %3128 = vmatprep.subr.mxu0 0.0
    %3129 = vmatpush1.msra.mxu0 0.0
    %3130 = vmatprep.subr.mxu0 0.0
    %3131 = vmatpush1.msra.mxu0 0.0
    %3132 = vmatprep.subr.mxu0 0.0
    %3133 = vmatpush1.msra.mxu0 0.0
    %3134 = vmatprep.subr.mxu0 0.0
    %3135 = vmatpush1.msra.mxu0 0.0
    %3136 = vmatprep.subr.mxu0 0.0
    %3137 = vmatpush1.msra.mxu0 0.0
    %3138 = vmatprep.subr.mxu0 0.0
    %3139 = vmatpush1.msra.mxu0 0.0
    %3140 = vmatprep.subr.mxu0 0.0
    %3141 = vmatpush1.msra.mxu0 0.0
    %3142 = vmatprep.subr.mxu0 0.0
    %3143 = vmatpush1.msra.mxu0 0.0
    %3144 = vmatprep.subr.mxu0 0.0
    %3145 = vmatpush1.msra.mxu0 0.0
    %3146 = vmatprep.subr.mxu0 0.0
    %3147 = vmatpush1.msra.mxu0 0.0
    %3148 = vmatprep.subr.mxu0 0.0
    %3149 = vmatpush1.msra.mxu0 0.0
    %3150 = vmatprep.subr.mxu0 0.0
    %3151 = vmatpush1.msra.mxu0 0.0
    %3152 = vmatprep.subr.mxu0 0.0
    %3153 = vmatpush1.msra.mxu0 0.0
    %3154 = vmatprep.mubr.f32.mxu0 0.0
    %3155 = vmatmul.mubr.f32.gmra.mrb[0].mxu0 %v2948
    %v3156 = vpop.f32.mrb[0].mxu0
    %v3157 = vadd.f32 0.0, %v3156
    %v3158 = vpop.f32.mrb[0].mxu0
    %v3159 = vadd.f32 0.0, %v3158
    %3160 = vdwg.mxu0
    %v3161 = vadd.f32 %v2951, %v3086
    %v3162 = vadd.f32 %v2952, %v3088
    %v3163 = vadd.f32 %v2953, %v3157
    %v3164 = vadd.f32 %v2954, %v3159
    %v3165 = vmul.f32 %v3161, 0.5
    %v3166 = vmul.f32 %v3162, 0.5
    %v3167 = vmul.f32 %v3163, 0.5
    %v3168 = vtanh.pop %v3165
    %v3169 = vtanh.pop %v3166
    %v3170 = vtanh.pop %v3167
    %v3171 = vmul.f32 %v3168, 0.5
    %v3172 = vmul.f32 %v3169, 0.5
    %v3173 = vmul.f32 %v3170, 0.5
    %v3174 = vadd.f32 %v3171, 0.5
    %v3175 = vadd.f32 %v3172, 0.5
    %v3176 = vadd.f32 %v3173, 0.5
    %v3177 = vtanh.pop %v3164
    %v3178 = vmul.f32 %v3175, %v2946
    %v3179 = vmul.f32 %v3174, %v3177
    %v3180 = vadd.f32 %v3178, %v3179
    %v3181 = vtanh.pop %v3180
    %v3182 = vmul.f32 %v3176, %v3181
    %3183 = vst.msk [vmem:[#allocation4 + $0x8] sm:$0xff] %vm635, %v3182
    %3184 = vst.msk [vmem:[#allocation4 + $0x30] sm:$0xff] %vm637, %v3182
    %v3185 = vld [vmem:[#allocation2 + $0x40] sm:$0xff]
    %v3186 = vld [vmem:[#allocation2 + $0x48] sm:$0xff]
    %v3187 = vld [vmem:[#allocation2 + $0x50] sm:$0xff]
    %v3188 = vld [vmem:[#allocation2 + $0x58] sm:$0xff]
    %v3189 = vld [vmem:[#allocation9] sm:$0xff]
    %v3190 = vld [vmem:[#allocation9 + $0x8] sm:$0xff]
    %v3191 = vld [vmem:[#allocation9 + $0x10] sm:$0xff]
    %v3192 = vld [vmem:[#allocation9 + $0x18] sm:$0xff]
    %v3193 = vld [vmem:[#allocation9 + $0x20] sm:$0xff]
    %v3194 = vld [vmem:[#allocation9 + $0x28] sm:$0xff]
    %v3195 = vld [vmem:[#allocation9 + $0x30] sm:$0xff]
    %v3196 = vld [vmem:[#allocation9 + $0x38] sm:$0xff]
    %v3197 = vld [vmem:[#allocation9 + $0x40] sm:$0xff]
    %v3198 = vld [vmem:[#allocation9 + $0x48] sm:$0xff]
    %v3199 = vld [vmem:[#allocation9 + $0x50] sm:$0xff]
    %v3200 = vld [vmem:[#allocation9 + $0x58] sm:$0xff]
    %v3201 = vld [vmem:[#allocation9 + $0x60] sm:$0xff]
    %v3202 = vld [vmem:[#allocation9 + $0x68] sm:$0xff]
    %v3203 = vld [vmem:[#allocation9 + $0x70] sm:$0xff]
    %v3204 = vld [vmem:[#allocation9 + $0x78] sm:$0xff]
    %v3205 = vld [vmem:[#allocation9 + $0x80] sm:$0xff]
    %v3206 = vld [vmem:[#allocation9 + $0x88] sm:$0xff]
    %v3207 = vld [vmem:[#allocation9 + $0x90] sm:$0xff]
    %v3208 = vld [vmem:[#allocation9 + $0x98] sm:$0xff]
    %v3209 = vld [vmem:[#allocation9 + $0xa0] sm:$0xff]
    %v3210 = vld [vmem:[#allocation9 + $0xa8] sm:$0xff]
    %v3211 = vld [vmem:[#allocation9 + $0xb0] sm:$0xff]
    %v3212 = vld [vmem:[#allocation9 + $0xb8] sm:$0xff]
    %v3213 = vld [vmem:[#allocation9 + $0xc0] sm:$0xff]
    %v3214 = vld [vmem:[#allocation9 + $0xc8] sm:$0xff]
    %v3215 = vld [vmem:[#allocation9 + $0xd0] sm:$0xff]
    %v3216 = vld [vmem:[#allocation9 + $0xd8] sm:$0xff]
    %v3217 = vld [vmem:[#allocation9 + $0xe0] sm:$0xff]
    %v3218 = vld [vmem:[#allocation9 + $0xe8] sm:$0xff]
    %v3219 = vld [vmem:[#allocation9 + $0xf0] sm:$0xff]
    %v3220 = vld [vmem:[#allocation9 + $0xf8] sm:$0xff]
    %v3221 = vld [vmem:[#allocation9 + $0x100] sm:$0xff]
    %v3222 = vld [vmem:[#allocation9 + $0x108] sm:$0xff]
    %v3223 = vld [vmem:[#allocation9 + $0x110] sm:$0xff]
    %v3224 = vld [vmem:[#allocation9 + $0x118] sm:$0xff]
    %v3225 = vld [vmem:[#allocation9 + $0x120] sm:$0xff]
    %v3226 = vld [vmem:[#allocation9 + $0x128] sm:$0xff]
    %v3227 = vld [vmem:[#allocation9 + $0x130] sm:$0xff]
    %v3228 = vld [vmem:[#allocation9 + $0x138] sm:$0xff]
    %v3229 = vld [vmem:[#allocation9 + $0x140] sm:$0xff]
    %v3230 = vld [vmem:[#allocation9 + $0x148] sm:$0xff]
    %v3231 = vld [vmem:[#allocation9 + $0x150] sm:$0xff]
    %v3232 = vld [vmem:[#allocation9 + $0x158] sm:$0xff]
    %v3233 = vld [vmem:[#allocation9 + $0x160] sm:$0xff]
    %v3234 = vld [vmem:[#allocation9 + $0x168] sm:$0xff]
    %v3235 = vld [vmem:[#allocation9 + $0x170] sm:$0xff]
    %v3236 = vld [vmem:[#allocation9 + $0x178] sm:$0xff]
    %v3237 = vld [vmem:[#allocation9 + $0x180] sm:$0xff]
    %v3238 = vld [vmem:[#allocation9 + $0x188] sm:$0xff]
    %v3239 = vld [vmem:[#allocation9 + $0x190] sm:$0xff]
    %v3240 = vld [vmem:[#allocation9 + $0x198] sm:$0xff]
    %v3241 = vld [vmem:[#allocation9 + $0x1a0] sm:$0xff]
    %v3242 = vld [vmem:[#allocation9 + $0x1a8] sm:$0xff]
    %v3243 = vld [vmem:[#allocation9 + $0x1b0] sm:$0xff]
    %v3244 = vld [vmem:[#allocation9 + $0x1b8] sm:$0xff]
    %v3245 = vld [vmem:[#allocation9 + $0x1c0] sm:$0xff]
    %v3246 = vld [vmem:[#allocation9 + $0x1c8] sm:$0xff]
    %v3247 = vld [vmem:[#allocation9 + $0x1d0] sm:$0xff]
    %v3248 = vld [vmem:[#allocation9 + $0x1d8] sm:$0xff]
    %v3249 = vld [vmem:[#allocation9 + $0x1e0] sm:$0xff]
    %v3250 = vld [vmem:[#allocation9 + $0x1e8] sm:$0xff]
    %v3251 = vld [vmem:[#allocation9 + $0x1f0] sm:$0xff]
    %v3252 = vld [vmem:[#allocation9 + $0x1f8] sm:$0xff]
    %3253 = vmatprep.subr.mxu0 %v3190
    %3254 = vmatpush1.msra.mxu0 %v3189
    %3255 = vmatprep.subr.mxu0 %v3194
    %3256 = vmatpush1.msra.mxu0 %v3193
    %3257 = vmatprep.subr.mxu0 %v3198
    %3258 = vmatpush1.msra.mxu0 %v3197
    %3259 = vmatprep.subr.mxu0 %v3202
    %3260 = vmatpush1.msra.mxu0 %v3201
    %3261 = vmatprep.subr.mxu0 %v3206
    %3262 = vmatpush1.msra.mxu0 %v3205
    %3263 = vmatprep.subr.mxu0 %v3210
    %3264 = vmatpush1.msra.mxu0 %v3209
    %3265 = vmatprep.subr.mxu0 %v3214
    %3266 = vmatpush1.msra.mxu0 %v3213
    %3267 = vmatprep.subr.mxu0 %v3218
    %3268 = vmatpush1.msra.mxu0 %v3217
    %3269 = vmatprep.subr.mxu0 %v3222
    %3270 = vmatpush1.msra.mxu0 %v3221
    %3271 = vmatprep.subr.mxu0 %v3226
    %3272 = vmatpush1.msra.mxu0 %v3225
    %3273 = vmatprep.subr.mxu0 %v3230
    %3274 = vmatpush1.msra.mxu0 %v3229
    %3275 = vmatprep.subr.mxu0 %v3234
    %3276 = vmatpush1.msra.mxu0 %v3233
    %3277 = vmatprep.subr.mxu0 %v3238
    %3278 = vmatpush1.msra.mxu0 %v3237
    %3279 = vmatprep.subr.mxu0 %v3242
    %3280 = vmatpush1.msra.mxu0 %v3241
    %3281 = vmatprep.subr.mxu0 %v3246
    %3282 = vmatpush1.msra.mxu0 %v3245
    %3283 = vmatprep.subr.mxu0 %v3250
    %3284 = vmatpush1.msra.mxu0 %v3249
    %3285 = vmatprep.subr.mxu0 0.0
    %3286 = vmatpush1.msra.mxu0 0.0
    %3287 = vmatprep.subr.mxu0 0.0
    %3288 = vmatpush1.msra.mxu0 0.0
    %3289 = vmatprep.subr.mxu0 0.0
    %3290 = vmatpush1.msra.mxu0 0.0
    %3291 = vmatprep.subr.mxu0 0.0
    %3292 = vmatpush1.msra.mxu0 0.0
    %3293 = vmatprep.subr.mxu0 0.0
    %3294 = vmatpush1.msra.mxu0 0.0
    %3295 = vmatprep.subr.mxu0 0.0
    %3296 = vmatpush1.msra.mxu0 0.0
    %3297 = vmatprep.subr.mxu0 0.0
    %3298 = vmatpush1.msra.mxu0 0.0
    %3299 = vmatprep.subr.mxu0 0.0
    %3300 = vmatpush1.msra.mxu0 0.0
    %3301 = vmatprep.subr.mxu0 0.0
    %3302 = vmatpush1.msra.mxu0 0.0
    %3303 = vmatprep.subr.mxu0 0.0
    %3304 = vmatpush1.msra.mxu0 0.0
    %3305 = vmatprep.subr.mxu0 0.0
    %3306 = vmatpush1.msra.mxu0 0.0
    %3307 = vmatprep.subr.mxu0 0.0
    %3308 = vmatpush1.msra.mxu0 0.0
    %3309 = vmatprep.subr.mxu0 0.0
    %3310 = vmatpush1.msra.mxu0 0.0
    %3311 = vmatprep.subr.mxu0 0.0
    %3312 = vmatpush1.msra.mxu0 0.0
    %3313 = vmatprep.subr.mxu0 0.0
    %3314 = vmatpush1.msra.mxu0 0.0
    %3315 = vmatprep.subr.mxu0 0.0
    %3316 = vmatpush1.msra.mxu0 0.0
    %3317 = vmatprep.mubr.f32.mxu0 0.0
    %3318 = vmatmul.mubr.f32.gmra.mrb[0].mxu0 %v3182
    %v3319 = vpop.f32.mrb[0].mxu0
    %v3320 = vadd.f32 0.0, %v3319
    %v3321 = vpop.f32.mrb[0].mxu0
    %v3322 = vadd.f32 0.0, %v3321
    %3323 = vdwg.mxu0
    %3324 = vmatprep.subr.mxu0 %v3192
    %3325 = vmatpush1.msra.mxu0 %v3191
    %3326 = vmatprep.subr.mxu0 %v3196
    %3327 = vmatpush1.msra.mxu0 %v3195
    %3328 = vmatprep.subr.mxu0 %v3200
    %3329 = vmatpush1.msra.mxu0 %v3199
    %3330 = vmatprep.subr.mxu0 %v3204
    %3331 = vmatpush1.msra.mxu0 %v3203
    %3332 = vmatprep.subr.mxu0 %v3208
    %3333 = vmatpush1.msra.mxu0 %v3207
    %3334 = vmatprep.subr.mxu0 %v3212
    %3335 = vmatpush1.msra.mxu0 %v3211
    %3336 = vmatprep.subr.mxu0 %v3216
    %3337 = vmatpush1.msra.mxu0 %v3215
    %3338 = vmatprep.subr.mxu0 %v3220
    %3339 = vmatpush1.msra.mxu0 %v3219
    %3340 = vmatprep.subr.mxu0 %v3224
    %3341 = vmatpush1.msra.mxu0 %v3223
    %3342 = vmatprep.subr.mxu0 %v3228
    %3343 = vmatpush1.msra.mxu0 %v3227
    %3344 = vmatprep.subr.mxu0 %v3232
    %3345 = vmatpush1.msra.mxu0 %v3231
    %3346 = vmatprep.subr.mxu0 %v3236
    %3347 = vmatpush1.msra.mxu0 %v3235
    %3348 = vmatprep.subr.mxu0 %v3240
    %3349 = vmatpush1.msra.mxu0 %v3239
    %3350 = vmatprep.subr.mxu0 %v3244
    %3351 = vmatpush1.msra.mxu0 %v3243
    %3352 = vmatprep.subr.mxu0 %v3248
    %3353 = vmatpush1.msra.mxu0 %v3247
    %3354 = vmatprep.subr.mxu0 %v3252
    %3355 = vmatpush1.msra.mxu0 %v3251
    %3356 = vmatprep.subr.mxu0 0.0
    %3357 = vmatpush1.msra.mxu0 0.0
    %3358 = vmatprep.subr.mxu0 0.0
    %3359 = vmatpush1.msra.mxu0 0.0
    %3360 = vmatprep.subr.mxu0 0.0
    %3361 = vmatpush1.msra.mxu0 0.0
    %3362 = vmatprep.subr.mxu0 0.0
    %3363 = vmatpush1.msra.mxu0 0.0
    %3364 = vmatprep.subr.mxu0 0.0
    %3365 = vmatpush1.msra.mxu0 0.0
    %3366 = vmatprep.subr.mxu0 0.0
    %3367 = vmatpush1.msra.mxu0 0.0
    %3368 = vmatprep.subr.mxu0 0.0
    %3369 = vmatpush1.msra.mxu0 0.0
    %3370 = vmatprep.subr.mxu0 0.0
    %3371 = vmatpush1.msra.mxu0 0.0
    %3372 = vmatprep.subr.mxu0 0.0
    %3373 = vmatpush1.msra.mxu0 0.0
    %3374 = vmatprep.subr.mxu0 0.0
    %3375 = vmatpush1.msra.mxu0 0.0
    %3376 = vmatprep.subr.mxu0 0.0
    %3377 = vmatpush1.msra.mxu0 0.0
    %3378 = vmatprep.subr.mxu0 0.0
    %3379 = vmatpush1.msra.mxu0 0.0
    %3380 = vmatprep.subr.mxu0 0.0
    %3381 = vmatpush1.msra.mxu0 0.0
    %3382 = vmatprep.subr.mxu0 0.0
    %3383 = vmatpush1.msra.mxu0 0.0
    %3384 = vmatprep.subr.mxu0 0.0
    %3385 = vmatpush1.msra.mxu0 0.0
    %3386 = vmatprep.subr.mxu0 0.0
    %3387 = vmatpush1.msra.mxu0 0.0
    %3388 = vmatprep.mubr.f32.mxu0 0.0
    %3389 = vmatmul.mubr.f32.gmra.mrb[0].mxu0 %v3182
    %v3390 = vpop.f32.mrb[0].mxu0
    %v3391 = vadd.f32 0.0, %v3390
    %v3392 = vpop.f32.mrb[0].mxu0
    %v3393 = vadd.f32 0.0, %v3392
    %3394 = vdwg.mxu0
    %v3395 = vadd.f32 %v3185, %v3320
    %v3396 = vadd.f32 %v3186, %v3322
    %v3397 = vadd.f32 %v3187, %v3391
    %v3398 = vadd.f32 %v3188, %v3393
    %v3399 = vmul.f32 %v3395, 0.5
    %v3400 = vmul.f32 %v3396, 0.5
    %v3401 = vmul.f32 %v3397, 0.5
    %v3402 = vtanh.pop %v3399
    %v3403 = vtanh.pop %v3400
    %v3404 = vtanh.pop %v3401
    %v3405 = vmul.f32 %v3402, 0.5
    %v3406 = vmul.f32 %v3403, 0.5
    %v3407 = vmul.f32 %v3404, 0.5
    %v3408 = vadd.f32 %v3405, 0.5
    %v3409 = vadd.f32 %v3406, 0.5
    %v3410 = vadd.f32 %v3407, 0.5
    %v3411 = vtanh.pop %v3398
    %v3412 = vmul.f32 %v3409, %v3180
    %v3413 = vmul.f32 %v3408, %v3411
    %v3414 = vadd.f32 %v3412, %v3413
    %v3415 = vtanh.pop %v3414
    %v3416 = vmul.f32 %v3410, %v3415
    %3417 = vst.msk [vmem:[#allocation4 + $0x10] sm:$0xff] %vm635, %v3416
    %3418 = vst.msk [vmem:[#allocation4 + $0x28] sm:$0xff] %vm637, %v3416
    %v3419 = vld [vmem:[#allocation2 + $0x60] sm:$0xff]
    %v3420 = vld [vmem:[#allocation2 + $0x68] sm:$0xff]
    %v3421 = vld [vmem:[#allocation2 + $0x70] sm:$0xff]
    %v3422 = vld [vmem:[#allocation2 + $0x78] sm:$0xff]
    %v3423 = vld [vmem:[#allocation9] sm:$0xff]
    %v3424 = vld [vmem:[#allocation9 + $0x8] sm:$0xff]
    %v3425 = vld [vmem:[#allocation9 + $0x10] sm:$0xff]
    %v3426 = vld [vmem:[#allocation9 + $0x18] sm:$0xff]
    %v3427 = vld [vmem:[#allocation9 + $0x20] sm:$0xff]
    %v3428 = vld [vmem:[#allocation9 + $0x28] sm:$0xff]
    %v3429 = vld [vmem:[#allocation9 + $0x30] sm:$0xff]
    %v3430 = vld [vmem:[#allocation9 + $0x38] sm:$0xff]
    %v3431 = vld [vmem:[#allocation9 + $0x40] sm:$0xff]
    %v3432 = vld [vmem:[#allocation9 + $0x48] sm:$0xff]
    %v3433 = vld [vmem:[#allocation9 + $0x50] sm:$0xff]
    %v3434 = vld [vmem:[#allocation9 + $0x58] sm:$0xff]
    %v3435 = vld [vmem:[#allocation9 + $0x60] sm:$0xff]
    %v3436 = vld [vmem:[#allocation9 + $0x68] sm:$0xff]
    %v3437 = vld [vmem:[#allocation9 + $0x70] sm:$0xff]
    %v3438 = vld [vmem:[#allocation9 + $0x78] sm:$0xff]
    %v3439 = vld [vmem:[#allocation9 + $0x80] sm:$0xff]
    %v3440 = vld [vmem:[#allocation9 + $0x88] sm:$0xff]
    %v3441 = vld [vmem:[#allocation9 + $0x90] sm:$0xff]
    %v3442 = vld [vmem:[#allocation9 + $0x98] sm:$0xff]
    %v3443 = vld [vmem:[#allocation9 + $0xa0] sm:$0xff]
    %v3444 = vld [vmem:[#allocation9 + $0xa8] sm:$0xff]
    %v3445 = vld [vmem:[#allocation9 + $0xb0] sm:$0xff]
    %v3446 = vld [vmem:[#allocation9 + $0xb8] sm:$0xff]
    %v3447 = vld [vmem:[#allocation9 + $0xc0] sm:$0xff]
    %v3448 = vld [vmem:[#allocation9 + $0xc8] sm:$0xff]
    %v3449 = vld [vmem:[#allocation9 + $0xd0] sm:$0xff]
    %v3450 = vld [vmem:[#allocation9 + $0xd8] sm:$0xff]
    %v3451 = vld [vmem:[#allocation9 + $0xe0] sm:$0xff]
    %v3452 = vld [vmem:[#allocation9 + $0xe8] sm:$0xff]
    %v3453 = vld [vmem:[#allocation9 + $0xf0] sm:$0xff]
    %v3454 = vld [vmem:[#allocation9 + $0xf8] sm:$0xff]
    %v3455 = vld [vmem:[#allocation9 + $0x100] sm:$0xff]
    %v3456 = vld [vmem:[#allocation9 + $0x108] sm:$0xff]
    %v3457 = vld [vmem:[#allocation9 + $0x110] sm:$0xff]
    %v3458 = vld [vmem:[#allocation9 + $0x118] sm:$0xff]
    %v3459 = vld [vmem:[#allocation9 + $0x120] sm:$0xff]
    %v3460 = vld [vmem:[#allocation9 + $0x128] sm:$0xff]
    %v3461 = vld [vmem:[#allocation9 + $0x130] sm:$0xff]
    %v3462 = vld [vmem:[#allocation9 + $0x138] sm:$0xff]
    %v3463 = vld [vmem:[#allocation9 + $0x140] sm:$0xff]
    %v3464 = vld [vmem:[#allocation9 + $0x148] sm:$0xff]
    %v3465 = vld [vmem:[#allocation9 + $0x150] sm:$0xff]
    %v3466 = vld [vmem:[#allocation9 + $0x158] sm:$0xff]
    %v3467 = vld [vmem:[#allocation9 + $0x160] sm:$0xff]
    %v3468 = vld [vmem:[#allocation9 + $0x168] sm:$0xff]
    %v3469 = vld [vmem:[#allocation9 + $0x170] sm:$0xff]
    %v3470 = vld [vmem:[#allocation9 + $0x178] sm:$0xff]
    %v3471 = vld [vmem:[#allocation9 + $0x180] sm:$0xff]
    %v3472 = vld [vmem:[#allocation9 + $0x188] sm:$0xff]
    %v3473 = vld [vmem:[#allocation9 + $0x190] sm:$0xff]
    %v3474 = vld [vmem:[#allocation9 + $0x198] sm:$0xff]
    %v3475 = vld [vmem:[#allocation9 + $0x1a0] sm:$0xff]
    %v3476 = vld [vmem:[#allocation9 + $0x1a8] sm:$0xff]
    %v3477 = vld [vmem:[#allocation9 + $0x1b0] sm:$0xff]
    %v3478 = vld [vmem:[#allocation9 + $0x1b8] sm:$0xff]
    %v3479 = vld [vmem:[#allocation9 + $0x1c0] sm:$0xff]
    %v3480 = vld [vmem:[#allocation9 + $0x1c8] sm:$0xff]
    %v3481 = vld [vmem:[#allocation9 + $0x1d0] sm:$0xff]
    %v3482 = vld [vmem:[#allocation9 + $0x1d8] sm:$0xff]
    %v3483 = vld [vmem:[#allocation9 + $0x1e0] sm:$0xff]
    %v3484 = vld [vmem:[#allocation9 + $0x1e8] sm:$0xff]
    %v3485 = vld [vmem:[#allocation9 + $0x1f0] sm:$0xff]
    %v3486 = vld [vmem:[#allocation9 + $0x1f8] sm:$0xff]
    %3487 = vmatprep.subr.mxu0 %v3424
    %3488 = vmatpush1.msra.mxu0 %v3423
    %3489 = vmatprep.subr.mxu0 %v3428
    %3490 = vmatpush1.msra.mxu0 %v3427
    %3491 = vmatprep.subr.mxu0 %v3432
    %3492 = vmatpush1.msra.mxu0 %v3431
    %3493 = vmatprep.subr.mxu0 %v3436
    %3494 = vmatpush1.msra.mxu0 %v3435
    %3495 = vmatprep.subr.mxu0 %v3440
    %3496 = vmatpush1.msra.mxu0 %v3439
    %3497 = vmatprep.subr.mxu0 %v3444
    %3498 = vmatpush1.msra.mxu0 %v3443
    %3499 = vmatprep.subr.mxu0 %v3448
    %3500 = vmatpush1.msra.mxu0 %v3447
    %3501 = vmatprep.subr.mxu0 %v3452
    %3502 = vmatpush1.msra.mxu0 %v3451
    %3503 = vmatprep.subr.mxu0 %v3456
    %3504 = vmatpush1.msra.mxu0 %v3455
    %3505 = vmatprep.subr.mxu0 %v3460
    %3506 = vmatpush1.msra.mxu0 %v3459
    %3507 = vmatprep.subr.mxu0 %v3464
    %3508 = vmatpush1.msra.mxu0 %v3463
    %3509 = vmatprep.subr.mxu0 %v3468
    %3510 = vmatpush1.msra.mxu0 %v3467
    %3511 = vmatprep.subr.mxu0 %v3472
    %3512 = vmatpush1.msra.mxu0 %v3471
    %3513 = vmatprep.subr.mxu0 %v3476
    %3514 = vmatpush1.msra.mxu0 %v3475
    %3515 = vmatprep.subr.mxu0 %v3480
    %3516 = vmatpush1.msra.mxu0 %v3479
    %3517 = vmatprep.subr.mxu0 %v3484
    %3518 = vmatpush1.msra.mxu0 %v3483
    %3519 = vmatprep.subr.mxu0 0.0
    %3520 = vmatpush1.msra.mxu0 0.0
    %3521 = vmatprep.subr.mxu0 0.0
    %3522 = vmatpush1.msra.mxu0 0.0
    %3523 = vmatprep.subr.mxu0 0.0
    %3524 = vmatpush1.msra.mxu0 0.0
    %3525 = vmatprep.subr.mxu0 0.0
    %3526 = vmatpush1.msra.mxu0 0.0
    %3527 = vmatprep.subr.mxu0 0.0
    %3528 = vmatpush1.msra.mxu0 0.0
    %3529 = vmatprep.subr.mxu0 0.0
    %3530 = vmatpush1.msra.mxu0 0.0
    %3531 = vmatprep.subr.mxu0 0.0
    %3532 = vmatpush1.msra.mxu0 0.0
    %3533 = vmatprep.subr.mxu0 0.0
    %3534 = vmatpush1.msra.mxu0 0.0
    %3535 = vmatprep.subr.mxu0 0.0
    %3536 = vmatpush1.msra.mxu0 0.0
    %3537 = vmatprep.subr.mxu0 0.0
    %3538 = vmatpush1.msra.mxu0 0.0
    %3539 = vmatprep.subr.mxu0 0.0
    %3540 = vmatpush1.msra.mxu0 0.0
    %3541 = vmatprep.subr.mxu0 0.0
    %3542 = vmatpush1.msra.mxu0 0.0
    %3543 = vmatprep.subr.mxu0 0.0
    %3544 = vmatpush1.msra.mxu0 0.0
    %3545 = vmatprep.subr.mxu0 0.0
    %3546 = vmatpush1.msra.mxu0 0.0
    %3547 = vmatprep.subr.mxu0 0.0
    %3548 = vmatpush1.msra.mxu0 0.0
    %3549 = vmatprep.subr.mxu0 0.0
    %3550 = vmatpush1.msra.mxu0 0.0
    %3551 = vmatprep.mubr.f32.mxu0 0.0
    %3552 = vmatmul.mubr.f32.gmra.mrb[0].mxu0 %v3416
    %v3553 = vpop.f32.mrb[0].mxu0
    %v3554 = vadd.f32 0.0, %v3553
    %v3555 = vpop.f32.mrb[0].mxu0
    %v3556 = vadd.f32 0.0, %v3555
    %3557 = vdwg.mxu0
    %3558 = vmatprep.subr.mxu0 %v3426
    %3559 = vmatpush1.msra.mxu0 %v3425
    %3560 = vmatprep.subr.mxu0 %v3430
    %3561 = vmatpush1.msra.mxu0 %v3429
    %3562 = vmatprep.subr.mxu0 %v3434
    %3563 = vmatpush1.msra.mxu0 %v3433
    %3564 = vmatprep.subr.mxu0 %v3438
    %3565 = vmatpush1.msra.mxu0 %v3437
    %3566 = vmatprep.subr.mxu0 %v3442
    %3567 = vmatpush1.msra.mxu0 %v3441
    %3568 = vmatprep.subr.mxu0 %v3446
    %3569 = vmatpush1.msra.mxu0 %v3445
    %3570 = vmatprep.subr.mxu0 %v3450
    %3571 = vmatpush1.msra.mxu0 %v3449
    %3572 = vmatprep.subr.mxu0 %v3454
    %3573 = vmatpush1.msra.mxu0 %v3453
    %3574 = vmatprep.subr.mxu0 %v3458
    %3575 = vmatpush1.msra.mxu0 %v3457
    %3576 = vmatprep.subr.mxu0 %v3462
    %3577 = vmatpush1.msra.mxu0 %v3461
    %3578 = vmatprep.subr.mxu0 %v3466
    %3579 = vmatpush1.msra.mxu0 %v3465
    %3580 = vmatprep.subr.mxu0 %v3470
    %3581 = vmatpush1.msra.mxu0 %v3469
    %3582 = vmatprep.subr.mxu0 %v3474
    %3583 = vmatpush1.msra.mxu0 %v3473
    %3584 = vmatprep.subr.mxu0 %v3478
    %3585 = vmatpush1.msra.mxu0 %v3477
    %3586 = vmatprep.subr.mxu0 %v3482
    %3587 = vmatpush1.msra.mxu0 %v3481
    %3588 = vmatprep.subr.mxu0 %v3486
    %3589 = vmatpush1.msra.mxu0 %v3485
    %3590 = vmatprep.subr.mxu0 0.0
    %3591 = vmatpush1.msra.mxu0 0.0
    %3592 = vmatprep.subr.mxu0 0.0
    %3593 = vmatpush1.msra.mxu0 0.0
    %3594 = vmatprep.subr.mxu0 0.0
    %3595 = vmatpush1.msra.mxu0 0.0
    %3596 = vmatprep.subr.mxu0 0.0
    %3597 = vmatpush1.msra.mxu0 0.0
    %3598 = vmatprep.subr.mxu0 0.0
    %3599 = vmatpush1.msra.mxu0 0.0
    %3600 = vmatprep.subr.mxu0 0.0
    %3601 = vmatpush1.msra.mxu0 0.0
    %3602 = vmatprep.subr.mxu0 0.0
    %3603 = vmatpush1.msra.mxu0 0.0
    %3604 = vmatprep.subr.mxu0 0.0
    %3605 = vmatpush1.msra.mxu0 0.0
    %3606 = vmatprep.subr.mxu0 0.0
    %3607 = vmatpush1.msra.mxu0 0.0
    %3608 = vmatprep.subr.mxu0 0.0
    %3609 = vmatpush1.msra.mxu0 0.0
    %3610 = vmatprep.subr.mxu0 0.0
    %3611 = vmatpush1.msra.mxu0 0.0
    %3612 = vmatprep.subr.mxu0 0.0
    %3613 = vmatpush1.msra.mxu0 0.0
    %3614 = vmatprep.subr.mxu0 0.0
    %3615 = vmatpush1.msra.mxu0 0.0
    %3616 = vmatprep.subr.mxu0 0.0
    %3617 = vmatpush1.msra.mxu0 0.0
    %3618 = vmatprep.subr.mxu0 0.0
    %3619 = vmatpush1.msra.mxu0 0.0
    %3620 = vmatprep.subr.mxu0 0.0
    %3621 = vmatpush1.msra.mxu0 0.0
    %3622 = vmatprep.mubr.f32.mxu0 0.0
    %3623 = vmatmul.mubr.f32.gmra.mrb[0].mxu0 %v3416
    %v3624 = vpop.f32.mrb[0].mxu0
    %v3625 = vadd.f32 0.0, %v3624
    %v3626 = vpop.f32.mrb[0].mxu0
    %v3627 = vadd.f32 0.0, %v3626
    %3628 = vdwg.mxu0
    %v3629 = vadd.f32 %v3419, %v3554
    %v3630 = vadd.f32 %v3420, %v3556
    %v3631 = vadd.f32 %v3421, %v3625
    %v3632 = vadd.f32 %v3422, %v3627
    %v3633 = vmul.f32 %v3629, 0.5
    %v3634 = vmul.f32 %v3630, 0.5
    %v3635 = vmul.f32 %v3631, 0.5
    %v3636 = vtanh.pop %v3633
    %v3637 = vtanh.pop %v3634
    %v3638 = vtanh.pop %v3635
    %v3639 = vmul.f32 %v3636, 0.5
    %v3640 = vmul.f32 %v3637, 0.5
    %v3641 = vmul.f32 %v3638, 0.5
    %v3642 = vadd.f32 %v3639, 0.5
    %v3643 = vadd.f32 %v3640, 0.5
    %v3644 = vadd.f32 %v3641, 0.5
    %v3645 = vtanh.pop %v3632
    %v3646 = vmul.f32 %v3643, %v3414
    %v3647 = vmul.f32 %v3642, %v3645
    %v3648 = vadd.f32 %v3646, %v3647
    %v3649 = vtanh.pop %v3648
    %v3650 = vmul.f32 %v3644, %v3649
    %3651 = vst.msk [vmem:[#allocation4 + $0x18] sm:$0xff] %vm635, %v3650
    %3652 = vst.msk [vmem:[#allocation4 + $0x20] sm:$0xff] %vm637, %v3650
    %v3653 = vld [vmem:[#allocation2 + $0x80] sm:$0xff]
    %v3654 = vld [vmem:[#allocation2 + $0x88] sm:$0xff]
    %v3655 = vld [vmem:[#allocation2 + $0x90] sm:$0xff]
    %v3656 = vld [vmem:[#allocation2 + $0x98] sm:$0xff]
    %v3657 = vld [vmem:[#allocation9] sm:$0xff]
    %v3658 = vld [vmem:[#allocation9 + $0x8] sm:$0xff]
    %v3659 = vld [vmem:[#allocation9 + $0x10] sm:$0xff]
    %v3660 = vld [vmem:[#allocation9 + $0x18] sm:$0xff]
    %v3661 = vld [vmem:[#allocation9 + $0x20] sm:$0xff]
    %v3662 = vld [vmem:[#allocation9 + $0x28] sm:$0xff]
    %v3663 = vld [vmem:[#allocation9 + $0x30] sm:$0xff]
    %v3664 = vld [vmem:[#allocation9 + $0x38] sm:$0xff]
    %v3665 = vld [vmem:[#allocation9 + $0x40] sm:$0xff]
    %v3666 = vld [vmem:[#allocation9 + $0x48] sm:$0xff]
    %v3667 = vld [vmem:[#allocation9 + $0x50] sm:$0xff]
    %v3668 = vld [vmem:[#allocation9 + $0x58] sm:$0xff]
    %v3669 = vld [vmem:[#allocation9 + $0x60] sm:$0xff]
    %v3670 = vld [vmem:[#allocation9 + $0x68] sm:$0xff]
    %v3671 = vld [vmem:[#allocation9 + $0x70] sm:$0xff]
    %v3672 = vld [vmem:[#allocation9 + $0x78] sm:$0xff]
    %v3673 = vld [vmem:[#allocation9 + $0x80] sm:$0xff]
    %v3674 = vld [vmem:[#allocation9 + $0x88] sm:$0xff]
    %v3675 = vld [vmem:[#allocation9 + $0x90] sm:$0xff]
    %v3676 = vld [vmem:[#allocation9 + $0x98] sm:$0xff]
    %v3677 = vld [vmem:[#allocation9 + $0xa0] sm:$0xff]
    %v3678 = vld [vmem:[#allocation9 + $0xa8] sm:$0xff]
    %v3679 = vld [vmem:[#allocation9 + $0xb0] sm:$0xff]
    %v3680 = vld [vmem:[#allocation9 + $0xb8] sm:$0xff]
    %v3681 = vld [vmem:[#allocation9 + $0xc0] sm:$0xff]
    %v3682 = vld [vmem:[#allocation9 + $0xc8] sm:$0xff]
    %v3683 = vld [vmem:[#allocation9 + $0xd0] sm:$0xff]
    %v3684 = vld [vmem:[#allocation9 + $0xd8] sm:$0xff]
    %v3685 = vld [vmem:[#allocation9 + $0xe0] sm:$0xff]
    %v3686 = vld [vmem:[#allocation9 + $0xe8] sm:$0xff]
    %v3687 = vld [vmem:[#allocation9 + $0xf0] sm:$0xff]
    %v3688 = vld [vmem:[#allocation9 + $0xf8] sm:$0xff]
    %v3689 = vld [vmem:[#allocation9 + $0x100] sm:$0xff]
    %v3690 = vld [vmem:[#allocation9 + $0x108] sm:$0xff]
    %v3691 = vld [vmem:[#allocation9 + $0x110] sm:$0xff]
    %v3692 = vld [vmem:[#allocation9 + $0x118] sm:$0xff]
    %v3693 = vld [vmem:[#allocation9 + $0x120] sm:$0xff]
    %v3694 = vld [vmem:[#allocation9 + $0x128] sm:$0xff]
    %v3695 = vld [vmem:[#allocation9 + $0x130] sm:$0xff]
    %v3696 = vld [vmem:[#allocation9 + $0x138] sm:$0xff]
    %v3697 = vld [vmem:[#allocation9 + $0x140] sm:$0xff]
    %v3698 = vld [vmem:[#allocation9 + $0x148] sm:$0xff]
    %v3699 = vld [vmem:[#allocation9 + $0x150] sm:$0xff]
    %v3700 = vld [vmem:[#allocation9 + $0x158] sm:$0xff]
    %v3701 = vld [vmem:[#allocation9 + $0x160] sm:$0xff]
    %v3702 = vld [vmem:[#allocation9 + $0x168] sm:$0xff]
    %v3703 = vld [vmem:[#allocation9 + $0x170] sm:$0xff]
    %v3704 = vld [vmem:[#allocation9 + $0x178] sm:$0xff]
    %v3705 = vld [vmem:[#allocation9 + $0x180] sm:$0xff]
    %v3706 = vld [vmem:[#allocation9 + $0x188] sm:$0xff]
    %v3707 = vld [vmem:[#allocation9 + $0x190] sm:$0xff]
    %v3708 = vld [vmem:[#allocation9 + $0x198] sm:$0xff]
    %v3709 = vld [vmem:[#allocation9 + $0x1a0] sm:$0xff]
    %v3710 = vld [vmem:[#allocation9 + $0x1a8] sm:$0xff]
    %v3711 = vld [vmem:[#allocation9 + $0x1b0] sm:$0xff]
    %v3712 = vld [vmem:[#allocation9 + $0x1b8] sm:$0xff]
    %v3713 = vld [vmem:[#allocation9 + $0x1c0] sm:$0xff]
    %v3714 = vld [vmem:[#allocation9 + $0x1c8] sm:$0xff]
    %v3715 = vld [vmem:[#allocation9 + $0x1d0] sm:$0xff]
    %v3716 = vld [vmem:[#allocation9 + $0x1d8] sm:$0xff]
    %v3717 = vld [vmem:[#allocation9 + $0x1e0] sm:$0xff]
    %v3718 = vld [vmem:[#allocation9 + $0x1e8] sm:$0xff]
    %v3719 = vld [vmem:[#allocation9 + $0x1f0] sm:$0xff]
    %v3720 = vld [vmem:[#allocation9 + $0x1f8] sm:$0xff]
    %3721 = vmatprep.subr.mxu0 %v3658
    %3722 = vmatpush1.msra.mxu0 %v3657
    %3723 = vmatprep.subr.mxu0 %v3662
    %3724 = vmatpush1.msra.mxu0 %v3661
    %3725 = vmatprep.subr.mxu0 %v3666
    %3726 = vmatpush1.msra.mxu0 %v3665
    %3727 = vmatprep.subr.mxu0 %v3670
    %3728 = vmatpush1.msra.mxu0 %v3669
    %3729 = vmatprep.subr.mxu0 %v3674
    %3730 = vmatpush1.msra.mxu0 %v3673
    %3731 = vmatprep.subr.mxu0 %v3678
    %3732 = vmatpush1.msra.mxu0 %v3677
    %3733 = vmatprep.subr.mxu0 %v3682
    %3734 = vmatpush1.msra.mxu0 %v3681
    %3735 = vmatprep.subr.mxu0 %v3686
    %3736 = vmatpush1.msra.mxu0 %v3685
    %3737 = vmatprep.subr.mxu0 %v3690
    %3738 = vmatpush1.msra.mxu0 %v3689
    %3739 = vmatprep.subr.mxu0 %v3694
    %3740 = vmatpush1.msra.mxu0 %v3693
    %3741 = vmatprep.subr.mxu0 %v3698
    %3742 = vmatpush1.msra.mxu0 %v3697
    %3743 = vmatprep.subr.mxu0 %v3702
    %3744 = vmatpush1.msra.mxu0 %v3701
    %3745 = vmatprep.subr.mxu0 %v3706
    %3746 = vmatpush1.msra.mxu0 %v3705
    %3747 = vmatprep.subr.mxu0 %v3710
    %3748 = vmatpush1.msra.mxu0 %v3709
    %3749 = vmatprep.subr.mxu0 %v3714
    %3750 = vmatpush1.msra.mxu0 %v3713
    %3751 = vmatprep.subr.mxu0 %v3718
    %3752 = vmatpush1.msra.mxu0 %v3717
    %3753 = vmatprep.subr.mxu0 0.0
    %3754 = vmatpush1.msra.mxu0 0.0
    %3755 = vmatprep.subr.mxu0 0.0
    %3756 = vmatpush1.msra.mxu0 0.0
    %3757 = vmatprep.subr.mxu0 0.0
    %3758 = vmatpush1.msra.mxu0 0.0
    %3759 = vmatprep.subr.mxu0 0.0
    %3760 = vmatpush1.msra.mxu0 0.0
    %3761 = vmatprep.subr.mxu0 0.0
    %3762 = vmatpush1.msra.mxu0 0.0
    %3763 = vmatprep.subr.mxu0 0.0
    %3764 = vmatpush1.msra.mxu0 0.0
    %3765 = vmatprep.subr.mxu0 0.0
    %3766 = vmatpush1.msra.mxu0 0.0
    %3767 = vmatprep.subr.mxu0 0.0
    %3768 = vmatpush1.msra.mxu0 0.0
    %3769 = vmatprep.subr.mxu0 0.0
    %3770 = vmatpush1.msra.mxu0 0.0
    %3771 = vmatprep.subr.mxu0 0.0
    %3772 = vmatpush1.msra.mxu0 0.0
    %3773 = vmatprep.subr.mxu0 0.0
    %3774 = vmatpush1.msra.mxu0 0.0
    %3775 = vmatprep.subr.mxu0 0.0
    %3776 = vmatpush1.msra.mxu0 0.0
    %3777 = vmatprep.subr.mxu0 0.0
    %3778 = vmatpush1.msra.mxu0 0.0
    %3779 = vmatprep.subr.mxu0 0.0
    %3780 = vmatpush1.msra.mxu0 0.0
    %3781 = vmatprep.subr.mxu0 0.0
    %3782 = vmatpush1.msra.mxu0 0.0
    %3783 = vmatprep.subr.mxu0 0.0
    %3784 = vmatpush1.msra.mxu0 0.0
    %3785 = vmatprep.mubr.f32.mxu0 0.0
    %3786 = vmatmul.mubr.f32.gmra.mrb[0].mxu0 %v3650
    %v3787 = vpop.f32.mrb[0].mxu0
    %v3788 = vadd.f32 0.0, %v3787
    %v3789 = vpop.f32.mrb[0].mxu0
    %v3790 = vadd.f32 0.0, %v3789
    %3791 = vdwg.mxu0
    %3792 = vmatprep.subr.mxu0 %v3660
    %3793 = vmatpush1.msra.mxu0 %v3659
    %3794 = vmatprep.subr.mxu0 %v3664
    %3795 = vmatpush1.msra.mxu0 %v3663
    %3796 = vmatprep.subr.mxu0 %v3668
    %3797 = vmatpush1.msra.mxu0 %v3667
    %3798 = vmatprep.subr.mxu0 %v3672
    %3799 = vmatpush1.msra.mxu0 %v3671
    %3800 = vmatprep.subr.mxu0 %v3676
    %3801 = vmatpush1.msra.mxu0 %v3675
    %3802 = vmatprep.subr.mxu0 %v3680
    %3803 = vmatpush1.msra.mxu0 %v3679
    %3804 = vmatprep.subr.mxu0 %v3684
    %3805 = vmatpush1.msra.mxu0 %v3683
    %3806 = vmatprep.subr.mxu0 %v3688
    %3807 = vmatpush1.msra.mxu0 %v3687
    %3808 = vmatprep.subr.mxu0 %v3692
    %3809 = vmatpush1.msra.mxu0 %v3691
    %3810 = vmatprep.subr.mxu0 %v3696
    %3811 = vmatpush1.msra.mxu0 %v3695
    %3812 = vmatprep.subr.mxu0 %v3700
    %3813 = vmatpush1.msra.mxu0 %v3699
    %3814 = vmatprep.subr.mxu0 %v3704
    %3815 = vmatpush1.msra.mxu0 %v3703
    %3816 = vmatprep.subr.mxu0 %v3708
    %3817 = vmatpush1.msra.mxu0 %v3707
    %3818 = vmatprep.subr.mxu0 %v3712
    %3819 = vmatpush1.msra.mxu0 %v3711
    %3820 = vmatprep.subr.mxu0 %v3716
    %3821 = vmatpush1.msra.mxu0 %v3715
    %3822 = vmatprep.subr.mxu0 %v3720
    %3823 = vmatpush1.msra.mxu0 %v3719
    %3824 = vmatprep.subr.mxu0 0.0
    %3825 = vmatpush1.msra.mxu0 0.0
    %3826 = vmatprep.subr.mxu0 0.0
    %3827 = vmatpush1.msra.mxu0 0.0
    %3828 = vmatprep.subr.mxu0 0.0
    %3829 = vmatpush1.msra.mxu0 0.0
    %3830 = vmatprep.subr.mxu0 0.0
    %3831 = vmatpush1.msra.mxu0 0.0
    %3832 = vmatprep.subr.mxu0 0.0
    %3833 = vmatpush1.msra.mxu0 0.0
    %3834 = vmatprep.subr.mxu0 0.0
    %3835 = vmatpush1.msra.mxu0 0.0
    %3836 = vmatprep.subr.mxu0 0.0
    %3837 = vmatpush1.msra.mxu0 0.0
    %3838 = vmatprep.subr.mxu0 0.0
    %3839 = vmatpush1.msra.mxu0 0.0
    %3840 = vmatprep.subr.mxu0 0.0
    %3841 = vmatpush1.msra.mxu0 0.0
    %3842 = vmatprep.subr.mxu0 0.0
    %3843 = vmatpush1.msra.mxu0 0.0
    %3844 = vmatprep.subr.mxu0 0.0
    %3845 = vmatpush1.msra.mxu0 0.0
    %3846 = vmatprep.subr.mxu0 0.0
    %3847 = vmatpush1.msra.mxu0 0.0
    %3848 = vmatprep.subr.mxu0 0.0
    %3849 = vmatpush1.msra.mxu0 0.0
    %3850 = vmatprep.subr.mxu0 0.0
    %3851 = vmatpush1.msra.mxu0 0.0
    %3852 = vmatprep.subr.mxu0 0.0
    %3853 = vmatpush1.msra.mxu0 0.0
    %3854 = vmatprep.subr.mxu0 0.0
    %3855 = vmatpush1.msra.mxu0 0.0
    %3856 = vmatprep.mubr.f32.mxu0 0.0
    %3857 = vmatmul.mubr.f32.gmra.mrb[0].mxu0 %v3650
    %v3858 = vpop.f32.mrb[0].mxu0
    %v3859 = vadd.f32 0.0, %v3858
    %v3860 = vpop.f32.mrb[0].mxu0
    %v3861 = vadd.f32 0.0, %v3860
    %3862 = vdwg.mxu0
    %v3863 = vadd.f32 %v3653, %v3788
    %v3864 = vadd.f32 %v3654, %v3790
    %v3865 = vadd.f32 %v3655, %v3859
    %v3866 = vadd.f32 %v3656, %v3861
    %v3867 = vmul.f32 %v3863, 0.5
    %v3868 = vmul.f32 %v3864, 0.5
    %v3869 = vmul.f32 %v3865, 0.5
    %v3870 = vtanh.pop %v3867
    %v3871 = vtanh.pop %v3868
    %v3872 = vtanh.pop %v3869
    %v3873 = vmul.f32 %v3870, 0.5
    %v3874 = vmul.f32 %v3871, 0.5
    %v3875 = vmul.f32 %v3872, 0.5
    %v3876 = vadd.f32 %v3873, 0.5
    %v3877 = vadd.f32 %v3874, 0.5
    %v3878 = vadd.f32 %v3875, 0.5
    %v3879 = vtanh.pop %v3866
    %v3880 = vmul.f32 %v3877, %v3648
    %v3881 = vmul.f32 %v3876, %v3879
    %v3882 = vadd.f32 %v3880, %v3881
    %v3883 = vtanh.pop %v3882
    %v3884 = vmul.f32 %v3878, %v3883
    %3885 = vst.msk [vmem:[#allocation4 + $0x20] sm:$0xff] %vm635, %v3884
    %3886 = vst.msk [vmem:[#allocation4 + $0x18] sm:$0xff] %vm637, %v3884
    %v3887 = vld [vmem:[#allocation2 + $0xa0] sm:$0xff]
    %v3888 = vld [vmem:[#allocation2 + $0xa8] sm:$0xff]
    %v3889 = vld [vmem:[#allocation2 + $0xb0] sm:$0xff]
    %v3890 = vld [vmem:[#allocation2 + $0xb8] sm:$0xff]
    %v3891 = vld [vmem:[#allocation9] sm:$0xff]
    %v3892 = vld [vmem:[#allocation9 + $0x8] sm:$0xff]
    %v3893 = vld [vmem:[#allocation9 + $0x10] sm:$0xff]
    %v3894 = vld [vmem:[#allocation9 + $0x18] sm:$0xff]
    %v3895 = vld [vmem:[#allocation9 + $0x20] sm:$0xff]
    %v3896 = vld [vmem:[#allocation9 + $0x28] sm:$0xff]
    %v3897 = vld [vmem:[#allocation9 + $0x30] sm:$0xff]
    %v3898 = vld [vmem:[#allocation9 + $0x38] sm:$0xff]
    %v3899 = vld [vmem:[#allocation9 + $0x40] sm:$0xff]
    %v3900 = vld [vmem:[#allocation9 + $0x48] sm:$0xff]
    %v3901 = vld [vmem:[#allocation9 + $0x50] sm:$0xff]
    %v3902 = vld [vmem:[#allocation9 + $0x58] sm:$0xff]
    %v3903 = vld [vmem:[#allocation9 + $0x60] sm:$0xff]
    %v3904 = vld [vmem:[#allocation9 + $0x68] sm:$0xff]
    %v3905 = vld [vmem:[#allocation9 + $0x70] sm:$0xff]
    %v3906 = vld [vmem:[#allocation9 + $0x78] sm:$0xff]
    %v3907 = vld [vmem:[#allocation9 + $0x80] sm:$0xff]
    %v3908 = vld [vmem:[#allocation9 + $0x88] sm:$0xff]
    %v3909 = vld [vmem:[#allocation9 + $0x90] sm:$0xff]
    %v3910 = vld [vmem:[#allocation9 + $0x98] sm:$0xff]
    %v3911 = vld [vmem:[#allocation9 + $0xa0] sm:$0xff]
    %v3912 = vld [vmem:[#allocation9 + $0xa8] sm:$0xff]
    %v3913 = vld [vmem:[#allocation9 + $0xb0] sm:$0xff]
    %v3914 = vld [vmem:[#allocation9 + $0xb8] sm:$0xff]
    %v3915 = vld [vmem:[#allocation9 + $0xc0] sm:$0xff]
    %v3916 = vld [vmem:[#allocation9 + $0xc8] sm:$0xff]
    %v3917 = vld [vmem:[#allocation9 + $0xd0] sm:$0xff]
    %v3918 = vld [vmem:[#allocation9 + $0xd8] sm:$0xff]
    %v3919 = vld [vmem:[#allocation9 + $0xe0] sm:$0xff]
    %v3920 = vld [vmem:[#allocation9 + $0xe8] sm:$0xff]
    %v3921 = vld [vmem:[#allocation9 + $0xf0] sm:$0xff]
    %v3922 = vld [vmem:[#allocation9 + $0xf8] sm:$0xff]
    %v3923 = vld [vmem:[#allocation9 + $0x100] sm:$0xff]
    %v3924 = vld [vmem:[#allocation9 + $0x108] sm:$0xff]
    %v3925 = vld [vmem:[#allocation9 + $0x110] sm:$0xff]
    %v3926 = vld [vmem:[#allocation9 + $0x118] sm:$0xff]
    %v3927 = vld [vmem:[#allocation9 + $0x120] sm:$0xff]
    %v3928 = vld [vmem:[#allocation9 + $0x128] sm:$0xff]
    %v3929 = vld [vmem:[#allocation9 + $0x130] sm:$0xff]
    %v3930 = vld [vmem:[#allocation9 + $0x138] sm:$0xff]
    %v3931 = vld [vmem:[#allocation9 + $0x140] sm:$0xff]
    %v3932 = vld [vmem:[#allocation9 + $0x148] sm:$0xff]
    %v3933 = vld [vmem:[#allocation9 + $0x150] sm:$0xff]
    %v3934 = vld [vmem:[#allocation9 + $0x158] sm:$0xff]
    %v3935 = vld [vmem:[#allocation9 + $0x160] sm:$0xff]
    %v3936 = vld [vmem:[#allocation9 + $0x168] sm:$0xff]
    %v3937 = vld [vmem:[#allocation9 + $0x170] sm:$0xff]
    %v3938 = vld [vmem:[#allocation9 + $0x178] sm:$0xff]
    %v3939 = vld [vmem:[#allocation9 + $0x180] sm:$0xff]
    %v3940 = vld [vmem:[#allocation9 + $0x188] sm:$0xff]
    %v3941 = vld [vmem:[#allocation9 + $0x190] sm:$0xff]
    %v3942 = vld [vmem:[#allocation9 + $0x198] sm:$0xff]
    %v3943 = vld [vmem:[#allocation9 + $0x1a0] sm:$0xff]
    %v3944 = vld [vmem:[#allocation9 + $0x1a8] sm:$0xff]
    %v3945 = vld [vmem:[#allocation9 + $0x1b0] sm:$0xff]
    %v3946 = vld [vmem:[#allocation9 + $0x1b8] sm:$0xff]
    %v3947 = vld [vmem:[#allocation9 + $0x1c0] sm:$0xff]
    %v3948 = vld [vmem:[#allocation9 + $0x1c8] sm:$0xff]
    %v3949 = vld [vmem:[#allocation9 + $0x1d0] sm:$0xff]
    %v3950 = vld [vmem:[#allocation9 + $0x1d8] sm:$0xff]
    %v3951 = vld [vmem:[#allocation9 + $0x1e0] sm:$0xff]
    %v3952 = vld [vmem:[#allocation9 + $0x1e8] sm:$0xff]
    %v3953 = vld [vmem:[#allocation9 + $0x1f0] sm:$0xff]
    %v3954 = vld [vmem:[#allocation9 + $0x1f8] sm:$0xff]
    %3955 = vmatprep.subr.mxu0 %v3892
    %3956 = vmatpush1.msra.mxu0 %v3891
    %3957 = vmatprep.subr.mxu0 %v3896
    %3958 = vmatpush1.msra.mxu0 %v3895
    %3959 = vmatprep.subr.mxu0 %v3900
    %3960 = vmatpush1.msra.mxu0 %v3899
    %3961 = vmatprep.subr.mxu0 %v3904
    %3962 = vmatpush1.msra.mxu0 %v3903
    %3963 = vmatprep.subr.mxu0 %v3908
    %3964 = vmatpush1.msra.mxu0 %v3907
    %3965 = vmatprep.subr.mxu0 %v3912
    %3966 = vmatpush1.msra.mxu0 %v3911
    %3967 = vmatprep.subr.mxu0 %v3916
    %3968 = vmatpush1.msra.mxu0 %v3915
    %3969 = vmatprep.subr.mxu0 %v3920
    %3970 = vmatpush1.msra.mxu0 %v3919
    %3971 = vmatprep.subr.mxu0 %v3924
    %3972 = vmatpush1.msra.mxu0 %v3923
    %3973 = vmatprep.subr.mxu0 %v3928
    %3974 = vmatpush1.msra.mxu0 %v3927
    %3975 = vmatprep.subr.mxu0 %v3932
    %3976 = vmatpush1.msra.mxu0 %v3931
    %3977 = vmatprep.subr.mxu0 %v3936
    %3978 = vmatpush1.msra.mxu0 %v3935
    %3979 = vmatprep.subr.mxu0 %v3940
    %3980 = vmatpush1.msra.mxu0 %v3939
    %3981 = vmatprep.subr.mxu0 %v3944
    %3982 = vmatpush1.msra.mxu0 %v3943
    %3983 = vmatprep.subr.mxu0 %v3948
    %3984 = vmatpush1.msra.mxu0 %v3947
    %3985 = vmatprep.subr.mxu0 %v3952
    %3986 = vmatpush1.msra.mxu0 %v3951
    %3987 = vmatprep.subr.mxu0 0.0
    %3988 = vmatpush1.msra.mxu0 0.0
    %3989 = vmatprep.subr.mxu0 0.0
    %3990 = vmatpush1.msra.mxu0 0.0
    %3991 = vmatprep.subr.mxu0 0.0
    %3992 = vmatpush1.msra.mxu0 0.0
    %3993 = vmatprep.subr.mxu0 0.0
    %3994 = vmatpush1.msra.mxu0 0.0
    %3995 = vmatprep.subr.mxu0 0.0
    %3996 = vmatpush1.msra.mxu0 0.0
    %3997 = vmatprep.subr.mxu0 0.0
    %3998 = vmatpush1.msra.mxu0 0.0
    %3999 = vmatprep.subr.mxu0 0.0
    %4000 = vmatpush1.msra.mxu0 0.0
    %4001 = vmatprep.subr.mxu0 0.0
    %4002 = vmatpush1.msra.mxu0 0.0
    %4003 = vmatprep.subr.mxu0 0.0
    %4004 = vmatpush1.msra.mxu0 0.0
    %4005 = vmatprep.subr.mxu0 0.0
    %4006 = vmatpush1.msra.mxu0 0.0
    %4007 = vmatprep.subr.mxu0 0.0
    %4008 = vmatpush1.msra.mxu0 0.0
    %4009 = vmatprep.subr.mxu0 0.0
    %4010 = vmatpush1.msra.mxu0 0.0
    %4011 = vmatprep.subr.mxu0 0.0
    %4012 = vmatpush1.msra.mxu0 0.0
    %4013 = vmatprep.subr.mxu0 0.0
    %4014 = vmatpush1.msra.mxu0 0.0
    %4015 = vmatprep.subr.mxu0 0.0
    %4016 = vmatpush1.msra.mxu0 0.0
    %4017 = vmatprep.subr.mxu0 0.0
    %4018 = vmatpush1.msra.mxu0 0.0
    %4019 = vmatprep.mubr.f32.mxu0 0.0
    %4020 = vmatmul.mubr.f32.gmra.mrb[0].mxu0 %v3884
    %v4021 = vpop.f32.mrb[0].mxu0
    %v4022 = vadd.f32 0.0, %v4021
    %v4023 = vpop.f32.mrb[0].mxu0
    %v4024 = vadd.f32 0.0, %v4023
    %4025 = vdwg.mxu0
    %4026 = vmatprep.subr.mxu0 %v3894
    %4027 = vmatpush1.msra.mxu0 %v3893
    %4028 = vmatprep.subr.mxu0 %v3898
    %4029 = vmatpush1.msra.mxu0 %v3897
    %4030 = vmatprep.subr.mxu0 %v3902
    %4031 = vmatpush1.msra.mxu0 %v3901
    %4032 = vmatprep.subr.mxu0 %v3906
    %4033 = vmatpush1.msra.mxu0 %v3905
    %4034 = vmatprep.subr.mxu0 %v3910
    %4035 = vmatpush1.msra.mxu0 %v3909
    %4036 = vmatprep.subr.mxu0 %v3914
    %4037 = vmatpush1.msra.mxu0 %v3913
    %4038 = vmatprep.subr.mxu0 %v3918
    %4039 = vmatpush1.msra.mxu0 %v3917
    %4040 = vmatprep.subr.mxu0 %v3922
    %4041 = vmatpush1.msra.mxu0 %v3921
    %4042 = vmatprep.subr.mxu0 %v3926
    %4043 = vmatpush1.msra.mxu0 %v3925
    %4044 = vmatprep.subr.mxu0 %v3930
    %4045 = vmatpush1.msra.mxu0 %v3929
    %4046 = vmatprep.subr.mxu0 %v3934
    %4047 = vmatpush1.msra.mxu0 %v3933
    %4048 = vmatprep.subr.mxu0 %v3938
    %4049 = vmatpush1.msra.mxu0 %v3937
    %4050 = vmatprep.subr.mxu0 %v3942
    %4051 = vmatpush1.msra.mxu0 %v3941
    %4052 = vmatprep.subr.mxu0 %v3946
    %4053 = vmatpush1.msra.mxu0 %v3945
    %4054 = vmatprep.subr.mxu0 %v3950
    %4055 = vmatpush1.msra.mxu0 %v3949
    %4056 = vmatprep.subr.mxu0 %v3954
    %4057 = vmatpush1.msra.mxu0 %v3953
    %4058 = vmatprep.subr.mxu0 0.0
    %4059 = vmatpush1.msra.mxu0 0.0
    %4060 = vmatprep.subr.mxu0 0.0
    %4061 = vmatpush1.msra.mxu0 0.0
    %4062 = vmatprep.subr.mxu0 0.0
    %4063 = vmatpush1.msra.mxu0 0.0
    %4064 = vmatprep.subr.mxu0 0.0
    %4065 = vmatpush1.msra.mxu0 0.0
    %4066 = vmatprep.subr.mxu0 0.0
    %4067 = vmatpush1.msra.mxu0 0.0
    %4068 = vmatprep.subr.mxu0 0.0
    %4069 = vmatpush1.msra.mxu0 0.0
    %4070 = vmatprep.subr.mxu0 0.0
    %4071 = vmatpush1.msra.mxu0 0.0
    %4072 = vmatprep.subr.mxu0 0.0
    %4073 = vmatpush1.msra.mxu0 0.0
    %4074 = vmatprep.subr.mxu0 0.0
    %4075 = vmatpush1.msra.mxu0 0.0
    %4076 = vmatprep.subr.mxu0 0.0
    %4077 = vmatpush1.msra.mxu0 0.0
    %4078 = vmatprep.subr.mxu0 0.0
    %4079 = vmatpush1.msra.mxu0 0.0
    %4080 = vmatprep.subr.mxu0 0.0
    %4081 = vmatpush1.msra.mxu0 0.0
    %4082 = vmatprep.subr.mxu0 0.0
    %4083 = vmatpush1.msra.mxu0 0.0
    %4084 = vmatprep.subr.mxu0 0.0
    %4085 = vmatpush1.msra.mxu0 0.0
    %4086 = vmatprep.subr.mxu0 0.0
    %4087 = vmatpush1.msra.mxu0 0.0
    %4088 = vmatprep.subr.mxu0 0.0
    %4089 = vmatpush1.msra.mxu0 0.0
    %4090 = vmatprep.mubr.f32.mxu0 0.0
    %4091 = vmatmul.mubr.f32.gmra.mrb[0].mxu0 %v3884
    %v4092 = vpop.f32.mrb[0].mxu0
    %v4093 = vadd.f32 0.0, %v4092
    %v4094 = vpop.f32.mrb[0].mxu0
    %v4095 = vadd.f32 0.0, %v4094
    %4096 = vdwg.mxu0
    %v4097 = vadd.f32 %v3887, %v4022
    %v4098 = vadd.f32 %v3888, %v4024
    %v4099 = vadd.f32 %v3889, %v4093
    %v4100 = vadd.f32 %v3890, %v4095
    %v4101 = vmul.f32 %v4097, 0.5
    %v4102 = vmul.f32 %v4098, 0.5
    %v4103 = vmul.f32 %v4099, 0.5
    %v4104 = vtanh.pop %v4101
    %v4105 = vtanh.pop %v4102
    %v4106 = vtanh.pop %v4103
    %v4107 = vmul.f32 %v4104, 0.5
    %v4108 = vmul.f32 %v4105, 0.5
    %v4109 = vmul.f32 %v4106, 0.5
    %v4110 = vadd.f32 %v4107, 0.5
    %v4111 = vadd.f32 %v4108, 0.5
    %v4112 = vadd.f32 %v4109, 0.5
    %v4113 = vtanh.pop %v4100
    %v4114 = vmul.f32 %v4111, %v3882
    %v4115 = vmul.f32 %v4110, %v4113
    %v4116 = vadd.f32 %v4114, %v4115
    %v4117 = vtanh.pop %v4116
    %v4118 = vmul.f32 %v4112, %v4117
    %4119 = vst.msk [vmem:[#allocation4 + $0x28] sm:$0xff] %vm635, %v4118
    %4120 = vst.msk [vmem:[#allocation4 + $0x10] sm:$0xff] %vm637, %v4118
    %v4121 = vld [vmem:[#allocation2 + $0xc0] sm:$0xff]
    %v4122 = vld [vmem:[#allocation2 + $0xc8] sm:$0xff]
    %v4123 = vld [vmem:[#allocation2 + $0xd0] sm:$0xff]
    %v4124 = vld [vmem:[#allocation2 + $0xd8] sm:$0xff]
    %v4125 = vld [vmem:[#allocation9] sm:$0xff]
    %v4126 = vld [vmem:[#allocation9 + $0x8] sm:$0xff]
    %v4127 = vld [vmem:[#allocation9 + $0x10] sm:$0xff]
    %v4128 = vld [vmem:[#allocation9 + $0x18] sm:$0xff]
    %v4129 = vld [vmem:[#allocation9 + $0x20] sm:$0xff]
    %v4130 = vld [vmem:[#allocation9 + $0x28] sm:$0xff]
    %v4131 = vld [vmem:[#allocation9 + $0x30] sm:$0xff]
    %v4132 = vld [vmem:[#allocation9 + $0x38] sm:$0xff]
    %v4133 = vld [vmem:[#allocation9 + $0x40] sm:$0xff]
    %v4134 = vld [vmem:[#allocation9 + $0x48] sm:$0xff]
    %v4135 = vld [vmem:[#allocation9 + $0x50] sm:$0xff]
    %v4136 = vld [vmem:[#allocation9 + $0x58] sm:$0xff]
    %v4137 = vld [vmem:[#allocation9 + $0x60] sm:$0xff]
    %v4138 = vld [vmem:[#allocation9 + $0x68] sm:$0xff]
    %v4139 = vld [vmem:[#allocation9 + $0x70] sm:$0xff]
    %v4140 = vld [vmem:[#allocation9 + $0x78] sm:$0xff]
    %v4141 = vld [vmem:[#allocation9 + $0x80] sm:$0xff]
    %v4142 = vld [vmem:[#allocation9 + $0x88] sm:$0xff]
    %v4143 = vld [vmem:[#allocation9 + $0x90] sm:$0xff]
    %v4144 = vld [vmem:[#allocation9 + $0x98] sm:$0xff]
    %v4145 = vld [vmem:[#allocation9 + $0xa0] sm:$0xff]
    %v4146 = vld [vmem:[#allocation9 + $0xa8] sm:$0xff]
    %v4147 = vld [vmem:[#allocation9 + $0xb0] sm:$0xff]
    %v4148 = vld [vmem:[#allocation9 + $0xb8] sm:$0xff]
    %v4149 = vld [vmem:[#allocation9 + $0xc0] sm:$0xff]
    %v4150 = vld [vmem:[#allocation9 + $0xc8] sm:$0xff]
    %v4151 = vld [vmem:[#allocation9 + $0xd0] sm:$0xff]
    %v4152 = vld [vmem:[#allocation9 + $0xd8] sm:$0xff]
    %v4153 = vld [vmem:[#allocation9 + $0xe0] sm:$0xff]
    %v4154 = vld [vmem:[#allocation9 + $0xe8] sm:$0xff]
    %v4155 = vld [vmem:[#allocation9 + $0xf0] sm:$0xff]
    %v4156 = vld [vmem:[#allocation9 + $0xf8] sm:$0xff]
    %v4157 = vld [vmem:[#allocation9 + $0x100] sm:$0xff]
    %v4158 = vld [vmem:[#allocation9 + $0x108] sm:$0xff]
    %v4159 = vld [vmem:[#allocation9 + $0x110] sm:$0xff]
    %v4160 = vld [vmem:[#allocation9 + $0x118] sm:$0xff]
    %v4161 = vld [vmem:[#allocation9 + $0x120] sm:$0xff]
    %v4162 = vld [vmem:[#allocation9 + $0x128] sm:$0xff]
    %v4163 = vld [vmem:[#allocation9 + $0x130] sm:$0xff]
    %v4164 = vld [vmem:[#allocation9 + $0x138] sm:$0xff]
    %v4165 = vld [vmem:[#allocation9 + $0x140] sm:$0xff]
    %v4166 = vld [vmem:[#allocation9 + $0x148] sm:$0xff]
    %v4167 = vld [vmem:[#allocation9 + $0x150] sm:$0xff]
    %v4168 = vld [vmem:[#allocation9 + $0x158] sm:$0xff]
    %v4169 = vld [vmem:[#allocation9 + $0x160] sm:$0xff]
    %v4170 = vld [vmem:[#allocation9 + $0x168] sm:$0xff]
    %v4171 = vld [vmem:[#allocation9 + $0x170] sm:$0xff]
    %v4172 = vld [vmem:[#allocation9 + $0x178] sm:$0xff]
    %v4173 = vld [vmem:[#allocation9 + $0x180] sm:$0xff]
    %v4174 = vld [vmem:[#allocation9 + $0x188] sm:$0xff]
    %v4175 = vld [vmem:[#allocation9 + $0x190] sm:$0xff]
    %v4176 = vld [vmem:[#allocation9 + $0x198] sm:$0xff]
    %v4177 = vld [vmem:[#allocation9 + $0x1a0] sm:$0xff]
    %v4178 = vld [vmem:[#allocation9 + $0x1a8] sm:$0xff]
    %v4179 = vld [vmem:[#allocation9 + $0x1b0] sm:$0xff]
    %v4180 = vld [vmem:[#allocation9 + $0x1b8] sm:$0xff]
    %v4181 = vld [vmem:[#allocation9 + $0x1c0] sm:$0xff]
    %v4182 = vld [vmem:[#allocation9 + $0x1c8] sm:$0xff]
    %v4183 = vld [vmem:[#allocation9 + $0x1d0] sm:$0xff]
    %v4184 = vld [vmem:[#allocation9 + $0x1d8] sm:$0xff]
    %v4185 = vld [vmem:[#allocation9 + $0x1e0] sm:$0xff]
    %v4186 = vld [vmem:[#allocation9 + $0x1e8] sm:$0xff]
    %v4187 = vld [vmem:[#allocation9 + $0x1f0] sm:$0xff]
    %v4188 = vld [vmem:[#allocation9 + $0x1f8] sm:$0xff]
    %4189 = vmatprep.subr.mxu0 %v4126
    %4190 = vmatpush1.msra.mxu0 %v4125
    %4191 = vmatprep.subr.mxu0 %v4130
    %4192 = vmatpush1.msra.mxu0 %v4129
    %4193 = vmatprep.subr.mxu0 %v4134
    %4194 = vmatpush1.msra.mxu0 %v4133
    %4195 = vmatprep.subr.mxu0 %v4138
    %4196 = vmatpush1.msra.mxu0 %v4137
    %4197 = vmatprep.subr.mxu0 %v4142
    %4198 = vmatpush1.msra.mxu0 %v4141
    %4199 = vmatprep.subr.mxu0 %v4146
    %4200 = vmatpush1.msra.mxu0 %v4145
    %4201 = vmatprep.subr.mxu0 %v4150
    %4202 = vmatpush1.msra.mxu0 %v4149
    %4203 = vmatprep.subr.mxu0 %v4154
    %4204 = vmatpush1.msra.mxu0 %v4153
    %4205 = vmatprep.subr.mxu0 %v4158
    %4206 = vmatpush1.msra.mxu0 %v4157
    %4207 = vmatprep.subr.mxu0 %v4162
    %4208 = vmatpush1.msra.mxu0 %v4161
    %4209 = vmatprep.subr.mxu0 %v4166
    %4210 = vmatpush1.msra.mxu0 %v4165
    %4211 = vmatprep.subr.mxu0 %v4170
    %4212 = vmatpush1.msra.mxu0 %v4169
    %4213 = vmatprep.subr.mxu0 %v4174
    %4214 = vmatpush1.msra.mxu0 %v4173
    %4215 = vmatprep.subr.mxu0 %v4178
    %4216 = vmatpush1.msra.mxu0 %v4177
    %4217 = vmatprep.subr.mxu0 %v4182
    %4218 = vmatpush1.msra.mxu0 %v4181
    %4219 = vmatprep.subr.mxu0 %v4186
    %4220 = vmatpush1.msra.mxu0 %v4185
    %4221 = vmatprep.subr.mxu0 0.0
    %4222 = vmatpush1.msra.mxu0 0.0
    %4223 = vmatprep.subr.mxu0 0.0
    %4224 = vmatpush1.msra.mxu0 0.0
    %4225 = vmatprep.subr.mxu0 0.0
    %4226 = vmatpush1.msra.mxu0 0.0
    %4227 = vmatprep.subr.mxu0 0.0
    %4228 = vmatpush1.msra.mxu0 0.0
    %4229 = vmatprep.subr.mxu0 0.0
    %4230 = vmatpush1.msra.mxu0 0.0
    %4231 = vmatprep.subr.mxu0 0.0
    %4232 = vmatpush1.msra.mxu0 0.0
    %4233 = vmatprep.subr.mxu0 0.0
    %4234 = vmatpush1.msra.mxu0 0.0
    %4235 = vmatprep.subr.mxu0 0.0
    %4236 = vmatpush1.msra.mxu0 0.0
    %4237 = vmatprep.subr.mxu0 0.0
    %4238 = vmatpush1.msra.mxu0 0.0
    %4239 = vmatprep.subr.mxu0 0.0
    %4240 = vmatpush1.msra.mxu0 0.0
    %4241 = vmatprep.subr.mxu0 0.0
    %4242 = vmatpush1.msra.mxu0 0.0
    %4243 = vmatprep.subr.mxu0 0.0
    %4244 = vmatpush1.msra.mxu0 0.0
    %4245 = vmatprep.subr.mxu0 0.0
    %4246 = vmatpush1.msra.mxu0 0.0
    %4247 = vmatprep.subr.mxu0 0.0
    %4248 = vmatpush1.msra.mxu0 0.0
    %4249 = vmatprep.subr.mxu0 0.0
    %4250 = vmatpush1.msra.mxu0 0.0
    %4251 = vmatprep.subr.mxu0 0.0
    %4252 = vmatpush1.msra.mxu0 0.0
    %4253 = vmatprep.mubr.f32.mxu0 0.0
    %4254 = vmatmul.mubr.f32.gmra.mrb[0].mxu0 %v4118
    %v4255 = vpop.f32.mrb[0].mxu0
    %v4256 = vadd.f32 0.0, %v4255
    %v4257 = vpop.f32.mrb[0].mxu0
    %v4258 = vadd.f32 0.0, %v4257
    %4259 = vdwg.mxu0
    %4260 = vmatprep.subr.mxu0 %v4128
    %4261 = vmatpush1.msra.mxu0 %v4127
    %4262 = vmatprep.subr.mxu0 %v4132
    %4263 = vmatpush1.msra.mxu0 %v4131
    %4264 = vmatprep.subr.mxu0 %v4136
    %4265 = vmatpush1.msra.mxu0 %v4135
    %4266 = vmatprep.subr.mxu0 %v4140
    %4267 = vmatpush1.msra.mxu0 %v4139
    %4268 = vmatprep.subr.mxu0 %v4144
    %4269 = vmatpush1.msra.mxu0 %v4143
    %4270 = vmatprep.subr.mxu0 %v4148
    %4271 = vmatpush1.msra.mxu0 %v4147
    %4272 = vmatprep.subr.mxu0 %v4152
    %4273 = vmatpush1.msra.mxu0 %v4151
    %4274 = vmatprep.subr.mxu0 %v4156
    %4275 = vmatpush1.msra.mxu0 %v4155
    %4276 = vmatprep.subr.mxu0 %v4160
    %4277 = vmatpush1.msra.mxu0 %v4159
    %4278 = vmatprep.subr.mxu0 %v4164
    %4279 = vmatpush1.msra.mxu0 %v4163
    %4280 = vmatprep.subr.mxu0 %v4168
    %4281 = vmatpush1.msra.mxu0 %v4167
    %4282 = vmatprep.subr.mxu0 %v4172
    %4283 = vmatpush1.msra.mxu0 %v4171
    %4284 = vmatprep.subr.mxu0 %v4176
    %4285 = vmatpush1.msra.mxu0 %v4175
    %4286 = vmatprep.subr.mxu0 %v4180
    %4287 = vmatpush1.msra.mxu0 %v4179
    %4288 = vmatprep.subr.mxu0 %v4184
    %4289 = vmatpush1.msra.mxu0 %v4183
    %4290 = vmatprep.subr.mxu0 %v4188
    %4291 = vmatpush1.msra.mxu0 %v4187
    %4292 = vmatprep.subr.mxu0 0.0
    %4293 = vmatpush1.msra.mxu0 0.0
    %4294 = vmatprep.subr.mxu0 0.0
    %4295 = vmatpush1.msra.mxu0 0.0
    %4296 = vmatprep.subr.mxu0 0.0
    %4297 = vmatpush1.msra.mxu0 0.0
    %4298 = vmatprep.subr.mxu0 0.0
    %4299 = vmatpush1.msra.mxu0 0.0
    %4300 = vmatprep.subr.mxu0 0.0
    %4301 = vmatpush1.msra.mxu0 0.0
    %4302 = vmatprep.subr.mxu0 0.0
    %4303 = vmatpush1.msra.mxu0 0.0
    %4304 = vmatprep.subr.mxu0 0.0
    %4305 = vmatpush1.msra.mxu0 0.0
    %4306 = vmatprep.subr.mxu0 0.0
    %4307 = vmatpush1.msra.mxu0 0.0
    %4308 = vmatprep.subr.mxu0 0.0
    %4309 = vmatpush1.msra.mxu0 0.0
    %4310 = vmatprep.subr.mxu0 0.0
    %4311 = vmatpush1.msra.mxu0 0.0
    %4312 = vmatprep.subr.mxu0 0.0
    %4313 = vmatpush1.msra.mxu0 0.0
    %4314 = vmatprep.subr.mxu0 0.0
    %4315 = vmatpush1.msra.mxu0 0.0
    %4316 = vmatprep.subr.mxu0 0.0
    %4317 = vmatpush1.msra.mxu0 0.0
    %4318 = vmatprep.subr.mxu0 0.0
    %4319 = vmatpush1.msra.mxu0 0.0
    %4320 = vmatprep.subr.mxu0 0.0
    %4321 = vmatpush1.msra.mxu0 0.0
    %4322 = vmatprep.subr.mxu0 0.0
    %4323 = vmatpush1.msra.mxu0 0.0
    %4324 = vmatprep.mubr.f32.mxu0 0.0
    %4325 = vmatmul.mubr.f32.gmra.mrb[0].mxu0 %v4118
    %v4326 = vpop.f32.mrb[0].mxu0
    %v4327 = vadd.f32 0.0, %v4326
    %v4328 = vpop.f32.mrb[0].mxu0
    %v4329 = vadd.f32 0.0, %v4328
    %4330 = vdwg.mxu0
    %v4331 = vadd.f32 %v4121, %v4256
    %v4332 = vadd.f32 %v4122, %v4258
    %v4333 = vadd.f32 %v4123, %v4327
    %v4334 = vadd.f32 %v4124, %v4329
    %v4335 = vmul.f32 %v4331, 0.5
    %v4336 = vmul.f32 %v4332, 0.5
    %v4337 = vmul.f32 %v4333, 0.5
    %v4338 = vtanh.pop %v4335
    %v4339 = vtanh.pop %v4336
    %v4340 = vtanh.pop %v4337
    %v4341 = vmul.f32 %v4338, 0.5
    %v4342 = vmul.f32 %v4339, 0.5
    %v4343 = vmul.f32 %v4340, 0.5
    %v4344 = vadd.f32 %v4341, 0.5
    %v4345 = vadd.f32 %v4342, 0.5
    %v4346 = vadd.f32 %v4343, 0.5
    %v4347 = vtanh.pop %v4334
    %v4348 = vmul.f32 %v4345, %v4116
    %v4349 = vmul.f32 %v4344, %v4347
    %v4350 = vadd.f32 %v4348, %v4349
    %v4351 = vtanh.pop %v4350
    %v4352 = vmul.f32 %v4346, %v4351
    %4353 = vst.msk [vmem:[#allocation4 + $0x30] sm:$0xff] %vm635, %v4352
    %4354 = vst.msk [vmem:[#allocation4 + $0x8] sm:$0xff] %vm637, %v4352
    %v4355 = vld [vmem:[#allocation2 + $0xe0] sm:$0xff]
    %v4356 = vld [vmem:[#allocation2 + $0xe8] sm:$0xff]
    %v4357 = vld [vmem:[#allocation2 + $0xf0] sm:$0xff]
    %v4358 = vld [vmem:[#allocation2 + $0xf8] sm:$0xff]
    %v4359 = vld [vmem:[#allocation9] sm:$0xff]
    %v4360 = vld [vmem:[#allocation9 + $0x8] sm:$0xff]
    %v4361 = vld [vmem:[#allocation9 + $0x10] sm:$0xff]
    %v4362 = vld [vmem:[#allocation9 + $0x18] sm:$0xff]
    %v4363 = vld [vmem:[#allocation9 + $0x20] sm:$0xff]
    %v4364 = vld [vmem:[#allocation9 + $0x28] sm:$0xff]
    %v4365 = vld [vmem:[#allocation9 + $0x30] sm:$0xff]
    %v4366 = vld [vmem:[#allocation9 + $0x38] sm:$0xff]
    %v4367 = vld [vmem:[#allocation9 + $0x40] sm:$0xff]
    %v4368 = vld [vmem:[#allocation9 + $0x48] sm:$0xff]
    %v4369 = vld [vmem:[#allocation9 + $0x50] sm:$0xff]
    %v4370 = vld [vmem:[#allocation9 + $0x58] sm:$0xff]
    %v4371 = vld [vmem:[#allocation9 + $0x60] sm:$0xff]
    %v4372 = vld [vmem:[#allocation9 + $0x68] sm:$0xff]
    %v4373 = vld [vmem:[#allocation9 + $0x70] sm:$0xff]
    %v4374 = vld [vmem:[#allocation9 + $0x78] sm:$0xff]
    %v4375 = vld [vmem:[#allocation9 + $0x80] sm:$0xff]
    %v4376 = vld [vmem:[#allocation9 + $0x88] sm:$0xff]
    %v4377 = vld [vmem:[#allocation9 + $0x90] sm:$0xff]
    %v4378 = vld [vmem:[#allocation9 + $0x98] sm:$0xff]
    %v4379 = vld [vmem:[#allocation9 + $0xa0] sm:$0xff]
    %v4380 = vld [vmem:[#allocation9 + $0xa8] sm:$0xff]
    %v4381 = vld [vmem:[#allocation9 + $0xb0] sm:$0xff]
    %v4382 = vld [vmem:[#allocation9 + $0xb8] sm:$0xff]
    %v4383 = vld [vmem:[#allocation9 + $0xc0] sm:$0xff]
    %v4384 = vld [vmem:[#allocation9 + $0xc8] sm:$0xff]
    %v4385 = vld [vmem:[#allocation9 + $0xd0] sm:$0xff]
    %v4386 = vld [vmem:[#allocation9 + $0xd8] sm:$0xff]
    %v4387 = vld [vmem:[#allocation9 + $0xe0] sm:$0xff]
    %v4388 = vld [vmem:[#allocation9 + $0xe8] sm:$0xff]
    %v4389 = vld [vmem:[#allocation9 + $0xf0] sm:$0xff]
    %v4390 = vld [vmem:[#allocation9 + $0xf8] sm:$0xff]
    %v4391 = vld [vmem:[#allocation9 + $0x100] sm:$0xff]
    %v4392 = vld [vmem:[#allocation9 + $0x108] sm:$0xff]
    %v4393 = vld [vmem:[#allocation9 + $0x110] sm:$0xff]
    %v4394 = vld [vmem:[#allocation9 + $0x118] sm:$0xff]
    %v4395 = vld [vmem:[#allocation9 + $0x120] sm:$0xff]
    %v4396 = vld [vmem:[#allocation9 + $0x128] sm:$0xff]
    %v4397 = vld [vmem:[#allocation9 + $0x130] sm:$0xff]
    %v4398 = vld [vmem:[#allocation9 + $0x138] sm:$0xff]
    %v4399 = vld [vmem:[#allocation9 + $0x140] sm:$0xff]
    %v4400 = vld [vmem:[#allocation9 + $0x148] sm:$0xff]
    %v4401 = vld [vmem:[#allocation9 + $0x150] sm:$0xff]
    %v4402 = vld [vmem:[#allocation9 + $0x158] sm:$0xff]
    %v4403 = vld [vmem:[#allocation9 + $0x160] sm:$0xff]
    %v4404 = vld [vmem:[#allocation9 + $0x168] sm:$0xff]
    %v4405 = vld [vmem:[#allocation9 + $0x170] sm:$0xff]
    %v4406 = vld [vmem:[#allocation9 + $0x178] sm:$0xff]
    %v4407 = vld [vmem:[#allocation9 + $0x180] sm:$0xff]
    %v4408 = vld [vmem:[#allocation9 + $0x188] sm:$0xff]
    %v4409 = vld [vmem:[#allocation9 + $0x190] sm:$0xff]
    %v4410 = vld [vmem:[#allocation9 + $0x198] sm:$0xff]
    %v4411 = vld [vmem:[#allocation9 + $0x1a0] sm:$0xff]
    %v4412 = vld [vmem:[#allocation9 + $0x1a8] sm:$0xff]
    %v4413 = vld [vmem:[#allocation9 + $0x1b0] sm:$0xff]
    %v4414 = vld [vmem:[#allocation9 + $0x1b8] sm:$0xff]
    %v4415 = vld [vmem:[#allocation9 + $0x1c0] sm:$0xff]
    %v4416 = vld [vmem:[#allocation9 + $0x1c8] sm:$0xff]
    %v4417 = vld [vmem:[#allocation9 + $0x1d0] sm:$0xff]
    %v4418 = vld [vmem:[#allocation9 + $0x1d8] sm:$0xff]
    %v4419 = vld [vmem:[#allocation9 + $0x1e0] sm:$0xff]
    %v4420 = vld [vmem:[#allocation9 + $0x1e8] sm:$0xff]
    %v4421 = vld [vmem:[#allocation9 + $0x1f0] sm:$0xff]
    %v4422 = vld [vmem:[#allocation9 + $0x1f8] sm:$0xff]
    %4423 = vmatprep.subr.mxu0 %v4360
    %4424 = vmatpush1.msra.mxu0 %v4359
    %4425 = vmatprep.subr.mxu0 %v4364
    %4426 = vmatpush1.msra.mxu0 %v4363
    %4427 = vmatprep.subr.mxu0 %v4368
    %4428 = vmatpush1.msra.mxu0 %v4367
    %4429 = vmatprep.subr.mxu0 %v4372
    %4430 = vmatpush1.msra.mxu0 %v4371
    %4431 = vmatprep.subr.mxu0 %v4376
    %4432 = vmatpush1.msra.mxu0 %v4375
    %4433 = vmatprep.subr.mxu0 %v4380
    %4434 = vmatpush1.msra.mxu0 %v4379
    %4435 = vmatprep.subr.mxu0 %v4384
    %4436 = vmatpush1.msra.mxu0 %v4383
    %4437 = vmatprep.subr.mxu0 %v4388
    %4438 = vmatpush1.msra.mxu0 %v4387
    %4439 = vmatprep.subr.mxu0 %v4392
    %4440 = vmatpush1.msra.mxu0 %v4391
    %4441 = vmatprep.subr.mxu0 %v4396
    %4442 = vmatpush1.msra.mxu0 %v4395
    %4443 = vmatprep.subr.mxu0 %v4400
    %4444 = vmatpush1.msra.mxu0 %v4399
    %4445 = vmatprep.subr.mxu0 %v4404
    %4446 = vmatpush1.msra.mxu0 %v4403
    %4447 = vmatprep.subr.mxu0 %v4408
    %4448 = vmatpush1.msra.mxu0 %v4407
    %4449 = vmatprep.subr.mxu0 %v4412
    %4450 = vmatpush1.msra.mxu0 %v4411
    %4451 = vmatprep.subr.mxu0 %v4416
    %4452 = vmatpush1.msra.mxu0 %v4415
    %4453 = vmatprep.subr.mxu0 %v4420
    %4454 = vmatpush1.msra.mxu0 %v4419
    %4455 = vmatprep.subr.mxu0 0.0
    %4456 = vmatpush1.msra.mxu0 0.0
    %4457 = vmatprep.subr.mxu0 0.0
    %4458 = vmatpush1.msra.mxu0 0.0
    %4459 = vmatprep.subr.mxu0 0.0
    %4460 = vmatpush1.msra.mxu0 0.0
    %4461 = vmatprep.subr.mxu0 0.0
    %4462 = vmatpush1.msra.mxu0 0.0
    %4463 = vmatprep.subr.mxu0 0.0
    %4464 = vmatpush1.msra.mxu0 0.0
    %4465 = vmatprep.subr.mxu0 0.0
    %4466 = vmatpush1.msra.mxu0 0.0
    %4467 = vmatprep.subr.mxu0 0.0
    %4468 = vmatpush1.msra.mxu0 0.0
    %4469 = vmatprep.subr.mxu0 0.0
    %4470 = vmatpush1.msra.mxu0 0.0
    %4471 = vmatprep.subr.mxu0 0.0
    %4472 = vmatpush1.msra.mxu0 0.0
    %4473 = vmatprep.subr.mxu0 0.0
    %4474 = vmatpush1.msra.mxu0 0.0
    %4475 = vmatprep.subr.mxu0 0.0
    %4476 = vmatpush1.msra.mxu0 0.0
    %4477 = vmatprep.subr.mxu0 0.0
    %4478 = vmatpush1.msra.mxu0 0.0
    %4479 = vmatprep.subr.mxu0 0.0
    %4480 = vmatpush1.msra.mxu0 0.0
    %4481 = vmatprep.subr.mxu0 0.0
    %4482 = vmatpush1.msra.mxu0 0.0
    %4483 = vmatprep.subr.mxu0 0.0
    %4484 = vmatpush1.msra.mxu0 0.0
    %4485 = vmatprep.subr.mxu0 0.0
    %4486 = vmatpush1.msra.mxu0 0.0
    %4487 = vmatprep.mubr.f32.mxu0 0.0
    %4488 = vmatmul.mubr.f32.gmra.mrb[0].mxu0 %v4352
    %v4489 = vpop.f32.mrb[0].mxu0
    %v4490 = vadd.f32 0.0, %v4489
    %v4491 = vpop.f32.mrb[0].mxu0
    %v4492 = vadd.f32 0.0, %v4491
    %4493 = vdwg.mxu0
    %4494 = vmatprep.subr.mxu0 %v4362
    %4495 = vmatpush1.msra.mxu0 %v4361
    %4496 = vmatprep.subr.mxu0 %v4366
    %4497 = vmatpush1.msra.mxu0 %v4365
    %4498 = vmatprep.subr.mxu0 %v4370
    %4499 = vmatpush1.msra.mxu0 %v4369
    %4500 = vmatprep.subr.mxu0 %v4374
    %4501 = vmatpush1.msra.mxu0 %v4373
    %4502 = vmatprep.subr.mxu0 %v4378
    %4503 = vmatpush1.msra.mxu0 %v4377
    %4504 = vmatprep.subr.mxu0 %v4382
    %4505 = vmatpush1.msra.mxu0 %v4381
    %4506 = vmatprep.subr.mxu0 %v4386
    %4507 = vmatpush1.msra.mxu0 %v4385
    %4508 = vmatprep.subr.mxu0 %v4390
    %4509 = vmatpush1.msra.mxu0 %v4389
    %4510 = vmatprep.subr.mxu0 %v4394
    %4511 = vmatpush1.msra.mxu0 %v4393
    %4512 = vmatprep.subr.mxu0 %v4398
    %4513 = vmatpush1.msra.mxu0 %v4397
    %4514 = vmatprep.subr.mxu0 %v4402
    %4515 = vmatpush1.msra.mxu0 %v4401
    %4516 = vmatprep.subr.mxu0 %v4406
    %4517 = vmatpush1.msra.mxu0 %v4405
    %4518 = vmatprep.subr.mxu0 %v4410
    %4519 = vmatpush1.msra.mxu0 %v4409
    %4520 = vmatprep.subr.mxu0 %v4414
    %4521 = vmatpush1.msra.mxu0 %v4413
    %4522 = vmatprep.subr.mxu0 %v4418
    %4523 = vmatpush1.msra.mxu0 %v4417
    %4524 = vmatprep.subr.mxu0 %v4422
    %4525 = vmatpush1.msra.mxu0 %v4421
    %4526 = vmatprep.subr.mxu0 0.0
    %4527 = vmatpush1.msra.mxu0 0.0
    %4528 = vmatprep.subr.mxu0 0.0
    %4529 = vmatpush1.msra.mxu0 0.0
    %4530 = vmatprep.subr.mxu0 0.0
    %4531 = vmatpush1.msra.mxu0 0.0
    %4532 = vmatprep.subr.mxu0 0.0
    %4533 = vmatpush1.msra.mxu0 0.0
    %4534 = vmatprep.subr.mxu0 0.0
    %4535 = vmatpush1.msra.mxu0 0.0
    %4536 = vmatprep.subr.mxu0 0.0
    %4537 = vmatpush1.msra.mxu0 0.0
    %4538 = vmatprep.subr.mxu0 0.0
    %4539 = vmatpush1.msra.mxu0 0.0
    %4540 = vmatprep.subr.mxu0 0.0
    %4541 = vmatpush1.msra.mxu0 0.0
    %4542 = vmatprep.subr.mxu0 0.0
    %4543 = vmatpush1.msra.mxu0 0.0
    %4544 = vmatprep.subr.mxu0 0.0
    %4545 = vmatpush1.msra.mxu0 0.0
    %4546 = vmatprep.subr.mxu0 0.0
    %4547 = vmatpush1.msra.mxu0 0.0
    %4548 = vmatprep.subr.mxu0 0.0
    %4549 = vmatpush1.msra.mxu0 0.0
    %4550 = vmatprep.subr.mxu0 0.0
    %4551 = vmatpush1.msra.mxu0 0.0
    %4552 = vmatprep.subr.mxu0 0.0
    %4553 = vmatpush1.msra.mxu0 0.0
    %4554 = vmatprep.subr.mxu0 0.0
    %4555 = vmatpush1.msra.mxu0 0.0
    %4556 = vmatprep.subr.mxu0 0.0
    %4557 = vmatpush1.msra.mxu0 0.0
    %4558 = vmatprep.mubr.f32.mxu0 0.0
    %4559 = vmatmul.mubr.f32.gmra.mrb[0].mxu0 %v4352
    %v4560 = vpop.f32.mrb[0].mxu0
    %v4561 = vadd.f32 0.0, %v4560
    %v4562 = vpop.f32.mrb[0].mxu0
    %v4563 = vadd.f32 0.0, %v4562
    %4564 = vdwg.mxu0
    %v4565 = vadd.f32 %v4355, %v4490
    %v4566 = vadd.f32 %v4356, %v4492
    %v4567 = vadd.f32 %v4357, %v4561
    %v4568 = vadd.f32 %v4358, %v4563
    %v4569 = vmul.f32 %v4565, 0.5
    %v4570 = vmul.f32 %v4566, 0.5
    %v4571 = vmul.f32 %v4567, 0.5
    %v4572 = vtanh.pop %v4569
    %v4573 = vtanh.pop %v4570
    %v4574 = vtanh.pop %v4571
    %v4575 = vmul.f32 %v4572, 0.5
    %v4576 = vmul.f32 %v4573, 0.5
    %v4577 = vmul.f32 %v4574, 0.5
    %v4578 = vadd.f32 %v4575, 0.5
    %v4579 = vadd.f32 %v4576, 0.5
    %v4580 = vadd.f32 %v4577, 0.5
    %v4581 = vtanh.pop %v4568
    %v4582 = vmul.f32 %v4579, %v4350
    %v4583 = vmul.f32 %v4578, %v4581
    %v4584 = vadd.f32 %v4582, %v4583
    %v4585 = vtanh.pop %v4584
    %v4586 = vmul.f32 %v4580, %v4585
    %4587 = vst.msk [vmem:[#allocation4 + $0x38] sm:$0xff] %vm635, %v4586
    %4588 = vst.msk [vmem:[#allocation4] sm:$0xff] %vm637, %v4586
    %v4589 = vld [vmem:[#allocation4] sm:$0xff]
    %v4590 = vld [vmem:[#allocation4 + $0x8] sm:$0xff]
    %v4591 = vld [vmem:[#allocation4 + $0x10] sm:$0xff]
    %v4592 = vld [vmem:[#allocation4 + $0x18] sm:$0xff]
    %v4593 = vld [vmem:[#allocation4 + $0x20] sm:$0xff]
    %v4594 = vld [vmem:[#allocation4 + $0x28] sm:$0xff]
    %v4595 = vld [vmem:[#allocation4 + $0x30] sm:$0xff]
    %v4596 = vld [vmem:[#allocation4 + $0x38] sm:$0xff]
    %v4597 = vld [vmem:[%s7] sm:$0xff]
    %v4598 = vld [vmem:[%s7 + $0x8] sm:$0xff]
    %v4599 = vld [vmem:[%s7 + $0x10] sm:$0xff]
    %v4600 = vld [vmem:[%s7 + $0x18] sm:$0xff]
    %v4601 = vld [vmem:[%s7 + $0x20] sm:$0xff]
    %v4602 = vld [vmem:[%s7 + $0x28] sm:$0xff]
    %v4603 = vld [vmem:[%s7 + $0x30] sm:$0xff]
    %v4604 = vld [vmem:[%s7 + $0x38] sm:$0xff]
    %v4605 = vld [vmem:[%s7 + $0x40] sm:$0xff]
    %v4606 = vld [vmem:[%s7 + $0x48] sm:$0xff]
    %v4607 = vld [vmem:[%s7 + $0x50] sm:$0xff]
    %v4608 = vld [vmem:[%s7 + $0x58] sm:$0xff]
    %v4609 = vld [vmem:[%s7 + $0x60] sm:$0xff]
    %v4610 = vld [vmem:[%s7 + $0x68] sm:$0xff]
    %v4611 = vld [vmem:[%s7 + $0x70] sm:$0xff]
    %v4612 = vld [vmem:[%s7 + $0x78] sm:$0xff]
    %v4613 = vld [vmem:[%s8] sm:$0x1]
    %v4615 = vlaneseq
    %v4616 = vshrl.u32 %v4615, 7
    %v4617 = vsub.s32 0, %v4616
    %v4618 = vrot.slane %v4613, %v4617
    %4620 = vmatprep.subr.mxu0 0.0
    %4621 = vmatpush1.msra.mxu0 %v4597
    %4622 = vmatprep.subr.mxu0 0.0
    %4623 = vmatpush1.msra.mxu0 %v4598
    %4624 = vmatprep.subr.mxu0 0.0
    %4625 = vmatpush1.msra.mxu0 %v4599
    %4626 = vmatprep.subr.mxu0 0.0
    %4627 = vmatpush1.msra.mxu0 %v4600
    %4628 = vmatprep.subr.mxu0 0.0
    %4629 = vmatpush1.msra.mxu0 %v4601
    %4630 = vmatprep.subr.mxu0 0.0
    %4631 = vmatpush1.msra.mxu0 %v4602
    %4632 = vmatprep.subr.mxu0 0.0
    %4633 = vmatpush1.msra.mxu0 %v4603
    %4634 = vmatprep.subr.mxu0 0.0
    %4635 = vmatpush1.msra.mxu0 %v4604
    %4636 = vmatprep.subr.mxu0 0.0
    %4637 = vmatpush1.msra.mxu0 %v4605
    %4638 = vmatprep.subr.mxu0 0.0
    %4639 = vmatpush1.msra.mxu0 %v4606
    %4640 = vmatprep.subr.mxu0 0.0
    %4641 = vmatpush1.msra.mxu0 %v4607
    %4642 = vmatprep.subr.mxu0 0.0
    %4643 = vmatpush1.msra.mxu0 %v4608
    %4644 = vmatprep.subr.mxu0 0.0
    %4645 = vmatpush1.msra.mxu0 %v4609
    %4646 = vmatprep.subr.mxu0 0.0
    %4647 = vmatpush1.msra.mxu0 %v4610
    %4648 = vmatprep.subr.mxu0 0.0
    %4649 = vmatpush1.msra.mxu0 %v4611
    %4650 = vmatprep.subr.mxu0 0.0
    %4651 = vmatpush1.msra.mxu0 %v4612
    %4652 = vmatprep.subr.mxu0 0.0
    %4653 = vmatpush1.msra.mxu0 0.0
    %4654 = vmatprep.subr.mxu0 0.0
    %4655 = vmatpush1.msra.mxu0 0.0
    %4656 = vmatprep.subr.mxu0 0.0
    %4657 = vmatpush1.msra.mxu0 0.0
    %4658 = vmatprep.subr.mxu0 0.0
    %4659 = vmatpush1.msra.mxu0 0.0
    %4660 = vmatprep.subr.mxu0 0.0
    %4661 = vmatpush1.msra.mxu0 0.0
    %4662 = vmatprep.subr.mxu0 0.0
    %4663 = vmatpush1.msra.mxu0 0.0
    %4664 = vmatprep.subr.mxu0 0.0
    %4665 = vmatpush1.msra.mxu0 0.0
    %4666 = vmatprep.subr.mxu0 0.0
    %4667 = vmatpush1.msra.mxu0 0.0
    %4668 = vmatprep.subr.mxu0 0.0
    %4669 = vmatpush1.msra.mxu0 0.0
    %4670 = vmatprep.subr.mxu0 0.0
    %4671 = vmatpush1.msra.mxu0 0.0
    %4672 = vmatprep.subr.mxu0 0.0
    %4673 = vmatpush1.msra.mxu0 0.0
    %4674 = vmatprep.subr.mxu0 0.0
    %4675 = vmatpush1.msra.mxu0 0.0
    %4676 = vmatprep.subr.mxu0 0.0
    %4677 = vmatpush1.msra.mxu0 0.0
    %4678 = vmatprep.subr.mxu0 0.0
    %4679 = vmatpush1.msra.mxu0 0.0
    %4680 = vmatprep.subr.mxu0 0.0
    %4681 = vmatpush1.msra.mxu0 0.0
    %4682 = vmatprep.subr.mxu0 0.0
    %4683 = vmatpush1.msra.mxu0 0.0
    %4684 = vmatprep.mubr.f32.mxu0 0.0
    %4685 = vmatmul.mubr.f32.gmra.mrb[0].mxu0 %v4589
    %v4686 = vpop.f32.mrb[0].mxu0
    %v4687 = vadd.f32 %v4618, %v4686
    %v4688 = vpop.f32.mrb[0].mxu0
    %4689 = vmatprep.mubr.f32.mxu0 0.0
    %4690 = vmatmul.mubr.f32.gmra.mrb[0].mxu0 %v4590
    %v4691 = vpop.f32.mrb[0].mxu0
    %v4692 = vadd.f32 %v4618, %v4691
    %v4693 = vpop.f32.mrb[0].mxu0
    %4694 = vmatprep.mubr.f32.mxu0 0.0
    %4695 = vmatmul.mubr.f32.gmra.mrb[0].mxu0 %v4591
    %v4696 = vpop.f32.mrb[0].mxu0
    %v4697 = vadd.f32 %v4618, %v4696
    %v4698 = vpop.f32.mrb[0].mxu0
    %4699 = vmatprep.mubr.f32.mxu0 0.0
    %4700 = vmatmul.mubr.f32.gmra.mrb[0].mxu0 %v4592
    %v4701 = vpop.f32.mrb[0].mxu0
    %v4702 = vadd.f32 %v4618, %v4701
    %v4703 = vpop.f32.mrb[0].mxu0
    %4704 = vmatprep.mubr.f32.mxu0 0.0
    %4705 = vmatmul.mubr.f32.gmra.mrb[0].mxu0 %v4593
    %v4706 = vpop.f32.mrb[0].mxu0
    %v4707 = vadd.f32 %v4618, %v4706
    %v4708 = vpop.f32.mrb[0].mxu0
    %4709 = vmatprep.mubr.f32.mxu0 0.0
    %4710 = vmatmul.mubr.f32.gmra.mrb[0].mxu0 %v4594
    %v4711 = vpop.f32.mrb[0].mxu0
    %v4712 = vadd.f32 %v4618, %v4711
    %v4713 = vpop.f32.mrb[0].mxu0
    %4714 = vmatprep.mubr.f32.mxu0 0.0
    %4715 = vmatmul.mubr.f32.gmra.mrb[0].mxu0 %v4595
    %v4716 = vpop.f32.mrb[0].mxu0
    %v4717 = vadd.f32 %v4618, %v4716
    %v4718 = vpop.f32.mrb[0].mxu0
    %4719 = vmatprep.mubr.f32.mxu0 0.0
    %4720 = vmatmul.mubr.f32.gmra.mrb[0].mxu0 %v4596
    %v4721 = vpop.f32.mrb[0].mxu0
    %v4722 = vadd.f32 %v4618, %v4721
    %v4723 = vpop.f32.mrb[0].mxu0
    %4724 = vdwg.mxu0
    %vm4725 = vcmask 23552
    %4726 = vst.msk [vmem:[%s9] sm:$0xff] %vm4725, %v4687
    %4727 = vst.msk [vmem:[%s9 + $0x8] sm:$0xff] %vm4725, %v4692
    %4728 = vst.msk [vmem:[%s9 + $0x10] sm:$0xff] %vm4725, %v4697
    %4729 = vst.msk [vmem:[%s9 + $0x18] sm:$0xff] %vm4725, %v4702
    %4730 = vst.msk [vmem:[%s9 + $0x20] sm:$0xff] %vm4725, %v4707
    %4731 = vst.msk [vmem:[%s9 + $0x28] sm:$0xff] %vm4725, %v4712
    %4732 = vst.msk [vmem:[%s9 + $0x30] sm:$0xff] %vm4725, %v4717
    %4733 = vst.msk [vmem:[%s9 + $0x38] sm:$0xff] %vm4725, %v4722
    // Predicated region
    $region50: #{bilstm_model.1} parent=1 // pred_check
      _
    $region51: #{bilstm_model.1} parent=1 // pred_check_branch
      %4735 = sbr.rel (0) target = $region53
    $region52: #{bilstm_model.1} parent=1 // pred_region
      _
    $region53: #{bilstm_model.1} parent=1 // pred_fallthru
      _
    // Predicated region
    $region54: #{bilstm_model.1} parent=1 // pred_check
      _
    $region55: #{bilstm_model.1} parent=1 // pred_check_branch
      %4737 = sbr.rel (0) target = $region57
    $region56: #{bilstm_model.1} parent=1 // pred_region
      _
    $region57: #{bilstm_model.1} parent=1 // pred_fallthru
      _
    %4738 = vsyncpa [#allocation6], 1
    %4739 = vsyncpa [#allocation8], 1

</llo_original>
